<compile_context>
chip_gen: v7x
topology: tpu7x:2x2x1
jax: 0.10.0
libtpu: 0.0.40
codegen_flags: <defaults>
</compile_context>

<pallas_src>
import functools

import numpy as np

import jax
import jax.numpy as jnp
from jax.experimental import pallas as pl
from jax.experimental.pallas import tpu as pltpu

EPS = 1e-5      # PyTorch BatchNorm2d default
LANES = 128     # channel dims are zero-padded to the vreg lane width


def _bn_train(y, gamma, beta, count, stat_mask=None):
    """Training-mode BatchNorm from accumulated moments sum(y), sum(y*y).

    `count` is the true number of pixels contributing to the statistics.
    Rows that must be excluded are either exactly zero (no mask needed) or
    are zeroed inside the sums via `stat_mask`.
    """
    ym = y if stat_mask is None else y * stat_mask
    s1 = jnp.sum(ym, axis=0, keepdims=True)
    s2 = jnp.sum(ym * y, axis=0, keepdims=True)
    inv = 1.0 / count
    mean = s1 * inv
    var = jnp.maximum(s2 * inv - mean * mean, 0.0)    # biased variance
    return (y - mean) * jax.lax.rsqrt(var + EPS) * gamma + beta


def _bottleneck_kernel(x_ref, min_ref, mout_ref,
                       w1_ref, w2_ref, w3_ref, ws_ref,
                       g1_ref, be1_ref, g2_ref, be2_ref,
                       g3_ref, be3_ref, gs_ref, bes_ref,
                       o_ref, z1_ref,
                       *, wpad, pad_rows, rows_out, count1, count2,
                       has_shortcut):
    f32 = jnp.float32

    # ---- conv1 (1x1) + bn1 + relu over the whole extended flat grid -------
    # Halo / spatial-pad rows of x are exactly zero and there is no bias, so
    # their conv output is exactly zero and the unmasked sums equal the sums
    # over the N*H*W real pixels (count1).
    y1 = jnp.dot(x_ref[...], w1_ref[...], preferred_element_type=f32)
    z1 = jnp.maximum(_bn_train(y1, g1_ref[...], be1_ref[...], count1), 0.0)
    z1 = z1 * min_ref[...]        # re-zero pad rows => conv2 sees zero padding
    z1_ref[...] = z1.astype(jnp.bfloat16)

    # ---- conv2 (3x3, pad=1; stride folded into the valid-output mask) -----
    # Tap (ky,kx) of the 3x3 stencil is a contiguous row-shifted window of the
    # flattened padded NHWC grid (shift = (ky-1)*Wpad + (kx-1)); 9 accumulating
    # MXU dots replace the im2col.  Non-valid output rows hold junk but are
    # excluded from the BN statistics and discarded by the wrapper.
    mout = mout_ref[...]
    acc = None
    for ky in range(3):
        for kx in range(3):
            off = pad_rows + (ky - 1) * wpad + (kx - 1)
            tap = z1_ref[pl.ds(off, rows_out), :]
            d = jnp.dot(tap, w2_ref[3 * ky + kx], preferred_element_type=f32)
            acc = d if acc is None else acc + d
    z2 = jnp.maximum(_bn_train(acc, g2_ref[...], be2_ref[...], count2, mout), 0.0)

    # ---- conv3 (1x1) + bn3 (no relu yet) -----------------------------------
    y3 = jnp.dot(z2.astype(jnp.bfloat16), w3_ref[...], preferred_element_type=f32)
    z3 = _bn_train(y3, g3_ref[...], be3_ref[...], count2, mout)

    # ---- shortcut: strided 1x1 conv + bn, or identity ----------------------
    xs = x_ref[pl.ds(pad_rows, rows_out), :]
    if has_shortcut:
        ysc = jnp.dot(xs, ws_ref[...], preferred_element_type=f32)
        sc = _bn_train(ysc, gs_ref[...], bes_ref[...], count2, mout)
    else:
        sc = xs.astype(f32)

    # ---- residual add + final relu; lane-dense (rows, 128) f32 store ------
    o_ref[...] = jnp.maximum(z3 + sc, 0.0)


def _pad_matrix(w):
    out = jnp.zeros((LANES, LANES), jnp.float32)
    return out.at[:w.shape[0], :w.shape[1]].set(w).astype(jnp.bfloat16)


def _pad_vector(v):
    out = jnp.zeros((1, LANES), jnp.float32)
    return out.at[0, :v.shape[0]].set(v.astype(jnp.float32))


@functools.partial(jax.jit, static_argnames=("stride",))
def bottleneck_forward(x_nchw, params, stride=1):
    """Forward of the Bottleneck block. Input/output are NCHW (PyTorch layout)."""
    N, Cin, H, W = x_nchw.shape
    planes = params["w1"].shape[1]
    cout = params["w3"].shape[1]
    assert Cin <= LANES and planes <= LANES and cout <= LANES

    Hp, Wp = H + 2, W + 2                       # spatially zero-padded grid
    Ho = (H - 1) // stride + 1                  # conv2 / shortcut output size
    Wo = (W - 1) // stride + 1
    rows = N * Hp * Wp                          # flattened padded grid
    pad_rows = -((Wp + 1) // -8) * 8            # halo so 3x3 taps stay in-bounds
    rows_big = rows + 2 * pad_rows
    has_shortcut = (stride != 1) or (Cin != cout)

    # ---- XLA-side layout glue: NCHW -> zero-padded flat NHWC, 128 lanes ----
    x = jnp.transpose(x_nchw, (0, 2, 3, 1)).astype(jnp.float32)
    x = jnp.pad(x, ((0, 0), (1, 1), (1, 1), (0, LANES - Cin)))
    x = x.reshape(rows, LANES)
    x = jnp.pad(x, ((pad_rows, pad_rows), (0, 0))).astype(jnp.bfloat16)

    # ---- static masks (host-built constants) -------------------------------
    interior = np.zeros((N, Hp, Wp, 1), np.float32)
    interior[:, 1:H + 1, 1:W + 1, :] = 1.0
    mask_in = np.zeros((rows_big, 1), np.float32)
    mask_in[pad_rows:pad_rows + rows, :] = interior.reshape(rows, 1)

    valid = np.zeros((N, Hp, Wp, 1), np.float32)
    valid[:, 1:1 + stride * (Ho - 1) + 1:stride,
             1:1 + stride * (Wo - 1) + 1:stride, :] = 1.0
    mask_out = valid.reshape(rows, 1)

    # ---- lane-dense (128x128) bf16 weights; (1,128) f32 BN affine ----------
    # NOTE: conv biases (params["b*"]) are intentionally unused: each conv is
    # followed by a training-mode BN whose mean subtraction cancels them.
    w1 = _pad_matrix(params["w1"])
    w2 = jnp.zeros((9, LANES, LANES), jnp.float32)
    w2 = w2.at[:, :planes, :planes].set(params["w2"].reshape(9, planes, planes))
    w2 = w2.astype(jnp.bfloat16)
    w3 = _pad_matrix(params["w3"])
    g1, be1 = _pad_vector(params["g1"]), _pad_vector(params["be1"])
    g2, be2 = _pad_vector(params["g2"]), _pad_vector(params["be2"])
    g3, be3 = _pad_vector(params["g3"]), _pad_vector(params["be3"])
    if has_shortcut:
        ws = _pad_matrix(params["ws"])
        gs, bes = _pad_vector(params["gs"]), _pad_vector(params["bes"])
    else:
        ws = jnp.zeros((LANES, LANES), jnp.bfloat16)
        gs = jnp.zeros((1, LANES), jnp.float32)
        bes = jnp.zeros((1, LANES), jnp.float32)

    kernel = functools.partial(
        _bottleneck_kernel,
        wpad=Wp, pad_rows=pad_rows, rows_out=rows,
        count1=float(N * H * W), count2=float(N * Ho * Wo),
        has_shortcut=has_shortcut)

    out_flat = pl.pallas_call(
        kernel,
        out_shape=jax.ShapeDtypeStruct((rows, LANES), jnp.float32),
        scratch_shapes=[pltpu.VMEM((rows_big, LANES), jnp.bfloat16)],
    )(x, jnp.asarray(mask_in), jnp.asarray(mask_out),
      w1, w2, w3, ws, g1, be1, g2, be2, g3, be3, gs, bes)

    # ---- XLA-side layout glue: pick valid output pixels, back to NCHW ------
    out = out_flat.reshape(N, Hp, Wp, LANES)
    out = out[:, 1:1 + stride * (Ho - 1) + 1:stride,
                 1:1 + stride * (Wo - 1) + 1:stride, :cout]
    return jnp.transpose(out, (0, 3, 1, 2))


def init_params(key, in_planes=4, planes=4, expansion=4):
    """Deterministic synthetic parameters (PyTorch layouts pre-transposed).

    w1: (in_planes, planes)        == conv1.weight (planes,in,1,1) transposed
    w2: (3, 3, planes, planes)     == conv2.weight (out,in,3,3) -> (ky,kx,in,out)
    w3: (planes, expansion*planes)
    ws: (in_planes, expansion*planes)   shortcut 1x1 conv
    b*: conv biases — kept for spec fidelity but mathematically cancelled by
        the training-mode BatchNorm that follows every conv.
    g*/be*: BatchNorm affine gamma / beta.
    """
    cout = expansion * planes
    ks = jax.random.split(key, 8)

    def w(k, shape):
        return jax.random.normal(k, shape, jnp.float32) * 0.1

    p = {}
    p["w1"], p["b1"] = w(ks[0], (in_planes, planes)), w(ks[1], (planes,))
    p["g1"], p["be1"] = jnp.ones((planes,), jnp.float32), jnp.zeros((planes,), jnp.float32)

    p["w2"], p["b2"] = w(ks[2], (3, 3, planes, planes)), w(ks[3], (planes,))
    p["g2"], p["be2"] = jnp.ones((planes,), jnp.float32), jnp.zeros((planes,), jnp.float32)

    p["w3"], p["b3"] = w(ks[4], (planes, cout)), w(ks[5], (cout,))
    p["g3"], p["be3"] = jnp.ones((cout,), jnp.float32), jnp.zeros((cout,), jnp.float32)

    p["ws"], p["bs"] = w(ks[6], (in_planes, cout)), w(ks[7], (cout,))
    p["gs"], p["bes"] = jnp.ones((cout,), jnp.float32), jnp.zeros((cout,), jnp.float32)
    return p


if __name__ == "__main__":
    key = jax.random.PRNGKey(0)
    kx, kp = jax.random.split(key)

    # Small shapes consistent with the module: N=2, in_planes=4, 16x16 spatial,
    # planes=4 -> output channels = expansion*planes = 16, stride=1.
    x = jax.random.normal(kx, (2, 4, 16, 16), jnp.float32)   # NCHW, like PyTorch
    params = init_params(kp, in_planes=4, planes=4)

    out = bottleneck_forward(x, params, stride=1)
    out = jax.block_until_ready(out)
    assert out.shape == (2, 16, 16, 16), out.shape
    assert bool(jnp.all(jnp.isfinite(out)))
    assert bool(jnp.all(out >= 0.0))  # final ReLU
    print("KERNEL_OK")
</pallas_src>

<mosaic_0001>
module attributes {stable_mosaic.version = 11 : i64} {
  func.func @_bottleneck_kernel(%arg0: memref<696x128xbf16, #tpu.memory_space<vmem>>, %arg1: memref<696x1xf32, #tpu.memory_space<vmem>>, %arg2: memref<648x1xf32, #tpu.memory_space<vmem>>, %arg3: memref<128x128xbf16, #tpu.memory_space<vmem>>, %arg4: memref<9x128x128xbf16, #tpu.memory_space<vmem>>, %arg5: memref<128x128xbf16, #tpu.memory_space<vmem>>, %arg6: memref<128x128xbf16, #tpu.memory_space<vmem>>, %arg7: memref<1x128xf32, #tpu.memory_space<vmem>>, %arg8: memref<1x128xf32, #tpu.memory_space<vmem>>, %arg9: memref<1x128xf32, #tpu.memory_space<vmem>>, %arg10: memref<1x128xf32, #tpu.memory_space<vmem>>, %arg11: memref<1x128xf32, #tpu.memory_space<vmem>>, %arg12: memref<1x128xf32, #tpu.memory_space<vmem>>, %arg13: memref<1x128xf32, #tpu.memory_space<vmem>>, %arg14: memref<1x128xf32, #tpu.memory_space<vmem>>, %arg15: memref<648x128xf32, #tpu.memory_space<vmem>>, %arg16: memref<696x128xbf16, #tpu.memory_space<vmem>>) attributes {dimension_semantics = [], scalar_prefetch = 0 : i64, scratch_operands = 1 : i64, tpu.core_type = #tpu.core_type<tc>} {
    %c0 = arith.constant 0 : index
    %c0_0 = arith.constant 0 : index
    %0 = vector.load %arg0[%c0, %c0_0] : memref<696x128xbf16, #tpu.memory_space<vmem>>, vector<696x128xbf16>
    %c0_1 = arith.constant 0 : index
    %c0_2 = arith.constant 0 : index
    %1 = vector.load %arg3[%c0_1, %c0_2] : memref<128x128xbf16, #tpu.memory_space<vmem>>, vector<128x128xbf16>
    %cst = arith.constant dense<0.000000e+00> : vector<696x128xf32>
    %2 = tpu.matmul %0, %1, %cst {dimension_numbers = #tpu.dot_dimension_numbers<[1], [0], [0], [1], [0, 0, 1, 1], [], []>} : vector<696x128xbf16>, vector<128x128xbf16>, vector<696x128xf32> -> vector<696x128xf32>
    %c0_3 = arith.constant 0 : index
    %c0_4 = arith.constant 0 : index
    %3 = vector.load %arg7[%c0_3, %c0_4] : memref<1x128xf32, #tpu.memory_space<vmem>>, vector<1x128xf32>
    %c0_5 = arith.constant 0 : index
    %c0_6 = arith.constant 0 : index
    %4 = vector.load %arg8[%c0_5, %c0_6] : memref<1x128xf32, #tpu.memory_space<vmem>>, vector<1x128xf32>
    %cst_7 = arith.constant dense<0.000000e+00> : vector<128xf32>
    %5 = vector.multi_reduction <add>, %2, %cst_7 [0] : vector<696x128xf32> to vector<128xf32>
    %6 = vector.shape_cast %5 : vector<128xf32> to vector<1x128xf32>
    %7 = arith.mulf %2, %2 : vector<696x128xf32>
    %cst_8 = arith.constant dense<0.000000e+00> : vector<128xf32>
    %8 = vector.multi_reduction <add>, %7, %cst_8 [0] : vector<696x128xf32> to vector<128xf32>
    %9 = vector.shape_cast %8 : vector<128xf32> to vector<1x128xf32>
    %cst_9 = arith.constant 0.001953125 : f32
    %10 = vector.broadcast %cst_9 : f32 to vector<1x128xf32>
    %11 = arith.mulf %6, %10 : vector<1x128xf32>
    %cst_10 = arith.constant 0.001953125 : f32
    %12 = vector.broadcast %cst_10 : f32 to vector<1x128xf32>
    %13 = arith.mulf %9, %12 : vector<1x128xf32>
    %14 = arith.mulf %11, %11 : vector<1x128xf32>
    %15 = arith.subf %13, %14 : vector<1x128xf32>
    %cst_11 = arith.constant 0.000000e+00 : f32
    %16 = vector.broadcast %cst_11 : f32 to vector<1x128xf32>
    %17 = arith.maximumf %15, %16 : vector<1x128xf32>
    %18 = vector.broadcast %11 : vector<1x128xf32> to vector<696x128xf32>
    %19 = arith.subf %2, %18 : vector<696x128xf32>
    %cst_12 = arith.constant 9.99999974E-6 : f32
    %20 = vector.broadcast %cst_12 : f32 to vector<1x128xf32>
    %21 = arith.addf %17, %20 : vector<1x128xf32>
    %22 = math.rsqrt %21 : vector<1x128xf32>
    %23 = vector.broadcast %22 : vector<1x128xf32> to vector<696x128xf32>
    %24 = arith.mulf %19, %23 : vector<696x128xf32>
    %25 = vector.broadcast %3 : vector<1x128xf32> to vector<696x128xf32>
    %26 = arith.mulf %24, %25 : vector<696x128xf32>
    %27 = vector.broadcast %4 : vector<1x128xf32> to vector<696x128xf32>
    %28 = arith.addf %26, %27 : vector<696x128xf32>
    %cst_13 = arith.constant 0.000000e+00 : f32
    %29 = vector.broadcast %cst_13 : f32 to vector<696x128xf32>
    %30 = arith.maximumf %28, %29 : vector<696x128xf32>
    %c0_14 = arith.constant 0 : index
    %c0_15 = arith.constant 0 : index
    %31 = vector.load %arg1[%c0_14, %c0_15] : memref<696x1xf32, #tpu.memory_space<vmem>>, vector<696x1xf32>
    %32 = vector.broadcast %31 : vector<696x1xf32> to vector<696x128xf32>
    %33 = arith.mulf %30, %32 : vector<696x128xf32>
    %34 = arith.truncf %33 : vector<696x128xf32> to vector<696x128xbf16>
    %c0_16 = arith.constant 0 : index
    %c0_17 = arith.constant 0 : index
    %35 = vector.load %arg16[%c0_16, %c0_17] : memref<696x128xbf16, #tpu.memory_space<vmem>>, vector<696x128xbf16>
    tpu.vector_store %arg16[%c0_16, %c0_17], %34 {strides = array<i32>} : memref<696x128xbf16, #tpu.memory_space<vmem>>, vector<696x128xbf16>,
    %c0_18 = arith.constant 0 : index
    %c0_19 = arith.constant 0 : index
    %36 = vector.load %arg2[%c0_18, %c0_19] : memref<648x1xf32, #tpu.memory_space<vmem>>, vector<648x1xf32>
    %c5 = arith.constant 5 : index
    %c0_20 = arith.constant 0 : index
    %37 = vector.load %arg16[%c5, %c0_20] : memref<696x128xbf16, #tpu.memory_space<vmem>>, vector<648x128xbf16>
    %c0_21 = arith.constant 0 : index
    %c0_22 = arith.constant 0 : index
    %c0_23 = arith.constant 0 : index
    %38 = vector.load %arg4[%c0_21, %c0_22, %c0_23] : memref<9x128x128xbf16, #tpu.memory_space<vmem>>, vector<1x128x128xbf16>
    %39 = vector.shape_cast %38 : vector<1x128x128xbf16> to vector<128x128xbf16>
    %cst_24 = arith.constant dense<0.000000e+00> : vector<648x128xf32>
    %40 = tpu.matmul %37, %39, %cst_24 {dimension_numbers = #tpu.dot_dimension_numbers<[1], [0], [0], [1], [0, 0, 1, 1], [], []>} : vector<648x128xbf16>, vector<128x128xbf16>, vector<648x128xf32> -> vector<648x128xf32>
    %c6 = arith.constant 6 : index
    %c0_25 = arith.constant 0 : index
    %41 = vector.load %arg16[%c6, %c0_25] : memref<696x128xbf16, #tpu.memory_space<vmem>>, vector<648x128xbf16>
    %c1 = arith.constant 1 : index
    %c0_26 = arith.constant 0 : index
    %c0_27 = arith.constant 0 : index
    %42 = vector.load %arg4[%c1, %c0_26, %c0_27] : memref<9x128x128xbf16, #tpu.memory_space<vmem>>, vector<1x128x128xbf16>
    %43 = vector.shape_cast %42 : vector<1x128x128xbf16> to vector<128x128xbf16>
    %cst_28 = arith.constant dense<0.000000e+00> : vector<648x128xf32>
    %44 = tpu.matmul %41, %43, %cst_28 {dimension_numbers = #tpu.dot_dimension_numbers<[1], [0], [0], [1], [0, 0, 1, 1], [], []>} : vector<648x128xbf16>, vector<128x128xbf16>, vector<648x128xf32> -> vector<648x128xf32>
    %45 = arith.addf %40, %44 : vector<648x128xf32>
    %c7 = arith.constant 7 : index
    %c0_29 = arith.constant 0 : index
    %46 = vector.load %arg16[%c7, %c0_29] : memref<696x128xbf16, #tpu.memory_space<vmem>>, vector<648x128xbf16>
    %c2 = arith.constant 2 : index
    %c0_30 = arith.constant 0 : index
    %c0_31 = arith.constant 0 : index
    %47 = vector.load %arg4[%c2, %c0_30, %c0_31] : memref<9x128x128xbf16, #tpu.memory_space<vmem>>, vector<1x128x128xbf16>
    %48 = vector.shape_cast %47 : vector<1x128x128xbf16> to vector<128x128xbf16>
    %cst_32 = arith.constant dense<0.000000e+00> : vector<648x128xf32>
    %49 = tpu.matmul %46, %48, %cst_32 {dimension_numbers = #tpu.dot_dimension_numbers<[1], [0], [0], [1], [0, 0, 1, 1], [], []>} : vector<648x128xbf16>, vector<128x128xbf16>, vector<648x128xf32> -> vector<648x128xf32>
    %50 = arith.addf %45, %49 : vector<648x128xf32>
    %c23 = arith.constant 23 : index
    %c0_33 = arith.constant 0 : index
    %51 = vector.load %arg16[%c23, %c0_33] : memref<696x128xbf16, #tpu.memory_space<vmem>>, vector<648x128xbf16>
    %c3 = arith.constant 3 : index
    %c0_34 = arith.constant 0 : index
    %c0_35 = arith.constant 0 : index
    %52 = vector.load %arg4[%c3, %c0_34, %c0_35] : memref<9x128x128xbf16, #tpu.memory_space<vmem>>, vector<1x128x128xbf16>
    %53 = vector.shape_cast %52 : vector<1x128x128xbf16> to vector<128x128xbf16>
    %cst_36 = arith.constant dense<0.000000e+00> : vector<648x128xf32>
    %54 = tpu.matmul %51, %53, %cst_36 {dimension_numbers = #tpu.dot_dimension_numbers<[1], [0], [0], [1], [0, 0, 1, 1], [], []>} : vector<648x128xbf16>, vector<128x128xbf16>, vector<648x128xf32> -> vector<648x128xf32>
    %55 = arith.addf %50, %54 : vector<648x128xf32>
    %c24 = arith.constant 24 : index
    %c0_37 = arith.constant 0 : index
    %56 = vector.load %arg16[%c24, %c0_37] : memref<696x128xbf16, #tpu.memory_space<vmem>>, vector<648x128xbf16>
    %c4 = arith.constant 4 : index
    %c0_38 = arith.constant 0 : index
    %c0_39 = arith.constant 0 : index
    %57 = vector.load %arg4[%c4, %c0_38, %c0_39] : memref<9x128x128xbf16, #tpu.memory_space<vmem>>, vector<1x128x128xbf16>
    %58 = vector.shape_cast %57 : vector<1x128x128xbf16> to vector<128x128xbf16>
    %cst_40 = arith.constant dense<0.000000e+00> : vector<648x128xf32>
    %59 = tpu.matmul %56, %58, %cst_40 {dimension_numbers = #tpu.dot_dimension_numbers<[1], [0], [0], [1], [0, 0, 1, 1], [], []>} : vector<648x128xbf16>, vector<128x128xbf16>, vector<648x128xf32> -> vector<648x128xf32>
    %60 = arith.addf %55, %59 : vector<648x128xf32>
    %c25 = arith.constant 25 : index
    %c0_41 = arith.constant 0 : index
    %61 = vector.load %arg16[%c25, %c0_41] : memref<696x128xbf16, #tpu.memory_space<vmem>>, vector<648x128xbf16>
    %c5_42 = arith.constant 5 : index
    %c0_43 = arith.constant 0 : index
    %c0_44 = arith.constant 0 : index
    %62 = vector.load %arg4[%c5_42, %c0_43, %c0_44] : memref<9x128x128xbf16, #tpu.memory_space<vmem>>, vector<1x128x128xbf16>
    %63 = vector.shape_cast %62 : vector<1x128x128xbf16> to vector<128x128xbf16>
    %cst_45 = arith.constant dense<0.000000e+00> : vector<648x128xf32>
    %64 = tpu.matmul %61, %63, %cst_45 {dimension_numbers = #tpu.dot_dimension_numbers<[1], [0], [0], [1], [0, 0, 1, 1], [], []>} : vector<648x128xbf16>, vector<128x128xbf16>, vector<648x128xf32> -> vector<648x128xf32>
    %65 = arith.addf %60, %64 : vector<648x128xf32>
    %c41 = arith.constant 41 : index
    %c0_46 = arith.constant 0 : index
    %66 = vector.load %arg16[%c41, %c0_46] : memref<696x128xbf16, #tpu.memory_space<vmem>>, vector<648x128xbf16>
    %c6_47 = arith.constant 6 : index
    %c0_48 = arith.constant 0 : index
    %c0_49 = arith.constant 0 : index
    %67 = vector.load %arg4[%c6_47, %c0_48, %c0_49] : memref<9x128x128xbf16, #tpu.memory_space<vmem>>, vector<1x128x128xbf16>
    %68 = vector.shape_cast %67 : vector<1x128x128xbf16> to vector<128x128xbf16>
    %cst_50 = arith.constant dense<0.000000e+00> : vector<648x128xf32>
    %69 = tpu.matmul %66, %68, %cst_50 {dimension_numbers = #tpu.dot_dimension_numbers<[1], [0], [0], [1], [0, 0, 1, 1], [], []>} : vector<648x128xbf16>, vector<128x128xbf16>, vector<648x128xf32> -> vector<648x128xf32>
    %70 = arith.addf %65, %69 : vector<648x128xf32>
    %c42 = arith.constant 42 : index
    %c0_51 = arith.constant 0 : index
    %71 = vector.load %arg16[%c42, %c0_51] : memref<696x128xbf16, #tpu.memory_space<vmem>>, vector<648x128xbf16>
    %c7_52 = arith.constant 7 : index
    %c0_53 = arith.constant 0 : index
    %c0_54 = arith.constant 0 : index
    %72 = vector.load %arg4[%c7_52, %c0_53, %c0_54] : memref<9x128x128xbf16, #tpu.memory_space<vmem>>, vector<1x128x128xbf16>
    %73 = vector.shape_cast %72 : vector<1x128x128xbf16> to vector<128x128xbf16>
    %cst_55 = arith.constant dense<0.000000e+00> : vector<648x128xf32>
    %74 = tpu.matmul %71, %73, %cst_55 {dimension_numbers = #tpu.dot_dimension_numbers<[1], [0], [0], [1], [0, 0, 1, 1], [], []>} : vector<648x128xbf16>, vector<128x128xbf16>, vector<648x128xf32> -> vector<648x128xf32>
    %75 = arith.addf %70, %74 : vector<648x128xf32>
    %c43 = arith.constant 43 : index
    %c0_56 = arith.constant 0 : index
    %76 = vector.load %arg16[%c43, %c0_56] : memref<696x128xbf16, #tpu.memory_space<vmem>>, vector<648x128xbf16>
    %c8 = arith.constant 8 : index
    %c0_57 = arith.constant 0 : index
    %c0_58 = arith.constant 0 : index
    %77 = vector.load %arg4[%c8, %c0_57, %c0_58] : memref<9x128x128xbf16, #tpu.memory_space<vmem>>, vector<1x128x128xbf16>
    %78 = vector.shape_cast %77 : vector<1x128x128xbf16> to vector<128x128xbf16>
    %cst_59 = arith.constant dense<0.000000e+00> : vector<648x128xf32>
    %79 = tpu.matmul %76, %78, %cst_59 {dimension_numbers = #tpu.dot_dimension_numbers<[1], [0], [0], [1], [0, 0, 1, 1], [], []>} : vector<648x128xbf16>, vector<128x128xbf16>, vector<648x128xf32> -> vector<648x128xf32>
    %80 = arith.addf %75, %79 : vector<648x128xf32>
    %c0_60 = arith.constant 0 : index
    %c0_61 = arith.constant 0 : index
    %81 = vector.load %arg9[%c0_60, %c0_61] : memref<1x128xf32, #tpu.memory_space<vmem>>, vector<1x128xf32>
    %c0_62 = arith.constant 0 : index
    %c0_63 = arith.constant 0 : index
    %82 = vector.load %arg10[%c0_62, %c0_63] : memref<1x128xf32, #tpu.memory_space<vmem>>, vector<1x128xf32>
    %83 = vector.broadcast %36 : vector<648x1xf32> to vector<648x128xf32>
    %84 = arith.mulf %80, %83 : vector<648x128xf32>
    %cst_64 = arith.constant dense<0.000000e+00> : vector<128xf32>
    %85 = vector.multi_reduction <add>, %84, %cst_64 [0] : vector<648x128xf32> to vector<128xf32>
    %86 = vector.shape_cast %85 : vector<128xf32> to vector<1x128xf32>
    %87 = arith.mulf %84, %80 : vector<648x128xf32>
    %cst_65 = arith.constant dense<0.000000e+00> : vector<128xf32>
    %88 = vector.multi_reduction <add>, %87, %cst_65 [0] : vector<648x128xf32> to vector<128xf32>
    %89 = vector.shape_cast %88 : vector<128xf32> to vector<1x128xf32>
    %cst_66 = arith.constant 0.001953125 : f32
    %90 = vector.broadcast %cst_66 : f32 to vector<1x128xf32>
    %91 = arith.mulf %86, %90 : vector<1x128xf32>
    %cst_67 = arith.constant 0.001953125 : f32
    %92 = vector.broadcast %cst_67 : f32 to vector<1x128xf32>
    %93 = arith.mulf %89, %92 : vector<1x128xf32>
    %94 = arith.mulf %91, %91 : vector<1x128xf32>
    %95 = arith.subf %93, %94 : vector<1x128xf32>
    %cst_68 = arith.constant 0.000000e+00 : f32
    %96 = vector.broadcast %cst_68 : f32 to vector<1x128xf32>
    %97 = arith.maximumf %95, %96 : vector<1x128xf32>
    %98 = vector.broadcast %91 : vector<1x128xf32> to vector<648x128xf32>
    %99 = arith.subf %80, %98 : vector<648x128xf32>
    %cst_69 = arith.constant 9.99999974E-6 : f32
    %100 = vector.broadcast %cst_69 : f32 to vector<1x128xf32>
    %101 = arith.addf %97, %100 : vector<1x128xf32>
    %102 = math.rsqrt %101 : vector<1x128xf32>
    %103 = vector.broadcast %102 : vector<1x128xf32> to vector<648x128xf32>
    %104 = arith.mulf %99, %103 : vector<648x128xf32>
    %105 = vector.broadcast %81 : vector<1x128xf32> to vector<648x128xf32>
    %106 = arith.mulf %104, %105 : vector<648x128xf32>
    %107 = vector.broadcast %82 : vector<1x128xf32> to vector<648x128xf32>
    %108 = arith.addf %106, %107 : vector<648x128xf32>
    %cst_70 = arith.constant 0.000000e+00 : f32
    %109 = vector.broadcast %cst_70 : f32 to vector<648x128xf32>
    %110 = arith.maximumf %108, %109 : vector<648x128xf32>
    %111 = arith.truncf %110 : vector<648x128xf32> to vector<648x128xbf16>
    %c0_71 = arith.constant 0 : index
    %c0_72 = arith.constant 0 : index
    %112 = vector.load %arg5[%c0_71, %c0_72] : memref<128x128xbf16, #tpu.memory_space<vmem>>, vector<128x128xbf16>
    %cst_73 = arith.constant dense<0.000000e+00> : vector<648x128xf32>
    %113 = tpu.matmul %111, %112, %cst_73 {dimension_numbers = #tpu.dot_dimension_numbers<[1], [0], [0], [1], [0, 0, 1, 1], [], []>} : vector<648x128xbf16>, vector<128x128xbf16>, vector<648x128xf32> -> vector<648x128xf32>
    %c0_74 = arith.constant 0 : index
    %c0_75 = arith.constant 0 : index
    %114 = vector.load %arg11[%c0_74, %c0_75] : memref<1x128xf32, #tpu.memory_space<vmem>>, vector<1x128xf32>
    %c0_76 = arith.constant 0 : index
    %c0_77 = arith.constant 0 : index
    %115 = vector.load %arg12[%c0_76, %c0_77] : memref<1x128xf32, #tpu.memory_space<vmem>>, vector<1x128xf32>
    %116 = vector.broadcast %36 : vector<648x1xf32> to vector<648x128xf32>
    %117 = arith.mulf %113, %116 : vector<648x128xf32>
    %cst_78 = arith.constant dense<0.000000e+00> : vector<128xf32>
    %118 = vector.multi_reduction <add>, %117, %cst_78 [0] : vector<648x128xf32> to vector<128xf32>
    %119 = vector.shape_cast %118 : vector<128xf32> to vector<1x128xf32>
    %120 = arith.mulf %117, %113 : vector<648x128xf32>
    %cst_79 = arith.constant dense<0.000000e+00> : vector<128xf32>
    %121 = vector.multi_reduction <add>, %120, %cst_79 [0] : vector<648x128xf32> to vector<128xf32>
    %122 = vector.shape_cast %121 : vector<128xf32> to vector<1x128xf32>
    %cst_80 = arith.constant 0.001953125 : f32
    %123 = vector.broadcast %cst_80 : f32 to vector<1x128xf32>
    %124 = arith.mulf %119, %123 : vector<1x128xf32>
    %cst_81 = arith.constant 0.001953125 : f32
    %125 = vector.broadcast %cst_81 : f32 to vector<1x128xf32>
    %126 = arith.mulf %122, %125 : vector<1x128xf32>
    %127 = arith.mulf %124, %124 : vector<1x128xf32>
    %128 = arith.subf %126, %127 : vector<1x128xf32>
    %cst_82 = arith.constant 0.000000e+00 : f32
    %129 = vector.broadcast %cst_82 : f32 to vector<1x128xf32>
    %130 = arith.maximumf %128, %129 : vector<1x128xf32>
    %131 = vector.broadcast %124 : vector<1x128xf32> to vector<648x128xf32>
    %132 = arith.subf %113, %131 : vector<648x128xf32>
    %cst_83 = arith.constant 9.99999974E-6 : f32
    %133 = vector.broadcast %cst_83 : f32 to vector<1x128xf32>
    %134 = arith.addf %130, %133 : vector<1x128xf32>
    %135 = math.rsqrt %134 : vector<1x128xf32>
    %136 = vector.broadcast %135 : vector<1x128xf32> to vector<648x128xf32>
    %137 = arith.mulf %132, %136 : vector<648x128xf32>
    %138 = vector.broadcast %114 : vector<1x128xf32> to vector<648x128xf32>
    %139 = arith.mulf %137, %138 : vector<648x128xf32>
    %140 = vector.broadcast %115 : vector<1x128xf32> to vector<648x128xf32>
    %141 = arith.addf %139, %140 : vector<648x128xf32>
    %c24_84 = arith.constant 24 : index
    %c0_85 = arith.constant 0 : index
    %142 = vector.load %arg0[%c24_84, %c0_85] : memref<696x128xbf16, #tpu.memory_space<vmem>>, vector<648x128xbf16>
    %c0_86 = arith.constant 0 : index
    %c0_87 = arith.constant 0 : index
    %143 = vector.load %arg6[%c0_86, %c0_87] : memref<128x128xbf16, #tpu.memory_space<vmem>>, vector<128x128xbf16>
    %cst_88 = arith.constant dense<0.000000e+00> : vector<648x128xf32>
    %144 = tpu.matmul %142, %143, %cst_88 {dimension_numbers = #tpu.dot_dimension_numbers<[1], [0], [0], [1], [0, 0, 1, 1], [], []>} : vector<648x128xbf16>, vector<128x128xbf16>, vector<648x128xf32> -> vector<648x128xf32>
    %c0_89 = arith.constant 0 : index
    %c0_90 = arith.constant 0 : index
    %145 = vector.load %arg13[%c0_89, %c0_90] : memref<1x128xf32, #tpu.memory_space<vmem>>, vector<1x128xf32>
    %c0_91 = arith.constant 0 : index
    %c0_92 = arith.constant 0 : index
    %146 = vector.load %arg14[%c0_91, %c0_92] : memref<1x128xf32, #tpu.memory_space<vmem>>, vector<1x128xf32>
    %147 = vector.broadcast %36 : vector<648x1xf32> to vector<648x128xf32>
    %148 = arith.mulf %144, %147 : vector<648x128xf32>
    %cst_93 = arith.constant dense<0.000000e+00> : vector<128xf32>
    %149 = vector.multi_reduction <add>, %148, %cst_93 [0] : vector<648x128xf32> to vector<128xf32>
    %150 = vector.shape_cast %149 : vector<128xf32> to vector<1x128xf32>
    %151 = arith.mulf %148, %144 : vector<648x128xf32>
    %cst_94 = arith.constant dense<0.000000e+00> : vector<128xf32>
    %152 = vector.multi_reduction <add>, %151, %cst_94 [0] : vector<648x128xf32> to vector<128xf32>
    %153 = vector.shape_cast %152 : vector<128xf32> to vector<1x128xf32>
    %cst_95 = arith.constant 0.001953125 : f32
    %154 = vector.broadcast %cst_95 : f32 to vector<1x128xf32>
    %155 = arith.mulf %150, %154 : vector<1x128xf32>
    %cst_96 = arith.constant 0.001953125 : f32
    %156 = vector.broadcast %cst_96 : f32 to vector<1x128xf32>
    %157 = arith.mulf %153, %156 : vector<1x128xf32>
    %158 = arith.mulf %155, %155 : vector<1x128xf32>
    %159 = arith.subf %157, %158 : vector<1x128xf32>
    %cst_97 = arith.constant 0.000000e+00 : f32
    %160 = vector.broadcast %cst_97 : f32 to vector<1x128xf32>
    %161 = arith.maximumf %159, %160 : vector<1x128xf32>
    %162 = vector.broadcast %155 : vector<1x128xf32> to vector<648x128xf32>
    %163 = arith.subf %144, %162 : vector<648x128xf32>
    %cst_98 = arith.constant 9.99999974E-6 : f32
    %164 = vector.broadcast %cst_98 : f32 to vector<1x128xf32>
    %165 = arith.addf %161, %164 : vector<1x128xf32>
    %166 = math.rsqrt %165 : vector<1x128xf32>
    %167 = vector.broadcast %166 : vector<1x128xf32> to vector<648x128xf32>
    %168 = arith.mulf %163, %167 : vector<648x128xf32>
    %169 = vector.broadcast %145 : vector<1x128xf32> to vector<648x128xf32>
    %170 = arith.mulf %168, %169 : vector<648x128xf32>
    %171 = vector.broadcast %146 : vector<1x128xf32> to vector<648x128xf32>
    %172 = arith.addf %170, %171 : vector<648x128xf32>
    %173 = arith.addf %141, %172 : vector<648x128xf32>
    %cst_99 = arith.constant 0.000000e+00 : f32
    %174 = vector.broadcast %cst_99 : f32 to vector<648x128xf32>
    %175 = arith.maximumf %173, %174 : vector<648x128xf32>
    %c0_100 = arith.constant 0 : index
    %c0_101 = arith.constant 0 : index
    %176 = vector.load %arg15[%c0_100, %c0_101] : memref<648x128xf32, #tpu.memory_space<vmem>>, vector<648x128xf32>
    tpu.vector_store %arg15[%c0_100, %c0_101], %175 {strides = array<i32>} : memref<648x128xf32, #tpu.memory_space<vmem>>, vector<648x128xf32>,
    return
  }
}

</mosaic_0001>

<llo_original>
// kernel: bottleneck_forward.1
$region0: #{bottleneck_forward.1}
  #allocation0 [shape = 'u32[]', space=smem, size = 0x4, offset = 0x4, fixed_abs, tag = 'smem constant byte address 0x4 - core index']
  #allocation1 [shape = 'u32[144,128]{1,0:T(1,128)}', space=vmem, size = 0x12000, scoped, tag = 'internal scratch']
  #allocation2 [shape = 'bf16[696,128]{1,0:T(8,128)(2,1)}', space=vmem, size = 0x2b800, scoped, tag = 'scratch operand']
  %s0 = inlined_call_operand.vmem [shape: bf16[696,128], index: 0, kind: input, shape index: {}]
  %s1 = inlined_call_operand.vmem [shape: f32[696,1], index: 1, kind: input, shape index: {}]
  %s2 = inlined_call_operand.vmem [shape: f32[648,1], index: 2, kind: input, shape index: {}]
  %s3 = inlined_call_operand.vmem [shape: bf16[128,128], index: 3, kind: input, shape index: {}]
  %s4 = inlined_call_operand.vmem [shape: bf16[9,128,128], index: 4, kind: input, shape index: {}]
  %s5 = inlined_call_operand.vmem [shape: bf16[128,128], index: 5, kind: input, shape index: {}]
  %s6 = inlined_call_operand.vmem [shape: bf16[128,128], index: 6, kind: input, shape index: {}]
  %s7 = inlined_call_operand.vmem [shape: f32[1,128], index: 7, kind: input, shape index: {}]
  %s8 = inlined_call_operand.vmem [shape: f32[1,128], index: 8, kind: input, shape index: {}]
  %s9 = inlined_call_operand.vmem [shape: f32[1,128], index: 9, kind: input, shape index: {}]
  %s10 = inlined_call_operand.vmem [shape: f32[1,128], index: 10, kind: input, shape index: {}]
  %s11 = inlined_call_operand.vmem [shape: f32[1,128], index: 11, kind: input, shape index: {}]
  %s12 = inlined_call_operand.vmem [shape: f32[1,128], index: 12, kind: input, shape index: {}]
  %s13 = inlined_call_operand.vmem [shape: f32[1,128], index: 13, kind: input, shape index: {}]
  %s14 = inlined_call_operand.vmem [shape: f32[1,128], index: 14, kind: input, shape index: {}]
  %s15 = inlined_call_operand.vmem [shape: f32[648,128], index: 15, kind: output, shape index: {}]
  %s16 = sld [smem:[#allocation0]]
  $region70: #{bottleneck_forward.1} parent=0
    _
  %s18 = ssub.s32 1, %s16
  %s19 = scalar_select 0, %s18, %s16
  // Predicated region
  $region2: #{bottleneck_forward.1} parent=0 // pred_check
    _
  $region3: #{bottleneck_forward.1} parent=0 // pred_check_branch
    %21 = sbr.rel (0) target = $region5
  $region4: #{bottleneck_forward.1} parent=0 // pred_region
    _
  $region5: #{bottleneck_forward.1} parent=0 // pred_fallthru
    _
  // Predicated region
  $region6: #{bottleneck_forward.1} parent=0 // pred_check
    _
  $region7: #{bottleneck_forward.1} parent=0 // pred_check_branch
    %23 = sbr.rel (0) target = $region9
  $region8: #{bottleneck_forward.1} parent=0 // pred_region
    _
  $region9: #{bottleneck_forward.1} parent=0 // pred_fallthru
    _
  // Predicated region
  $region10: #{bottleneck_forward.1} parent=0 // pred_check
    _
  $region11: #{bottleneck_forward.1} parent=0 // pred_check_branch
    %25 = sbr.rel (0) target = $region13
  $region12: #{bottleneck_forward.1} parent=0 // pred_region
    _
  $region13: #{bottleneck_forward.1} parent=0 // pred_fallthru
    _
  // Predicated region
  $region14: #{bottleneck_forward.1} parent=0 // pred_check
    _
  $region15: #{bottleneck_forward.1} parent=0 // pred_check_branch
    %27 = sbr.rel (0) target = $region17
  $region16: #{bottleneck_forward.1} parent=0 // pred_region
    _
  $region17: #{bottleneck_forward.1} parent=0 // pred_fallthru
    _
  // Predicated region
  $region18: #{bottleneck_forward.1} parent=0 // pred_check
    _
  $region19: #{bottleneck_forward.1} parent=0 // pred_check_branch
    %29 = sbr.rel (0) target = $region21
  $region20: #{bottleneck_forward.1} parent=0 // pred_region
    _
  $region21: #{bottleneck_forward.1} parent=0 // pred_fallthru
    _
  // Predicated region
  $region22: #{bottleneck_forward.1} parent=0 // pred_check
    _
  $region23: #{bottleneck_forward.1} parent=0 // pred_check_branch
    %31 = sbr.rel (0) target = $region25
  $region24: #{bottleneck_forward.1} parent=0 // pred_region
    _
  $region25: #{bottleneck_forward.1} parent=0 // pred_fallthru
    _
  // Predicated region
  $region26: #{bottleneck_forward.1} parent=0 // pred_check
    _
  $region27: #{bottleneck_forward.1} parent=0 // pred_check_branch
    %33 = sbr.rel (0) target = $region29
  $region28: #{bottleneck_forward.1} parent=0 // pred_region
    _
  $region29: #{bottleneck_forward.1} parent=0 // pred_fallthru
    _
  // Predicated region
  $region30: #{bottleneck_forward.1} parent=0 // pred_check
    _
  $region31: #{bottleneck_forward.1} parent=0 // pred_check_branch
    %35 = sbr.rel (0) target = $region33
  $region32: #{bottleneck_forward.1} parent=0 // pred_region
    _
  $region33: #{bottleneck_forward.1} parent=0 // pred_fallthru
    _
  // Predicated region
  $region34: #{bottleneck_forward.1} parent=0 // pred_check
    _
  $region35: #{bottleneck_forward.1} parent=0 // pred_check_branch
    %37 = sbr.rel (0) target = $region37
  $region36: #{bottleneck_forward.1} parent=0 // pred_region
    _
  $region37: #{bottleneck_forward.1} parent=0 // pred_fallthru
    _
  // Predicated region
  $region38: #{bottleneck_forward.1} parent=0 // pred_check
    _
  $region39: #{bottleneck_forward.1} parent=0 // pred_check_branch
    %39 = sbr.rel (0) target = $region41
  $region40: #{bottleneck_forward.1} parent=0 // pred_region
    _
  $region41: #{bottleneck_forward.1} parent=0 // pred_fallthru
    _
  // Predicated region
  $region42: #{bottleneck_forward.1} parent=0 // pred_check
    _
  $region43: #{bottleneck_forward.1} parent=0 // pred_check_branch
    %41 = sbr.rel (0) target = $region45
  $region44: #{bottleneck_forward.1} parent=0 // pred_region
    _
  $region45: #{bottleneck_forward.1} parent=0 // pred_fallthru
    _
  // Predicated region
  $region46: #{bottleneck_forward.1} parent=0 // pred_check
    _
  $region47: #{bottleneck_forward.1} parent=0 // pred_check_branch
    %43 = sbr.rel (0) target = $region49
  $region48: #{bottleneck_forward.1} parent=0 // pred_region
    _
  $region49: #{bottleneck_forward.1} parent=0 // pred_fallthru
    _
  // Predicated region
  $region50: #{bottleneck_forward.1} parent=0 // pred_check
    _
  $region51: #{bottleneck_forward.1} parent=0 // pred_check_branch
    %45 = sbr.rel (0) target = $region53
  $region52: #{bottleneck_forward.1} parent=0 // pred_region
    _
  $region53: #{bottleneck_forward.1} parent=0 // pred_fallthru
    _
  // Predicated region
  $region54: #{bottleneck_forward.1} parent=0 // pred_check
    _
  $region55: #{bottleneck_forward.1} parent=0 // pred_check_branch
    %47 = sbr.rel (0) target = $region57
  $region56: #{bottleneck_forward.1} parent=0 // pred_region
    _
  $region57: #{bottleneck_forward.1} parent=0 // pred_fallthru
    _
  // Predicated region
  $region58: #{bottleneck_forward.1} parent=0 // pred_check
    _
  $region59: #{bottleneck_forward.1} parent=0 // pred_check_branch
    %49 = sbr.rel (0) target = $region61
  $region60: #{bottleneck_forward.1} parent=0 // pred_region
    _
  $region61: #{bottleneck_forward.1} parent=0 // pred_fallthru
    _
  %v51 = vld [vmem:[%s0] sm:$0xf]
  %v52 = vld [vmem:[%s0 + $0x4] sm:$0xf]
  %v53 = vld [vmem:[%s0 + $0x8] sm:$0xf]
  %v54 = vld [vmem:[%s0 + $0xc] sm:$0xf]
  %v55 = vld [vmem:[%s0 + $0x10] sm:$0xf]
  %v56 = vld [vmem:[%s0 + $0x14] sm:$0xf]
  %v57 = vld [vmem:[%s0 + $0x18] sm:$0xf]
  %v58 = vld [vmem:[%s0 + $0x1c] sm:$0xf]
  %v59 = vld [vmem:[%s0 + $0x20] sm:$0xf]
  %v60 = vld [vmem:[%s0 + $0x24] sm:$0xf]
  %v61 = vld [vmem:[%s0 + $0x28] sm:$0xf]
  %v62 = vld [vmem:[%s0 + $0x2c] sm:$0xf]
  %v63 = vld [vmem:[%s0 + $0x30] sm:$0xf]
  %v64 = vld [vmem:[%s0 + $0x34] sm:$0xf]
  %v65 = vld [vmem:[%s0 + $0x38] sm:$0xf]
  %v66 = vld [vmem:[%s0 + $0x3c] sm:$0xf]
  %v67 = vld [vmem:[%s0 + $0x40] sm:$0xf]
  %v68 = vld [vmem:[%s0 + $0x44] sm:$0xf]
  %v69 = vld [vmem:[%s0 + $0x48] sm:$0xf]
  %v70 = vld [vmem:[%s0 + $0x4c] sm:$0xf]
  %v71 = vld [vmem:[%s0 + $0x50] sm:$0xf]
  %v72 = vld [vmem:[%s0 + $0x54] sm:$0xf]
  %v73 = vld [vmem:[%s0 + $0x58] sm:$0xf]
  %v74 = vld [vmem:[%s0 + $0x5c] sm:$0xf]
  %v75 = vld [vmem:[%s0 + $0x60] sm:$0xf]
  %v76 = vld [vmem:[%s0 + $0x64] sm:$0xf]
  %v77 = vld [vmem:[%s0 + $0x68] sm:$0xf]
  %v78 = vld [vmem:[%s0 + $0x6c] sm:$0xf]
  %v79 = vld [vmem:[%s0 + $0x70] sm:$0xf]
  %v80 = vld [vmem:[%s0 + $0x74] sm:$0xf]
  %v81 = vld [vmem:[%s0 + $0x78] sm:$0xf]
  %v82 = vld [vmem:[%s0 + $0x7c] sm:$0xf]
  %v83 = vld [vmem:[%s0 + $0x80] sm:$0xf]
  %v84 = vld [vmem:[%s0 + $0x84] sm:$0xf]
  %v85 = vld [vmem:[%s0 + $0x88] sm:$0xf]
  %v86 = vld [vmem:[%s0 + $0x8c] sm:$0xf]
  %v87 = vld [vmem:[%s0 + $0x90] sm:$0xf]
  %v88 = vld [vmem:[%s0 + $0x94] sm:$0xf]
  %v89 = vld [vmem:[%s0 + $0x98] sm:$0xf]
  %v90 = vld [vmem:[%s0 + $0x9c] sm:$0xf]
  %v91 = vld [vmem:[%s0 + $0xa0] sm:$0xf]
  %v92 = vld [vmem:[%s0 + $0xa4] sm:$0xf]
  %v93 = vld [vmem:[%s0 + $0xa8] sm:$0xf]
  %v94 = vld [vmem:[%s0 + $0xac] sm:$0xf]
  %v95 = vld [vmem:[%s0 + $0xb0] sm:$0xf]
  %v96 = vld [vmem:[%s0 + $0xb4] sm:$0xf]
  %v97 = vld [vmem:[%s0 + $0xb8] sm:$0xf]
  %v98 = vld [vmem:[%s0 + $0xbc] sm:$0xf]
  %v99 = vld [vmem:[%s0 + $0xc0] sm:$0xf]
  %v100 = vld [vmem:[%s0 + $0xc4] sm:$0xf]
  %v101 = vld [vmem:[%s0 + $0xc8] sm:$0xf]
  %v102 = vld [vmem:[%s0 + $0xcc] sm:$0xf]
  %v103 = vld [vmem:[%s0 + $0xd0] sm:$0xf]
  %v104 = vld [vmem:[%s0 + $0xd4] sm:$0xf]
  %v105 = vld [vmem:[%s0 + $0xd8] sm:$0xf]
  %v106 = vld [vmem:[%s0 + $0xdc] sm:$0xf]
  %v107 = vld [vmem:[%s0 + $0xe0] sm:$0xf]
  %v108 = vld [vmem:[%s0 + $0xe4] sm:$0xf]
  %v109 = vld [vmem:[%s0 + $0xe8] sm:$0xf]
  %v110 = vld [vmem:[%s0 + $0xec] sm:$0xf]
  %v111 = vld [vmem:[%s0 + $0xf0] sm:$0xf]
  %v112 = vld [vmem:[%s0 + $0xf4] sm:$0xf]
  %v113 = vld [vmem:[%s0 + $0xf8] sm:$0xf]
  %v114 = vld [vmem:[%s0 + $0xfc] sm:$0xf]
  %v115 = vld [vmem:[%s0 + $0x100] sm:$0xf]
  %v116 = vld [vmem:[%s0 + $0x104] sm:$0xf]
  %v117 = vld [vmem:[%s0 + $0x108] sm:$0xf]
  %v118 = vld [vmem:[%s0 + $0x10c] sm:$0xf]
  %v119 = vld [vmem:[%s0 + $0x110] sm:$0xf]
  %v120 = vld [vmem:[%s0 + $0x114] sm:$0xf]
  %v121 = vld [vmem:[%s0 + $0x118] sm:$0xf]
  %v122 = vld [vmem:[%s0 + $0x11c] sm:$0xf]
  %v123 = vld [vmem:[%s0 + $0x120] sm:$0xf]
  %v124 = vld [vmem:[%s0 + $0x124] sm:$0xf]
  %v125 = vld [vmem:[%s0 + $0x128] sm:$0xf]
  %v126 = vld [vmem:[%s0 + $0x12c] sm:$0xf]
  %v127 = vld [vmem:[%s0 + $0x130] sm:$0xf]
  %v128 = vld [vmem:[%s0 + $0x134] sm:$0xf]
  %v129 = vld [vmem:[%s0 + $0x138] sm:$0xf]
  %v130 = vld [vmem:[%s0 + $0x13c] sm:$0xf]
  %v131 = vld [vmem:[%s0 + $0x140] sm:$0xf]
  %v132 = vld [vmem:[%s0 + $0x144] sm:$0xf]
  %v133 = vld [vmem:[%s0 + $0x148] sm:$0xf]
  %v134 = vld [vmem:[%s0 + $0x14c] sm:$0xf]
  %v135 = vld [vmem:[%s0 + $0x150] sm:$0xf]
  %v136 = vld [vmem:[%s0 + $0x154] sm:$0xf]
  %v137 = vld [vmem:[%s0 + $0x158] sm:$0xf]
  %v138 = vld [vmem:[%s3] sm:$0xf]
  %v139 = vld [vmem:[%s3 + $0x4] sm:$0xf]
  %v140 = vld [vmem:[%s3 + $0x8] sm:$0xf]
  %v141 = vld [vmem:[%s3 + $0xc] sm:$0xf]
  %v142 = vld [vmem:[%s3 + $0x10] sm:$0xf]
  %v143 = vld [vmem:[%s3 + $0x14] sm:$0xf]
  %v144 = vld [vmem:[%s3 + $0x18] sm:$0xf]
  %v145 = vld [vmem:[%s3 + $0x1c] sm:$0xf]
  %v146 = vld [vmem:[%s3 + $0x20] sm:$0xf]
  %v147 = vld [vmem:[%s3 + $0x24] sm:$0xf]
  %v148 = vld [vmem:[%s3 + $0x28] sm:$0xf]
  %v149 = vld [vmem:[%s3 + $0x2c] sm:$0xf]
  %v150 = vld [vmem:[%s3 + $0x30] sm:$0xf]
  %v151 = vld [vmem:[%s3 + $0x34] sm:$0xf]
  %v152 = vld [vmem:[%s3 + $0x38] sm:$0xf]
  %v153 = vld [vmem:[%s3 + $0x3c] sm:$0xf]
  %v241 = vunpack.c.l.b16 %v51
  %v242 = vunpack.c.l.b16 %v52
  %v243 = vunpack.c.l.b16 %v53
  %v244 = vunpack.c.l.b16 %v54
  %v245 = vunpack.c.l.b16 %v55
  %v246 = vunpack.c.l.b16 %v56
  %v247 = vunpack.c.l.b16 %v57
  %v248 = vunpack.c.l.b16 %v58
  %v249 = vunpack.c.l.b16 %v59
  %v250 = vunpack.c.l.b16 %v60
  %v251 = vunpack.c.l.b16 %v61
  %v252 = vunpack.c.l.b16 %v62
  %v253 = vunpack.c.l.b16 %v63
  %v254 = vunpack.c.l.b16 %v64
  %v255 = vunpack.c.l.b16 %v65
  %v256 = vunpack.c.l.b16 %v66
  %v257 = vunpack.c.l.b16 %v67
  %v258 = vunpack.c.l.b16 %v68
  %v259 = vunpack.c.l.b16 %v69
  %v260 = vunpack.c.l.b16 %v70
  %v261 = vunpack.c.l.b16 %v71
  %v262 = vunpack.c.l.b16 %v72
  %v263 = vunpack.c.l.b16 %v73
  %v264 = vunpack.c.l.b16 %v74
  %v265 = vunpack.c.l.b16 %v75
  %v266 = vunpack.c.l.b16 %v76
  %v267 = vunpack.c.l.b16 %v77
  %v268 = vunpack.c.l.b16 %v78
  %v269 = vunpack.c.l.b16 %v79
  %v270 = vunpack.c.l.b16 %v80
  %v271 = vunpack.c.l.b16 %v81
  %v272 = vunpack.c.l.b16 %v82
  %v273 = vunpack.c.l.b16 %v83
  %v274 = vunpack.c.l.b16 %v84
  %v275 = vunpack.c.l.b16 %v85
  %v276 = vunpack.c.l.b16 %v86
  %v277 = vunpack.c.l.b16 %v87
  %v278 = vunpack.c.l.b16 %v88
  %v279 = vunpack.c.l.b16 %v89
  %v280 = vunpack.c.l.b16 %v90
  %v281 = vunpack.c.l.b16 %v91
  %v282 = vunpack.c.l.b16 %v92
  %v283 = vunpack.c.l.b16 %v93
  %v284 = vunpack.c.l.b16 %v94
  %v285 = vunpack.c.l.b16 %v95
  %v286 = vunpack.c.l.b16 %v96
  %v287 = vunpack.c.l.b16 %v97
  %v288 = vunpack.c.l.b16 %v98
  %v289 = vunpack.c.l.b16 %v99
  %v290 = vunpack.c.l.b16 %v100
  %v291 = vunpack.c.l.b16 %v101
  %v292 = vunpack.c.l.b16 %v102
  %v293 = vunpack.c.l.b16 %v103
  %v294 = vunpack.c.l.b16 %v104
  %v295 = vunpack.c.l.b16 %v105
  %v296 = vunpack.c.l.b16 %v106
  %v297 = vunpack.c.l.b16 %v107
  %v298 = vunpack.c.l.b16 %v108
  %v299 = vunpack.c.l.b16 %v109
  %v300 = vunpack.c.l.b16 %v110
  %v301 = vunpack.c.l.b16 %v111
  %v302 = vunpack.c.l.b16 %v112
  %v303 = vunpack.c.l.b16 %v113
  %v304 = vunpack.c.l.b16 %v114
  %v305 = vunpack.c.l.b16 %v115
  %v306 = vunpack.c.l.b16 %v116
  %v307 = vunpack.c.l.b16 %v117
  %v308 = vunpack.c.l.b16 %v118
  %v309 = vunpack.c.l.b16 %v119
  %v310 = vunpack.c.l.b16 %v120
  %v311 = vunpack.c.l.b16 %v121
  %v312 = vunpack.c.l.b16 %v122
  %v313 = vunpack.c.l.b16 %v123
  %v314 = vunpack.c.l.b16 %v124
  %v315 = vunpack.c.l.b16 %v125
  %v316 = vunpack.c.l.b16 %v126
  %v317 = vunpack.c.l.b16 %v127
  %v318 = vunpack.c.l.b16 %v128
  %v319 = vunpack.c.l.b16 %v129
  %v320 = vunpack.c.l.b16 %v130
  %v321 = vunpack.c.l.b16 %v131
  %v322 = vunpack.c.l.b16 %v132
  %v323 = vunpack.c.l.b16 %v133
  %v324 = vunpack.c.l.b16 %v134
  %v325 = vunpack.c.l.b16 %v135
  %v326 = vunpack.c.l.b16 %v136
  %v327 = vunpack.c.l.b16 %v137
  %v328 = vpack.c.b16 %v242, %v241
  %v329 = vpack.c.b16 %v244, %v243
  %v330 = vpack.c.b16 %v246, %v245
  %v331 = vpack.c.b16 %v248, %v247
  %v332 = vpack.c.b16 %v250, %v249
  %v333 = vpack.c.b16 %v252, %v251
  %v334 = vpack.c.b16 %v254, %v253
  %v335 = vpack.c.b16 %v256, %v255
  %v336 = vpack.c.b16 %v258, %v257
  %v337 = vpack.c.b16 %v260, %v259
  %v338 = vpack.c.b16 %v262, %v261
  %v339 = vpack.c.b16 %v264, %v263
  %v340 = vpack.c.b16 %v266, %v265
  %v341 = vpack.c.b16 %v268, %v267
  %v342 = vpack.c.b16 %v270, %v269
  %v343 = vpack.c.b16 %v272, %v271
  %v344 = vpack.c.b16 %v274, %v273
  %v345 = vpack.c.b16 %v276, %v275
  %v346 = vpack.c.b16 %v278, %v277
  %v347 = vpack.c.b16 %v280, %v279
  %v348 = vpack.c.b16 %v282, %v281
  %v349 = vpack.c.b16 %v284, %v283
  %v350 = vpack.c.b16 %v286, %v285
  %v351 = vpack.c.b16 %v288, %v287
  %v352 = vpack.c.b16 %v290, %v289
  %v353 = vpack.c.b16 %v292, %v291
  %v354 = vpack.c.b16 %v294, %v293
  %v355 = vpack.c.b16 %v296, %v295
  %v356 = vpack.c.b16 %v298, %v297
  %v357 = vpack.c.b16 %v300, %v299
  %v358 = vpack.c.b16 %v302, %v301
  %v359 = vpack.c.b16 %v304, %v303
  %v360 = vpack.c.b16 %v306, %v305
  %v361 = vpack.c.b16 %v308, %v307
  %v362 = vpack.c.b16 %v310, %v309
  %v363 = vpack.c.b16 %v312, %v311
  %v364 = vpack.c.b16 %v314, %v313
  %v365 = vpack.c.b16 %v316, %v315
  %v366 = vpack.c.b16 %v318, %v317
  %v367 = vpack.c.b16 %v320, %v319
  %v368 = vpack.c.b16 %v322, %v321
  %v369 = vpack.c.b16 %v324, %v323
  %v370 = vpack.c.b16 %v326, %v325
  %v371 = vpack.c.b16 %v327, %v327
  %v432 = vunpack.c.l.b16 %v138
  %v433 = vunpack.c.l.b16 %v139
  %v434 = vunpack.c.l.b16 %v140
  %v435 = vunpack.c.l.b16 %v141
  %v436 = vunpack.c.l.b16 %v142
  %v437 = vunpack.c.l.b16 %v143
  %v438 = vunpack.c.l.b16 %v144
  %v439 = vunpack.c.l.b16 %v145
  %v440 = vunpack.c.l.b16 %v146
  %v441 = vunpack.c.l.b16 %v147
  %v442 = vunpack.c.l.b16 %v148
  %v443 = vunpack.c.l.b16 %v149
  %v444 = vunpack.c.l.b16 %v150
  %v445 = vunpack.c.l.b16 %v151
  %v446 = vunpack.c.l.b16 %v152
  %v447 = vunpack.c.l.b16 %v153
  %v448 = vpack.c.b16 %v433, %v432
  %v449 = vpack.c.b16 %v435, %v434
  %v450 = vpack.c.b16 %v437, %v436
  %v451 = vpack.c.b16 %v439, %v438
  %v452 = vpack.c.b16 %v441, %v440
  %v453 = vpack.c.b16 %v443, %v442
  %v454 = vpack.c.b16 %v445, %v444
  %v455 = vpack.c.b16 %v447, %v446
  %464 = vmatprep.subr.bf16.mxu0 0
  %465 = vmatpush1.bf16.msra.mxu0 %v448
  %466 = vmatprep.subr.bf16.mxu0 0
  %467 = vmatpush1.bf16.msra.mxu0 %v449
  %468 = vmatprep.subr.bf16.mxu0 0
  %469 = vmatpush1.bf16.msra.mxu0 %v450
  %470 = vmatprep.subr.bf16.mxu0 0
  %471 = vmatpush1.bf16.msra.mxu0 %v451
  %472 = vmatprep.subr.bf16.mxu0 0
  %473 = vmatpush1.bf16.msra.mxu0 %v452
  %474 = vmatprep.subr.bf16.mxu0 0
  %475 = vmatpush1.bf16.msra.mxu0 %v453
  %476 = vmatprep.subr.bf16.mxu0 0
  %477 = vmatpush1.bf16.msra.mxu0 %v454
  %478 = vmatprep.subr.bf16.mxu0 0
  %479 = vmatpush1.bf16.msra.mxu0 %v455
  %480 = vmatprep.subr.bf16.mxu0 0
  %481 = vmatpush1.bf16.msra.mxu0 0
  %482 = vmatprep.subr.bf16.mxu0 0
  %483 = vmatpush1.bf16.msra.mxu0 0
  %484 = vmatprep.subr.bf16.mxu0 0
  %485 = vmatpush1.bf16.msra.mxu0 0
  %486 = vmatprep.subr.bf16.mxu0 0
  %487 = vmatpush1.bf16.msra.mxu0 0
  %488 = vmatprep.subr.bf16.mxu0 0
  %489 = vmatpush1.bf16.msra.mxu0 0
  %490 = vmatprep.subr.bf16.mxu0 0
  %491 = vmatpush1.bf16.msra.mxu0 0
  %492 = vmatprep.subr.bf16.mxu0 0
  %493 = vmatpush1.bf16.msra.mxu0 0
  %494 = vmatprep.subr.bf16.mxu0 0
  %495 = vmatpush1.bf16.msra.mxu0 0
  %496 = vmatprep.mubr.bf16.mxu0 0
  %497 = vmatmul.mubr.bf16.gmra.mrb[0].mxu0 %v328
  %v498 = vpop.f32.mrb[0].mxu0
  %v499 = vadd.f32 0.0, %v498
  %v500 = vpop.f32.mrb[0].mxu0
  %v501 = vpop.f32.mrb[0].mxu0
  %v502 = vadd.f32 0.0, %v501
  %v503 = vpop.f32.mrb[0].mxu0
  %504 = vmatprep.mubr.bf16.mxu0 0
  %505 = vmatmul.mubr.bf16.gmra.mrb[0].mxu0 %v329
  %v506 = vpop.f32.mrb[0].mxu0
  %v507 = vadd.f32 0.0, %v506
  %v508 = vpop.f32.mrb[0].mxu0
  %v509 = vpop.f32.mrb[0].mxu0
  %v510 = vadd.f32 0.0, %v509
  %v511 = vpop.f32.mrb[0].mxu0
  %512 = vmatprep.mubr.bf16.mxu0 0
  %513 = vmatmul.mubr.bf16.gmra.mrb[0].mxu0 %v330
  %v514 = vpop.f32.mrb[0].mxu0
  %v515 = vadd.f32 0.0, %v514
  %v516 = vpop.f32.mrb[0].mxu0
  %v517 = vpop.f32.mrb[0].mxu0
  %v518 = vadd.f32 0.0, %v517
  %v519 = vpop.f32.mrb[0].mxu0
  %520 = vmatprep.mubr.bf16.mxu0 0
  %521 = vmatmul.mubr.bf16.gmra.mrb[0].mxu0 %v331
  %v522 = vpop.f32.mrb[0].mxu0
  %v523 = vadd.f32 0.0, %v522
  %v524 = vpop.f32.mrb[0].mxu0
  %v525 = vpop.f32.mrb[0].mxu0
  %v526 = vadd.f32 0.0, %v525
  %v527 = vpop.f32.mrb[0].mxu0
  %528 = vmatprep.mubr.bf16.mxu0 0
  %529 = vmatmul.mubr.bf16.gmra.mrb[0].mxu0 %v332
  %v530 = vpop.f32.mrb[0].mxu0
  %v531 = vadd.f32 0.0, %v530
  %v532 = vpop.f32.mrb[0].mxu0
  %v533 = vpop.f32.mrb[0].mxu0
  %v534 = vadd.f32 0.0, %v533
  %v535 = vpop.f32.mrb[0].mxu0
  %536 = vmatprep.mubr.bf16.mxu0 0
  %537 = vmatmul.mubr.bf16.gmra.mrb[0].mxu0 %v333
  %v538 = vpop.f32.mrb[0].mxu0
  %v539 = vadd.f32 0.0, %v538
  %v540 = vpop.f32.mrb[0].mxu0
  %v541 = vpop.f32.mrb[0].mxu0
  %v542 = vadd.f32 0.0, %v541
  %v543 = vpop.f32.mrb[0].mxu0
  %544 = vmatprep.mubr.bf16.mxu0 0
  %545 = vmatmul.mubr.bf16.gmra.mrb[0].mxu0 %v334
  %v546 = vpop.f32.mrb[0].mxu0
  %v547 = vadd.f32 0.0, %v546
  %v548 = vpop.f32.mrb[0].mxu0
  %v549 = vpop.f32.mrb[0].mxu0
  %v550 = vadd.f32 0.0, %v549
  %v551 = vpop.f32.mrb[0].mxu0
  %552 = vmatprep.mubr.bf16.mxu0 0
  %553 = vmatmul.mubr.bf16.gmra.mrb[0].mxu0 %v335
  %v554 = vpop.f32.mrb[0].mxu0
  %v555 = vadd.f32 0.0, %v554
  %v556 = vpop.f32.mrb[0].mxu0
  %v557 = vpop.f32.mrb[0].mxu0
  %v558 = vadd.f32 0.0, %v557
  %v559 = vpop.f32.mrb[0].mxu0
  %560 = vmatprep.mubr.bf16.mxu0 0
  %561 = vmatmul.mubr.bf16.gmra.mrb[0].mxu0 %v336
  %v562 = vpop.f32.mrb[0].mxu0
  %v563 = vadd.f32 0.0, %v562
  %v564 = vpop.f32.mrb[0].mxu0
  %v565 = vpop.f32.mrb[0].mxu0
  %v566 = vadd.f32 0.0, %v565
  %v567 = vpop.f32.mrb[0].mxu0
  %568 = vmatprep.mubr.bf16.mxu0 0
  %569 = vmatmul.mubr.bf16.gmra.mrb[0].mxu0 %v337
  %v570 = vpop.f32.mrb[0].mxu0
  %v571 = vadd.f32 0.0, %v570
  %v572 = vpop.f32.mrb[0].mxu0
  %v573 = vpop.f32.mrb[0].mxu0
  %v574 = vadd.f32 0.0, %v573
  %v575 = vpop.f32.mrb[0].mxu0
  %576 = vmatprep.mubr.bf16.mxu0 0
  %577 = vmatmul.mubr.bf16.gmra.mrb[0].mxu0 %v338
  %v578 = vpop.f32.mrb[0].mxu0
  %v579 = vadd.f32 0.0, %v578
  %v580 = vpop.f32.mrb[0].mxu0
  %v581 = vpop.f32.mrb[0].mxu0
  %v582 = vadd.f32 0.0, %v581
  %v583 = vpop.f32.mrb[0].mxu0
  %584 = vmatprep.mubr.bf16.mxu0 0
  %585 = vmatmul.mubr.bf16.gmra.mrb[0].mxu0 %v339
  %v586 = vpop.f32.mrb[0].mxu0
  %v587 = vadd.f32 0.0, %v586
  %v588 = vpop.f32.mrb[0].mxu0
  %v589 = vpop.f32.mrb[0].mxu0
  %v590 = vadd.f32 0.0, %v589
  %v591 = vpop.f32.mrb[0].mxu0
  %592 = vmatprep.mubr.bf16.mxu0 0
  %593 = vmatmul.mubr.bf16.gmra.mrb[0].mxu0 %v340
  %v594 = vpop.f32.mrb[0].mxu0
  %v595 = vadd.f32 0.0, %v594
  %v596 = vpop.f32.mrb[0].mxu0
  %v597 = vpop.f32.mrb[0].mxu0
  %v598 = vadd.f32 0.0, %v597
  %v599 = vpop.f32.mrb[0].mxu0
  %600 = vmatprep.mubr.bf16.mxu0 0
  %601 = vmatmul.mubr.bf16.gmra.mrb[0].mxu0 %v341
  %v602 = vpop.f32.mrb[0].mxu0
  %v603 = vadd.f32 0.0, %v602
  %v604 = vpop.f32.mrb[0].mxu0
  %v605 = vpop.f32.mrb[0].mxu0
  %v606 = vadd.f32 0.0, %v605
  %v607 = vpop.f32.mrb[0].mxu0
  %608 = vmatprep.mubr.bf16.mxu0 0
  %609 = vmatmul.mubr.bf16.gmra.mrb[0].mxu0 %v342
  %v610 = vpop.f32.mrb[0].mxu0
  %v611 = vadd.f32 0.0, %v610
  %v612 = vpop.f32.mrb[0].mxu0
  %v613 = vpop.f32.mrb[0].mxu0
  %v614 = vadd.f32 0.0, %v613
  %v615 = vpop.f32.mrb[0].mxu0
  %616 = vmatprep.mubr.bf16.mxu0 0
  %617 = vmatmul.mubr.bf16.gmra.mrb[0].mxu0 %v343
  %v618 = vpop.f32.mrb[0].mxu0
  %v619 = vadd.f32 0.0, %v618
  %v620 = vpop.f32.mrb[0].mxu0
  %v621 = vpop.f32.mrb[0].mxu0
  %v622 = vadd.f32 0.0, %v621
  %v623 = vpop.f32.mrb[0].mxu0
  %624 = vmatprep.mubr.bf16.mxu0 0
  %625 = vmatmul.mubr.bf16.gmra.mrb[0].mxu0 %v344
  %v626 = vpop.f32.mrb[0].mxu0
  %v627 = vadd.f32 0.0, %v626
  %v628 = vpop.f32.mrb[0].mxu0
  %v629 = vpop.f32.mrb[0].mxu0
  %v630 = vadd.f32 0.0, %v629
  %v631 = vpop.f32.mrb[0].mxu0
  %632 = vmatprep.mubr.bf16.mxu0 0
  %633 = vmatmul.mubr.bf16.gmra.mrb[0].mxu0 %v345
  %v634 = vpop.f32.mrb[0].mxu0
  %v635 = vadd.f32 0.0, %v634
  %v636 = vpop.f32.mrb[0].mxu0
  %v637 = vpop.f32.mrb[0].mxu0
  %v638 = vadd.f32 0.0, %v637
  %v639 = vpop.f32.mrb[0].mxu0
  %640 = vmatprep.mubr.bf16.mxu0 0
  %641 = vmatmul.mubr.bf16.gmra.mrb[0].mxu0 %v346
  %v642 = vpop.f32.mrb[0].mxu0
  %v643 = vadd.f32 0.0, %v642
  %v644 = vpop.f32.mrb[0].mxu0
  %v645 = vpop.f32.mrb[0].mxu0
  %v646 = vadd.f32 0.0, %v645
  %v647 = vpop.f32.mrb[0].mxu0
  %648 = vmatprep.mubr.bf16.mxu0 0
  %649 = vmatmul.mubr.bf16.gmra.mrb[0].mxu0 %v347
  %v650 = vpop.f32.mrb[0].mxu0
  %v651 = vadd.f32 0.0, %v650
  %v652 = vpop.f32.mrb[0].mxu0
  %v653 = vpop.f32.mrb[0].mxu0
  %v654 = vadd.f32 0.0, %v653
  %v655 = vpop.f32.mrb[0].mxu0
  %656 = vmatprep.mubr.bf16.mxu0 0
  %657 = vmatmul.mubr.bf16.gmra.mrb[0].mxu0 %v348
  %v658 = vpop.f32.mrb[0].mxu0
  %v659 = vadd.f32 0.0, %v658
  %v660 = vpop.f32.mrb[0].mxu0
  %v661 = vpop.f32.mrb[0].mxu0
  %v662 = vadd.f32 0.0, %v661
  %v663 = vpop.f32.mrb[0].mxu0
  %664 = vmatprep.mubr.bf16.mxu0 0
  %665 = vmatmul.mubr.bf16.gmra.mrb[0].mxu0 %v349
  %v666 = vpop.f32.mrb[0].mxu0
  %v667 = vadd.f32 0.0, %v666
  %v668 = vpop.f32.mrb[0].mxu0
  %v669 = vpop.f32.mrb[0].mxu0
  %v670 = vadd.f32 0.0, %v669
  %v671 = vpop.f32.mrb[0].mxu0
  %672 = vmatprep.mubr.bf16.mxu0 0
  %673 = vmatmul.mubr.bf16.gmra.mrb[0].mxu0 %v350
  %v674 = vpop.f32.mrb[0].mxu0
  %v675 = vadd.f32 0.0, %v674
  %v676 = vpop.f32.mrb[0].mxu0
  %v677 = vpop.f32.mrb[0].mxu0
  %v678 = vadd.f32 0.0, %v677
  %v679 = vpop.f32.mrb[0].mxu0
  %680 = vmatprep.mubr.bf16.mxu0 0
  %681 = vmatmul.mubr.bf16.gmra.mrb[0].mxu0 %v351
  %v682 = vpop.f32.mrb[0].mxu0
  %v683 = vadd.f32 0.0, %v682
  %v684 = vpop.f32.mrb[0].mxu0
  %v685 = vpop.f32.mrb[0].mxu0
  %v686 = vadd.f32 0.0, %v685
  %v687 = vpop.f32.mrb[0].mxu0
  %688 = vmatprep.mubr.bf16.mxu0 0
  %689 = vmatmul.mubr.bf16.gmra.mrb[0].mxu0 %v352
  %v690 = vpop.f32.mrb[0].mxu0
  %v691 = vadd.f32 0.0, %v690
  %v692 = vpop.f32.mrb[0].mxu0
  %v693 = vpop.f32.mrb[0].mxu0
  %v694 = vadd.f32 0.0, %v693
  %v695 = vpop.f32.mrb[0].mxu0
  %696 = vmatprep.mubr.bf16.mxu0 0
  %697 = vmatmul.mubr.bf16.gmra.mrb[0].mxu0 %v353
  %v698 = vpop.f32.mrb[0].mxu0
  %v699 = vadd.f32 0.0, %v698
  %v700 = vpop.f32.mrb[0].mxu0
  %v701 = vpop.f32.mrb[0].mxu0
  %v702 = vadd.f32 0.0, %v701
  %v703 = vpop.f32.mrb[0].mxu0
  %704 = vmatprep.mubr.bf16.mxu0 0
  %705 = vmatmul.mubr.bf16.gmra.mrb[0].mxu0 %v354
  %v706 = vpop.f32.mrb[0].mxu0
  %v707 = vadd.f32 0.0, %v706
  %v708 = vpop.f32.mrb[0].mxu0
  %v709 = vpop.f32.mrb[0].mxu0
  %v710 = vadd.f32 0.0, %v709
  %v711 = vpop.f32.mrb[0].mxu0
  %712 = vmatprep.mubr.bf16.mxu0 0
  %713 = vmatmul.mubr.bf16.gmra.mrb[0].mxu0 %v355
  %v714 = vpop.f32.mrb[0].mxu0
  %v715 = vadd.f32 0.0, %v714
  %v716 = vpop.f32.mrb[0].mxu0
  %v717 = vpop.f32.mrb[0].mxu0
  %v718 = vadd.f32 0.0, %v717
  %v719 = vpop.f32.mrb[0].mxu0
  %720 = vmatprep.mubr.bf16.mxu0 0
  %721 = vmatmul.mubr.bf16.gmra.mrb[0].mxu0 %v356
  %v722 = vpop.f32.mrb[0].mxu0
  %v723 = vadd.f32 0.0, %v722
  %v724 = vpop.f32.mrb[0].mxu0
  %v725 = vpop.f32.mrb[0].mxu0
  %v726 = vadd.f32 0.0, %v725
  %v727 = vpop.f32.mrb[0].mxu0
  %728 = vmatprep.mubr.bf16.mxu0 0
  %729 = vmatmul.mubr.bf16.gmra.mrb[0].mxu0 %v357
  %v730 = vpop.f32.mrb[0].mxu0
  %v731 = vadd.f32 0.0, %v730
  %v732 = vpop.f32.mrb[0].mxu0
  %v733 = vpop.f32.mrb[0].mxu0
  %v734 = vadd.f32 0.0, %v733
  %v735 = vpop.f32.mrb[0].mxu0
  %736 = vmatprep.mubr.bf16.mxu0 0
  %737 = vmatmul.mubr.bf16.gmra.mrb[0].mxu0 %v358
  %v738 = vpop.f32.mrb[0].mxu0
  %v739 = vadd.f32 0.0, %v738
  %v740 = vpop.f32.mrb[0].mxu0
  %v741 = vpop.f32.mrb[0].mxu0
  %v742 = vadd.f32 0.0, %v741
  %v743 = vpop.f32.mrb[0].mxu0
  %744 = vmatprep.mubr.bf16.mxu0 0
  %745 = vmatmul.mubr.bf16.gmra.mrb[0].mxu0 %v359
  %v746 = vpop.f32.mrb[0].mxu0
  %v747 = vadd.f32 0.0, %v746
  %v748 = vpop.f32.mrb[0].mxu0
  %v749 = vpop.f32.mrb[0].mxu0
  %v750 = vadd.f32 0.0, %v749
  %v751 = vpop.f32.mrb[0].mxu0
  %752 = vmatprep.mubr.bf16.mxu0 0
  %753 = vmatmul.mubr.bf16.gmra.mrb[0].mxu0 %v360
  %v754 = vpop.f32.mrb[0].mxu0
  %v755 = vadd.f32 0.0, %v754
  %v756 = vpop.f32.mrb[0].mxu0
  %v757 = vpop.f32.mrb[0].mxu0
  %v758 = vadd.f32 0.0, %v757
  %v759 = vpop.f32.mrb[0].mxu0
  %760 = vmatprep.mubr.bf16.mxu0 0
  %761 = vmatmul.mubr.bf16.gmra.mrb[0].mxu0 %v361
  %v762 = vpop.f32.mrb[0].mxu0
  %v763 = vadd.f32 0.0, %v762
  %v764 = vpop.f32.mrb[0].mxu0
  %v765 = vpop.f32.mrb[0].mxu0
  %v766 = vadd.f32 0.0, %v765
  %v767 = vpop.f32.mrb[0].mxu0
  %768 = vmatprep.mubr.bf16.mxu0 0
  %769 = vmatmul.mubr.bf16.gmra.mrb[0].mxu0 %v362
  %v770 = vpop.f32.mrb[0].mxu0
  %v771 = vadd.f32 0.0, %v770
  %v772 = vpop.f32.mrb[0].mxu0
  %v773 = vpop.f32.mrb[0].mxu0
  %v774 = vadd.f32 0.0, %v773
  %v775 = vpop.f32.mrb[0].mxu0
  %776 = vmatprep.mubr.bf16.mxu0 0
  %777 = vmatmul.mubr.bf16.gmra.mrb[0].mxu0 %v363
  %v778 = vpop.f32.mrb[0].mxu0
  %v779 = vadd.f32 0.0, %v778
  %v780 = vpop.f32.mrb[0].mxu0
  %v781 = vpop.f32.mrb[0].mxu0
  %v782 = vadd.f32 0.0, %v781
  %v783 = vpop.f32.mrb[0].mxu0
  %784 = vmatprep.mubr.bf16.mxu0 0
  %785 = vmatmul.mubr.bf16.gmra.mrb[0].mxu0 %v364
  %v786 = vpop.f32.mrb[0].mxu0
  %v787 = vadd.f32 0.0, %v786
  %v788 = vpop.f32.mrb[0].mxu0
  %v789 = vpop.f32.mrb[0].mxu0
  %v790 = vadd.f32 0.0, %v789
  %v791 = vpop.f32.mrb[0].mxu0
  %792 = vmatprep.mubr.bf16.mxu0 0
  %793 = vmatmul.mubr.bf16.gmra.mrb[0].mxu0 %v365
  %v794 = vpop.f32.mrb[0].mxu0
  %v795 = vadd.f32 0.0, %v794
  %v796 = vpop.f32.mrb[0].mxu0
  %v797 = vpop.f32.mrb[0].mxu0
  %v798 = vadd.f32 0.0, %v797
  %v799 = vpop.f32.mrb[0].mxu0
  %800 = vmatprep.mubr.bf16.mxu0 0
  %801 = vmatmul.mubr.bf16.gmra.mrb[0].mxu0 %v366
  %v802 = vpop.f32.mrb[0].mxu0
  %v803 = vadd.f32 0.0, %v802
  %v804 = vpop.f32.mrb[0].mxu0
  %v805 = vpop.f32.mrb[0].mxu0
  %v806 = vadd.f32 0.0, %v805
  %v807 = vpop.f32.mrb[0].mxu0
  %808 = vmatprep.mubr.bf16.mxu0 0
  %809 = vmatmul.mubr.bf16.gmra.mrb[0].mxu0 %v367
  %v810 = vpop.f32.mrb[0].mxu0
  %v811 = vadd.f32 0.0, %v810
  %v812 = vpop.f32.mrb[0].mxu0
  %v813 = vpop.f32.mrb[0].mxu0
  %v814 = vadd.f32 0.0, %v813
  %v815 = vpop.f32.mrb[0].mxu0
  %816 = vmatprep.mubr.bf16.mxu0 0
  %817 = vmatmul.mubr.bf16.gmra.mrb[0].mxu0 %v368
  %v818 = vpop.f32.mrb[0].mxu0
  %v819 = vadd.f32 0.0, %v818
  %v820 = vpop.f32.mrb[0].mxu0
  %v821 = vpop.f32.mrb[0].mxu0
  %v822 = vadd.f32 0.0, %v821
  %v823 = vpop.f32.mrb[0].mxu0
  %824 = vmatprep.mubr.bf16.mxu0 0
  %825 = vmatmul.mubr.bf16.gmra.mrb[0].mxu0 %v369
  %v826 = vpop.f32.mrb[0].mxu0
  %v827 = vadd.f32 0.0, %v826
  %v828 = vpop.f32.mrb[0].mxu0
  %v829 = vpop.f32.mrb[0].mxu0
  %v830 = vadd.f32 0.0, %v829
  %v831 = vpop.f32.mrb[0].mxu0
  %832 = vmatprep.mubr.bf16.mxu0 0
  %833 = vmatmul.mubr.bf16.gmra.mrb[0].mxu0 %v370
  %v834 = vpop.f32.mrb[0].mxu0
  %v835 = vadd.f32 0.0, %v834
  %v836 = vpop.f32.mrb[0].mxu0
  %v837 = vpop.f32.mrb[0].mxu0
  %v838 = vadd.f32 0.0, %v837
  %v839 = vpop.f32.mrb[0].mxu0
  %840 = vmatprep.mubr.bf16.mxu0 0
  %841 = vmatmul.mubr.bf16.gmra.mrb[0].mxu0 %v371
  %v842 = vpop.f32.mrb[0].mxu0
  %v843 = vadd.f32 0.0, %v842
  %v844 = vpop.f32.mrb[0].mxu0
  %v845 = vpop.f32.mrb[0].mxu0
  %v846 = vpop.f32.mrb[0].mxu0
  %847 = vdwg.mxu0
  %v848 = vld [vmem:[%s7] sm:$0x1]
  %v849 = vld [vmem:[%s8] sm:$0x1]
  %v850 = vadd.f32 %v499, %v502
  %v851 = vadd.f32 %v850, %v507
  %v852 = vadd.f32 %v851, %v510
  %v853 = vadd.f32 %v852, %v515
  %v854 = vadd.f32 %v853, %v518
  %v855 = vadd.f32 %v854, %v523
  %v856 = vadd.f32 %v855, %v526
  %v857 = vadd.f32 %v856, %v531
  %v858 = vadd.f32 %v857, %v534
  %v859 = vadd.f32 %v858, %v539
  %v860 = vadd.f32 %v859, %v542
  %v861 = vadd.f32 %v860, %v547
  %v862 = vadd.f32 %v861, %v550
  %v863 = vadd.f32 %v862, %v555
  %v864 = vadd.f32 %v863, %v558
  %v865 = vadd.f32 %v864, %v563
  %v866 = vadd.f32 %v865, %v566
  %v867 = vadd.f32 %v866, %v571
  %v868 = vadd.f32 %v867, %v574
  %v869 = vadd.f32 %v868, %v579
  %v870 = vadd.f32 %v869, %v582
  %v871 = vadd.f32 %v870, %v587
  %v872 = vadd.f32 %v871, %v590
  %v873 = vadd.f32 %v872, %v595
  %v874 = vadd.f32 %v873, %v598
  %v875 = vadd.f32 %v874, %v603
  %v876 = vadd.f32 %v875, %v606
  %v877 = vadd.f32 %v876, %v611
  %v878 = vadd.f32 %v877, %v614
  %v879 = vadd.f32 %v878, %v619
  %v880 = vadd.f32 %v879, %v622
  %v881 = vadd.f32 %v880, %v627
  %v882 = vadd.f32 %v881, %v630
  %v883 = vadd.f32 %v882, %v635
  %v884 = vadd.f32 %v883, %v638
  %v885 = vadd.f32 %v884, %v643
  %v886 = vadd.f32 %v885, %v646
  %v887 = vadd.f32 %v886, %v651
  %v888 = vadd.f32 %v887, %v654
  %v889 = vadd.f32 %v888, %v659
  %v890 = vadd.f32 %v889, %v662
  %v891 = vadd.f32 %v890, %v667
  %v892 = vadd.f32 %v891, %v670
  %v893 = vadd.f32 %v892, %v675
  %v894 = vadd.f32 %v893, %v678
  %v895 = vadd.f32 %v894, %v683
  %v896 = vadd.f32 %v895, %v686
  %v897 = vadd.f32 %v896, %v691
  %v898 = vadd.f32 %v897, %v694
  %v899 = vadd.f32 %v898, %v699
  %v900 = vadd.f32 %v899, %v702
  %v901 = vadd.f32 %v900, %v707
  %v902 = vadd.f32 %v901, %v710
  %v903 = vadd.f32 %v902, %v715
  %v904 = vadd.f32 %v903, %v718
  %v905 = vadd.f32 %v904, %v723
  %v906 = vadd.f32 %v905, %v726
  %v907 = vadd.f32 %v906, %v731
  %v908 = vadd.f32 %v907, %v734
  %v909 = vadd.f32 %v908, %v739
  %v910 = vadd.f32 %v909, %v742
  %v911 = vadd.f32 %v910, %v747
  %v912 = vadd.f32 %v911, %v750
  %v913 = vadd.f32 %v912, %v755
  %v914 = vadd.f32 %v913, %v758
  %v915 = vadd.f32 %v914, %v763
  %v916 = vadd.f32 %v915, %v766
  %v917 = vadd.f32 %v916, %v771
  %v918 = vadd.f32 %v917, %v774
  %v919 = vadd.f32 %v918, %v779
  %v920 = vadd.f32 %v919, %v782
  %v921 = vadd.f32 %v920, %v787
  %v922 = vadd.f32 %v921, %v790
  %v923 = vadd.f32 %v922, %v795
  %v924 = vadd.f32 %v923, %v798
  %v925 = vadd.f32 %v924, %v803
  %v926 = vadd.f32 %v925, %v806
  %v927 = vadd.f32 %v926, %v811
  %v928 = vadd.f32 %v927, %v814
  %v929 = vadd.f32 %v928, %v819
  %v930 = vadd.f32 %v929, %v822
  %v931 = vadd.f32 %v930, %v827
  %v932 = vadd.f32 %v931, %v830
  %v933 = vadd.f32 %v932, %v835
  %v934 = vadd.f32 %v933, %v838
  %v935 = vadd.f32 %v934, %v843
  %v936 = vrot.slane %v935, 4
  %v937 = vadd.f32 %v935, %v936
  %v938 = vrot.slane %v937, 2
  %v939 = vadd.f32 %v937, %v938
  %v940 = vrot.slane %v939, 1
  %v941 = vadd.f32 %v939, %v940
  %v942 = vmul.f32 %v499, %v499
  %v943 = vmul.f32 %v502, %v502
  %v944 = vmul.f32 %v507, %v507
  %v945 = vmul.f32 %v510, %v510
  %v946 = vmul.f32 %v515, %v515
  %v947 = vmul.f32 %v518, %v518
  %v948 = vmul.f32 %v523, %v523
  %v949 = vmul.f32 %v526, %v526
  %v950 = vmul.f32 %v531, %v531
  %v951 = vmul.f32 %v534, %v534
  %v952 = vmul.f32 %v539, %v539
  %v953 = vmul.f32 %v542, %v542
  %v954 = vmul.f32 %v547, %v547
  %v955 = vmul.f32 %v550, %v550
  %v956 = vmul.f32 %v555, %v555
  %v957 = vmul.f32 %v558, %v558
  %v958 = vmul.f32 %v563, %v563
  %v959 = vmul.f32 %v566, %v566
  %v960 = vmul.f32 %v571, %v571
  %v961 = vmul.f32 %v574, %v574
  %v962 = vmul.f32 %v579, %v579
  %v963 = vmul.f32 %v582, %v582
  %v964 = vmul.f32 %v587, %v587
  %v965 = vmul.f32 %v590, %v590
  %v966 = vmul.f32 %v595, %v595
  %v967 = vmul.f32 %v598, %v598
  %v968 = vmul.f32 %v603, %v603
  %v969 = vmul.f32 %v606, %v606
  %v970 = vmul.f32 %v611, %v611
  %v971 = vmul.f32 %v614, %v614
  %v972 = vmul.f32 %v619, %v619
  %v973 = vmul.f32 %v622, %v622
  %v974 = vmul.f32 %v627, %v627
  %v975 = vmul.f32 %v630, %v630
  %v976 = vmul.f32 %v635, %v635
  %v977 = vmul.f32 %v638, %v638
  %v978 = vmul.f32 %v643, %v643
  %v979 = vmul.f32 %v646, %v646
  %v980 = vmul.f32 %v651, %v651
  %v981 = vmul.f32 %v654, %v654
  %v982 = vmul.f32 %v659, %v659
  %v983 = vmul.f32 %v662, %v662
  %v984 = vmul.f32 %v667, %v667
  %v985 = vmul.f32 %v670, %v670
  %v986 = vmul.f32 %v675, %v675
  %v987 = vmul.f32 %v678, %v678
  %v988 = vmul.f32 %v683, %v683
  %v989 = vmul.f32 %v686, %v686
  %v990 = vmul.f32 %v691, %v691
  %v991 = vmul.f32 %v694, %v694
  %v992 = vmul.f32 %v699, %v699
  %v993 = vmul.f32 %v702, %v702
  %v994 = vmul.f32 %v707, %v707
  %v995 = vmul.f32 %v710, %v710
  %v996 = vmul.f32 %v715, %v715
  %v997 = vmul.f32 %v718, %v718
  %v998 = vmul.f32 %v723, %v723
  %v999 = vmul.f32 %v726, %v726
  %v1000 = vmul.f32 %v731, %v731
  %v1001 = vmul.f32 %v734, %v734
  %v1002 = vmul.f32 %v739, %v739
  %v1003 = vmul.f32 %v742, %v742
  %v1004 = vmul.f32 %v747, %v747
  %v1005 = vmul.f32 %v750, %v750
  %v1006 = vmul.f32 %v755, %v755
  %v1007 = vmul.f32 %v758, %v758
  %v1008 = vmul.f32 %v763, %v763
  %v1009 = vmul.f32 %v766, %v766
  %v1010 = vmul.f32 %v771, %v771
  %v1011 = vmul.f32 %v774, %v774
  %v1012 = vmul.f32 %v779, %v779
  %v1013 = vmul.f32 %v782, %v782
  %v1014 = vmul.f32 %v787, %v787
  %v1015 = vmul.f32 %v790, %v790
  %v1016 = vmul.f32 %v795, %v795
  %v1017 = vmul.f32 %v798, %v798
  %v1018 = vmul.f32 %v803, %v803
  %v1019 = vmul.f32 %v806, %v806
  %v1020 = vmul.f32 %v811, %v811
  %v1021 = vmul.f32 %v814, %v814
  %v1022 = vmul.f32 %v819, %v819
  %v1023 = vmul.f32 %v822, %v822
  %v1024 = vmul.f32 %v827, %v827
  %v1025 = vmul.f32 %v830, %v830
  %v1026 = vmul.f32 %v835, %v835
  %v1027 = vmul.f32 %v838, %v838
  %v1028 = vmul.f32 %v843, %v843
  %v1029 = vadd.f32 %v942, %v943
  %v1030 = vadd.f32 %v1029, %v944
  %v1031 = vadd.f32 %v1030, %v945
  %v1032 = vadd.f32 %v1031, %v946
  %v1033 = vadd.f32 %v1032, %v947
  %v1034 = vadd.f32 %v1033, %v948
  %v1035 = vadd.f32 %v1034, %v949
  %v1036 = vadd.f32 %v1035, %v950
  %v1037 = vadd.f32 %v1036, %v951
  %v1038 = vadd.f32 %v1037, %v952
  %v1039 = vadd.f32 %v1038, %v953
  %v1040 = vadd.f32 %v1039, %v954
  %v1041 = vadd.f32 %v1040, %v955
  %v1042 = vadd.f32 %v1041, %v956
  %v1043 = vadd.f32 %v1042, %v957
  %v1044 = vadd.f32 %v1043, %v958
  %v1045 = vadd.f32 %v1044, %v959
  %v1046 = vadd.f32 %v1045, %v960
  %v1047 = vadd.f32 %v1046, %v961
  %v1048 = vadd.f32 %v1047, %v962
  %v1049 = vadd.f32 %v1048, %v963
  %v1050 = vadd.f32 %v1049, %v964
  %v1051 = vadd.f32 %v1050, %v965
  %v1052 = vadd.f32 %v1051, %v966
  %v1053 = vadd.f32 %v1052, %v967
  %v1054 = vadd.f32 %v1053, %v968
  %v1055 = vadd.f32 %v1054, %v969
  %v1056 = vadd.f32 %v1055, %v970
  %v1057 = vadd.f32 %v1056, %v971
  %v1058 = vadd.f32 %v1057, %v972
  %v1059 = vadd.f32 %v1058, %v973
  %v1060 = vadd.f32 %v1059, %v974
  %v1061 = vadd.f32 %v1060, %v975
  %v1062 = vadd.f32 %v1061, %v976
  %v1063 = vadd.f32 %v1062, %v977
  %v1064 = vadd.f32 %v1063, %v978
  %v1065 = vadd.f32 %v1064, %v979
  %v1066 = vadd.f32 %v1065, %v980
  %v1067 = vadd.f32 %v1066, %v981
  %v1068 = vadd.f32 %v1067, %v982
  %v1069 = vadd.f32 %v1068, %v983
  %v1070 = vadd.f32 %v1069, %v984
  %v1071 = vadd.f32 %v1070, %v985
  %v1072 = vadd.f32 %v1071, %v986
  %v1073 = vadd.f32 %v1072, %v987
  %v1074 = vadd.f32 %v1073, %v988
  %v1075 = vadd.f32 %v1074, %v989
  %v1076 = vadd.f32 %v1075, %v990
  %v1077 = vadd.f32 %v1076, %v991
  %v1078 = vadd.f32 %v1077, %v992
  %v1079 = vadd.f32 %v1078, %v993
  %v1080 = vadd.f32 %v1079, %v994
  %v1081 = vadd.f32 %v1080, %v995
  %v1082 = vadd.f32 %v1081, %v996
  %v1083 = vadd.f32 %v1082, %v997
  %v1084 = vadd.f32 %v1083, %v998
  %v1085 = vadd.f32 %v1084, %v999
  %v1086 = vadd.f32 %v1085, %v1000
  %v1087 = vadd.f32 %v1086, %v1001
  %v1088 = vadd.f32 %v1087, %v1002
  %v1089 = vadd.f32 %v1088, %v1003
  %v1090 = vadd.f32 %v1089, %v1004
  %v1091 = vadd.f32 %v1090, %v1005
  %v1092 = vadd.f32 %v1091, %v1006
  %v1093 = vadd.f32 %v1092, %v1007
  %v1094 = vadd.f32 %v1093, %v1008
  %v1095 = vadd.f32 %v1094, %v1009
  %v1096 = vadd.f32 %v1095, %v1010
  %v1097 = vadd.f32 %v1096, %v1011
  %v1098 = vadd.f32 %v1097, %v1012
  %v1099 = vadd.f32 %v1098, %v1013
  %v1100 = vadd.f32 %v1099, %v1014
  %v1101 = vadd.f32 %v1100, %v1015
  %v1102 = vadd.f32 %v1101, %v1016
  %v1103 = vadd.f32 %v1102, %v1017
  %v1104 = vadd.f32 %v1103, %v1018
  %v1105 = vadd.f32 %v1104, %v1019
  %v1106 = vadd.f32 %v1105, %v1020
  %v1107 = vadd.f32 %v1106, %v1021
  %v1108 = vadd.f32 %v1107, %v1022
  %v1109 = vadd.f32 %v1108, %v1023
  %v1110 = vadd.f32 %v1109, %v1024
  %v1111 = vadd.f32 %v1110, %v1025
  %v1112 = vadd.f32 %v1111, %v1026
  %v1113 = vadd.f32 %v1112, %v1027
  %v1114 = vadd.f32 %v1113, %v1028
  %v1115 = vrot.slane %v1114, 4
  %v1116 = vadd.f32 %v1114, %v1115
  %v1117 = vrot.slane %v1116, 2
  %v1118 = vadd.f32 %v1116, %v1117
  %v1119 = vrot.slane %v1118, 1
  %v1120 = vadd.f32 %v1118, %v1119
  %v1121 = vmul.f32 %v941, 0.001953125
  %v1122 = vmul.f32 %v1120, 0.001953125
  %v1123 = vmul.f32 %v1121, %v1121
  %v1124 = vsub.f32 %v1122, %v1123
  %v1125 = vmax.f32 %v1124, 0.0
  %v1126 = vsub.f32 %v499, %v1121
  %v1127 = vsub.f32 %v502, %v1121
  %v1128 = vsub.f32 %v507, %v1121
  %v1129 = vsub.f32 %v510, %v1121
  %v1130 = vsub.f32 %v515, %v1121
  %v1131 = vsub.f32 %v518, %v1121
  %v1132 = vsub.f32 %v523, %v1121
  %v1133 = vsub.f32 %v526, %v1121
  %v1134 = vsub.f32 %v531, %v1121
  %v1135 = vsub.f32 %v534, %v1121
  %v1136 = vsub.f32 %v539, %v1121
  %v1137 = vsub.f32 %v542, %v1121
  %v1138 = vsub.f32 %v547, %v1121
  %v1139 = vsub.f32 %v550, %v1121
  %v1140 = vsub.f32 %v555, %v1121
  %v1141 = vsub.f32 %v558, %v1121
  %v1142 = vsub.f32 %v563, %v1121
  %v1143 = vsub.f32 %v566, %v1121
  %v1144 = vsub.f32 %v571, %v1121
  %v1145 = vsub.f32 %v574, %v1121
  %v1146 = vsub.f32 %v579, %v1121
  %v1147 = vsub.f32 %v582, %v1121
  %v1148 = vsub.f32 %v587, %v1121
  %v1149 = vsub.f32 %v590, %v1121
  %v1150 = vsub.f32 %v595, %v1121
  %v1151 = vsub.f32 %v598, %v1121
  %v1152 = vsub.f32 %v603, %v1121
  %v1153 = vsub.f32 %v606, %v1121
  %v1154 = vsub.f32 %v611, %v1121
  %v1155 = vsub.f32 %v614, %v1121
  %v1156 = vsub.f32 %v619, %v1121
  %v1157 = vsub.f32 %v622, %v1121
  %v1158 = vsub.f32 %v627, %v1121
  %v1159 = vsub.f32 %v630, %v1121
  %v1160 = vsub.f32 %v635, %v1121
  %v1161 = vsub.f32 %v638, %v1121
  %v1162 = vsub.f32 %v643, %v1121
  %v1163 = vsub.f32 %v646, %v1121
  %v1164 = vsub.f32 %v651, %v1121
  %v1165 = vsub.f32 %v654, %v1121
  %v1166 = vsub.f32 %v659, %v1121
  %v1167 = vsub.f32 %v662, %v1121
  %v1168 = vsub.f32 %v667, %v1121
  %v1169 = vsub.f32 %v670, %v1121
  %v1170 = vsub.f32 %v675, %v1121
  %v1171 = vsub.f32 %v678, %v1121
  %v1172 = vsub.f32 %v683, %v1121
  %v1173 = vsub.f32 %v686, %v1121
  %v1174 = vsub.f32 %v691, %v1121
  %v1175 = vsub.f32 %v694, %v1121
  %v1176 = vsub.f32 %v699, %v1121
  %v1177 = vsub.f32 %v702, %v1121
  %v1178 = vsub.f32 %v707, %v1121
  %v1179 = vsub.f32 %v710, %v1121
  %v1180 = vsub.f32 %v715, %v1121
  %v1181 = vsub.f32 %v718, %v1121
  %v1182 = vsub.f32 %v723, %v1121
  %v1183 = vsub.f32 %v726, %v1121
  %v1184 = vsub.f32 %v731, %v1121
  %v1185 = vsub.f32 %v734, %v1121
  %v1186 = vsub.f32 %v739, %v1121
  %v1187 = vsub.f32 %v742, %v1121
  %v1188 = vsub.f32 %v747, %v1121
  %v1189 = vsub.f32 %v750, %v1121
  %v1190 = vsub.f32 %v755, %v1121
  %v1191 = vsub.f32 %v758, %v1121
  %v1192 = vsub.f32 %v763, %v1121
  %v1193 = vsub.f32 %v766, %v1121
  %v1194 = vsub.f32 %v771, %v1121
  %v1195 = vsub.f32 %v774, %v1121
  %v1196 = vsub.f32 %v779, %v1121
  %v1197 = vsub.f32 %v782, %v1121
  %v1198 = vsub.f32 %v787, %v1121
  %v1199 = vsub.f32 %v790, %v1121
  %v1200 = vsub.f32 %v795, %v1121
  %v1201 = vsub.f32 %v798, %v1121
  %v1202 = vsub.f32 %v803, %v1121
  %v1203 = vsub.f32 %v806, %v1121
  %v1204 = vsub.f32 %v811, %v1121
  %v1205 = vsub.f32 %v814, %v1121
  %v1206 = vsub.f32 %v819, %v1121
  %v1207 = vsub.f32 %v822, %v1121
  %v1208 = vsub.f32 %v827, %v1121
  %v1209 = vsub.f32 %v830, %v1121
  %v1210 = vsub.f32 %v835, %v1121
  %v1211 = vsub.f32 %v838, %v1121
  %v1212 = vsub.f32 %v843, %v1121
  %v1213 = vadd.f32 %v1125, 1e-05
  %v1214 = vrsqrt.pop %v1213
  %v1215 = vmul.f32 %v1126, %v1214
  %v1216 = vmul.f32 %v1127, %v1214
  %v1217 = vmul.f32 %v1128, %v1214
  %v1218 = vmul.f32 %v1129, %v1214
  %v1219 = vmul.f32 %v1130, %v1214
  %v1220 = vmul.f32 %v1131, %v1214
  %v1221 = vmul.f32 %v1132, %v1214
  %v1222 = vmul.f32 %v1133, %v1214
  %v1223 = vmul.f32 %v1134, %v1214
  %v1224 = vmul.f32 %v1135, %v1214
  %v1225 = vmul.f32 %v1136, %v1214
  %v1226 = vmul.f32 %v1137, %v1214
  %v1227 = vmul.f32 %v1138, %v1214
  %v1228 = vmul.f32 %v1139, %v1214
  %v1229 = vmul.f32 %v1140, %v1214
  %v1230 = vmul.f32 %v1141, %v1214
  %v1231 = vmul.f32 %v1142, %v1214
  %v1232 = vmul.f32 %v1143, %v1214
  %v1233 = vmul.f32 %v1144, %v1214
  %v1234 = vmul.f32 %v1145, %v1214
  %v1235 = vmul.f32 %v1146, %v1214
  %v1236 = vmul.f32 %v1147, %v1214
  %v1237 = vmul.f32 %v1148, %v1214
  %v1238 = vmul.f32 %v1149, %v1214
  %v1239 = vmul.f32 %v1150, %v1214
  %v1240 = vmul.f32 %v1151, %v1214
  %v1241 = vmul.f32 %v1152, %v1214
  %v1242 = vmul.f32 %v1153, %v1214
  %v1243 = vmul.f32 %v1154, %v1214
  %v1244 = vmul.f32 %v1155, %v1214
  %v1245 = vmul.f32 %v1156, %v1214
  %v1246 = vmul.f32 %v1157, %v1214
  %v1247 = vmul.f32 %v1158, %v1214
  %v1248 = vmul.f32 %v1159, %v1214
  %v1249 = vmul.f32 %v1160, %v1214
  %v1250 = vmul.f32 %v1161, %v1214
  %v1251 = vmul.f32 %v1162, %v1214
  %v1252 = vmul.f32 %v1163, %v1214
  %v1253 = vmul.f32 %v1164, %v1214
  %v1254 = vmul.f32 %v1165, %v1214
  %v1255 = vmul.f32 %v1166, %v1214
  %v1256 = vmul.f32 %v1167, %v1214
  %v1257 = vmul.f32 %v1168, %v1214
  %v1258 = vmul.f32 %v1169, %v1214
  %v1259 = vmul.f32 %v1170, %v1214
  %v1260 = vmul.f32 %v1171, %v1214
  %v1261 = vmul.f32 %v1172, %v1214
  %v1262 = vmul.f32 %v1173, %v1214
  %v1263 = vmul.f32 %v1174, %v1214
  %v1264 = vmul.f32 %v1175, %v1214
  %v1265 = vmul.f32 %v1176, %v1214
  %v1266 = vmul.f32 %v1177, %v1214
  %v1267 = vmul.f32 %v1178, %v1214
  %v1268 = vmul.f32 %v1179, %v1214
  %v1269 = vmul.f32 %v1180, %v1214
  %v1270 = vmul.f32 %v1181, %v1214
  %v1271 = vmul.f32 %v1182, %v1214
  %v1272 = vmul.f32 %v1183, %v1214
  %v1273 = vmul.f32 %v1184, %v1214
  %v1274 = vmul.f32 %v1185, %v1214
  %v1275 = vmul.f32 %v1186, %v1214
  %v1276 = vmul.f32 %v1187, %v1214
  %v1277 = vmul.f32 %v1188, %v1214
  %v1278 = vmul.f32 %v1189, %v1214
  %v1279 = vmul.f32 %v1190, %v1214
  %v1280 = vmul.f32 %v1191, %v1214
  %v1281 = vmul.f32 %v1192, %v1214
  %v1282 = vmul.f32 %v1193, %v1214
  %v1283 = vmul.f32 %v1194, %v1214
  %v1284 = vmul.f32 %v1195, %v1214
  %v1285 = vmul.f32 %v1196, %v1214
  %v1286 = vmul.f32 %v1197, %v1214
  %v1287 = vmul.f32 %v1198, %v1214
  %v1288 = vmul.f32 %v1199, %v1214
  %v1289 = vmul.f32 %v1200, %v1214
  %v1290 = vmul.f32 %v1201, %v1214
  %v1291 = vmul.f32 %v1202, %v1214
  %v1292 = vmul.f32 %v1203, %v1214
  %v1293 = vmul.f32 %v1204, %v1214
  %v1294 = vmul.f32 %v1205, %v1214
  %v1295 = vmul.f32 %v1206, %v1214
  %v1296 = vmul.f32 %v1207, %v1214
  %v1297 = vmul.f32 %v1208, %v1214
  %v1298 = vmul.f32 %v1209, %v1214
  %v1299 = vmul.f32 %v1210, %v1214
  %v1300 = vmul.f32 %v1211, %v1214
  %v1301 = vmul.f32 %v1212, %v1214
  %v1303 = vlaneseq
  %v1304 = vshrl.u32 %v1303, 7
  %v1305 = vsub.s32 0, %v1304
  %v1306 = vrot.slane %v848, %v1305
  %v1308 = vmul.f32 %v1215, %v1306
  %v1309 = vmul.f32 %v1216, %v1306
  %v1310 = vmul.f32 %v1217, %v1306
  %v1311 = vmul.f32 %v1218, %v1306
  %v1312 = vmul.f32 %v1219, %v1306
  %v1313 = vmul.f32 %v1220, %v1306
  %v1314 = vmul.f32 %v1221, %v1306
  %v1315 = vmul.f32 %v1222, %v1306
  %v1316 = vmul.f32 %v1223, %v1306
  %v1317 = vmul.f32 %v1224, %v1306
  %v1318 = vmul.f32 %v1225, %v1306
  %v1319 = vmul.f32 %v1226, %v1306
  %v1320 = vmul.f32 %v1227, %v1306
  %v1321 = vmul.f32 %v1228, %v1306
  %v1322 = vmul.f32 %v1229, %v1306
  %v1323 = vmul.f32 %v1230, %v1306
  %v1324 = vmul.f32 %v1231, %v1306
  %v1325 = vmul.f32 %v1232, %v1306
  %v1326 = vmul.f32 %v1233, %v1306
  %v1327 = vmul.f32 %v1234, %v1306
  %v1328 = vmul.f32 %v1235, %v1306
  %v1329 = vmul.f32 %v1236, %v1306
  %v1330 = vmul.f32 %v1237, %v1306
  %v1331 = vmul.f32 %v1238, %v1306
  %v1332 = vmul.f32 %v1239, %v1306
  %v1333 = vmul.f32 %v1240, %v1306
  %v1334 = vmul.f32 %v1241, %v1306
  %v1335 = vmul.f32 %v1242, %v1306
  %v1336 = vmul.f32 %v1243, %v1306
  %v1337 = vmul.f32 %v1244, %v1306
  %v1338 = vmul.f32 %v1245, %v1306
  %v1339 = vmul.f32 %v1246, %v1306
  %v1340 = vmul.f32 %v1247, %v1306
  %v1341 = vmul.f32 %v1248, %v1306
  %v1342 = vmul.f32 %v1249, %v1306
  %v1343 = vmul.f32 %v1250, %v1306
  %v1344 = vmul.f32 %v1251, %v1306
  %v1345 = vmul.f32 %v1252, %v1306
  %v1346 = vmul.f32 %v1253, %v1306
  %v1347 = vmul.f32 %v1254, %v1306
  %v1348 = vmul.f32 %v1255, %v1306
  %v1349 = vmul.f32 %v1256, %v1306
  %v1350 = vmul.f32 %v1257, %v1306
  %v1351 = vmul.f32 %v1258, %v1306
  %v1352 = vmul.f32 %v1259, %v1306
  %v1353 = vmul.f32 %v1260, %v1306
  %v1354 = vmul.f32 %v1261, %v1306
  %v1355 = vmul.f32 %v1262, %v1306
  %v1356 = vmul.f32 %v1263, %v1306
  %v1357 = vmul.f32 %v1264, %v1306
  %v1358 = vmul.f32 %v1265, %v1306
  %v1359 = vmul.f32 %v1266, %v1306
  %v1360 = vmul.f32 %v1267, %v1306
  %v1361 = vmul.f32 %v1268, %v1306
  %v1362 = vmul.f32 %v1269, %v1306
  %v1363 = vmul.f32 %v1270, %v1306
  %v1364 = vmul.f32 %v1271, %v1306
  %v1365 = vmul.f32 %v1272, %v1306
  %v1366 = vmul.f32 %v1273, %v1306
  %v1367 = vmul.f32 %v1274, %v1306
  %v1368 = vmul.f32 %v1275, %v1306
  %v1369 = vmul.f32 %v1276, %v1306
  %v1370 = vmul.f32 %v1277, %v1306
  %v1371 = vmul.f32 %v1278, %v1306
  %v1372 = vmul.f32 %v1279, %v1306
  %v1373 = vmul.f32 %v1280, %v1306
  %v1374 = vmul.f32 %v1281, %v1306
  %v1375 = vmul.f32 %v1282, %v1306
  %v1376 = vmul.f32 %v1283, %v1306
  %v1377 = vmul.f32 %v1284, %v1306
  %v1378 = vmul.f32 %v1285, %v1306
  %v1379 = vmul.f32 %v1286, %v1306
  %v1380 = vmul.f32 %v1287, %v1306
  %v1381 = vmul.f32 %v1288, %v1306
  %v1382 = vmul.f32 %v1289, %v1306
  %v1383 = vmul.f32 %v1290, %v1306
  %v1384 = vmul.f32 %v1291, %v1306
  %v1385 = vmul.f32 %v1292, %v1306
  %v1386 = vmul.f32 %v1293, %v1306
  %v1387 = vmul.f32 %v1294, %v1306
  %v1388 = vmul.f32 %v1295, %v1306
  %v1389 = vmul.f32 %v1296, %v1306
  %v1390 = vmul.f32 %v1297, %v1306
  %v1391 = vmul.f32 %v1298, %v1306
  %v1392 = vmul.f32 %v1299, %v1306
  %v1393 = vmul.f32 %v1300, %v1306
  %v1394 = vmul.f32 %v1301, %v1306
  %v1396 = vlaneseq
  %v1397 = vshrl.u32 %v1396, 7
  %v1398 = vsub.s32 0, %v1397
  %v1399 = vrot.slane %v849, %v1398
  %v1401 = vadd.f32 %v1308, %v1399
  %v1402 = vadd.f32 %v1309, %v1399
  %v1403 = vadd.f32 %v1310, %v1399
  %v1404 = vadd.f32 %v1311, %v1399
  %v1405 = vadd.f32 %v1312, %v1399
  %v1406 = vadd.f32 %v1313, %v1399
  %v1407 = vadd.f32 %v1314, %v1399
  %v1408 = vadd.f32 %v1315, %v1399
  %v1409 = vadd.f32 %v1316, %v1399
  %v1410 = vadd.f32 %v1317, %v1399
  %v1411 = vadd.f32 %v1318, %v1399
  %v1412 = vadd.f32 %v1319, %v1399
  %v1413 = vadd.f32 %v1320, %v1399
  %v1414 = vadd.f32 %v1321, %v1399
  %v1415 = vadd.f32 %v1322, %v1399
  %v1416 = vadd.f32 %v1323, %v1399
  %v1417 = vadd.f32 %v1324, %v1399
  %v1418 = vadd.f32 %v1325, %v1399
  %v1419 = vadd.f32 %v1326, %v1399
  %v1420 = vadd.f32 %v1327, %v1399
  %v1421 = vadd.f32 %v1328, %v1399
  %v1422 = vadd.f32 %v1329, %v1399
  %v1423 = vadd.f32 %v1330, %v1399
  %v1424 = vadd.f32 %v1331, %v1399
  %v1425 = vadd.f32 %v1332, %v1399
  %v1426 = vadd.f32 %v1333, %v1399
  %v1427 = vadd.f32 %v1334, %v1399
  %v1428 = vadd.f32 %v1335, %v1399
  %v1429 = vadd.f32 %v1336, %v1399
  %v1430 = vadd.f32 %v1337, %v1399
  %v1431 = vadd.f32 %v1338, %v1399
  %v1432 = vadd.f32 %v1339, %v1399
  %v1433 = vadd.f32 %v1340, %v1399
  %v1434 = vadd.f32 %v1341, %v1399
  %v1435 = vadd.f32 %v1342, %v1399
  %v1436 = vadd.f32 %v1343, %v1399
  %v1437 = vadd.f32 %v1344, %v1399
  %v1438 = vadd.f32 %v1345, %v1399
  %v1439 = vadd.f32 %v1346, %v1399
  %v1440 = vadd.f32 %v1347, %v1399
  %v1441 = vadd.f32 %v1348, %v1399
  %v1442 = vadd.f32 %v1349, %v1399
  %v1443 = vadd.f32 %v1350, %v1399
  %v1444 = vadd.f32 %v1351, %v1399
  %v1445 = vadd.f32 %v1352, %v1399
  %v1446 = vadd.f32 %v1353, %v1399
  %v1447 = vadd.f32 %v1354, %v1399
  %v1448 = vadd.f32 %v1355, %v1399
  %v1449 = vadd.f32 %v1356, %v1399
  %v1450 = vadd.f32 %v1357, %v1399
  %v1451 = vadd.f32 %v1358, %v1399
  %v1452 = vadd.f32 %v1359, %v1399
  %v1453 = vadd.f32 %v1360, %v1399
  %v1454 = vadd.f32 %v1361, %v1399
  %v1455 = vadd.f32 %v1362, %v1399
  %v1456 = vadd.f32 %v1363, %v1399
  %v1457 = vadd.f32 %v1364, %v1399
  %v1458 = vadd.f32 %v1365, %v1399
  %v1459 = vadd.f32 %v1366, %v1399
  %v1460 = vadd.f32 %v1367, %v1399
  %v1461 = vadd.f32 %v1368, %v1399
  %v1462 = vadd.f32 %v1369, %v1399
  %v1463 = vadd.f32 %v1370, %v1399
  %v1464 = vadd.f32 %v1371, %v1399
  %v1465 = vadd.f32 %v1372, %v1399
  %v1466 = vadd.f32 %v1373, %v1399
  %v1467 = vadd.f32 %v1374, %v1399
  %v1468 = vadd.f32 %v1375, %v1399
  %v1469 = vadd.f32 %v1376, %v1399
  %v1470 = vadd.f32 %v1377, %v1399
  %v1471 = vadd.f32 %v1378, %v1399
  %v1472 = vadd.f32 %v1379, %v1399
  %v1473 = vadd.f32 %v1380, %v1399
  %v1474 = vadd.f32 %v1381, %v1399
  %v1475 = vadd.f32 %v1382, %v1399
  %v1476 = vadd.f32 %v1383, %v1399
  %v1477 = vadd.f32 %v1384, %v1399
  %v1478 = vadd.f32 %v1385, %v1399
  %v1479 = vadd.f32 %v1386, %v1399
  %v1480 = vadd.f32 %v1387, %v1399
  %v1481 = vadd.f32 %v1388, %v1399
  %v1482 = vadd.f32 %v1389, %v1399
  %v1483 = vadd.f32 %v1390, %v1399
  %v1484 = vadd.f32 %v1391, %v1399
  %v1485 = vadd.f32 %v1392, %v1399
  %v1486 = vadd.f32 %v1393, %v1399
  %v1487 = vadd.f32 %v1394, %v1399
  %v1488 = vmax.f32 %v1401, 0.0
  %v1489 = vmax.f32 %v1402, 0.0
  %v1490 = vmax.f32 %v1403, 0.0
  %v1491 = vmax.f32 %v1404, 0.0
  %v1492 = vmax.f32 %v1405, 0.0
  %v1493 = vmax.f32 %v1406, 0.0
  %v1494 = vmax.f32 %v1407, 0.0
  %v1495 = vmax.f32 %v1408, 0.0
  %v1496 = vmax.f32 %v1409, 0.0
  %v1497 = vmax.f32 %v1410, 0.0
  %v1498 = vmax.f32 %v1411, 0.0
  %v1499 = vmax.f32 %v1412, 0.0
  %v1500 = vmax.f32 %v1413, 0.0
  %v1501 = vmax.f32 %v1414, 0.0
  %v1502 = vmax.f32 %v1415, 0.0
  %v1503 = vmax.f32 %v1416, 0.0
  %v1504 = vmax.f32 %v1417, 0.0
  %v1505 = vmax.f32 %v1418, 0.0
  %v1506 = vmax.f32 %v1419, 0.0
  %v1507 = vmax.f32 %v1420, 0.0
  %v1508 = vmax.f32 %v1421, 0.0
  %v1509 = vmax.f32 %v1422, 0.0
  %v1510 = vmax.f32 %v1423, 0.0
  %v1511 = vmax.f32 %v1424, 0.0
  %v1512 = vmax.f32 %v1425, 0.0
  %v1513 = vmax.f32 %v1426, 0.0
  %v1514 = vmax.f32 %v1427, 0.0
  %v1515 = vmax.f32 %v1428, 0.0
  %v1516 = vmax.f32 %v1429, 0.0
  %v1517 = vmax.f32 %v1430, 0.0
  %v1518 = vmax.f32 %v1431, 0.0
  %v1519 = vmax.f32 %v1432, 0.0
  %v1520 = vmax.f32 %v1433, 0.0
  %v1521 = vmax.f32 %v1434, 0.0
  %v1522 = vmax.f32 %v1435, 0.0
  %v1523 = vmax.f32 %v1436, 0.0
  %v1524 = vmax.f32 %v1437, 0.0
  %v1525 = vmax.f32 %v1438, 0.0
  %v1526 = vmax.f32 %v1439, 0.0
  %v1527 = vmax.f32 %v1440, 0.0
  %v1528 = vmax.f32 %v1441, 0.0
  %v1529 = vmax.f32 %v1442, 0.0
  %v1530 = vmax.f32 %v1443, 0.0
  %v1531 = vmax.f32 %v1444, 0.0
  %v1532 = vmax.f32 %v1445, 0.0
  %v1533 = vmax.f32 %v1446, 0.0
  %v1534 = vmax.f32 %v1447, 0.0
  %v1535 = vmax.f32 %v1448, 0.0
  %v1536 = vmax.f32 %v1449, 0.0
  %v1537 = vmax.f32 %v1450, 0.0
  %v1538 = vmax.f32 %v1451, 0.0
  %v1539 = vmax.f32 %v1452, 0.0
  %v1540 = vmax.f32 %v1453, 0.0
  %v1541 = vmax.f32 %v1454, 0.0
  %v1542 = vmax.f32 %v1455, 0.0
  %v1543 = vmax.f32 %v1456, 0.0
  %v1544 = vmax.f32 %v1457, 0.0
  %v1545 = vmax.f32 %v1458, 0.0
  %v1546 = vmax.f32 %v1459, 0.0
  %v1547 = vmax.f32 %v1460, 0.0
  %v1548 = vmax.f32 %v1461, 0.0
  %v1549 = vmax.f32 %v1462, 0.0
  %v1550 = vmax.f32 %v1463, 0.0
  %v1551 = vmax.f32 %v1464, 0.0
  %v1552 = vmax.f32 %v1465, 0.0
  %v1553 = vmax.f32 %v1466, 0.0
  %v1554 = vmax.f32 %v1467, 0.0
  %v1555 = vmax.f32 %v1468, 0.0
  %v1556 = vmax.f32 %v1469, 0.0
  %v1557 = vmax.f32 %v1470, 0.0
  %v1558 = vmax.f32 %v1471, 0.0
  %v1559 = vmax.f32 %v1472, 0.0
  %v1560 = vmax.f32 %v1473, 0.0
  %v1561 = vmax.f32 %v1474, 0.0
  %v1562 = vmax.f32 %v1475, 0.0
  %v1563 = vmax.f32 %v1476, 0.0
  %v1564 = vmax.f32 %v1477, 0.0
  %v1565 = vmax.f32 %v1478, 0.0
  %v1566 = vmax.f32 %v1479, 0.0
  %v1567 = vmax.f32 %v1480, 0.0
  %v1568 = vmax.f32 %v1481, 0.0
  %v1569 = vmax.f32 %v1482, 0.0
  %v1570 = vmax.f32 %v1483, 0.0
  %v1571 = vmax.f32 %v1484, 0.0
  %v1572 = vmax.f32 %v1485, 0.0
  %v1573 = vmax.f32 %v1486, 0.0
  %v1574 = vmax.f32 %v1487, 0.0
  %v1575 = vld [vmem:[%s1] sm:$0xff]
  %v1576 = vld [vmem:[%s1 + $0x8] sm:$0xff]
  %v1577 = vld [vmem:[%s1 + $0x10] sm:$0xff]
  %v1578 = vld [vmem:[%s1 + $0x18] sm:$0xff]
  %v1579 = vld [vmem:[%s1 + $0x20] sm:$0xff]
  %v1580 = vld [vmem:[%s1 + $0x28] sm:$0xff]
  %v1581 = vld [vmem:[%s1 + $0x30] sm:$0xff]
  %v1582 = vld [vmem:[%s1 + $0x38] sm:$0xff]
  %v1583 = vld [vmem:[%s1 + $0x40] sm:$0xff]
  %v1584 = vld [vmem:[%s1 + $0x48] sm:$0xff]
  %v1585 = vld [vmem:[%s1 + $0x50] sm:$0xff]
  %v1586 = vld [vmem:[%s1 + $0x58] sm:$0xff]
  %v1587 = vld [vmem:[%s1 + $0x60] sm:$0xff]
  %v1588 = vld [vmem:[%s1 + $0x68] sm:$0xff]
  %v1589 = vld [vmem:[%s1 + $0x70] sm:$0xff]
  %v1590 = vld [vmem:[%s1 + $0x78] sm:$0xff]
  %v1591 = vld [vmem:[%s1 + $0x80] sm:$0xff]
  %v1592 = vld [vmem:[%s1 + $0x88] sm:$0xff]
  %v1593 = vld [vmem:[%s1 + $0x90] sm:$0xff]
  %v1594 = vld [vmem:[%s1 + $0x98] sm:$0xff]
  %v1595 = vld [vmem:[%s1 + $0xa0] sm:$0xff]
  %v1596 = vld [vmem:[%s1 + $0xa8] sm:$0xff]
  %v1597 = vld [vmem:[%s1 + $0xb0] sm:$0xff]
  %v1598 = vld [vmem:[%s1 + $0xb8] sm:$0xff]
  %v1599 = vld [vmem:[%s1 + $0xc0] sm:$0xff]
  %v1600 = vld [vmem:[%s1 + $0xc8] sm:$0xff]
  %v1601 = vld [vmem:[%s1 + $0xd0] sm:$0xff]
  %v1602 = vld [vmem:[%s1 + $0xd8] sm:$0xff]
  %v1603 = vld [vmem:[%s1 + $0xe0] sm:$0xff]
  %v1604 = vld [vmem:[%s1 + $0xe8] sm:$0xff]
  %v1605 = vld [vmem:[%s1 + $0xf0] sm:$0xff]
  %v1606 = vld [vmem:[%s1 + $0xf8] sm:$0xff]
  %v1607 = vld [vmem:[%s1 + $0x100] sm:$0xff]
  %v1608 = vld [vmem:[%s1 + $0x108] sm:$0xff]
  %v1609 = vld [vmem:[%s1 + $0x110] sm:$0xff]
  %v1610 = vld [vmem:[%s1 + $0x118] sm:$0xff]
  %v1611 = vld [vmem:[%s1 + $0x120] sm:$0xff]
  %v1612 = vld [vmem:[%s1 + $0x128] sm:$0xff]
  %v1613 = vld [vmem:[%s1 + $0x130] sm:$0xff]
  %v1614 = vld [vmem:[%s1 + $0x138] sm:$0xff]
  %v1615 = vld [vmem:[%s1 + $0x140] sm:$0xff]
  %v1616 = vld [vmem:[%s1 + $0x148] sm:$0xff]
  %v1617 = vld [vmem:[%s1 + $0x150] sm:$0xff]
  %v1618 = vld [vmem:[%s1 + $0x158] sm:$0xff]
  %v1619 = vld [vmem:[%s1 + $0x160] sm:$0xff]
  %v1620 = vld [vmem:[%s1 + $0x168] sm:$0xff]
  %v1621 = vld [vmem:[%s1 + $0x170] sm:$0xff]
  %v1622 = vld [vmem:[%s1 + $0x178] sm:$0xff]
  %v1623 = vld [vmem:[%s1 + $0x180] sm:$0xff]
  %v1624 = vld [vmem:[%s1 + $0x188] sm:$0xff]
  %v1625 = vld [vmem:[%s1 + $0x190] sm:$0xff]
  %v1626 = vld [vmem:[%s1 + $0x198] sm:$0xff]
  %v1627 = vld [vmem:[%s1 + $0x1a0] sm:$0xff]
  %v1628 = vld [vmem:[%s1 + $0x1a8] sm:$0xff]
  %v1629 = vld [vmem:[%s1 + $0x1b0] sm:$0xff]
  %v1630 = vld [vmem:[%s1 + $0x1b8] sm:$0xff]
  %v1631 = vld [vmem:[%s1 + $0x1c0] sm:$0xff]
  %v1632 = vld [vmem:[%s1 + $0x1c8] sm:$0xff]
  %v1633 = vld [vmem:[%s1 + $0x1d0] sm:$0xff]
  %v1634 = vld [vmem:[%s1 + $0x1d8] sm:$0xff]
  %v1635 = vld [vmem:[%s1 + $0x1e0] sm:$0xff]
  %v1636 = vld [vmem:[%s1 + $0x1e8] sm:$0xff]
  %v1637 = vld [vmem:[%s1 + $0x1f0] sm:$0xff]
  %v1638 = vld [vmem:[%s1 + $0x1f8] sm:$0xff]
  %v1639 = vld [vmem:[%s1 + $0x200] sm:$0xff]
  %v1640 = vld [vmem:[%s1 + $0x208] sm:$0xff]
  %v1641 = vld [vmem:[%s1 + $0x210] sm:$0xff]
  %v1642 = vld [vmem:[%s1 + $0x218] sm:$0xff]
  %v1643 = vld [vmem:[%s1 + $0x220] sm:$0xff]
  %v1644 = vld [vmem:[%s1 + $0x228] sm:$0xff]
  %v1645 = vld [vmem:[%s1 + $0x230] sm:$0xff]
  %v1646 = vld [vmem:[%s1 + $0x238] sm:$0xff]
  %v1647 = vld [vmem:[%s1 + $0x240] sm:$0xff]
  %v1648 = vld [vmem:[%s1 + $0x248] sm:$0xff]
  %v1649 = vld [vmem:[%s1 + $0x250] sm:$0xff]
  %v1650 = vld [vmem:[%s1 + $0x258] sm:$0xff]
  %v1651 = vld [vmem:[%s1 + $0x260] sm:$0xff]
  %v1652 = vld [vmem:[%s1 + $0x268] sm:$0xff]
  %v1653 = vld [vmem:[%s1 + $0x270] sm:$0xff]
  %v1654 = vld [vmem:[%s1 + $0x278] sm:$0xff]
  %v1655 = vld [vmem:[%s1 + $0x280] sm:$0xff]
  %v1656 = vld [vmem:[%s1 + $0x288] sm:$0xff]
  %v1657 = vld [vmem:[%s1 + $0x290] sm:$0xff]
  %v1658 = vld [vmem:[%s1 + $0x298] sm:$0xff]
  %v1659 = vld [vmem:[%s1 + $0x2a0] sm:$0xff]
  %v1660 = vld [vmem:[%s1 + $0x2a8] sm:$0xff]
  %v1661 = vld [vmem:[%s1 + $0x2b0] sm:$0xff]
  %1663 = vset.pattern.permute.xlu0 0
  %1664 = vperm.xlu0 %1663, %v1575
  %v1665 = vpop.permute.xlu0 %1664
  %1668 = vset.pattern.permute.xlu0 0
  %1669 = vperm.xlu0 %1668, %v1576
  %v1670 = vpop.permute.xlu0 %1669
  %1673 = vset.pattern.permute.xlu0 0
  %1674 = vperm.xlu0 %1673, %v1577
  %v1675 = vpop.permute.xlu0 %1674
  %1678 = vset.pattern.permute.xlu0 0
  %1679 = vperm.xlu0 %1678, %v1578
  %v1680 = vpop.permute.xlu0 %1679
  %1683 = vset.pattern.permute.xlu0 0
  %1684 = vperm.xlu0 %1683, %v1579
  %v1685 = vpop.permute.xlu0 %1684
  %1688 = vset.pattern.permute.xlu0 0
  %1689 = vperm.xlu0 %1688, %v1580
  %v1690 = vpop.permute.xlu0 %1689
  %1693 = vset.pattern.permute.xlu0 0
  %1694 = vperm.xlu0 %1693, %v1581
  %v1695 = vpop.permute.xlu0 %1694
  %1698 = vset.pattern.permute.xlu0 0
  %1699 = vperm.xlu0 %1698, %v1582
  %v1700 = vpop.permute.xlu0 %1699
  %1703 = vset.pattern.permute.xlu0 0
  %1704 = vperm.xlu0 %1703, %v1583
  %v1705 = vpop.permute.xlu0 %1704
  %1708 = vset.pattern.permute.xlu0 0
  %1709 = vperm.xlu0 %1708, %v1584
  %v1710 = vpop.permute.xlu0 %1709
  %1713 = vset.pattern.permute.xlu0 0
  %1714 = vperm.xlu0 %1713, %v1585
  %v1715 = vpop.permute.xlu0 %1714
  %1718 = vset.pattern.permute.xlu0 0
  %1719 = vperm.xlu0 %1718, %v1586
  %v1720 = vpop.permute.xlu0 %1719
  %1723 = vset.pattern.permute.xlu0 0
  %1724 = vperm.xlu0 %1723, %v1587
  %v1725 = vpop.permute.xlu0 %1724
  %1728 = vset.pattern.permute.xlu0 0
  %1729 = vperm.xlu0 %1728, %v1588
  %v1730 = vpop.permute.xlu0 %1729
  %1733 = vset.pattern.permute.xlu0 0
  %1734 = vperm.xlu0 %1733, %v1589
  %v1735 = vpop.permute.xlu0 %1734
  %1738 = vset.pattern.permute.xlu0 0
  %1739 = vperm.xlu0 %1738, %v1590
  %v1740 = vpop.permute.xlu0 %1739
  %1743 = vset.pattern.permute.xlu0 0
  %1744 = vperm.xlu0 %1743, %v1591
  %v1745 = vpop.permute.xlu0 %1744
  %1748 = vset.pattern.permute.xlu0 0
  %1749 = vperm.xlu0 %1748, %v1592
  %v1750 = vpop.permute.xlu0 %1749
  %1753 = vset.pattern.permute.xlu0 0
  %1754 = vperm.xlu0 %1753, %v1593
  %v1755 = vpop.permute.xlu0 %1754
  %1758 = vset.pattern.permute.xlu0 0
  %1759 = vperm.xlu0 %1758, %v1594
  %v1760 = vpop.permute.xlu0 %1759
  %1763 = vset.pattern.permute.xlu0 0
  %1764 = vperm.xlu0 %1763, %v1595
  %v1765 = vpop.permute.xlu0 %1764
  %1768 = vset.pattern.permute.xlu0 0
  %1769 = vperm.xlu0 %1768, %v1596
  %v1770 = vpop.permute.xlu0 %1769
  %1773 = vset.pattern.permute.xlu0 0
  %1774 = vperm.xlu0 %1773, %v1597
  %v1775 = vpop.permute.xlu0 %1774
  %1778 = vset.pattern.permute.xlu0 0
  %1779 = vperm.xlu0 %1778, %v1598
  %v1780 = vpop.permute.xlu0 %1779
  %1783 = vset.pattern.permute.xlu0 0
  %1784 = vperm.xlu0 %1783, %v1599
  %v1785 = vpop.permute.xlu0 %1784
  %1788 = vset.pattern.permute.xlu0 0
  %1789 = vperm.xlu0 %1788, %v1600
  %v1790 = vpop.permute.xlu0 %1789
  %1793 = vset.pattern.permute.xlu0 0
  %1794 = vperm.xlu0 %1793, %v1601
  %v1795 = vpop.permute.xlu0 %1794
  %1798 = vset.pattern.permute.xlu0 0
  %1799 = vperm.xlu0 %1798, %v1602
  %v1800 = vpop.permute.xlu0 %1799
  %1803 = vset.pattern.permute.xlu0 0
  %1804 = vperm.xlu0 %1803, %v1603
  %v1805 = vpop.permute.xlu0 %1804
  %1808 = vset.pattern.permute.xlu0 0
  %1809 = vperm.xlu0 %1808, %v1604
  %v1810 = vpop.permute.xlu0 %1809
  %1813 = vset.pattern.permute.xlu0 0
  %1814 = vperm.xlu0 %1813, %v1605
  %v1815 = vpop.permute.xlu0 %1814
  %1818 = vset.pattern.permute.xlu0 0
  %1819 = vperm.xlu0 %1818, %v1606
  %v1820 = vpop.permute.xlu0 %1819
  %1823 = vset.pattern.permute.xlu0 0
  %1824 = vperm.xlu0 %1823, %v1607
  %v1825 = vpop.permute.xlu0 %1824
  %1828 = vset.pattern.permute.xlu0 0
  %1829 = vperm.xlu0 %1828, %v1608
  %v1830 = vpop.permute.xlu0 %1829
  %1833 = vset.pattern.permute.xlu0 0
  %1834 = vperm.xlu0 %1833, %v1609
  %v1835 = vpop.permute.xlu0 %1834
  %1838 = vset.pattern.permute.xlu0 0
  %1839 = vperm.xlu0 %1838, %v1610
  %v1840 = vpop.permute.xlu0 %1839
  %1843 = vset.pattern.permute.xlu0 0
  %1844 = vperm.xlu0 %1843, %v1611
  %v1845 = vpop.permute.xlu0 %1844
  %1848 = vset.pattern.permute.xlu0 0
  %1849 = vperm.xlu0 %1848, %v1612
  %v1850 = vpop.permute.xlu0 %1849
  %1853 = vset.pattern.permute.xlu0 0
  %1854 = vperm.xlu0 %1853, %v1613
  %v1855 = vpop.permute.xlu0 %1854
  %1858 = vset.pattern.permute.xlu0 0
  %1859 = vperm.xlu0 %1858, %v1614
  %v1860 = vpop.permute.xlu0 %1859
  %1863 = vset.pattern.permute.xlu0 0
  %1864 = vperm.xlu0 %1863, %v1615
  %v1865 = vpop.permute.xlu0 %1864
  %1868 = vset.pattern.permute.xlu0 0
  %1869 = vperm.xlu0 %1868, %v1616
  %v1870 = vpop.permute.xlu0 %1869
  %1873 = vset.pattern.permute.xlu0 0
  %1874 = vperm.xlu0 %1873, %v1617
  %v1875 = vpop.permute.xlu0 %1874
  %1878 = vset.pattern.permute.xlu0 0
  %1879 = vperm.xlu0 %1878, %v1618
  %v1880 = vpop.permute.xlu0 %1879
  %1883 = vset.pattern.permute.xlu0 0
  %1884 = vperm.xlu0 %1883, %v1619
  %v1885 = vpop.permute.xlu0 %1884
  %1888 = vset.pattern.permute.xlu0 0
  %1889 = vperm.xlu0 %1888, %v1620
  %v1890 = vpop.permute.xlu0 %1889
  %1893 = vset.pattern.permute.xlu0 0
  %1894 = vperm.xlu0 %1893, %v1621
  %v1895 = vpop.permute.xlu0 %1894
  %1898 = vset.pattern.permute.xlu0 0
  %1899 = vperm.xlu0 %1898, %v1622
  %v1900 = vpop.permute.xlu0 %1899
  %1903 = vset.pattern.permute.xlu0 0
  %1904 = vperm.xlu0 %1903, %v1623
  %v1905 = vpop.permute.xlu0 %1904
  %1908 = vset.pattern.permute.xlu0 0
  %1909 = vperm.xlu0 %1908, %v1624
  %v1910 = vpop.permute.xlu0 %1909
  %1913 = vset.pattern.permute.xlu0 0
  %1914 = vperm.xlu0 %1913, %v1625
  %v1915 = vpop.permute.xlu0 %1914
  %1918 = vset.pattern.permute.xlu0 0
  %1919 = vperm.xlu0 %1918, %v1626
  %v1920 = vpop.permute.xlu0 %1919
  %1923 = vset.pattern.permute.xlu0 0
  %1924 = vperm.xlu0 %1923, %v1627
  %v1925 = vpop.permute.xlu0 %1924
  %1928 = vset.pattern.permute.xlu0 0
  %1929 = vperm.xlu0 %1928, %v1628
  %v1930 = vpop.permute.xlu0 %1929
  %1933 = vset.pattern.permute.xlu0 0
  %1934 = vperm.xlu0 %1933, %v1629
  %v1935 = vpop.permute.xlu0 %1934
  %1938 = vset.pattern.permute.xlu0 0
  %1939 = vperm.xlu0 %1938, %v1630
  %v1940 = vpop.permute.xlu0 %1939
  %1943 = vset.pattern.permute.xlu0 0
  %1944 = vperm.xlu0 %1943, %v1631
  %v1945 = vpop.permute.xlu0 %1944
  %1948 = vset.pattern.permute.xlu0 0
  %1949 = vperm.xlu0 %1948, %v1632
  %v1950 = vpop.permute.xlu0 %1949
  %1953 = vset.pattern.permute.xlu0 0
  %1954 = vperm.xlu0 %1953, %v1633
  %v1955 = vpop.permute.xlu0 %1954
  %1958 = vset.pattern.permute.xlu0 0
  %1959 = vperm.xlu0 %1958, %v1634
  %v1960 = vpop.permute.xlu0 %1959
  %1963 = vset.pattern.permute.xlu0 0
  %1964 = vperm.xlu0 %1963, %v1635
  %v1965 = vpop.permute.xlu0 %1964
  %1968 = vset.pattern.permute.xlu0 0
  %1969 = vperm.xlu0 %1968, %v1636
  %v1970 = vpop.permute.xlu0 %1969
  %1973 = vset.pattern.permute.xlu0 0
  %1974 = vperm.xlu0 %1973, %v1637
  %v1975 = vpop.permute.xlu0 %1974
  %1978 = vset.pattern.permute.xlu0 0
  %1979 = vperm.xlu0 %1978, %v1638
  %v1980 = vpop.permute.xlu0 %1979
  %1983 = vset.pattern.permute.xlu0 0
  %1984 = vperm.xlu0 %1983, %v1639
  %v1985 = vpop.permute.xlu0 %1984
  %1988 = vset.pattern.permute.xlu0 0
  %1989 = vperm.xlu0 %1988, %v1640
  %v1990 = vpop.permute.xlu0 %1989
  %1993 = vset.pattern.permute.xlu0 0
  %1994 = vperm.xlu0 %1993, %v1641
  %v1995 = vpop.permute.xlu0 %1994
  %1998 = vset.pattern.permute.xlu0 0
  %1999 = vperm.xlu0 %1998, %v1642
  %v2000 = vpop.permute.xlu0 %1999
  %2003 = vset.pattern.permute.xlu0 0
  %2004 = vperm.xlu0 %2003, %v1643
  %v2005 = vpop.permute.xlu0 %2004
  %2008 = vset.pattern.permute.xlu0 0
  %2009 = vperm.xlu0 %2008, %v1644
  %v2010 = vpop.permute.xlu0 %2009
  %2013 = vset.pattern.permute.xlu0 0
  %2014 = vperm.xlu0 %2013, %v1645
  %v2015 = vpop.permute.xlu0 %2014
  %2018 = vset.pattern.permute.xlu0 0
  %2019 = vperm.xlu0 %2018, %v1646
  %v2020 = vpop.permute.xlu0 %2019
  %2023 = vset.pattern.permute.xlu0 0
  %2024 = vperm.xlu0 %2023, %v1647
  %v2025 = vpop.permute.xlu0 %2024
  %2028 = vset.pattern.permute.xlu0 0
  %2029 = vperm.xlu0 %2028, %v1648
  %v2030 = vpop.permute.xlu0 %2029
  %2033 = vset.pattern.permute.xlu0 0
  %2034 = vperm.xlu0 %2033, %v1649
  %v2035 = vpop.permute.xlu0 %2034
  %2038 = vset.pattern.permute.xlu0 0
  %2039 = vperm.xlu0 %2038, %v1650
  %v2040 = vpop.permute.xlu0 %2039
  %2043 = vset.pattern.permute.xlu0 0
  %2044 = vperm.xlu0 %2043, %v1651
  %v2045 = vpop.permute.xlu0 %2044
  %2048 = vset.pattern.permute.xlu0 0
  %2049 = vperm.xlu0 %2048, %v1652
  %v2050 = vpop.permute.xlu0 %2049
  %2053 = vset.pattern.permute.xlu0 0
  %2054 = vperm.xlu0 %2053, %v1653
  %v2055 = vpop.permute.xlu0 %2054
  %2058 = vset.pattern.permute.xlu0 0
  %2059 = vperm.xlu0 %2058, %v1654
  %v2060 = vpop.permute.xlu0 %2059
  %2063 = vset.pattern.permute.xlu0 0
  %2064 = vperm.xlu0 %2063, %v1655
  %v2065 = vpop.permute.xlu0 %2064
  %2068 = vset.pattern.permute.xlu0 0
  %2069 = vperm.xlu0 %2068, %v1656
  %v2070 = vpop.permute.xlu0 %2069
  %2073 = vset.pattern.permute.xlu0 0
  %2074 = vperm.xlu0 %2073, %v1657
  %v2075 = vpop.permute.xlu0 %2074
  %2078 = vset.pattern.permute.xlu0 0
  %2079 = vperm.xlu0 %2078, %v1658
  %v2080 = vpop.permute.xlu0 %2079
  %2083 = vset.pattern.permute.xlu0 0
  %2084 = vperm.xlu0 %2083, %v1659
  %v2085 = vpop.permute.xlu0 %2084
  %2088 = vset.pattern.permute.xlu0 0
  %2089 = vperm.xlu0 %2088, %v1660
  %v2090 = vpop.permute.xlu0 %2089
  %2093 = vset.pattern.permute.xlu0 0
  %2094 = vperm.xlu0 %2093, %v1661
  %v2095 = vpop.permute.xlu0 %2094
  %v2097 = vmul.f32 %v1488, %v1665
  %v2098 = vmul.f32 %v1489, %v1670
  %v2099 = vmul.f32 %v1490, %v1675
  %v2100 = vmul.f32 %v1491, %v1680
  %v2101 = vmul.f32 %v1492, %v1685
  %v2102 = vmul.f32 %v1493, %v1690
  %v2103 = vmul.f32 %v1494, %v1695
  %v2104 = vmul.f32 %v1495, %v1700
  %v2105 = vmul.f32 %v1496, %v1705
  %v2106 = vmul.f32 %v1497, %v1710
  %v2107 = vmul.f32 %v1498, %v1715
  %v2108 = vmul.f32 %v1499, %v1720
  %v2109 = vmul.f32 %v1500, %v1725
  %v2110 = vmul.f32 %v1501, %v1730
  %v2111 = vmul.f32 %v1502, %v1735
  %v2112 = vmul.f32 %v1503, %v1740
  %v2113 = vmul.f32 %v1504, %v1745
  %v2114 = vmul.f32 %v1505, %v1750
  %v2115 = vmul.f32 %v1506, %v1755
  %v2116 = vmul.f32 %v1507, %v1760
  %v2117 = vmul.f32 %v1508, %v1765
  %v2118 = vmul.f32 %v1509, %v1770
  %v2119 = vmul.f32 %v1510, %v1775
  %v2120 = vmul.f32 %v1511, %v1780
  %v2121 = vmul.f32 %v1512, %v1785
  %v2122 = vmul.f32 %v1513, %v1790
  %v2123 = vmul.f32 %v1514, %v1795
  %v2124 = vmul.f32 %v1515, %v1800
  %v2125 = vmul.f32 %v1516, %v1805
  %v2126 = vmul.f32 %v1517, %v1810
  %v2127 = vmul.f32 %v1518, %v1815
  %v2128 = vmul.f32 %v1519, %v1820
  %v2129 = vmul.f32 %v1520, %v1825
  %v2130 = vmul.f32 %v1521, %v1830
  %v2131 = vmul.f32 %v1522, %v1835
  %v2132 = vmul.f32 %v1523, %v1840
  %v2133 = vmul.f32 %v1524, %v1845
  %v2134 = vmul.f32 %v1525, %v1850
  %v2135 = vmul.f32 %v1526, %v1855
  %v2136 = vmul.f32 %v1527, %v1860
  %v2137 = vmul.f32 %v1528, %v1865
  %v2138 = vmul.f32 %v1529, %v1870
  %v2139 = vmul.f32 %v1530, %v1875
  %v2140 = vmul.f32 %v1531, %v1880
  %v2141 = vmul.f32 %v1532, %v1885
  %v2142 = vmul.f32 %v1533, %v1890
  %v2143 = vmul.f32 %v1534, %v1895
  %v2144 = vmul.f32 %v1535, %v1900
  %v2145 = vmul.f32 %v1536, %v1905
  %v2146 = vmul.f32 %v1537, %v1910
  %v2147 = vmul.f32 %v1538, %v1915
  %v2148 = vmul.f32 %v1539, %v1920
  %v2149 = vmul.f32 %v1540, %v1925
  %v2150 = vmul.f32 %v1541, %v1930
  %v2151 = vmul.f32 %v1542, %v1935
  %v2152 = vmul.f32 %v1543, %v1940
  %v2153 = vmul.f32 %v1544, %v1945
  %v2154 = vmul.f32 %v1545, %v1950
  %v2155 = vmul.f32 %v1546, %v1955
  %v2156 = vmul.f32 %v1547, %v1960
  %v2157 = vmul.f32 %v1548, %v1965
  %v2158 = vmul.f32 %v1549, %v1970
  %v2159 = vmul.f32 %v1550, %v1975
  %v2160 = vmul.f32 %v1551, %v1980
  %v2161 = vmul.f32 %v1552, %v1985
  %v2162 = vmul.f32 %v1553, %v1990
  %v2163 = vmul.f32 %v1554, %v1995
  %v2164 = vmul.f32 %v1555, %v2000
  %v2165 = vmul.f32 %v1556, %v2005
  %v2166 = vmul.f32 %v1557, %v2010
  %v2167 = vmul.f32 %v1558, %v2015
  %v2168 = vmul.f32 %v1559, %v2020
  %v2169 = vmul.f32 %v1560, %v2025
  %v2170 = vmul.f32 %v1561, %v2030
  %v2171 = vmul.f32 %v1562, %v2035
  %v2172 = vmul.f32 %v1563, %v2040
  %v2173 = vmul.f32 %v1564, %v2045
  %v2174 = vmul.f32 %v1565, %v2050
  %v2175 = vmul.f32 %v1566, %v2055
  %v2176 = vmul.f32 %v1567, %v2060
  %v2177 = vmul.f32 %v1568, %v2065
  %v2178 = vmul.f32 %v1569, %v2070
  %v2179 = vmul.f32 %v1570, %v2075
  %v2180 = vmul.f32 %v1571, %v2080
  %v2181 = vmul.f32 %v1572, %v2085
  %v2182 = vmul.f32 %v1573, %v2090
  %v2183 = vmul.f32 %v1574, %v2095
  %v2184 = vpack.c.bf16 %v2098, %v2097
  %v2185 = vpack.c.bf16 %v2100, %v2099
  %v2186 = vpack.c.bf16 %v2102, %v2101
  %v2187 = vpack.c.bf16 %v2104, %v2103
  %v2188 = vpack.c.bf16 %v2106, %v2105
  %v2189 = vpack.c.bf16 %v2108, %v2107
  %v2190 = vpack.c.bf16 %v2110, %v2109
  %v2191 = vpack.c.bf16 %v2112, %v2111
  %v2192 = vpack.c.bf16 %v2114, %v2113
  %v2193 = vpack.c.bf16 %v2116, %v2115
  %v2194 = vpack.c.bf16 %v2118, %v2117
  %v2195 = vpack.c.bf16 %v2120, %v2119
  %v2196 = vpack.c.bf16 %v2122, %v2121
  %v2197 = vpack.c.bf16 %v2124, %v2123
  %v2198 = vpack.c.bf16 %v2126, %v2125
  %v2199 = vpack.c.bf16 %v2128, %v2127
  %v2200 = vpack.c.bf16 %v2130, %v2129
  %v2201 = vpack.c.bf16 %v2132, %v2131
  %v2202 = vpack.c.bf16 %v2134, %v2133
  %v2203 = vpack.c.bf16 %v2136, %v2135
  %v2204 = vpack.c.bf16 %v2138, %v2137
  %v2205 = vpack.c.bf16 %v2140, %v2139
  %v2206 = vpack.c.bf16 %v2142, %v2141
  %v2207 = vpack.c.bf16 %v2144, %v2143
  %v2208 = vpack.c.bf16 %v2146, %v2145
  %v2209 = vpack.c.bf16 %v2148, %v2147
  %v2210 = vpack.c.bf16 %v2150, %v2149
  %v2211 = vpack.c.bf16 %v2152, %v2151
  %v2212 = vpack.c.bf16 %v2154, %v2153
  %v2213 = vpack.c.bf16 %v2156, %v2155
  %v2214 = vpack.c.bf16 %v2158, %v2157
  %v2215 = vpack.c.bf16 %v2160, %v2159
  %v2216 = vpack.c.bf16 %v2162, %v2161
  %v2217 = vpack.c.bf16 %v2164, %v2163
  %v2218 = vpack.c.bf16 %v2166, %v2165
  %v2219 = vpack.c.bf16 %v2168, %v2167
  %v2220 = vpack.c.bf16 %v2170, %v2169
  %v2221 = vpack.c.bf16 %v2172, %v2171
  %v2222 = vpack.c.bf16 %v2174, %v2173
  %v2223 = vpack.c.bf16 %v2176, %v2175
  %v2224 = vpack.c.bf16 %v2178, %v2177
  %v2225 = vpack.c.bf16 %v2180, %v2179
  %v2226 = vpack.c.bf16 %v2182, %v2181
  %v2227 = vpack.c.bf16 %v2183, %v2183
  %v2272 = vunpack.c.l.b16 %v2184
  %v2273 = vunpack.c.h.b16 %v2184
  %v2274 = vunpack.c.l.b16 %v2185
  %v2275 = vunpack.c.h.b16 %v2185
  %v2276 = vunpack.c.l.b16 %v2186
  %v2277 = vunpack.c.h.b16 %v2186
  %v2278 = vunpack.c.l.b16 %v2187
  %v2279 = vunpack.c.h.b16 %v2187
  %v2280 = vunpack.c.l.b16 %v2188
  %v2281 = vunpack.c.h.b16 %v2188
  %v2282 = vunpack.c.l.b16 %v2189
  %v2283 = vunpack.c.h.b16 %v2189
  %v2284 = vunpack.c.l.b16 %v2190
  %v2285 = vunpack.c.h.b16 %v2190
  %v2286 = vunpack.c.l.b16 %v2191
  %v2287 = vunpack.c.h.b16 %v2191
  %v2288 = vunpack.c.l.b16 %v2192
  %v2289 = vunpack.c.h.b16 %v2192
  %v2290 = vunpack.c.l.b16 %v2193
  %v2291 = vunpack.c.h.b16 %v2193
  %v2292 = vunpack.c.l.b16 %v2194
  %v2293 = vunpack.c.h.b16 %v2194
  %v2294 = vunpack.c.l.b16 %v2195
  %v2295 = vunpack.c.h.b16 %v2195
  %v2296 = vunpack.c.l.b16 %v2196
  %v2297 = vunpack.c.h.b16 %v2196
  %v2298 = vunpack.c.l.b16 %v2197
  %v2299 = vunpack.c.h.b16 %v2197
  %v2300 = vunpack.c.l.b16 %v2198
  %v2301 = vunpack.c.h.b16 %v2198
  %v2302 = vunpack.c.l.b16 %v2199
  %v2303 = vunpack.c.h.b16 %v2199
  %v2304 = vunpack.c.l.b16 %v2200
  %v2305 = vunpack.c.h.b16 %v2200
  %v2306 = vunpack.c.l.b16 %v2201
  %v2307 = vunpack.c.h.b16 %v2201
  %v2308 = vunpack.c.l.b16 %v2202
  %v2309 = vunpack.c.h.b16 %v2202
  %v2310 = vunpack.c.l.b16 %v2203
  %v2311 = vunpack.c.h.b16 %v2203
  %v2312 = vunpack.c.l.b16 %v2204
  %v2313 = vunpack.c.h.b16 %v2204
  %v2314 = vunpack.c.l.b16 %v2205
  %v2315 = vunpack.c.h.b16 %v2205
  %v2316 = vunpack.c.l.b16 %v2206
  %v2317 = vunpack.c.h.b16 %v2206
  %v2318 = vunpack.c.l.b16 %v2207
  %v2319 = vunpack.c.h.b16 %v2207
  %v2320 = vunpack.c.l.b16 %v2208
  %v2321 = vunpack.c.h.b16 %v2208
  %v2322 = vunpack.c.l.b16 %v2209
  %v2323 = vunpack.c.h.b16 %v2209
  %v2324 = vunpack.c.l.b16 %v2210
  %v2325 = vunpack.c.h.b16 %v2210
  %v2326 = vunpack.c.l.b16 %v2211
  %v2327 = vunpack.c.h.b16 %v2211
  %v2328 = vunpack.c.l.b16 %v2212
  %v2329 = vunpack.c.h.b16 %v2212
  %v2330 = vunpack.c.l.b16 %v2213
  %v2331 = vunpack.c.h.b16 %v2213
  %v2332 = vunpack.c.l.b16 %v2214
  %v2333 = vunpack.c.h.b16 %v2214
  %v2334 = vunpack.c.l.b16 %v2215
  %v2335 = vunpack.c.h.b16 %v2215
  %v2336 = vunpack.c.l.b16 %v2216
  %v2337 = vunpack.c.h.b16 %v2216
  %v2338 = vunpack.c.l.b16 %v2217
  %v2339 = vunpack.c.h.b16 %v2217
  %v2340 = vunpack.c.l.b16 %v2218
  %v2341 = vunpack.c.h.b16 %v2218
  %v2342 = vunpack.c.l.b16 %v2219
  %v2343 = vunpack.c.h.b16 %v2219
  %v2344 = vunpack.c.l.b16 %v2220
  %v2345 = vunpack.c.h.b16 %v2220
  %v2346 = vunpack.c.l.b16 %v2221
  %v2347 = vunpack.c.h.b16 %v2221
  %v2348 = vunpack.c.l.b16 %v2222
  %v2349 = vunpack.c.h.b16 %v2222
  %v2350 = vunpack.c.l.b16 %v2223
  %v2351 = vunpack.c.h.b16 %v2223
  %v2352 = vunpack.c.l.b16 %v2224
  %v2353 = vunpack.c.h.b16 %v2224
  %v2354 = vunpack.c.l.b16 %v2225
  %v2355 = vunpack.c.h.b16 %v2225
  %v2356 = vunpack.c.l.b16 %v2226
  %v2357 = vunpack.c.h.b16 %v2226
  %v2358 = vunpack.c.l.b16 %v2227
  %v2359 = vpack.c.b16 %v2272, %v2272
  %v2360 = vpack.c.b16 %v2273, %v2273
  %v2361 = vpack.c.b16 %v2274, %v2274
  %v2362 = vpack.c.b16 %v2275, %v2275
  %v2363 = vpack.c.b16 %v2276, %v2276
  %v2364 = vpack.c.b16 %v2277, %v2277
  %v2365 = vpack.c.b16 %v2278, %v2278
  %v2366 = vpack.c.b16 %v2279, %v2279
  %v2367 = vpack.c.b16 %v2280, %v2280
  %v2368 = vpack.c.b16 %v2281, %v2281
  %v2369 = vpack.c.b16 %v2282, %v2282
  %v2370 = vpack.c.b16 %v2283, %v2283
  %v2371 = vpack.c.b16 %v2284, %v2284
  %v2372 = vpack.c.b16 %v2285, %v2285
  %v2373 = vpack.c.b16 %v2286, %v2286
  %v2374 = vpack.c.b16 %v2287, %v2287
  %v2375 = vpack.c.b16 %v2288, %v2288
  %v2376 = vpack.c.b16 %v2289, %v2289
  %v2377 = vpack.c.b16 %v2290, %v2290
  %v2378 = vpack.c.b16 %v2291, %v2291
  %v2379 = vpack.c.b16 %v2292, %v2292
  %v2380 = vpack.c.b16 %v2293, %v2293
  %v2381 = vpack.c.b16 %v2294, %v2294
  %v2382 = vpack.c.b16 %v2295, %v2295
  %v2383 = vpack.c.b16 %v2296, %v2296
  %v2384 = vpack.c.b16 %v2297, %v2297
  %v2385 = vpack.c.b16 %v2298, %v2298
  %v2386 = vpack.c.b16 %v2299, %v2299
  %v2387 = vpack.c.b16 %v2300, %v2300
  %v2388 = vpack.c.b16 %v2301, %v2301
  %v2389 = vpack.c.b16 %v2302, %v2302
  %v2390 = vpack.c.b16 %v2303, %v2303
  %v2391 = vpack.c.b16 %v2304, %v2304
  %v2392 = vpack.c.b16 %v2305, %v2305
  %v2393 = vpack.c.b16 %v2306, %v2306
  %v2394 = vpack.c.b16 %v2307, %v2307
  %v2395 = vpack.c.b16 %v2308, %v2308
  %v2396 = vpack.c.b16 %v2309, %v2309
  %v2397 = vpack.c.b16 %v2310, %v2310
  %v2398 = vpack.c.b16 %v2311, %v2311
  %v2399 = vpack.c.b16 %v2312, %v2312
  %v2400 = vpack.c.b16 %v2313, %v2313
  %v2401 = vpack.c.b16 %v2314, %v2314
  %v2402 = vpack.c.b16 %v2315, %v2315
  %v2403 = vpack.c.b16 %v2316, %v2316
  %v2404 = vpack.c.b16 %v2317, %v2317
  %v2405 = vpack.c.b16 %v2318, %v2318
  %v2406 = vpack.c.b16 %v2319, %v2319
  %v2407 = vpack.c.b16 %v2320, %v2320
  %v2408 = vpack.c.b16 %v2321, %v2321
  %v2409 = vpack.c.b16 %v2322, %v2322
  %v2410 = vpack.c.b16 %v2323, %v2323
  %v2411 = vpack.c.b16 %v2324, %v2324
  %v2412 = vpack.c.b16 %v2325, %v2325
  %v2413 = vpack.c.b16 %v2326, %v2326
  %v2414 = vpack.c.b16 %v2327, %v2327
  %v2415 = vpack.c.b16 %v2328, %v2328
  %v2416 = vpack.c.b16 %v2329, %v2329
  %v2417 = vpack.c.b16 %v2330, %v2330
  %v2418 = vpack.c.b16 %v2331, %v2331
  %v2419 = vpack.c.b16 %v2332, %v2332
  %v2420 = vpack.c.b16 %v2333, %v2333
  %v2421 = vpack.c.b16 %v2334, %v2334
  %v2422 = vpack.c.b16 %v2335, %v2335
  %v2423 = vpack.c.b16 %v2336, %v2336
  %v2424 = vpack.c.b16 %v2337, %v2337
  %v2425 = vpack.c.b16 %v2338, %v2338
  %v2426 = vpack.c.b16 %v2339, %v2339
  %v2427 = vpack.c.b16 %v2340, %v2340
  %v2428 = vpack.c.b16 %v2341, %v2341
  %v2429 = vpack.c.b16 %v2342, %v2342
  %v2430 = vpack.c.b16 %v2343, %v2343
  %v2431 = vpack.c.b16 %v2344, %v2344
  %v2432 = vpack.c.b16 %v2345, %v2345
  %v2433 = vpack.c.b16 %v2346, %v2346
  %v2434 = vpack.c.b16 %v2347, %v2347
  %v2435 = vpack.c.b16 %v2348, %v2348
  %v2436 = vpack.c.b16 %v2349, %v2349
  %v2437 = vpack.c.b16 %v2350, %v2350
  %v2438 = vpack.c.b16 %v2351, %v2351
  %v2439 = vpack.c.b16 %v2352, %v2352
  %v2440 = vpack.c.b16 %v2353, %v2353
  %v2441 = vpack.c.b16 %v2354, %v2354
  %v2442 = vpack.c.b16 %v2355, %v2355
  %v2443 = vpack.c.b16 %v2356, %v2356
  %v2444 = vpack.c.b16 %v2357, %v2357
  %v2445 = vpack.c.b16 %v2358, %v2358
  %2533 = vst [vmem:[#allocation2] sm:$0xf] %v2359
  %2534 = vst [vmem:[#allocation2 + $0x4] sm:$0xf] %v2360
  %2535 = vst [vmem:[#allocation2 + $0x8] sm:$0xf] %v2361
  %2536 = vst [vmem:[#allocation2 + $0xc] sm:$0xf] %v2362
  %2537 = vst [vmem:[#allocation2 + $0x10] sm:$0xf] %v2363
  %2538 = vst [vmem:[#allocation2 + $0x14] sm:$0xf] %v2364
  %2539 = vst [vmem:[#allocation2 + $0x18] sm:$0xf] %v2365
  %2540 = vst [vmem:[#allocation2 + $0x1c] sm:$0xf] %v2366
  %2541 = vst [vmem:[#allocation2 + $0x20] sm:$0xf] %v2367
  %2542 = vst [vmem:[#allocation2 + $0x24] sm:$0xf] %v2368
  %2543 = vst [vmem:[#allocation2 + $0x28] sm:$0xf] %v2369
  %2544 = vst [vmem:[#allocation2 + $0x2c] sm:$0xf] %v2370
  %2545 = vst [vmem:[#allocation2 + $0x30] sm:$0xf] %v2371
  %2546 = vst [vmem:[#allocation2 + $0x34] sm:$0xf] %v2372
  %2547 = vst [vmem:[#allocation2 + $0x38] sm:$0xf] %v2373
  %2548 = vst [vmem:[#allocation2 + $0x3c] sm:$0xf] %v2374
  %2549 = vst [vmem:[#allocation2 + $0x40] sm:$0xf] %v2375
  %2550 = vst [vmem:[#allocation2 + $0x44] sm:$0xf] %v2376
  %2551 = vst [vmem:[#allocation2 + $0x48] sm:$0xf] %v2377
  %2552 = vst [vmem:[#allocation2 + $0x4c] sm:$0xf] %v2378
  %2553 = vst [vmem:[#allocation2 + $0x50] sm:$0xf] %v2379
  %2554 = vst [vmem:[#allocation2 + $0x54] sm:$0xf] %v2380
  %2555 = vst [vmem:[#allocation2 + $0x58] sm:$0xf] %v2381
  %2556 = vst [vmem:[#allocation2 + $0x5c] sm:$0xf] %v2382
  %2557 = vst [vmem:[#allocation2 + $0x60] sm:$0xf] %v2383
  %2558 = vst [vmem:[#allocation2 + $0x64] sm:$0xf] %v2384
  %2559 = vst [vmem:[#allocation2 + $0x68] sm:$0xf] %v2385
  %2560 = vst [vmem:[#allocation2 + $0x6c] sm:$0xf] %v2386
  %2561 = vst [vmem:[#allocation2 + $0x70] sm:$0xf] %v2387
  %2562 = vst [vmem:[#allocation2 + $0x74] sm:$0xf] %v2388
  %2563 = vst [vmem:[#allocation2 + $0x78] sm:$0xf] %v2389
  %2564 = vst [vmem:[#allocation2 + $0x7c] sm:$0xf] %v2390
  %2565 = vst [vmem:[#allocation2 + $0x80] sm:$0xf] %v2391
  %2566 = vst [vmem:[#allocation2 + $0x84] sm:$0xf] %v2392
  %2567 = vst [vmem:[#allocation2 + $0x88] sm:$0xf] %v2393
  %2568 = vst [vmem:[#allocation2 + $0x8c] sm:$0xf] %v2394
  %2569 = vst [vmem:[#allocation2 + $0x90] sm:$0xf] %v2395
  %2570 = vst [vmem:[#allocation2 + $0x94] sm:$0xf] %v2396
  %2571 = vst [vmem:[#allocation2 + $0x98] sm:$0xf] %v2397
  %2572 = vst [vmem:[#allocation2 + $0x9c] sm:$0xf] %v2398
  %2573 = vst [vmem:[#allocation2 + $0xa0] sm:$0xf] %v2399
  %2574 = vst [vmem:[#allocation2 + $0xa4] sm:$0xf] %v2400
  %2575 = vst [vmem:[#allocation2 + $0xa8] sm:$0xf] %v2401
  %2576 = vst [vmem:[#allocation2 + $0xac] sm:$0xf] %v2402
  %2577 = vst [vmem:[#allocation2 + $0xb0] sm:$0xf] %v2403
  %2578 = vst [vmem:[#allocation2 + $0xb4] sm:$0xf] %v2404
  %2579 = vst [vmem:[#allocation2 + $0xb8] sm:$0xf] %v2405
  %2580 = vst [vmem:[#allocation2 + $0xbc] sm:$0xf] %v2406
  %2581 = vst [vmem:[#allocation2 + $0xc0] sm:$0xf] %v2407
  %2582 = vst [vmem:[#allocation2 + $0xc4] sm:$0xf] %v2408
  %2583 = vst [vmem:[#allocation2 + $0xc8] sm:$0xf] %v2409
  %2584 = vst [vmem:[#allocation2 + $0xcc] sm:$0xf] %v2410
  %2585 = vst [vmem:[#allocation2 + $0xd0] sm:$0xf] %v2411
  %2586 = vst [vmem:[#allocation2 + $0xd4] sm:$0xf] %v2412
  %2587 = vst [vmem:[#allocation2 + $0xd8] sm:$0xf] %v2413
  %2588 = vst [vmem:[#allocation2 + $0xdc] sm:$0xf] %v2414
  %2589 = vst [vmem:[#allocation2 + $0xe0] sm:$0xf] %v2415
  %2590 = vst [vmem:[#allocation2 + $0xe4] sm:$0xf] %v2416
  %2591 = vst [vmem:[#allocation2 + $0xe8] sm:$0xf] %v2417
  %2592 = vst [vmem:[#allocation2 + $0xec] sm:$0xf] %v2418
  %2593 = vst [vmem:[#allocation2 + $0xf0] sm:$0xf] %v2419
  %2594 = vst [vmem:[#allocation2 + $0xf4] sm:$0xf] %v2420
  %2595 = vst [vmem:[#allocation2 + $0xf8] sm:$0xf] %v2421
  %2596 = vst [vmem:[#allocation2 + $0xfc] sm:$0xf] %v2422
  %2597 = vst [vmem:[#allocation2 + $0x100] sm:$0xf] %v2423
  %2598 = vst [vmem:[#allocation2 + $0x104] sm:$0xf] %v2424
  %2599 = vst [vmem:[#allocation2 + $0x108] sm:$0xf] %v2425
  %2600 = vst [vmem:[#allocation2 + $0x10c] sm:$0xf] %v2426
  %2601 = vst [vmem:[#allocation2 + $0x110] sm:$0xf] %v2427
  %2602 = vst [vmem:[#allocation2 + $0x114] sm:$0xf] %v2428
  %2603 = vst [vmem:[#allocation2 + $0x118] sm:$0xf] %v2429
  %2604 = vst [vmem:[#allocation2 + $0x11c] sm:$0xf] %v2430
  %2605 = vst [vmem:[#allocation2 + $0x120] sm:$0xf] %v2431
  %2606 = vst [vmem:[#allocation2 + $0x124] sm:$0xf] %v2432
  %2607 = vst [vmem:[#allocation2 + $0x128] sm:$0xf] %v2433
  %2608 = vst [vmem:[#allocation2 + $0x12c] sm:$0xf] %v2434
  %2609 = vst [vmem:[#allocation2 + $0x130] sm:$0xf] %v2435
  %2610 = vst [vmem:[#allocation2 + $0x134] sm:$0xf] %v2436
  %2611 = vst [vmem:[#allocation2 + $0x138] sm:$0xf] %v2437
  %2612 = vst [vmem:[#allocation2 + $0x13c] sm:$0xf] %v2438
  %2613 = vst [vmem:[#allocation2 + $0x140] sm:$0xf] %v2439
  %2614 = vst [vmem:[#allocation2 + $0x144] sm:$0xf] %v2440
  %2615 = vst [vmem:[#allocation2 + $0x148] sm:$0xf] %v2441
  %2616 = vst [vmem:[#allocation2 + $0x14c] sm:$0xf] %v2442
  %2617 = vst [vmem:[#allocation2 + $0x150] sm:$0xf] %v2443
  %2618 = vst [vmem:[#allocation2 + $0x154] sm:$0xf] %v2444
  %2619 = vst [vmem:[#allocation2 + $0x158] sm:$0xf] %v2445
  %v2620 = vld [vmem:[%s2] sm:$0xff]
  %v2621 = vld [vmem:[%s2 + $0x8] sm:$0xff]
  %v2622 = vld [vmem:[%s2 + $0x10] sm:$0xff]
  %v2623 = vld [vmem:[%s2 + $0x18] sm:$0xff]
  %v2624 = vld [vmem:[%s2 + $0x20] sm:$0xff]
  %v2625 = vld [vmem:[%s2 + $0x28] sm:$0xff]
  %v2626 = vld [vmem:[%s2 + $0x30] sm:$0xff]
  %v2627 = vld [vmem:[%s2 + $0x38] sm:$0xff]
  %v2628 = vld [vmem:[%s2 + $0x40] sm:$0xff]
  %v2629 = vld [vmem:[%s2 + $0x48] sm:$0xff]
  %v2630 = vld [vmem:[%s2 + $0x50] sm:$0xff]
  %v2631 = vld [vmem:[%s2 + $0x58] sm:$0xff]
  %v2632 = vld [vmem:[%s2 + $0x60] sm:$0xff]
  %v2633 = vld [vmem:[%s2 + $0x68] sm:$0xff]
  %v2634 = vld [vmem:[%s2 + $0x70] sm:$0xff]
  %v2635 = vld [vmem:[%s2 + $0x78] sm:$0xff]
  %v2636 = vld [vmem:[%s2 + $0x80] sm:$0xff]
  %v2637 = vld [vmem:[%s2 + $0x88] sm:$0xff]
  %v2638 = vld [vmem:[%s2 + $0x90] sm:$0xff]
  %v2639 = vld [vmem:[%s2 + $0x98] sm:$0xff]
  %v2640 = vld [vmem:[%s2 + $0xa0] sm:$0xff]
  %v2641 = vld [vmem:[%s2 + $0xa8] sm:$0xff]
  %v2642 = vld [vmem:[%s2 + $0xb0] sm:$0xff]
  %v2643 = vld [vmem:[%s2 + $0xb8] sm:$0xff]
  %v2644 = vld [vmem:[%s2 + $0xc0] sm:$0xff]
  %v2645 = vld [vmem:[%s2 + $0xc8] sm:$0xff]
  %v2646 = vld [vmem:[%s2 + $0xd0] sm:$0xff]
  %v2647 = vld [vmem:[%s2 + $0xd8] sm:$0xff]
  %v2648 = vld [vmem:[%s2 + $0xe0] sm:$0xff]
  %v2649 = vld [vmem:[%s2 + $0xe8] sm:$0xff]
  %v2650 = vld [vmem:[%s2 + $0xf0] sm:$0xff]
  %v2651 = vld [vmem:[%s2 + $0xf8] sm:$0xff]
  %v2652 = vld [vmem:[%s2 + $0x100] sm:$0xff]
  %v2653 = vld [vmem:[%s2 + $0x108] sm:$0xff]
  %v2654 = vld [vmem:[%s2 + $0x110] sm:$0xff]
  %v2655 = vld [vmem:[%s2 + $0x118] sm:$0xff]
  %v2656 = vld [vmem:[%s2 + $0x120] sm:$0xff]
  %v2657 = vld [vmem:[%s2 + $0x128] sm:$0xff]
  %v2658 = vld [vmem:[%s2 + $0x130] sm:$0xff]
  %v2659 = vld [vmem:[%s2 + $0x138] sm:$0xff]
  %v2660 = vld [vmem:[%s2 + $0x140] sm:$0xff]
  %v2661 = vld [vmem:[%s2 + $0x148] sm:$0xff]
  %v2662 = vld [vmem:[%s2 + $0x150] sm:$0xff]
  %v2663 = vld [vmem:[%s2 + $0x158] sm:$0xff]
  %v2664 = vld [vmem:[%s2 + $0x160] sm:$0xff]
  %v2665 = vld [vmem:[%s2 + $0x168] sm:$0xff]
  %v2666 = vld [vmem:[%s2 + $0x170] sm:$0xff]
  %v2667 = vld [vmem:[%s2 + $0x178] sm:$0xff]
  %v2668 = vld [vmem:[%s2 + $0x180] sm:$0xff]
  %v2669 = vld [vmem:[%s2 + $0x188] sm:$0xff]
  %v2670 = vld [vmem:[%s2 + $0x190] sm:$0xff]
  %v2671 = vld [vmem:[%s2 + $0x198] sm:$0xff]
  %v2672 = vld [vmem:[%s2 + $0x1a0] sm:$0xff]
  %v2673 = vld [vmem:[%s2 + $0x1a8] sm:$0xff]
  %v2674 = vld [vmem:[%s2 + $0x1b0] sm:$0xff]
  %v2675 = vld [vmem:[%s2 + $0x1b8] sm:$0xff]
  %v2676 = vld [vmem:[%s2 + $0x1c0] sm:$0xff]
  %v2677 = vld [vmem:[%s2 + $0x1c8] sm:$0xff]
  %v2678 = vld [vmem:[%s2 + $0x1d0] sm:$0xff]
  %v2679 = vld [vmem:[%s2 + $0x1d8] sm:$0xff]
  %v2680 = vld [vmem:[%s2 + $0x1e0] sm:$0xff]
  %v2681 = vld [vmem:[%s2 + $0x1e8] sm:$0xff]
  %v2682 = vld [vmem:[%s2 + $0x1f0] sm:$0xff]
  %v2683 = vld [vmem:[%s2 + $0x1f8] sm:$0xff]
  %v2684 = vld [vmem:[%s2 + $0x200] sm:$0xff]
  %v2685 = vld [vmem:[%s2 + $0x208] sm:$0xff]
  %v2686 = vld [vmem:[%s2 + $0x210] sm:$0xff]
  %v2687 = vld [vmem:[%s2 + $0x218] sm:$0xff]
  %v2688 = vld [vmem:[%s2 + $0x220] sm:$0xff]
  %v2689 = vld [vmem:[%s2 + $0x228] sm:$0xff]
  %v2690 = vld [vmem:[%s2 + $0x230] sm:$0xff]
  %v2691 = vld [vmem:[%s2 + $0x238] sm:$0xff]
  %v2692 = vld [vmem:[%s2 + $0x240] sm:$0xff]
  %v2693 = vld [vmem:[%s2 + $0x248] sm:$0xff]
  %v2694 = vld [vmem:[%s2 + $0x250] sm:$0xff]
  %v2695 = vld [vmem:[%s2 + $0x258] sm:$0xff]
  %v2696 = vld [vmem:[%s2 + $0x260] sm:$0xff]
  %v2697 = vld [vmem:[%s2 + $0x268] sm:$0xff]
  %v2698 = vld [vmem:[%s2 + $0x270] sm:$0xff]
  %v2699 = vld [vmem:[%s2 + $0x278] sm:$0xff]
  %v2700 = vld [vmem:[%s2 + $0x280] sm:$0xff]
  %v2701 = vld [vmem:[#allocation2] sm:$0xc]
  %v2702 = vld [vmem:[#allocation2 + $0x4] sm:$0xf]
  %v2703 = vld [vmem:[#allocation2 + $0x8] sm:$0xf]
  %v2704 = vld [vmem:[#allocation2 + $0xc] sm:$0xf]
  %v2705 = vld [vmem:[#allocation2 + $0x10] sm:$0xf]
  %v2706 = vld [vmem:[#allocation2 + $0x14] sm:$0xf]
  %v2707 = vld [vmem:[#allocation2 + $0x18] sm:$0xf]
  %v2708 = vld [vmem:[#allocation2 + $0x1c] sm:$0xf]
  %v2709 = vld [vmem:[#allocation2 + $0x20] sm:$0xf]
  %v2710 = vld [vmem:[#allocation2 + $0x24] sm:$0xf]
  %v2711 = vld [vmem:[#allocation2 + $0x28] sm:$0xf]
  %v2712 = vld [vmem:[#allocation2 + $0x2c] sm:$0xf]
  %v2713 = vld [vmem:[#allocation2 + $0x30] sm:$0xf]
  %v2714 = vld [vmem:[#allocation2 + $0x34] sm:$0xf]
  %v2715 = vld [vmem:[#allocation2 + $0x38] sm:$0xf]
  %v2716 = vld [vmem:[#allocation2 + $0x3c] sm:$0xf]
  %v2717 = vld [vmem:[#allocation2 + $0x40] sm:$0xf]
  %v2718 = vld [vmem:[#allocation2 + $0x44] sm:$0xf]
  %v2719 = vld [vmem:[#allocation2 + $0x48] sm:$0xf]
  %v2720 = vld [vmem:[#allocation2 + $0x4c] sm:$0xf]
  %v2721 = vld [vmem:[#allocation2 + $0x50] sm:$0xf]
  %v2722 = vld [vmem:[#allocation2 + $0x54] sm:$0xf]
  %v2723 = vld [vmem:[#allocation2 + $0x58] sm:$0xf]
  %v2724 = vld [vmem:[#allocation2 + $0x5c] sm:$0xf]
  %v2725 = vld [vmem:[#allocation2 + $0x60] sm:$0xf]
  %v2726 = vld [vmem:[#allocation2 + $0x64] sm:$0xf]
  %v2727 = vld [vmem:[#allocation2 + $0x68] sm:$0xf]
  %v2728 = vld [vmem:[#allocation2 + $0x6c] sm:$0xf]
  %v2729 = vld [vmem:[#allocation2 + $0x70] sm:$0xf]
  %v2730 = vld [vmem:[#allocation2 + $0x74] sm:$0xf]
  %v2731 = vld [vmem:[#allocation2 + $0x78] sm:$0xf]
  %v2732 = vld [vmem:[#allocation2 + $0x7c] sm:$0xf]
  %v2733 = vld [vmem:[#allocation2 + $0x80] sm:$0xf]
  %v2734 = vld [vmem:[#allocation2 + $0x84] sm:$0xf]
  %v2735 = vld [vmem:[#allocation2 + $0x88] sm:$0xf]
  %v2736 = vld [vmem:[#allocation2 + $0x8c] sm:$0xf]
  %v2737 = vld [vmem:[#allocation2 + $0x90] sm:$0xf]
  %v2738 = vld [vmem:[#allocation2 + $0x94] sm:$0xf]
  %v2739 = vld [vmem:[#allocation2 + $0x98] sm:$0xf]
  %v2740 = vld [vmem:[#allocation2 + $0x9c] sm:$0xf]
  %v2741 = vld [vmem:[#allocation2 + $0xa0] sm:$0xf]
  %v2742 = vld [vmem:[#allocation2 + $0xa4] sm:$0xf]
  %v2743 = vld [vmem:[#allocation2 + $0xa8] sm:$0xf]
  %v2744 = vld [vmem:[#allocation2 + $0xac] sm:$0xf]
  %v2745 = vld [vmem:[#allocation2 + $0xb0] sm:$0xf]
  %v2746 = vld [vmem:[#allocation2 + $0xb4] sm:$0xf]
  %v2747 = vld [vmem:[#allocation2 + $0xb8] sm:$0xf]
  %v2748 = vld [vmem:[#allocation2 + $0xbc] sm:$0xf]
  %v2749 = vld [vmem:[#allocation2 + $0xc0] sm:$0xf]
  %v2750 = vld [vmem:[#allocation2 + $0xc4] sm:$0xf]
  %v2751 = vld [vmem:[#allocation2 + $0xc8] sm:$0xf]
  %v2752 = vld [vmem:[#allocation2 + $0xcc] sm:$0xf]
  %v2753 = vld [vmem:[#allocation2 + $0xd0] sm:$0xf]
  %v2754 = vld [vmem:[#allocation2 + $0xd4] sm:$0xf]
  %v2755 = vld [vmem:[#allocation2 + $0xd8] sm:$0xf]
  %v2756 = vld [vmem:[#allocation2 + $0xdc] sm:$0xf]
  %v2757 = vld [vmem:[#allocation2 + $0xe0] sm:$0xf]
  %v2758 = vld [vmem:[#allocation2 + $0xe4] sm:$0xf]
  %v2759 = vld [vmem:[#allocation2 + $0xe8] sm:$0xf]
  %v2760 = vld [vmem:[#allocation2 + $0xec] sm:$0xf]
  %v2761 = vld [vmem:[#allocation2 + $0xf0] sm:$0xf]
  %v2762 = vld [vmem:[#allocation2 + $0xf4] sm:$0xf]
  %v2763 = vld [vmem:[#allocation2 + $0xf8] sm:$0xf]
  %v2764 = vld [vmem:[#allocation2 + $0xfc] sm:$0xf]
  %v2765 = vld [vmem:[#allocation2 + $0x100] sm:$0xf]
  %v2766 = vld [vmem:[#allocation2 + $0x104] sm:$0xf]
  %v2767 = vld [vmem:[#allocation2 + $0x108] sm:$0xf]
  %v2768 = vld [vmem:[#allocation2 + $0x10c] sm:$0xf]
  %v2769 = vld [vmem:[#allocation2 + $0x110] sm:$0xf]
  %v2770 = vld [vmem:[#allocation2 + $0x114] sm:$0xf]
  %v2771 = vld [vmem:[#allocation2 + $0x118] sm:$0xf]
  %v2772 = vld [vmem:[#allocation2 + $0x11c] sm:$0xf]
  %v2773 = vld [vmem:[#allocation2 + $0x120] sm:$0xf]
  %v2774 = vld [vmem:[#allocation2 + $0x124] sm:$0xf]
  %v2775 = vld [vmem:[#allocation2 + $0x128] sm:$0xf]
  %v2776 = vld [vmem:[#allocation2 + $0x12c] sm:$0xf]
  %v2777 = vld [vmem:[#allocation2 + $0x130] sm:$0xf]
  %v2778 = vld [vmem:[#allocation2 + $0x134] sm:$0xf]
  %v2779 = vld [vmem:[#allocation2 + $0x138] sm:$0xf]
  %v2780 = vld [vmem:[#allocation2 + $0x13c] sm:$0xf]
  %v2781 = vld [vmem:[#allocation2 + $0x140] sm:$0xf]
  %v2782 = vld [vmem:[#allocation2 + $0x144] sm:$0x7]
  %v2783 = vld [vmem:[%s4] sm:$0xf]
  %v2784 = vld [vmem:[%s4 + $0x4] sm:$0xf]
  %v2785 = vld [vmem:[%s4 + $0x8] sm:$0xf]
  %v2786 = vld [vmem:[%s4 + $0xc] sm:$0xf]
  %v2787 = vld [vmem:[%s4 + $0x10] sm:$0xf]
  %v2788 = vld [vmem:[%s4 + $0x14] sm:$0xf]
  %v2789 = vld [vmem:[%s4 + $0x18] sm:$0xf]
  %v2790 = vld [vmem:[%s4 + $0x1c] sm:$0xf]
  %v2791 = vld [vmem:[%s4 + $0x20] sm:$0xf]
  %v2792 = vld [vmem:[%s4 + $0x24] sm:$0xf]
  %v2793 = vld [vmem:[%s4 + $0x28] sm:$0xf]
  %v2794 = vld [vmem:[%s4 + $0x2c] sm:$0xf]
  %v2795 = vld [vmem:[%s4 + $0x30] sm:$0xf]
  %v2796 = vld [vmem:[%s4 + $0x34] sm:$0xf]
  %v2797 = vld [vmem:[%s4 + $0x38] sm:$0xf]
  %v2798 = vld [vmem:[%s4 + $0x3c] sm:$0xf]
  %v2799 = vld [vmem:[#allocation2] sm:$0x8]
  %s2800 = scalar_lea.vmem %s4, 64
  %v2801 = vld [vmem:[%s2800] sm:$0xf]
  %v2802 = vld [vmem:[%s2800 + $0x4] sm:$0xf]
  %v2803 = vld [vmem:[%s2800 + $0x8] sm:$0xf]
  %v2804 = vld [vmem:[%s2800 + $0xc] sm:$0xf]
  %v2805 = vld [vmem:[%s2800 + $0x10] sm:$0xf]
  %v2806 = vld [vmem:[%s2800 + $0x14] sm:$0xf]
  %v2807 = vld [vmem:[%s2800 + $0x18] sm:$0xf]
  %v2808 = vld [vmem:[%s2800 + $0x1c] sm:$0xf]
  %v2809 = vld [vmem:[%s2800 + $0x20] sm:$0xf]
  %v2810 = vld [vmem:[%s2800 + $0x24] sm:$0xf]
  %v2811 = vld [vmem:[%s2800 + $0x28] sm:$0xf]
  %v2812 = vld [vmem:[%s2800 + $0x2c] sm:$0xf]
  %v2813 = vld [vmem:[%s2800 + $0x30] sm:$0xf]
  %v2814 = vld [vmem:[%s2800 + $0x34] sm:$0xf]
  %v2815 = vld [vmem:[%s2800 + $0x38] sm:$0xf]
  %v2816 = vld [vmem:[%s2800 + $0x3c] sm:$0xf]
  %v2899 = vunpack.c.l.b16 %v2799
  %v2900 = vunpack.c.l.b16 %v2702
  %v2901 = vunpack.c.l.b16 %v2703
  %v2902 = vunpack.c.l.b16 %v2704
  %v2903 = vunpack.c.l.b16 %v2705
  %v2904 = vunpack.c.l.b16 %v2706
  %v2905 = vunpack.c.l.b16 %v2707
  %v2906 = vunpack.c.l.b16 %v2708
  %v2907 = vunpack.c.l.b16 %v2709
  %v2908 = vunpack.c.l.b16 %v2710
  %v2909 = vunpack.c.l.b16 %v2711
  %v2910 = vunpack.c.l.b16 %v2712
  %v2911 = vunpack.c.l.b16 %v2713
  %v2912 = vunpack.c.l.b16 %v2714
  %v2913 = vunpack.c.l.b16 %v2715
  %v2914 = vunpack.c.l.b16 %v2716
  %v2915 = vunpack.c.l.b16 %v2717
  %v2916 = vunpack.c.l.b16 %v2718
  %v2917 = vunpack.c.l.b16 %v2719
  %v2918 = vunpack.c.l.b16 %v2720
  %v2919 = vunpack.c.l.b16 %v2721
  %v2920 = vunpack.c.l.b16 %v2722
  %v2921 = vunpack.c.l.b16 %v2723
  %v2922 = vunpack.c.l.b16 %v2724
  %v2923 = vunpack.c.l.b16 %v2725
  %v2924 = vunpack.c.l.b16 %v2726
  %v2925 = vunpack.c.l.b16 %v2727
  %v2926 = vunpack.c.l.b16 %v2728
  %v2927 = vunpack.c.l.b16 %v2729
  %v2928 = vunpack.c.l.b16 %v2730
  %v2929 = vunpack.c.l.b16 %v2731
  %v2930 = vunpack.c.l.b16 %v2732
  %v2931 = vunpack.c.l.b16 %v2733
  %v2932 = vunpack.c.l.b16 %v2734
  %v2933 = vunpack.c.l.b16 %v2735
  %v2934 = vunpack.c.l.b16 %v2736
  %v2935 = vunpack.c.l.b16 %v2737
  %v2936 = vunpack.c.l.b16 %v2738
  %v2937 = vunpack.c.l.b16 %v2739
  %v2938 = vunpack.c.l.b16 %v2740
  %v2939 = vunpack.c.l.b16 %v2741
  %v2940 = vunpack.c.l.b16 %v2742
  %v2941 = vunpack.c.l.b16 %v2743
  %v2942 = vunpack.c.l.b16 %v2744
  %v2943 = vunpack.c.l.b16 %v2745
  %v2944 = vunpack.c.l.b16 %v2746
  %v2945 = vunpack.c.l.b16 %v2747
  %v2946 = vunpack.c.l.b16 %v2748
  %v2947 = vunpack.c.l.b16 %v2749
  %v2948 = vunpack.c.l.b16 %v2750
  %v2949 = vunpack.c.l.b16 %v2751
  %v2950 = vunpack.c.l.b16 %v2752
  %v2951 = vunpack.c.l.b16 %v2753
  %v2952 = vunpack.c.l.b16 %v2754
  %v2953 = vunpack.c.l.b16 %v2755
  %v2954 = vunpack.c.l.b16 %v2756
  %v2955 = vunpack.c.l.b16 %v2757
  %v2956 = vunpack.c.l.b16 %v2758
  %v2957 = vunpack.c.l.b16 %v2759
  %v2958 = vunpack.c.l.b16 %v2760
  %v2959 = vunpack.c.l.b16 %v2761
  %v2960 = vunpack.c.l.b16 %v2762
  %v2961 = vunpack.c.l.b16 %v2763
  %v2962 = vunpack.c.l.b16 %v2764
  %v2963 = vunpack.c.l.b16 %v2765
  %v2964 = vunpack.c.l.b16 %v2766
  %v2965 = vunpack.c.l.b16 %v2767
  %v2966 = vunpack.c.l.b16 %v2768
  %v2967 = vunpack.c.l.b16 %v2769
  %v2968 = vunpack.c.l.b16 %v2770
  %v2969 = vunpack.c.l.b16 %v2771
  %v2970 = vunpack.c.l.b16 %v2772
  %v2971 = vunpack.c.l.b16 %v2773
  %v2972 = vunpack.c.l.b16 %v2774
  %v2973 = vunpack.c.l.b16 %v2775
  %v2974 = vunpack.c.l.b16 %v2776
  %v2975 = vunpack.c.l.b16 %v2777
  %v2976 = vunpack.c.l.b16 %v2778
  %v2977 = vunpack.c.l.b16 %v2779
  %v2978 = vunpack.c.l.b16 %v2780
  %v2979 = vunpack.c.l.b16 %v2781
  %v2980 = vunpack.c.l.b16 %v2782
  %v2981 = vpack.c.b16 %v2900, %v2899
  %v2982 = vpack.c.b16 %v2902, %v2901
  %v2983 = vpack.c.b16 %v2904, %v2903
  %v2984 = vpack.c.b16 %v2906, %v2905
  %v2985 = vpack.c.b16 %v2908, %v2907
  %v2986 = vpack.c.b16 %v2910, %v2909
  %v2987 = vpack.c.b16 %v2912, %v2911
  %v2988 = vpack.c.b16 %v2914, %v2913
  %v2989 = vpack.c.b16 %v2916, %v2915
  %v2990 = vpack.c.b16 %v2918, %v2917
  %v2991 = vpack.c.b16 %v2920, %v2919
  %v2992 = vpack.c.b16 %v2922, %v2921
  %v2993 = vpack.c.b16 %v2924, %v2923
  %v2994 = vpack.c.b16 %v2926, %v2925
  %v2995 = vpack.c.b16 %v2928, %v2927
  %v2996 = vpack.c.b16 %v2930, %v2929
  %v2997 = vpack.c.b16 %v2932, %v2931
  %v2998 = vpack.c.b16 %v2934, %v2933
  %v2999 = vpack.c.b16 %v2936, %v2935
  %v3000 = vpack.c.b16 %v2938, %v2937
  %v3001 = vpack.c.b16 %v2940, %v2939
  %v3002 = vpack.c.b16 %v2942, %v2941
  %v3003 = vpack.c.b16 %v2944, %v2943
  %v3004 = vpack.c.b16 %v2946, %v2945
  %v3005 = vpack.c.b16 %v2948, %v2947
  %v3006 = vpack.c.b16 %v2950, %v2949
  %v3007 = vpack.c.b16 %v2952, %v2951
  %v3008 = vpack.c.b16 %v2954, %v2953
  %v3009 = vpack.c.b16 %v2956, %v2955
  %v3010 = vpack.c.b16 %v2958, %v2957
  %v3011 = vpack.c.b16 %v2960, %v2959
  %v3012 = vpack.c.b16 %v2962, %v2961
  %v3013 = vpack.c.b16 %v2964, %v2963
  %v3014 = vpack.c.b16 %v2966, %v2965
  %v3015 = vpack.c.b16 %v2968, %v2967
  %v3016 = vpack.c.b16 %v2970, %v2969
  %v3017 = vpack.c.b16 %v2972, %v2971
  %v3018 = vpack.c.b16 %v2974, %v2973
  %v3019 = vpack.c.b16 %v2976, %v2975
  %v3020 = vpack.c.b16 %v2978, %v2977
  %v3021 = vpack.c.b16 %v2980, %v2979
  %vm3022 = vcmask 1044480
  %v3023 = vrot.slane %v2981, 3
  %v3024 = vrot.slane %v2982, 3
  %v3025 = vsel %vm3022, %v3023, %v3024
  %v3026 = vrot.slane %v2983, 3
  %v3027 = vsel %vm3022, %v3024, %v3026
  %v3028 = vrot.slane %v2984, 3
  %v3029 = vsel %vm3022, %v3026, %v3028
  %v3030 = vrot.slane %v2985, 3
  %v3031 = vsel %vm3022, %v3028, %v3030
  %v3032 = vrot.slane %v2986, 3
  %v3033 = vsel %vm3022, %v3030, %v3032
  %v3034 = vrot.slane %v2987, 3
  %v3035 = vsel %vm3022, %v3032, %v3034
  %v3036 = vrot.slane %v2988, 3
  %v3037 = vsel %vm3022, %v3034, %v3036
  %v3038 = vrot.slane %v2989, 3
  %v3039 = vsel %vm3022, %v3036, %v3038
  %v3040 = vrot.slane %v2990, 3
  %v3041 = vsel %vm3022, %v3038, %v3040
  %v3042 = vrot.slane %v2991, 3
  %v3043 = vsel %vm3022, %v3040, %v3042
  %v3044 = vrot.slane %v2992, 3
  %v3045 = vsel %vm3022, %v3042, %v3044
  %v3046 = vrot.slane %v2993, 3
  %v3047 = vsel %vm3022, %v3044, %v3046
  %v3048 = vrot.slane %v2994, 3
  %v3049 = vsel %vm3022, %v3046, %v3048
  %v3050 = vrot.slane %v2995, 3
  %v3051 = vsel %vm3022, %v3048, %v3050
  %v3052 = vrot.slane %v2996, 3
  %v3053 = vsel %vm3022, %v3050, %v3052
  %v3054 = vrot.slane %v2997, 3
  %v3055 = vsel %vm3022, %v3052, %v3054
  %v3056 = vrot.slane %v2998, 3
  %v3057 = vsel %vm3022, %v3054, %v3056
  %v3058 = vrot.slane %v2999, 3
  %v3059 = vsel %vm3022, %v3056, %v3058
  %v3060 = vrot.slane %v3000, 3
  %v3061 = vsel %vm3022, %v3058, %v3060
  %v3062 = vrot.slane %v3001, 3
  %v3063 = vsel %vm3022, %v3060, %v3062
  %v3064 = vrot.slane %v3002, 3
  %v3065 = vsel %vm3022, %v3062, %v3064
  %v3066 = vrot.slane %v3003, 3
  %v3067 = vsel %vm3022, %v3064, %v3066
  %v3068 = vrot.slane %v3004, 3
  %v3069 = vsel %vm3022, %v3066, %v3068
  %v3070 = vrot.slane %v3005, 3
  %v3071 = vsel %vm3022, %v3068, %v3070
  %v3072 = vrot.slane %v3006, 3
  %v3073 = vsel %vm3022, %v3070, %v3072
  %v3074 = vrot.slane %v3007, 3
  %v3075 = vsel %vm3022, %v3072, %v3074
  %v3076 = vrot.slane %v3008, 3
  %v3077 = vsel %vm3022, %v3074, %v3076
  %v3078 = vrot.slane %v3009, 3
  %v3079 = vsel %vm3022, %v3076, %v3078
  %v3080 = vrot.slane %v3010, 3
  %v3081 = vsel %vm3022, %v3078, %v3080
  %v3082 = vrot.slane %v3011, 3
  %v3083 = vsel %vm3022, %v3080, %v3082
  %v3084 = vrot.slane %v3012, 3
  %v3085 = vsel %vm3022, %v3082, %v3084
  %v3086 = vrot.slane %v3013, 3
  %v3087 = vsel %vm3022, %v3084, %v3086
  %v3088 = vrot.slane %v3014, 3
  %v3089 = vsel %vm3022, %v3086, %v3088
  %v3090 = vrot.slane %v3015, 3
  %v3091 = vsel %vm3022, %v3088, %v3090
  %v3092 = vrot.slane %v3016, 3
  %v3093 = vsel %vm3022, %v3090, %v3092
  %v3094 = vrot.slane %v3017, 3
  %v3095 = vsel %vm3022, %v3092, %v3094
  %v3096 = vrot.slane %v3018, 3
  %v3097 = vsel %vm3022, %v3094, %v3096
  %v3098 = vrot.slane %v3019, 3
  %v3099 = vsel %vm3022, %v3096, %v3098
  %v3100 = vrot.slane %v3020, 3
  %v3101 = vsel %vm3022, %v3098, %v3100
  %v3102 = vrot.slane %v3021, 3
  %v3103 = vsel %vm3022, %v3100, %v3102
  %v3161 = vunpack.c.l.b16 %v2801
  %v3162 = vunpack.c.l.b16 %v2802
  %v3163 = vunpack.c.l.b16 %v2803
  %v3164 = vunpack.c.l.b16 %v2804
  %v3165 = vunpack.c.l.b16 %v2805
  %v3166 = vunpack.c.l.b16 %v2806
  %v3167 = vunpack.c.l.b16 %v2807
  %v3168 = vunpack.c.l.b16 %v2808
  %v3169 = vunpack.c.l.b16 %v2809
  %v3170 = vunpack.c.l.b16 %v2810
  %v3171 = vunpack.c.l.b16 %v2811
  %v3172 = vunpack.c.l.b16 %v2812
  %v3173 = vunpack.c.l.b16 %v2813
  %v3174 = vunpack.c.l.b16 %v2814
  %v3175 = vunpack.c.l.b16 %v2815
  %v3176 = vunpack.c.l.b16 %v2816
  %v3177 = vpack.c.b16 %v3162, %v3161
  %v3178 = vpack.c.b16 %v3164, %v3163
  %v3179 = vpack.c.b16 %v3166, %v3165
  %v3180 = vpack.c.b16 %v3168, %v3167
  %v3181 = vpack.c.b16 %v3170, %v3169
  %v3182 = vpack.c.b16 %v3172, %v3171
  %v3183 = vpack.c.b16 %v3174, %v3173
  %v3184 = vpack.c.b16 %v3176, %v3175
  %3193 = vmatprep.subr.bf16.mxu0 0
  %3194 = vmatpush1.bf16.msra.mxu0 %v3177
  %3195 = vmatprep.subr.bf16.mxu0 0
  %3196 = vmatpush1.bf16.msra.mxu0 %v3178
  %3197 = vmatprep.subr.bf16.mxu0 0
  %3198 = vmatpush1.bf16.msra.mxu0 %v3179
  %3199 = vmatprep.subr.bf16.mxu0 0
  %3200 = vmatpush1.bf16.msra.mxu0 %v3180
  %3201 = vmatprep.subr.bf16.mxu0 0
  %3202 = vmatpush1.bf16.msra.mxu0 %v3181
  %3203 = vmatprep.subr.bf16.mxu0 0
  %3204 = vmatpush1.bf16.msra.mxu0 %v3182
  %3205 = vmatprep.subr.bf16.mxu0 0
  %3206 = vmatpush1.bf16.msra.mxu0 %v3183
  %3207 = vmatprep.subr.bf16.mxu0 0
  %3208 = vmatpush1.bf16.msra.mxu0 %v3184
  %3209 = vmatprep.subr.bf16.mxu0 0
  %3210 = vmatpush1.bf16.msra.mxu0 0
  %3211 = vmatprep.subr.bf16.mxu0 0
  %3212 = vmatpush1.bf16.msra.mxu0 0
  %3213 = vmatprep.subr.bf16.mxu0 0
  %3214 = vmatpush1.bf16.msra.mxu0 0
  %3215 = vmatprep.subr.bf16.mxu0 0
  %3216 = vmatpush1.bf16.msra.mxu0 0
  %3217 = vmatprep.subr.bf16.mxu0 0
  %3218 = vmatpush1.bf16.msra.mxu0 0
  %3219 = vmatprep.subr.bf16.mxu0 0
  %3220 = vmatpush1.bf16.msra.mxu0 0
  %3221 = vmatprep.subr.bf16.mxu0 0
  %3222 = vmatpush1.bf16.msra.mxu0 0
  %3223 = vmatprep.subr.bf16.mxu0 0
  %3224 = vmatpush1.bf16.msra.mxu0 0
  %3225 = vmatprep.mubr.bf16.mxu0 0
  %3226 = vmatmul.mubr.bf16.gmra.mrb[0].mxu0 %v3025
  %v3227 = vpop.f32.mrb[0].mxu0
  %v3228 = vadd.f32 0.0, %v3227
  %v3229 = vpop.f32.mrb[0].mxu0
  %v3230 = vpop.f32.mrb[0].mxu0
  %v3231 = vadd.f32 0.0, %v3230
  %v3232 = vpop.f32.mrb[0].mxu0
  %3233 = vmatprep.mubr.bf16.mxu0 0
  %3234 = vmatmul.mubr.bf16.gmra.mrb[0].mxu0 %v3027
  %v3235 = vpop.f32.mrb[0].mxu0
  %v3236 = vadd.f32 0.0, %v3235
  %v3237 = vpop.f32.mrb[0].mxu0
  %v3238 = vpop.f32.mrb[0].mxu0
  %v3239 = vadd.f32 0.0, %v3238
  %v3240 = vpop.f32.mrb[0].mxu0
  %3241 = vmatprep.mubr.bf16.mxu0 0
  %3242 = vmatmul.mubr.bf16.gmra.mrb[0].mxu0 %v3029
  %v3243 = vpop.f32.mrb[0].mxu0
  %v3244 = vadd.f32 0.0, %v3243
  %v3245 = vpop.f32.mrb[0].mxu0
  %v3246 = vpop.f32.mrb[0].mxu0
  %v3247 = vadd.f32 0.0, %v3246
  %v3248 = vpop.f32.mrb[0].mxu0
  %3249 = vmatprep.mubr.bf16.mxu0 0
  %3250 = vmatmul.mubr.bf16.gmra.mrb[0].mxu0 %v3031
  %v3251 = vpop.f32.mrb[0].mxu0
  %v3252 = vadd.f32 0.0, %v3251
  %v3253 = vpop.f32.mrb[0].mxu0
  %v3254 = vpop.f32.mrb[0].mxu0
  %v3255 = vadd.f32 0.0, %v3254
  %v3256 = vpop.f32.mrb[0].mxu0
  %3257 = vmatprep.mubr.bf16.mxu0 0
  %3258 = vmatmul.mubr.bf16.gmra.mrb[0].mxu0 %v3033
  %v3259 = vpop.f32.mrb[0].mxu0
  %v3260 = vadd.f32 0.0, %v3259
  %v3261 = vpop.f32.mrb[0].mxu0
  %v3262 = vpop.f32.mrb[0].mxu0
  %v3263 = vadd.f32 0.0, %v3262
  %v3264 = vpop.f32.mrb[0].mxu0
  %3265 = vmatprep.mubr.bf16.mxu0 0
  %3266 = vmatmul.mubr.bf16.gmra.mrb[0].mxu0 %v3035
  %v3267 = vpop.f32.mrb[0].mxu0
  %v3268 = vadd.f32 0.0, %v3267
  %v3269 = vpop.f32.mrb[0].mxu0
  %v3270 = vpop.f32.mrb[0].mxu0
  %v3271 = vadd.f32 0.0, %v3270
  %v3272 = vpop.f32.mrb[0].mxu0
  %3273 = vmatprep.mubr.bf16.mxu0 0
  %3274 = vmatmul.mubr.bf16.gmra.mrb[0].mxu0 %v3037
  %v3275 = vpop.f32.mrb[0].mxu0
  %v3276 = vadd.f32 0.0, %v3275
  %v3277 = vpop.f32.mrb[0].mxu0
  %v3278 = vpop.f32.mrb[0].mxu0
  %v3279 = vadd.f32 0.0, %v3278
  %v3280 = vpop.f32.mrb[0].mxu0
  %3281 = vmatprep.mubr.bf16.mxu0 0
  %3282 = vmatmul.mubr.bf16.gmra.mrb[0].mxu0 %v3039
  %v3283 = vpop.f32.mrb[0].mxu0
  %v3284 = vadd.f32 0.0, %v3283
  %v3285 = vpop.f32.mrb[0].mxu0
  %v3286 = vpop.f32.mrb[0].mxu0
  %v3287 = vadd.f32 0.0, %v3286
  %v3288 = vpop.f32.mrb[0].mxu0
  %3289 = vmatprep.mubr.bf16.mxu0 0
  %3290 = vmatmul.mubr.bf16.gmra.mrb[0].mxu0 %v3041
  %v3291 = vpop.f32.mrb[0].mxu0
  %v3292 = vadd.f32 0.0, %v3291
  %v3293 = vpop.f32.mrb[0].mxu0
  %v3294 = vpop.f32.mrb[0].mxu0
  %v3295 = vadd.f32 0.0, %v3294
  %v3296 = vpop.f32.mrb[0].mxu0
  %3297 = vmatprep.mubr.bf16.mxu0 0
  %3298 = vmatmul.mubr.bf16.gmra.mrb[0].mxu0 %v3043
  %v3299 = vpop.f32.mrb[0].mxu0
  %v3300 = vadd.f32 0.0, %v3299
  %v3301 = vpop.f32.mrb[0].mxu0
  %v3302 = vpop.f32.mrb[0].mxu0
  %v3303 = vadd.f32 0.0, %v3302
  %v3304 = vpop.f32.mrb[0].mxu0
  %3305 = vmatprep.mubr.bf16.mxu0 0
  %3306 = vmatmul.mubr.bf16.gmra.mrb[0].mxu0 %v3045
  %v3307 = vpop.f32.mrb[0].mxu0
  %v3308 = vadd.f32 0.0, %v3307
  %v3309 = vpop.f32.mrb[0].mxu0
  %v3310 = vpop.f32.mrb[0].mxu0
  %v3311 = vadd.f32 0.0, %v3310
  %v3312 = vpop.f32.mrb[0].mxu0
  %3313 = vmatprep.mubr.bf16.mxu0 0
  %3314 = vmatmul.mubr.bf16.gmra.mrb[0].mxu0 %v3047
  %v3315 = vpop.f32.mrb[0].mxu0
  %v3316 = vadd.f32 0.0, %v3315
  %v3317 = vpop.f32.mrb[0].mxu0
  %v3318 = vpop.f32.mrb[0].mxu0
  %v3319 = vadd.f32 0.0, %v3318
  %v3320 = vpop.f32.mrb[0].mxu0
  %3321 = vmatprep.mubr.bf16.mxu0 0
  %3322 = vmatmul.mubr.bf16.gmra.mrb[0].mxu0 %v3049
  %v3323 = vpop.f32.mrb[0].mxu0
  %v3324 = vadd.f32 0.0, %v3323
  %v3325 = vpop.f32.mrb[0].mxu0
  %v3326 = vpop.f32.mrb[0].mxu0
  %v3327 = vadd.f32 0.0, %v3326
  %v3328 = vpop.f32.mrb[0].mxu0
  %3329 = vmatprep.mubr.bf16.mxu0 0
  %3330 = vmatmul.mubr.bf16.gmra.mrb[0].mxu0 %v3051
  %v3331 = vpop.f32.mrb[0].mxu0
  %v3332 = vadd.f32 0.0, %v3331
  %v3333 = vpop.f32.mrb[0].mxu0
  %v3334 = vpop.f32.mrb[0].mxu0
  %v3335 = vadd.f32 0.0, %v3334
  %v3336 = vpop.f32.mrb[0].mxu0
  %3337 = vmatprep.mubr.bf16.mxu0 0
  %3338 = vmatmul.mubr.bf16.gmra.mrb[0].mxu0 %v3053
  %v3339 = vpop.f32.mrb[0].mxu0
  %v3340 = vadd.f32 0.0, %v3339
  %v3341 = vpop.f32.mrb[0].mxu0
  %v3342 = vpop.f32.mrb[0].mxu0
  %v3343 = vadd.f32 0.0, %v3342
  %v3344 = vpop.f32.mrb[0].mxu0
  %3345 = vmatprep.mubr.bf16.mxu0 0
  %3346 = vmatmul.mubr.bf16.gmra.mrb[0].mxu0 %v3055
  %v3347 = vpop.f32.mrb[0].mxu0
  %v3348 = vadd.f32 0.0, %v3347
  %v3349 = vpop.f32.mrb[0].mxu0
  %v3350 = vpop.f32.mrb[0].mxu0
  %v3351 = vadd.f32 0.0, %v3350
  %v3352 = vpop.f32.mrb[0].mxu0
  %3353 = vmatprep.mubr.bf16.mxu0 0
  %3354 = vmatmul.mubr.bf16.gmra.mrb[0].mxu0 %v3057
  %v3355 = vpop.f32.mrb[0].mxu0
  %v3356 = vadd.f32 0.0, %v3355
  %v3357 = vpop.f32.mrb[0].mxu0
  %v3358 = vpop.f32.mrb[0].mxu0
  %v3359 = vadd.f32 0.0, %v3358
  %v3360 = vpop.f32.mrb[0].mxu0
  %3361 = vmatprep.mubr.bf16.mxu0 0
  %3362 = vmatmul.mubr.bf16.gmra.mrb[0].mxu0 %v3059
  %v3363 = vpop.f32.mrb[0].mxu0
  %v3364 = vadd.f32 0.0, %v3363
  %v3365 = vpop.f32.mrb[0].mxu0
  %v3366 = vpop.f32.mrb[0].mxu0
  %v3367 = vadd.f32 0.0, %v3366
  %v3368 = vpop.f32.mrb[0].mxu0
  %3369 = vmatprep.mubr.bf16.mxu0 0
  %3370 = vmatmul.mubr.bf16.gmra.mrb[0].mxu0 %v3061
  %v3371 = vpop.f32.mrb[0].mxu0
  %v3372 = vadd.f32 0.0, %v3371
  %v3373 = vpop.f32.mrb[0].mxu0
  %v3374 = vpop.f32.mrb[0].mxu0
  %v3375 = vadd.f32 0.0, %v3374
  %v3376 = vpop.f32.mrb[0].mxu0
  %3377 = vmatprep.mubr.bf16.mxu0 0
  %3378 = vmatmul.mubr.bf16.gmra.mrb[0].mxu0 %v3063
  %v3379 = vpop.f32.mrb[0].mxu0
  %v3380 = vadd.f32 0.0, %v3379
  %v3381 = vpop.f32.mrb[0].mxu0
  %v3382 = vpop.f32.mrb[0].mxu0
  %v3383 = vadd.f32 0.0, %v3382
  %v3384 = vpop.f32.mrb[0].mxu0
  %3385 = vmatprep.mubr.bf16.mxu0 0
  %3386 = vmatmul.mubr.bf16.gmra.mrb[0].mxu0 %v3065
  %v3387 = vpop.f32.mrb[0].mxu0
  %v3388 = vadd.f32 0.0, %v3387
  %v3389 = vpop.f32.mrb[0].mxu0
  %v3390 = vpop.f32.mrb[0].mxu0
  %v3391 = vadd.f32 0.0, %v3390
  %v3392 = vpop.f32.mrb[0].mxu0
  %3393 = vmatprep.mubr.bf16.mxu0 0
  %3394 = vmatmul.mubr.bf16.gmra.mrb[0].mxu0 %v3067
  %v3395 = vpop.f32.mrb[0].mxu0
  %v3396 = vadd.f32 0.0, %v3395
  %v3397 = vpop.f32.mrb[0].mxu0
  %v3398 = vpop.f32.mrb[0].mxu0
  %v3399 = vadd.f32 0.0, %v3398
  %v3400 = vpop.f32.mrb[0].mxu0
  %3401 = vmatprep.mubr.bf16.mxu0 0
  %3402 = vmatmul.mubr.bf16.gmra.mrb[0].mxu0 %v3069
  %v3403 = vpop.f32.mrb[0].mxu0
  %v3404 = vadd.f32 0.0, %v3403
  %v3405 = vpop.f32.mrb[0].mxu0
  %v3406 = vpop.f32.mrb[0].mxu0
  %v3407 = vadd.f32 0.0, %v3406
  %v3408 = vpop.f32.mrb[0].mxu0
  %3409 = vmatprep.mubr.bf16.mxu0 0
  %3410 = vmatmul.mubr.bf16.gmra.mrb[0].mxu0 %v3071
  %v3411 = vpop.f32.mrb[0].mxu0
  %v3412 = vadd.f32 0.0, %v3411
  %v3413 = vpop.f32.mrb[0].mxu0
  %v3414 = vpop.f32.mrb[0].mxu0
  %v3415 = vadd.f32 0.0, %v3414
  %v3416 = vpop.f32.mrb[0].mxu0
  %3417 = vmatprep.mubr.bf16.mxu0 0
  %3418 = vmatmul.mubr.bf16.gmra.mrb[0].mxu0 %v3073
  %v3419 = vpop.f32.mrb[0].mxu0
  %v3420 = vadd.f32 0.0, %v3419
  %v3421 = vpop.f32.mrb[0].mxu0
  %v3422 = vpop.f32.mrb[0].mxu0
  %v3423 = vadd.f32 0.0, %v3422
  %v3424 = vpop.f32.mrb[0].mxu0
  %3425 = vmatprep.mubr.bf16.mxu0 0
  %3426 = vmatmul.mubr.bf16.gmra.mrb[0].mxu0 %v3075
  %v3427 = vpop.f32.mrb[0].mxu0
  %v3428 = vadd.f32 0.0, %v3427
  %v3429 = vpop.f32.mrb[0].mxu0
  %v3430 = vpop.f32.mrb[0].mxu0
  %v3431 = vadd.f32 0.0, %v3430
  %v3432 = vpop.f32.mrb[0].mxu0
  %3433 = vmatprep.mubr.bf16.mxu0 0
  %3434 = vmatmul.mubr.bf16.gmra.mrb[0].mxu0 %v3077
  %v3435 = vpop.f32.mrb[0].mxu0
  %v3436 = vadd.f32 0.0, %v3435
  %v3437 = vpop.f32.mrb[0].mxu0
  %v3438 = vpop.f32.mrb[0].mxu0
  %v3439 = vadd.f32 0.0, %v3438
  %v3440 = vpop.f32.mrb[0].mxu0
  %3441 = vmatprep.mubr.bf16.mxu0 0
  %3442 = vmatmul.mubr.bf16.gmra.mrb[0].mxu0 %v3079
  %v3443 = vpop.f32.mrb[0].mxu0
  %v3444 = vadd.f32 0.0, %v3443
  %v3445 = vpop.f32.mrb[0].mxu0
  %v3446 = vpop.f32.mrb[0].mxu0
  %v3447 = vadd.f32 0.0, %v3446
  %v3448 = vpop.f32.mrb[0].mxu0
  %3449 = vmatprep.mubr.bf16.mxu0 0
  %3450 = vmatmul.mubr.bf16.gmra.mrb[0].mxu0 %v3081
  %v3451 = vpop.f32.mrb[0].mxu0
  %v3452 = vadd.f32 0.0, %v3451
  %v3453 = vpop.f32.mrb[0].mxu0
  %v3454 = vpop.f32.mrb[0].mxu0
  %v3455 = vadd.f32 0.0, %v3454
  %v3456 = vpop.f32.mrb[0].mxu0
  %3457 = vmatprep.mubr.bf16.mxu0 0
  %3458 = vmatmul.mubr.bf16.gmra.mrb[0].mxu0 %v3083
  %v3459 = vpop.f32.mrb[0].mxu0
  %v3460 = vadd.f32 0.0, %v3459
  %v3461 = vpop.f32.mrb[0].mxu0
  %v3462 = vpop.f32.mrb[0].mxu0
  %v3463 = vadd.f32 0.0, %v3462
  %v3464 = vpop.f32.mrb[0].mxu0
  %3465 = vmatprep.mubr.bf16.mxu0 0
  %3466 = vmatmul.mubr.bf16.gmra.mrb[0].mxu0 %v3085
  %v3467 = vpop.f32.mrb[0].mxu0
  %v3468 = vadd.f32 0.0, %v3467
  %v3469 = vpop.f32.mrb[0].mxu0
  %v3470 = vpop.f32.mrb[0].mxu0
  %v3471 = vadd.f32 0.0, %v3470
  %v3472 = vpop.f32.mrb[0].mxu0
  %3473 = vmatprep.mubr.bf16.mxu0 0
  %3474 = vmatmul.mubr.bf16.gmra.mrb[0].mxu0 %v3087
  %v3475 = vpop.f32.mrb[0].mxu0
  %v3476 = vadd.f32 0.0, %v3475
  %v3477 = vpop.f32.mrb[0].mxu0
  %v3478 = vpop.f32.mrb[0].mxu0
  %v3479 = vadd.f32 0.0, %v3478
  %v3480 = vpop.f32.mrb[0].mxu0
  %3481 = vmatprep.mubr.bf16.mxu0 0
  %3482 = vmatmul.mubr.bf16.gmra.mrb[0].mxu0 %v3089
  %v3483 = vpop.f32.mrb[0].mxu0
  %v3484 = vadd.f32 0.0, %v3483
  %v3485 = vpop.f32.mrb[0].mxu0
  %v3486 = vpop.f32.mrb[0].mxu0
  %v3487 = vadd.f32 0.0, %v3486
  %v3488 = vpop.f32.mrb[0].mxu0
  %3489 = vmatprep.mubr.bf16.mxu0 0
  %3490 = vmatmul.mubr.bf16.gmra.mrb[0].mxu0 %v3091
  %v3491 = vpop.f32.mrb[0].mxu0
  %v3492 = vadd.f32 0.0, %v3491
  %v3493 = vpop.f32.mrb[0].mxu0
  %v3494 = vpop.f32.mrb[0].mxu0
  %v3495 = vadd.f32 0.0, %v3494
  %v3496 = vpop.f32.mrb[0].mxu0
  %3497 = vmatprep.mubr.bf16.mxu0 0
  %3498 = vmatmul.mubr.bf16.gmra.mrb[0].mxu0 %v3093
  %v3499 = vpop.f32.mrb[0].mxu0
  %v3500 = vadd.f32 0.0, %v3499
  %v3501 = vpop.f32.mrb[0].mxu0
  %v3502 = vpop.f32.mrb[0].mxu0
  %v3503 = vadd.f32 0.0, %v3502
  %v3504 = vpop.f32.mrb[0].mxu0
  %3505 = vmatprep.mubr.bf16.mxu0 0
  %3506 = vmatmul.mubr.bf16.gmra.mrb[0].mxu0 %v3095
  %v3507 = vpop.f32.mrb[0].mxu0
  %v3508 = vadd.f32 0.0, %v3507
  %v3509 = vpop.f32.mrb[0].mxu0
  %v3510 = vpop.f32.mrb[0].mxu0
  %v3511 = vadd.f32 0.0, %v3510
  %v3512 = vpop.f32.mrb[0].mxu0
  %3513 = vmatprep.mubr.bf16.mxu0 0
  %3514 = vmatmul.mubr.bf16.gmra.mrb[0].mxu0 %v3097
  %v3515 = vpop.f32.mrb[0].mxu0
  %v3516 = vadd.f32 0.0, %v3515
  %v3517 = vpop.f32.mrb[0].mxu0
  %v3518 = vpop.f32.mrb[0].mxu0
  %v3519 = vadd.f32 0.0, %v3518
  %v3520 = vpop.f32.mrb[0].mxu0
  %3521 = vmatprep.mubr.bf16.mxu0 0
  %3522 = vmatmul.mubr.bf16.gmra.mrb[0].mxu0 %v3099
  %v3523 = vpop.f32.mrb[0].mxu0
  %v3524 = vadd.f32 0.0, %v3523
  %v3525 = vpop.f32.mrb[0].mxu0
  %v3526 = vpop.f32.mrb[0].mxu0
  %v3527 = vadd.f32 0.0, %v3526
  %v3528 = vpop.f32.mrb[0].mxu0
  %3529 = vmatprep.mubr.bf16.mxu0 0
  %3530 = vmatmul.mubr.bf16.gmra.mrb[0].mxu0 %v3101
  %v3531 = vpop.f32.mrb[0].mxu0
  %v3532 = vadd.f32 0.0, %v3531
  %v3533 = vpop.f32.mrb[0].mxu0
  %v3534 = vpop.f32.mrb[0].mxu0
  %v3535 = vadd.f32 0.0, %v3534
  %v3536 = vpop.f32.mrb[0].mxu0
  %3537 = vmatprep.mubr.bf16.mxu0 0
  %3538 = vmatmul.mubr.bf16.gmra.mrb[0].mxu0 %v3103
  %v3539 = vpop.f32.mrb[0].mxu0
  %v3540 = vadd.f32 0.0, %v3539
  %v3541 = vpop.f32.mrb[0].mxu0
  %v3542 = vpop.f32.mrb[0].mxu0
  %v3543 = vadd.f32 0.0, %v3542
  %v3544 = vpop.f32.mrb[0].mxu0
  %3545 = vmatprep.mubr.bf16.mxu0 0
  %3546 = vmatmul.mubr.bf16.gmra.mrb[0].mxu0 %v3102
  %v3547 = vpop.f32.mrb[0].mxu0
  %v3548 = vadd.f32 0.0, %v3547
  %v3549 = vpop.f32.mrb[0].mxu0
  %v3550 = vpop.f32.mrb[0].mxu0
  %v3551 = vpop.f32.mrb[0].mxu0
  %3552 = vdwg.mxu0
  %v3554 = vunpack.c.l.b16 %v2701
  %v3555 = vpack.c.b16 %v2900, %v3554
  %vm3556 = vsmask.f32 5376
  %v3558 = vshrl.u32 %v3555, 16
  %v3560 = vrot.slane %v3558, 2
  %v3561 = vshll.u32 %v3555, 16
  %v3563 = vrot.slane %v3561, 3
  %v3564 = vor.u32 %v3560, %v3563
  %v3566 = vshrl.u32 %v2982, 16
  %v3568 = vrot.slane %v3566, 2
  %v3569 = vshll.u32 %v2982, 16
  %v3571 = vrot.slane %v3569, 3
  %v3572 = vor.u32 %v3568, %v3571
  %v3573 = vsel %vm3556, %v3564, %v3572
  %v3575 = vshrl.u32 %v2983, 16
  %v3577 = vrot.slane %v3575, 2
  %v3578 = vshll.u32 %v2983, 16
  %v3580 = vrot.slane %v3578, 3
  %v3581 = vor.u32 %v3577, %v3580
  %v3582 = vsel %vm3556, %v3572, %v3581
  %v3584 = vshrl.u32 %v2984, 16
  %v3586 = vrot.slane %v3584, 2
  %v3587 = vshll.u32 %v2984, 16
  %v3589 = vrot.slane %v3587, 3
  %v3590 = vor.u32 %v3586, %v3589
  %v3591 = vsel %vm3556, %v3581, %v3590
  %v3593 = vshrl.u32 %v2985, 16
  %v3595 = vrot.slane %v3593, 2
  %v3596 = vshll.u32 %v2985, 16
  %v3598 = vrot.slane %v3596, 3
  %v3599 = vor.u32 %v3595, %v3598
  %v3600 = vsel %vm3556, %v3590, %v3599
  %v3602 = vshrl.u32 %v2986, 16
  %v3604 = vrot.slane %v3602, 2
  %v3605 = vshll.u32 %v2986, 16
  %v3607 = vrot.slane %v3605, 3
  %v3608 = vor.u32 %v3604, %v3607
  %v3609 = vsel %vm3556, %v3599, %v3608
  %v3611 = vshrl.u32 %v2987, 16
  %v3613 = vrot.slane %v3611, 2
  %v3614 = vshll.u32 %v2987, 16
  %v3616 = vrot.slane %v3614, 3
  %v3617 = vor.u32 %v3613, %v3616
  %v3618 = vsel %vm3556, %v3608, %v3617
  %v3620 = vshrl.u32 %v2988, 16
  %v3622 = vrot.slane %v3620, 2
  %v3623 = vshll.u32 %v2988, 16
  %v3625 = vrot.slane %v3623, 3
  %v3626 = vor.u32 %v3622, %v3625
  %v3627 = vsel %vm3556, %v3617, %v3626
  %v3629 = vshrl.u32 %v2989, 16
  %v3631 = vrot.slane %v3629, 2
  %v3632 = vshll.u32 %v2989, 16
  %v3634 = vrot.slane %v3632, 3
  %v3635 = vor.u32 %v3631, %v3634
  %v3636 = vsel %vm3556, %v3626, %v3635
  %v3638 = vshrl.u32 %v2990, 16
  %v3640 = vrot.slane %v3638, 2
  %v3641 = vshll.u32 %v2990, 16
  %v3643 = vrot.slane %v3641, 3
  %v3644 = vor.u32 %v3640, %v3643
  %v3645 = vsel %vm3556, %v3635, %v3644
  %v3647 = vshrl.u32 %v2991, 16
  %v3649 = vrot.slane %v3647, 2
  %v3650 = vshll.u32 %v2991, 16
  %v3652 = vrot.slane %v3650, 3
  %v3653 = vor.u32 %v3649, %v3652
  %v3654 = vsel %vm3556, %v3644, %v3653
  %v3656 = vshrl.u32 %v2992, 16
  %v3658 = vrot.slane %v3656, 2
  %v3659 = vshll.u32 %v2992, 16
  %v3661 = vrot.slane %v3659, 3
  %v3662 = vor.u32 %v3658, %v3661
  %v3663 = vsel %vm3556, %v3653, %v3662
  %v3665 = vshrl.u32 %v2993, 16
  %v3667 = vrot.slane %v3665, 2
  %v3668 = vshll.u32 %v2993, 16
  %v3670 = vrot.slane %v3668, 3
  %v3671 = vor.u32 %v3667, %v3670
  %v3672 = vsel %vm3556, %v3662, %v3671
  %v3674 = vshrl.u32 %v2994, 16
  %v3676 = vrot.slane %v3674, 2
  %v3677 = vshll.u32 %v2994, 16
  %v3679 = vrot.slane %v3677, 3
  %v3680 = vor.u32 %v3676, %v3679
  %v3681 = vsel %vm3556, %v3671, %v3680
  %v3683 = vshrl.u32 %v2995, 16
  %v3685 = vrot.slane %v3683, 2
  %v3686 = vshll.u32 %v2995, 16
  %v3688 = vrot.slane %v3686, 3
  %v3689 = vor.u32 %v3685, %v3688
  %v3690 = vsel %vm3556, %v3680, %v3689
  %v3692 = vshrl.u32 %v2996, 16
  %v3694 = vrot.slane %v3692, 2
  %v3695 = vshll.u32 %v2996, 16
  %v3697 = vrot.slane %v3695, 3
  %v3698 = vor.u32 %v3694, %v3697
  %v3699 = vsel %vm3556, %v3689, %v3698
  %v3701 = vshrl.u32 %v2997, 16
  %v3703 = vrot.slane %v3701, 2
  %v3704 = vshll.u32 %v2997, 16
  %v3706 = vrot.slane %v3704, 3
  %v3707 = vor.u32 %v3703, %v3706
  %v3708 = vsel %vm3556, %v3698, %v3707
  %v3710 = vshrl.u32 %v2998, 16
  %v3712 = vrot.slane %v3710, 2
  %v3713 = vshll.u32 %v2998, 16
  %v3715 = vrot.slane %v3713, 3
  %v3716 = vor.u32 %v3712, %v3715
  %v3717 = vsel %vm3556, %v3707, %v3716
  %v3719 = vshrl.u32 %v2999, 16
  %v3721 = vrot.slane %v3719, 2
  %v3722 = vshll.u32 %v2999, 16
  %v3724 = vrot.slane %v3722, 3
  %v3725 = vor.u32 %v3721, %v3724
  %v3726 = vsel %vm3556, %v3716, %v3725
  %v3728 = vshrl.u32 %v3000, 16
  %v3730 = vrot.slane %v3728, 2
  %v3731 = vshll.u32 %v3000, 16
  %v3733 = vrot.slane %v3731, 3
  %v3734 = vor.u32 %v3730, %v3733
  %v3735 = vsel %vm3556, %v3725, %v3734
  %v3737 = vshrl.u32 %v3001, 16
  %v3739 = vrot.slane %v3737, 2
  %v3740 = vshll.u32 %v3001, 16
  %v3742 = vrot.slane %v3740, 3
  %v3743 = vor.u32 %v3739, %v3742
  %v3744 = vsel %vm3556, %v3734, %v3743
  %v3746 = vshrl.u32 %v3002, 16
  %v3748 = vrot.slane %v3746, 2
  %v3749 = vshll.u32 %v3002, 16
  %v3751 = vrot.slane %v3749, 3
  %v3752 = vor.u32 %v3748, %v3751
  %v3753 = vsel %vm3556, %v3743, %v3752
  %v3755 = vshrl.u32 %v3003, 16
  %v3757 = vrot.slane %v3755, 2
  %v3758 = vshll.u32 %v3003, 16
  %v3760 = vrot.slane %v3758, 3
  %v3761 = vor.u32 %v3757, %v3760
  %v3762 = vsel %vm3556, %v3752, %v3761
  %v3764 = vshrl.u32 %v3004, 16
  %v3766 = vrot.slane %v3764, 2
  %v3767 = vshll.u32 %v3004, 16
  %v3769 = vrot.slane %v3767, 3
  %v3770 = vor.u32 %v3766, %v3769
  %v3771 = vsel %vm3556, %v3761, %v3770
  %v3773 = vshrl.u32 %v3005, 16
  %v3775 = vrot.slane %v3773, 2
  %v3776 = vshll.u32 %v3005, 16
  %v3778 = vrot.slane %v3776, 3
  %v3779 = vor.u32 %v3775, %v3778
  %v3780 = vsel %vm3556, %v3770, %v3779
  %v3782 = vshrl.u32 %v3006, 16
  %v3784 = vrot.slane %v3782, 2
  %v3785 = vshll.u32 %v3006, 16
  %v3787 = vrot.slane %v3785, 3
  %v3788 = vor.u32 %v3784, %v3787
  %v3789 = vsel %vm3556, %v3779, %v3788
  %v3791 = vshrl.u32 %v3007, 16
  %v3793 = vrot.slane %v3791, 2
  %v3794 = vshll.u32 %v3007, 16
  %v3796 = vrot.slane %v3794, 3
  %v3797 = vor.u32 %v3793, %v3796
  %v3798 = vsel %vm3556, %v3788, %v3797
  %v3800 = vshrl.u32 %v3008, 16
  %v3802 = vrot.slane %v3800, 2
  %v3803 = vshll.u32 %v3008, 16
  %v3805 = vrot.slane %v3803, 3
  %v3806 = vor.u32 %v3802, %v3805
  %v3807 = vsel %vm3556, %v3797, %v3806
  %v3809 = vshrl.u32 %v3009, 16
  %v3811 = vrot.slane %v3809, 2
  %v3812 = vshll.u32 %v3009, 16
  %v3814 = vrot.slane %v3812, 3
  %v3815 = vor.u32 %v3811, %v3814
  %v3816 = vsel %vm3556, %v3806, %v3815
  %v3818 = vshrl.u32 %v3010, 16
  %v3820 = vrot.slane %v3818, 2
  %v3821 = vshll.u32 %v3010, 16
  %v3823 = vrot.slane %v3821, 3
  %v3824 = vor.u32 %v3820, %v3823
  %v3825 = vsel %vm3556, %v3815, %v3824
  %v3827 = vshrl.u32 %v3011, 16
  %v3829 = vrot.slane %v3827, 2
  %v3830 = vshll.u32 %v3011, 16
  %v3832 = vrot.slane %v3830, 3
  %v3833 = vor.u32 %v3829, %v3832
  %v3834 = vsel %vm3556, %v3824, %v3833
  %v3836 = vshrl.u32 %v3012, 16
  %v3838 = vrot.slane %v3836, 2
  %v3839 = vshll.u32 %v3012, 16
  %v3841 = vrot.slane %v3839, 3
  %v3842 = vor.u32 %v3838, %v3841
  %v3843 = vsel %vm3556, %v3833, %v3842
  %v3845 = vshrl.u32 %v3013, 16
  %v3847 = vrot.slane %v3845, 2
  %v3848 = vshll.u32 %v3013, 16
  %v3850 = vrot.slane %v3848, 3
  %v3851 = vor.u32 %v3847, %v3850
  %v3852 = vsel %vm3556, %v3842, %v3851
  %v3854 = vshrl.u32 %v3014, 16
  %v3856 = vrot.slane %v3854, 2
  %v3857 = vshll.u32 %v3014, 16
  %v3859 = vrot.slane %v3857, 3
  %v3860 = vor.u32 %v3856, %v3859
  %v3861 = vsel %vm3556, %v3851, %v3860
  %v3863 = vshrl.u32 %v3015, 16
  %v3865 = vrot.slane %v3863, 2
  %v3866 = vshll.u32 %v3015, 16
  %v3868 = vrot.slane %v3866, 3
  %v3869 = vor.u32 %v3865, %v3868
  %v3870 = vsel %vm3556, %v3860, %v3869
  %v3872 = vshrl.u32 %v3016, 16
  %v3874 = vrot.slane %v3872, 2
  %v3875 = vshll.u32 %v3016, 16
  %v3877 = vrot.slane %v3875, 3
  %v3878 = vor.u32 %v3874, %v3877
  %v3879 = vsel %vm3556, %v3869, %v3878
  %v3881 = vshrl.u32 %v3017, 16
  %v3883 = vrot.slane %v3881, 2
  %v3884 = vshll.u32 %v3017, 16
  %v3886 = vrot.slane %v3884, 3
  %v3887 = vor.u32 %v3883, %v3886
  %v3888 = vsel %vm3556, %v3878, %v3887
  %v3890 = vshrl.u32 %v3018, 16
  %v3892 = vrot.slane %v3890, 2
  %v3893 = vshll.u32 %v3018, 16
  %v3895 = vrot.slane %v3893, 3
  %v3896 = vor.u32 %v3892, %v3895
  %v3897 = vsel %vm3556, %v3887, %v3896
  %v3899 = vshrl.u32 %v3019, 16
  %v3901 = vrot.slane %v3899, 2
  %v3902 = vshll.u32 %v3019, 16
  %v3904 = vrot.slane %v3902, 3
  %v3905 = vor.u32 %v3901, %v3904
  %v3906 = vsel %vm3556, %v3896, %v3905
  %v3908 = vshrl.u32 %v3020, 16
  %v3910 = vrot.slane %v3908, 2
  %v3911 = vshll.u32 %v3020, 16
  %v3913 = vrot.slane %v3911, 3
  %v3914 = vor.u32 %v3910, %v3913
  %v3915 = vsel %vm3556, %v3905, %v3914
  %v3917 = vshrl.u32 %v3021, 16
  %v3919 = vrot.slane %v3917, 2
  %v3920 = vshll.u32 %v3021, 16
  %v3922 = vrot.slane %v3920, 3
  %v3923 = vor.u32 %v3919, %v3922
  %v3924 = vsel %vm3556, %v3914, %v3923
  %v3982 = vunpack.c.l.b16 %v2783
  %v3983 = vunpack.c.l.b16 %v2784
  %v3984 = vunpack.c.l.b16 %v2785
  %v3985 = vunpack.c.l.b16 %v2786
  %v3986 = vunpack.c.l.b16 %v2787
  %v3987 = vunpack.c.l.b16 %v2788
  %v3988 = vunpack.c.l.b16 %v2789
  %v3989 = vunpack.c.l.b16 %v2790
  %v3990 = vunpack.c.l.b16 %v2791
  %v3991 = vunpack.c.l.b16 %v2792
  %v3992 = vunpack.c.l.b16 %v2793
  %v3993 = vunpack.c.l.b16 %v2794
  %v3994 = vunpack.c.l.b16 %v2795
  %v3995 = vunpack.c.l.b16 %v2796
  %v3996 = vunpack.c.l.b16 %v2797
  %v3997 = vunpack.c.l.b16 %v2798
  %v3998 = vpack.c.b16 %v3983, %v3982
  %v3999 = vpack.c.b16 %v3985, %v3984
  %v4000 = vpack.c.b16 %v3987, %v3986
  %v4001 = vpack.c.b16 %v3989, %v3988
  %v4002 = vpack.c.b16 %v3991, %v3990
  %v4003 = vpack.c.b16 %v3993, %v3992
  %v4004 = vpack.c.b16 %v3995, %v3994
  %v4005 = vpack.c.b16 %v3997, %v3996
  %4014 = vmatprep.subr.bf16.mxu0 0
  %4015 = vmatpush1.bf16.msra.mxu0 %v3998
  %4016 = vmatprep.subr.bf16.mxu0 0
  %4017 = vmatpush1.bf16.msra.mxu0 %v3999
  %4018 = vmatprep.subr.bf16.mxu0 0
  %4019 = vmatpush1.bf16.msra.mxu0 %v4000
  %4020 = vmatprep.subr.bf16.mxu0 0
  %4021 = vmatpush1.bf16.msra.mxu0 %v4001
  %4022 = vmatprep.subr.bf16.mxu0 0
  %4023 = vmatpush1.bf16.msra.mxu0 %v4002
  %4024 = vmatprep.subr.bf16.mxu0 0
  %4025 = vmatpush1.bf16.msra.mxu0 %v4003
  %4026 = vmatprep.subr.bf16.mxu0 0
  %4027 = vmatpush1.bf16.msra.mxu0 %v4004
  %4028 = vmatprep.subr.bf16.mxu0 0
  %4029 = vmatpush1.bf16.msra.mxu0 %v4005
  %4030 = vmatprep.subr.bf16.mxu0 0
  %4031 = vmatpush1.bf16.msra.mxu0 0
  %4032 = vmatprep.subr.bf16.mxu0 0
  %4033 = vmatpush1.bf16.msra.mxu0 0
  %4034 = vmatprep.subr.bf16.mxu0 0
  %4035 = vmatpush1.bf16.msra.mxu0 0
  %4036 = vmatprep.subr.bf16.mxu0 0
  %4037 = vmatpush1.bf16.msra.mxu0 0
  %4038 = vmatprep.subr.bf16.mxu0 0
  %4039 = vmatpush1.bf16.msra.mxu0 0
  %4040 = vmatprep.subr.bf16.mxu0 0
  %4041 = vmatpush1.bf16.msra.mxu0 0
  %4042 = vmatprep.subr.bf16.mxu0 0
  %4043 = vmatpush1.bf16.msra.mxu0 0
  %4044 = vmatprep.subr.bf16.mxu0 0
  %4045 = vmatpush1.bf16.msra.mxu0 0
  %4046 = vmatprep.mubr.bf16.mxu0 0
  %4047 = vmatmul.mubr.bf16.gmra.mrb[0].mxu0 %v3573
  %v4048 = vpop.f32.mrb[0].mxu0
  %v4049 = vadd.f32 %v3228, %v4048
  %v4050 = vpop.f32.mrb[0].mxu0
  %v4051 = vpop.f32.mrb[0].mxu0
  %v4052 = vadd.f32 %v3231, %v4051
  %v4053 = vpop.f32.mrb[0].mxu0
  %4054 = vmatprep.mubr.bf16.mxu0 0
  %4055 = vmatmul.mubr.bf16.gmra.mrb[0].mxu0 %v3582
  %v4056 = vpop.f32.mrb[0].mxu0
  %v4057 = vadd.f32 %v3236, %v4056
  %v4058 = vpop.f32.mrb[0].mxu0
  %v4059 = vpop.f32.mrb[0].mxu0
  %v4060 = vadd.f32 %v3239, %v4059
  %v4061 = vpop.f32.mrb[0].mxu0
  %4062 = vmatprep.mubr.bf16.mxu0 0
  %4063 = vmatmul.mubr.bf16.gmra.mrb[0].mxu0 %v3591
  %v4064 = vpop.f32.mrb[0].mxu0
  %v4065 = vadd.f32 %v3244, %v4064
  %v4066 = vpop.f32.mrb[0].mxu0
  %v4067 = vpop.f32.mrb[0].mxu0
  %v4068 = vadd.f32 %v3247, %v4067
  %v4069 = vpop.f32.mrb[0].mxu0
  %4070 = vmatprep.mubr.bf16.mxu0 0
  %4071 = vmatmul.mubr.bf16.gmra.mrb[0].mxu0 %v3600
  %v4072 = vpop.f32.mrb[0].mxu0
  %v4073 = vadd.f32 %v3252, %v4072
  %v4074 = vpop.f32.mrb[0].mxu0
  %v4075 = vpop.f32.mrb[0].mxu0
  %v4076 = vadd.f32 %v3255, %v4075
  %v4077 = vpop.f32.mrb[0].mxu0
  %4078 = vmatprep.mubr.bf16.mxu0 0
  %4079 = vmatmul.mubr.bf16.gmra.mrb[0].mxu0 %v3609
  %v4080 = vpop.f32.mrb[0].mxu0
  %v4081 = vadd.f32 %v3260, %v4080
  %v4082 = vpop.f32.mrb[0].mxu0
  %v4083 = vpop.f32.mrb[0].mxu0
  %v4084 = vadd.f32 %v3263, %v4083
  %v4085 = vpop.f32.mrb[0].mxu0
  %4086 = vmatprep.mubr.bf16.mxu0 0
  %4087 = vmatmul.mubr.bf16.gmra.mrb[0].mxu0 %v3618
  %v4088 = vpop.f32.mrb[0].mxu0
  %v4089 = vadd.f32 %v3268, %v4088
  %v4090 = vpop.f32.mrb[0].mxu0
  %v4091 = vpop.f32.mrb[0].mxu0
  %v4092 = vadd.f32 %v3271, %v4091
  %v4093 = vpop.f32.mrb[0].mxu0
  %4094 = vmatprep.mubr.bf16.mxu0 0
  %4095 = vmatmul.mubr.bf16.gmra.mrb[0].mxu0 %v3627
  %v4096 = vpop.f32.mrb[0].mxu0
  %v4097 = vadd.f32 %v3276, %v4096
  %v4098 = vpop.f32.mrb[0].mxu0
  %v4099 = vpop.f32.mrb[0].mxu0
  %v4100 = vadd.f32 %v3279, %v4099
  %v4101 = vpop.f32.mrb[0].mxu0
  %4102 = vmatprep.mubr.bf16.mxu0 0
  %4103 = vmatmul.mubr.bf16.gmra.mrb[0].mxu0 %v3636
  %v4104 = vpop.f32.mrb[0].mxu0
  %v4105 = vadd.f32 %v3284, %v4104
  %v4106 = vpop.f32.mrb[0].mxu0
  %v4107 = vpop.f32.mrb[0].mxu0
  %v4108 = vadd.f32 %v3287, %v4107
  %v4109 = vpop.f32.mrb[0].mxu0
  %4110 = vmatprep.mubr.bf16.mxu0 0
  %4111 = vmatmul.mubr.bf16.gmra.mrb[0].mxu0 %v3645
  %v4112 = vpop.f32.mrb[0].mxu0
  %v4113 = vadd.f32 %v3292, %v4112
  %v4114 = vpop.f32.mrb[0].mxu0
  %v4115 = vpop.f32.mrb[0].mxu0
  %v4116 = vadd.f32 %v3295, %v4115
  %v4117 = vpop.f32.mrb[0].mxu0
  %4118 = vmatprep.mubr.bf16.mxu0 0
  %4119 = vmatmul.mubr.bf16.gmra.mrb[0].mxu0 %v3654
  %v4120 = vpop.f32.mrb[0].mxu0
  %v4121 = vadd.f32 %v3300, %v4120
  %v4122 = vpop.f32.mrb[0].mxu0
  %v4123 = vpop.f32.mrb[0].mxu0
  %v4124 = vadd.f32 %v3303, %v4123
  %v4125 = vpop.f32.mrb[0].mxu0
  %4126 = vmatprep.mubr.bf16.mxu0 0
  %4127 = vmatmul.mubr.bf16.gmra.mrb[0].mxu0 %v3663
  %v4128 = vpop.f32.mrb[0].mxu0
  %v4129 = vadd.f32 %v3308, %v4128
  %v4130 = vpop.f32.mrb[0].mxu0
  %v4131 = vpop.f32.mrb[0].mxu0
  %v4132 = vadd.f32 %v3311, %v4131
  %v4133 = vpop.f32.mrb[0].mxu0
  %4134 = vmatprep.mubr.bf16.mxu0 0
  %4135 = vmatmul.mubr.bf16.gmra.mrb[0].mxu0 %v3672
  %v4136 = vpop.f32.mrb[0].mxu0
  %v4137 = vadd.f32 %v3316, %v4136
  %v4138 = vpop.f32.mrb[0].mxu0
  %v4139 = vpop.f32.mrb[0].mxu0
  %v4140 = vadd.f32 %v3319, %v4139
  %v4141 = vpop.f32.mrb[0].mxu0
  %4142 = vmatprep.mubr.bf16.mxu0 0
  %4143 = vmatmul.mubr.bf16.gmra.mrb[0].mxu0 %v3681
  %v4144 = vpop.f32.mrb[0].mxu0
  %v4145 = vadd.f32 %v3324, %v4144
  %v4146 = vpop.f32.mrb[0].mxu0
  %v4147 = vpop.f32.mrb[0].mxu0
  %v4148 = vadd.f32 %v3327, %v4147
  %v4149 = vpop.f32.mrb[0].mxu0
  %4150 = vmatprep.mubr.bf16.mxu0 0
  %4151 = vmatmul.mubr.bf16.gmra.mrb[0].mxu0 %v3690
  %v4152 = vpop.f32.mrb[0].mxu0
  %v4153 = vadd.f32 %v3332, %v4152
  %v4154 = vpop.f32.mrb[0].mxu0
  %v4155 = vpop.f32.mrb[0].mxu0
  %v4156 = vadd.f32 %v3335, %v4155
  %v4157 = vpop.f32.mrb[0].mxu0
  %4158 = vmatprep.mubr.bf16.mxu0 0
  %4159 = vmatmul.mubr.bf16.gmra.mrb[0].mxu0 %v3699
  %v4160 = vpop.f32.mrb[0].mxu0
  %v4161 = vadd.f32 %v3340, %v4160
  %v4162 = vpop.f32.mrb[0].mxu0
  %v4163 = vpop.f32.mrb[0].mxu0
  %v4164 = vadd.f32 %v3343, %v4163
  %v4165 = vpop.f32.mrb[0].mxu0
  %4166 = vmatprep.mubr.bf16.mxu0 0
  %4167 = vmatmul.mubr.bf16.gmra.mrb[0].mxu0 %v3708
  %v4168 = vpop.f32.mrb[0].mxu0
  %v4169 = vadd.f32 %v3348, %v4168
  %v4170 = vpop.f32.mrb[0].mxu0
  %v4171 = vpop.f32.mrb[0].mxu0
  %v4172 = vadd.f32 %v3351, %v4171
  %v4173 = vpop.f32.mrb[0].mxu0
  %4174 = vmatprep.mubr.bf16.mxu0 0
  %4175 = vmatmul.mubr.bf16.gmra.mrb[0].mxu0 %v3717
  %v4176 = vpop.f32.mrb[0].mxu0
  %v4177 = vadd.f32 %v3356, %v4176
  %v4178 = vpop.f32.mrb[0].mxu0
  %v4179 = vpop.f32.mrb[0].mxu0
  %v4180 = vadd.f32 %v3359, %v4179
  %v4181 = vpop.f32.mrb[0].mxu0
  %4182 = vmatprep.mubr.bf16.mxu0 0
  %4183 = vmatmul.mubr.bf16.gmra.mrb[0].mxu0 %v3726
  %v4184 = vpop.f32.mrb[0].mxu0
  %v4185 = vadd.f32 %v3364, %v4184
  %v4186 = vpop.f32.mrb[0].mxu0
  %v4187 = vpop.f32.mrb[0].mxu0
  %v4188 = vadd.f32 %v3367, %v4187
  %v4189 = vpop.f32.mrb[0].mxu0
  %4190 = vmatprep.mubr.bf16.mxu0 0
  %4191 = vmatmul.mubr.bf16.gmra.mrb[0].mxu0 %v3735
  %v4192 = vpop.f32.mrb[0].mxu0
  %v4193 = vadd.f32 %v3372, %v4192
  %v4194 = vpop.f32.mrb[0].mxu0
  %v4195 = vpop.f32.mrb[0].mxu0
  %v4196 = vadd.f32 %v3375, %v4195
  %v4197 = vpop.f32.mrb[0].mxu0
  %4198 = vmatprep.mubr.bf16.mxu0 0
  %4199 = vmatmul.mubr.bf16.gmra.mrb[0].mxu0 %v3744
  %v4200 = vpop.f32.mrb[0].mxu0
  %v4201 = vadd.f32 %v3380, %v4200
  %v4202 = vpop.f32.mrb[0].mxu0
  %v4203 = vpop.f32.mrb[0].mxu0
  %v4204 = vadd.f32 %v3383, %v4203
  %v4205 = vpop.f32.mrb[0].mxu0
  %4206 = vmatprep.mubr.bf16.mxu0 0
  %4207 = vmatmul.mubr.bf16.gmra.mrb[0].mxu0 %v3753
  %v4208 = vpop.f32.mrb[0].mxu0
  %v4209 = vadd.f32 %v3388, %v4208
  %v4210 = vpop.f32.mrb[0].mxu0
  %v4211 = vpop.f32.mrb[0].mxu0
  %v4212 = vadd.f32 %v3391, %v4211
  %v4213 = vpop.f32.mrb[0].mxu0
  %4214 = vmatprep.mubr.bf16.mxu0 0
  %4215 = vmatmul.mubr.bf16.gmra.mrb[0].mxu0 %v3762
  %v4216 = vpop.f32.mrb[0].mxu0
  %v4217 = vadd.f32 %v3396, %v4216
  %v4218 = vpop.f32.mrb[0].mxu0
  %v4219 = vpop.f32.mrb[0].mxu0
  %v4220 = vadd.f32 %v3399, %v4219
  %v4221 = vpop.f32.mrb[0].mxu0
  %4222 = vmatprep.mubr.bf16.mxu0 0
  %4223 = vmatmul.mubr.bf16.gmra.mrb[0].mxu0 %v3771
  %v4224 = vpop.f32.mrb[0].mxu0
  %v4225 = vadd.f32 %v3404, %v4224
  %v4226 = vpop.f32.mrb[0].mxu0
  %v4227 = vpop.f32.mrb[0].mxu0
  %v4228 = vadd.f32 %v3407, %v4227
  %v4229 = vpop.f32.mrb[0].mxu0
  %4230 = vmatprep.mubr.bf16.mxu0 0
  %4231 = vmatmul.mubr.bf16.gmra.mrb[0].mxu0 %v3780
  %v4232 = vpop.f32.mrb[0].mxu0
  %v4233 = vadd.f32 %v3412, %v4232
  %v4234 = vpop.f32.mrb[0].mxu0
  %v4235 = vpop.f32.mrb[0].mxu0
  %v4236 = vadd.f32 %v3415, %v4235
  %v4237 = vpop.f32.mrb[0].mxu0
  %4238 = vmatprep.mubr.bf16.mxu0 0
  %4239 = vmatmul.mubr.bf16.gmra.mrb[0].mxu0 %v3789
  %v4240 = vpop.f32.mrb[0].mxu0
  %v4241 = vadd.f32 %v3420, %v4240
  %v4242 = vpop.f32.mrb[0].mxu0
  %v4243 = vpop.f32.mrb[0].mxu0
  %v4244 = vadd.f32 %v3423, %v4243
  %v4245 = vpop.f32.mrb[0].mxu0
  %4246 = vmatprep.mubr.bf16.mxu0 0
  %4247 = vmatmul.mubr.bf16.gmra.mrb[0].mxu0 %v3798
  %v4248 = vpop.f32.mrb[0].mxu0
  %v4249 = vadd.f32 %v3428, %v4248
  %v4250 = vpop.f32.mrb[0].mxu0
  %v4251 = vpop.f32.mrb[0].mxu0
  %v4252 = vadd.f32 %v3431, %v4251
  %v4253 = vpop.f32.mrb[0].mxu0
  %4254 = vmatprep.mubr.bf16.mxu0 0
  %4255 = vmatmul.mubr.bf16.gmra.mrb[0].mxu0 %v3807
  %v4256 = vpop.f32.mrb[0].mxu0
  %v4257 = vadd.f32 %v3436, %v4256
  %v4258 = vpop.f32.mrb[0].mxu0
  %v4259 = vpop.f32.mrb[0].mxu0
  %v4260 = vadd.f32 %v3439, %v4259
  %v4261 = vpop.f32.mrb[0].mxu0
  %4262 = vmatprep.mubr.bf16.mxu0 0
  %4263 = vmatmul.mubr.bf16.gmra.mrb[0].mxu0 %v3816
  %v4264 = vpop.f32.mrb[0].mxu0
  %v4265 = vadd.f32 %v3444, %v4264
  %v4266 = vpop.f32.mrb[0].mxu0
  %v4267 = vpop.f32.mrb[0].mxu0
  %v4268 = vadd.f32 %v3447, %v4267
  %v4269 = vpop.f32.mrb[0].mxu0
  %4270 = vmatprep.mubr.bf16.mxu0 0
  %4271 = vmatmul.mubr.bf16.gmra.mrb[0].mxu0 %v3825
  %v4272 = vpop.f32.mrb[0].mxu0
  %v4273 = vadd.f32 %v3452, %v4272
  %v4274 = vpop.f32.mrb[0].mxu0
  %v4275 = vpop.f32.mrb[0].mxu0
  %v4276 = vadd.f32 %v3455, %v4275
  %v4277 = vpop.f32.mrb[0].mxu0
  %4278 = vmatprep.mubr.bf16.mxu0 0
  %4279 = vmatmul.mubr.bf16.gmra.mrb[0].mxu0 %v3834
  %v4280 = vpop.f32.mrb[0].mxu0
  %v4281 = vadd.f32 %v3460, %v4280
  %v4282 = vpop.f32.mrb[0].mxu0
  %v4283 = vpop.f32.mrb[0].mxu0
  %v4284 = vadd.f32 %v3463, %v4283
  %v4285 = vpop.f32.mrb[0].mxu0
  %4286 = vmatprep.mubr.bf16.mxu0 0
  %4287 = vmatmul.mubr.bf16.gmra.mrb[0].mxu0 %v3843
  %v4288 = vpop.f32.mrb[0].mxu0
  %v4289 = vadd.f32 %v3468, %v4288
  %v4290 = vpop.f32.mrb[0].mxu0
  %v4291 = vpop.f32.mrb[0].mxu0
  %v4292 = vadd.f32 %v3471, %v4291
  %v4293 = vpop.f32.mrb[0].mxu0
  %4294 = vmatprep.mubr.bf16.mxu0 0
  %4295 = vmatmul.mubr.bf16.gmra.mrb[0].mxu0 %v3852
  %v4296 = vpop.f32.mrb[0].mxu0
  %v4297 = vadd.f32 %v3476, %v4296
  %v4298 = vpop.f32.mrb[0].mxu0
  %v4299 = vpop.f32.mrb[0].mxu0
  %v4300 = vadd.f32 %v3479, %v4299
  %v4301 = vpop.f32.mrb[0].mxu0
  %4302 = vmatprep.mubr.bf16.mxu0 0
  %4303 = vmatmul.mubr.bf16.gmra.mrb[0].mxu0 %v3861
  %v4304 = vpop.f32.mrb[0].mxu0
  %v4305 = vadd.f32 %v3484, %v4304
  %v4306 = vpop.f32.mrb[0].mxu0
  %v4307 = vpop.f32.mrb[0].mxu0
  %v4308 = vadd.f32 %v3487, %v4307
  %v4309 = vpop.f32.mrb[0].mxu0
  %4310 = vmatprep.mubr.bf16.mxu0 0
  %4311 = vmatmul.mubr.bf16.gmra.mrb[0].mxu0 %v3870
  %v4312 = vpop.f32.mrb[0].mxu0
  %v4313 = vadd.f32 %v3492, %v4312
  %v4314 = vpop.f32.mrb[0].mxu0
  %v4315 = vpop.f32.mrb[0].mxu0
  %v4316 = vadd.f32 %v3495, %v4315
  %v4317 = vpop.f32.mrb[0].mxu0
  %4318 = vmatprep.mubr.bf16.mxu0 0
  %4319 = vmatmul.mubr.bf16.gmra.mrb[0].mxu0 %v3879
  %v4320 = vpop.f32.mrb[0].mxu0
  %v4321 = vadd.f32 %v3500, %v4320
  %v4322 = vpop.f32.mrb[0].mxu0
  %v4323 = vpop.f32.mrb[0].mxu0
  %v4324 = vadd.f32 %v3503, %v4323
  %v4325 = vpop.f32.mrb[0].mxu0
  %4326 = vmatprep.mubr.bf16.mxu0 0
  %4327 = vmatmul.mubr.bf16.gmra.mrb[0].mxu0 %v3888
  %v4328 = vpop.f32.mrb[0].mxu0
  %v4329 = vadd.f32 %v3508, %v4328
  %v4330 = vpop.f32.mrb[0].mxu0
  %v4331 = vpop.f32.mrb[0].mxu0
  %v4332 = vadd.f32 %v3511, %v4331
  %v4333 = vpop.f32.mrb[0].mxu0
  %4334 = vmatprep.mubr.bf16.mxu0 0
  %4335 = vmatmul.mubr.bf16.gmra.mrb[0].mxu0 %v3897
  %v4336 = vpop.f32.mrb[0].mxu0
  %v4337 = vadd.f32 %v3516, %v4336
  %v4338 = vpop.f32.mrb[0].mxu0
  %v4339 = vpop.f32.mrb[0].mxu0
  %v4340 = vadd.f32 %v3519, %v4339
  %v4341 = vpop.f32.mrb[0].mxu0
  %4342 = vmatprep.mubr.bf16.mxu0 0
  %4343 = vmatmul.mubr.bf16.gmra.mrb[0].mxu0 %v3906
  %v4344 = vpop.f32.mrb[0].mxu0
  %v4345 = vadd.f32 %v3524, %v4344
  %v4346 = vpop.f32.mrb[0].mxu0
  %v4347 = vpop.f32.mrb[0].mxu0
  %v4348 = vadd.f32 %v3527, %v4347
  %v4349 = vpop.f32.mrb[0].mxu0
  %4350 = vmatprep.mubr.bf16.mxu0 0
  %4351 = vmatmul.mubr.bf16.gmra.mrb[0].mxu0 %v3915
  %v4352 = vpop.f32.mrb[0].mxu0
  %v4353 = vadd.f32 %v3532, %v4352
  %v4354 = vpop.f32.mrb[0].mxu0
  %v4355 = vpop.f32.mrb[0].mxu0
  %v4356 = vadd.f32 %v3535, %v4355
  %v4357 = vpop.f32.mrb[0].mxu0
  %4358 = vmatprep.mubr.bf16.mxu0 0
  %4359 = vmatmul.mubr.bf16.gmra.mrb[0].mxu0 %v3924
  %v4360 = vpop.f32.mrb[0].mxu0
  %v4361 = vadd.f32 %v3540, %v4360
  %v4362 = vpop.f32.mrb[0].mxu0
  %v4363 = vpop.f32.mrb[0].mxu0
  %v4364 = vadd.f32 %v3543, %v4363
  %v4365 = vpop.f32.mrb[0].mxu0
  %4366 = vmatprep.mubr.bf16.mxu0 0
  %4367 = vmatmul.mubr.bf16.gmra.mrb[0].mxu0 %v3923
  %v4368 = vpop.f32.mrb[0].mxu0
  %v4369 = vadd.f32 %v3548, %v4368
  %v4370 = vpop.f32.mrb[0].mxu0
  %v4371 = vpop.f32.mrb[0].mxu0
  %v4372 = vpop.f32.mrb[0].mxu0
  %4373 = vdwg.mxu0
  %v4374 = vld [vmem:[#allocation2 + $0x144] sm:$0xf]
  %s4375 = scalar_lea.vmem %s4, 128
  %v4376 = vld [vmem:[%s4375] sm:$0xf]
  %v4377 = vld [vmem:[%s4375 + $0x4] sm:$0xf]
  %v4378 = vld [vmem:[%s4375 + $0x8] sm:$0xf]
  %v4379 = vld [vmem:[%s4375 + $0xc] sm:$0xf]
  %v4380 = vld [vmem:[%s4375 + $0x10] sm:$0xf]
  %v4381 = vld [vmem:[%s4375 + $0x14] sm:$0xf]
  %v4382 = vld [vmem:[%s4375 + $0x18] sm:$0xf]
  %v4383 = vld [vmem:[%s4375 + $0x1c] sm:$0xf]
  %v4384 = vld [vmem:[%s4375 + $0x20] sm:$0xf]
  %v4385 = vld [vmem:[%s4375 + $0x24] sm:$0xf]
  %v4386 = vld [vmem:[%s4375 + $0x28] sm:$0xf]
  %v4387 = vld [vmem:[%s4375 + $0x2c] sm:$0xf]
  %v4388 = vld [vmem:[%s4375 + $0x30] sm:$0xf]
  %v4389 = vld [vmem:[%s4375 + $0x34] sm:$0xf]
  %v4390 = vld [vmem:[%s4375 + $0x38] sm:$0xf]
  %v4391 = vld [vmem:[%s4375 + $0x3c] sm:$0xf]
  %v4393 = vunpack.c.l.b16 %v4374
  %v4394 = vpack.c.b16 %v4393, %v2979
  %vm4395 = vsmask.f32 4352
  %v4397 = vshrl.u32 %v2981, 16
  %v4399 = vrot.slane %v4397, 3
  %v4400 = vshll.u32 %v2981, 16
  %v4402 = vrot.slane %v4400, 4
  %v4403 = vor.u32 %v4399, %v4402
  %v4404 = vrot.slane %v3566, 3
  %v4405 = vrot.slane %v3569, 4
  %v4406 = vor.u32 %v4404, %v4405
  %v4407 = vsel %vm4395, %v4403, %v4406
  %v4408 = vrot.slane %v3575, 3
  %v4409 = vrot.slane %v3578, 4
  %v4410 = vor.u32 %v4408, %v4409
  %v4411 = vsel %vm4395, %v4406, %v4410
  %v4412 = vrot.slane %v3584, 3
  %v4413 = vrot.slane %v3587, 4
  %v4414 = vor.u32 %v4412, %v4413
  %v4415 = vsel %vm4395, %v4410, %v4414
  %v4416 = vrot.slane %v3593, 3
  %v4417 = vrot.slane %v3596, 4
  %v4418 = vor.u32 %v4416, %v4417
  %v4419 = vsel %vm4395, %v4414, %v4418
  %v4420 = vrot.slane %v3602, 3
  %v4421 = vrot.slane %v3605, 4
  %v4422 = vor.u32 %v4420, %v4421
  %v4423 = vsel %vm4395, %v4418, %v4422
  %v4424 = vrot.slane %v3611, 3
  %v4425 = vrot.slane %v3614, 4
  %v4426 = vor.u32 %v4424, %v4425
  %v4427 = vsel %vm4395, %v4422, %v4426
  %v4428 = vrot.slane %v3620, 3
  %v4429 = vrot.slane %v3623, 4
  %v4430 = vor.u32 %v4428, %v4429
  %v4431 = vsel %vm4395, %v4426, %v4430
  %v4432 = vrot.slane %v3629, 3
  %v4433 = vrot.slane %v3632, 4
  %v4434 = vor.u32 %v4432, %v4433
  %v4435 = vsel %vm4395, %v4430, %v4434
  %v4436 = vrot.slane %v3638, 3
  %v4437 = vrot.slane %v3641, 4
  %v4438 = vor.u32 %v4436, %v4437
  %v4439 = vsel %vm4395, %v4434, %v4438
  %v4440 = vrot.slane %v3647, 3
  %v4441 = vrot.slane %v3650, 4
  %v4442 = vor.u32 %v4440, %v4441
  %v4443 = vsel %vm4395, %v4438, %v4442
  %v4444 = vrot.slane %v3656, 3
  %v4445 = vrot.slane %v3659, 4
  %v4446 = vor.u32 %v4444, %v4445
  %v4447 = vsel %vm4395, %v4442, %v4446
  %v4448 = vrot.slane %v3665, 3
  %v4449 = vrot.slane %v3668, 4
  %v4450 = vor.u32 %v4448, %v4449
  %v4451 = vsel %vm4395, %v4446, %v4450
  %v4452 = vrot.slane %v3674, 3
  %v4453 = vrot.slane %v3677, 4
  %v4454 = vor.u32 %v4452, %v4453
  %v4455 = vsel %vm4395, %v4450, %v4454
  %v4456 = vrot.slane %v3683, 3
  %v4457 = vrot.slane %v3686, 4
  %v4458 = vor.u32 %v4456, %v4457
  %v4459 = vsel %vm4395, %v4454, %v4458
  %v4460 = vrot.slane %v3692, 3
  %v4461 = vrot.slane %v3695, 4
  %v4462 = vor.u32 %v4460, %v4461
  %v4463 = vsel %vm4395, %v4458, %v4462
  %v4464 = vrot.slane %v3701, 3
  %v4465 = vrot.slane %v3704, 4
  %v4466 = vor.u32 %v4464, %v4465
  %v4467 = vsel %vm4395, %v4462, %v4466
  %v4468 = vrot.slane %v3710, 3
  %v4469 = vrot.slane %v3713, 4
  %v4470 = vor.u32 %v4468, %v4469
  %v4471 = vsel %vm4395, %v4466, %v4470
  %v4472 = vrot.slane %v3719, 3
  %v4473 = vrot.slane %v3722, 4
  %v4474 = vor.u32 %v4472, %v4473
  %v4475 = vsel %vm4395, %v4470, %v4474
  %v4476 = vrot.slane %v3728, 3
  %v4477 = vrot.slane %v3731, 4
  %v4478 = vor.u32 %v4476, %v4477
  %v4479 = vsel %vm4395, %v4474, %v4478
  %v4480 = vrot.slane %v3737, 3
  %v4481 = vrot.slane %v3740, 4
  %v4482 = vor.u32 %v4480, %v4481
  %v4483 = vsel %vm4395, %v4478, %v4482
  %v4484 = vrot.slane %v3746, 3
  %v4485 = vrot.slane %v3749, 4
  %v4486 = vor.u32 %v4484, %v4485
  %v4487 = vsel %vm4395, %v4482, %v4486
  %v4488 = vrot.slane %v3755, 3
  %v4489 = vrot.slane %v3758, 4
  %v4490 = vor.u32 %v4488, %v4489
  %v4491 = vsel %vm4395, %v4486, %v4490
  %v4492 = vrot.slane %v3764, 3
  %v4493 = vrot.slane %v3767, 4
  %v4494 = vor.u32 %v4492, %v4493
  %v4495 = vsel %vm4395, %v4490, %v4494
  %v4496 = vrot.slane %v3773, 3
  %v4497 = vrot.slane %v3776, 4
  %v4498 = vor.u32 %v4496, %v4497
  %v4499 = vsel %vm4395, %v4494, %v4498
  %v4500 = vrot.slane %v3782, 3
  %v4501 = vrot.slane %v3785, 4
  %v4502 = vor.u32 %v4500, %v4501
  %v4503 = vsel %vm4395, %v4498, %v4502
  %v4504 = vrot.slane %v3791, 3
  %v4505 = vrot.slane %v3794, 4
  %v4506 = vor.u32 %v4504, %v4505
  %v4507 = vsel %vm4395, %v4502, %v4506
  %v4508 = vrot.slane %v3800, 3
  %v4509 = vrot.slane %v3803, 4
  %v4510 = vor.u32 %v4508, %v4509
  %v4511 = vsel %vm4395, %v4506, %v4510
  %v4512 = vrot.slane %v3809, 3
  %v4513 = vrot.slane %v3812, 4
  %v4514 = vor.u32 %v4512, %v4513
  %v4515 = vsel %vm4395, %v4510, %v4514
  %v4516 = vrot.slane %v3818, 3
  %v4517 = vrot.slane %v3821, 4
  %v4518 = vor.u32 %v4516, %v4517
  %v4519 = vsel %vm4395, %v4514, %v4518
  %v4520 = vrot.slane %v3827, 3
  %v4521 = vrot.slane %v3830, 4
  %v4522 = vor.u32 %v4520, %v4521
  %v4523 = vsel %vm4395, %v4518, %v4522
  %v4524 = vrot.slane %v3836, 3
  %v4525 = vrot.slane %v3839, 4
  %v4526 = vor.u32 %v4524, %v4525
  %v4527 = vsel %vm4395, %v4522, %v4526
  %v4528 = vrot.slane %v3845, 3
  %v4529 = vrot.slane %v3848, 4
  %v4530 = vor.u32 %v4528, %v4529
  %v4531 = vsel %vm4395, %v4526, %v4530
  %v4532 = vrot.slane %v3854, 3
  %v4533 = vrot.slane %v3857, 4
  %v4534 = vor.u32 %v4532, %v4533
  %v4535 = vsel %vm4395, %v4530, %v4534
  %v4536 = vrot.slane %v3863, 3
  %v4537 = vrot.slane %v3866, 4
  %v4538 = vor.u32 %v4536, %v4537
  %v4539 = vsel %vm4395, %v4534, %v4538
  %v4540 = vrot.slane %v3872, 3
  %v4541 = vrot.slane %v3875, 4
  %v4542 = vor.u32 %v4540, %v4541
  %v4543 = vsel %vm4395, %v4538, %v4542
  %v4544 = vrot.slane %v3881, 3
  %v4545 = vrot.slane %v3884, 4
  %v4546 = vor.u32 %v4544, %v4545
  %v4547 = vsel %vm4395, %v4542, %v4546
  %v4548 = vrot.slane %v3890, 3
  %v4549 = vrot.slane %v3893, 4
  %v4550 = vor.u32 %v4548, %v4549
  %v4551 = vsel %vm4395, %v4546, %v4550
  %v4552 = vrot.slane %v3899, 3
  %v4553 = vrot.slane %v3902, 4
  %v4554 = vor.u32 %v4552, %v4553
  %v4555 = vsel %vm4395, %v4550, %v4554
  %v4556 = vrot.slane %v3908, 3
  %v4557 = vrot.slane %v3911, 4
  %v4558 = vor.u32 %v4556, %v4557
  %v4559 = vsel %vm4395, %v4554, %v4558
  %v4561 = vshrl.u32 %v4394, 16
  %v4563 = vrot.slane %v4561, 3
  %v4564 = vshll.u32 %v4394, 16
  %v4566 = vrot.slane %v4564, 4
  %v4567 = vor.u32 %v4563, %v4566
  %v4568 = vsel %vm4395, %v4558, %v4567
  %v4626 = vunpack.c.l.b16 %v4376
  %v4627 = vunpack.c.l.b16 %v4377
  %v4628 = vunpack.c.l.b16 %v4378
  %v4629 = vunpack.c.l.b16 %v4379
  %v4630 = vunpack.c.l.b16 %v4380
  %v4631 = vunpack.c.l.b16 %v4381
  %v4632 = vunpack.c.l.b16 %v4382
  %v4633 = vunpack.c.l.b16 %v4383
  %v4634 = vunpack.c.l.b16 %v4384
  %v4635 = vunpack.c.l.b16 %v4385
  %v4636 = vunpack.c.l.b16 %v4386
  %v4637 = vunpack.c.l.b16 %v4387
  %v4638 = vunpack.c.l.b16 %v4388
  %v4639 = vunpack.c.l.b16 %v4389
  %v4640 = vunpack.c.l.b16 %v4390
  %v4641 = vunpack.c.l.b16 %v4391
  %v4642 = vpack.c.b16 %v4627, %v4626
  %v4643 = vpack.c.b16 %v4629, %v4628
  %v4644 = vpack.c.b16 %v4631, %v4630
  %v4645 = vpack.c.b16 %v4633, %v4632
  %v4646 = vpack.c.b16 %v4635, %v4634
  %v4647 = vpack.c.b16 %v4637, %v4636
  %v4648 = vpack.c.b16 %v4639, %v4638
  %v4649 = vpack.c.b16 %v4641, %v4640
  %4658 = vmatprep.subr.bf16.mxu0 0
  %4659 = vmatpush1.bf16.msra.mxu0 %v4642
  %4660 = vmatprep.subr.bf16.mxu0 0
  %4661 = vmatpush1.bf16.msra.mxu0 %v4643
  %4662 = vmatprep.subr.bf16.mxu0 0
  %4663 = vmatpush1.bf16.msra.mxu0 %v4644
  %4664 = vmatprep.subr.bf16.mxu0 0
  %4665 = vmatpush1.bf16.msra.mxu0 %v4645
  %4666 = vmatprep.subr.bf16.mxu0 0
  %4667 = vmatpush1.bf16.msra.mxu0 %v4646
  %4668 = vmatprep.subr.bf16.mxu0 0
  %4669 = vmatpush1.bf16.msra.mxu0 %v4647
  %4670 = vmatprep.subr.bf16.mxu0 0
  %4671 = vmatpush1.bf16.msra.mxu0 %v4648
  %4672 = vmatprep.subr.bf16.mxu0 0
  %4673 = vmatpush1.bf16.msra.mxu0 %v4649
  %4674 = vmatprep.subr.bf16.mxu0 0
  %4675 = vmatpush1.bf16.msra.mxu0 0
  %4676 = vmatprep.subr.bf16.mxu0 0
  %4677 = vmatpush1.bf16.msra.mxu0 0
  %4678 = vmatprep.subr.bf16.mxu0 0
  %4679 = vmatpush1.bf16.msra.mxu0 0
  %4680 = vmatprep.subr.bf16.mxu0 0
  %4681 = vmatpush1.bf16.msra.mxu0 0
  %4682 = vmatprep.subr.bf16.mxu0 0
  %4683 = vmatpush1.bf16.msra.mxu0 0
  %4684 = vmatprep.subr.bf16.mxu0 0
  %4685 = vmatpush1.bf16.msra.mxu0 0
  %4686 = vmatprep.subr.bf16.mxu0 0
  %4687 = vmatpush1.bf16.msra.mxu0 0
  %4688 = vmatprep.subr.bf16.mxu0 0
  %4689 = vmatpush1.bf16.msra.mxu0 0
  %4690 = vmatprep.mubr.bf16.mxu0 0
  %4691 = vmatmul.mubr.bf16.gmra.mrb[0].mxu0 %v4407
  %v4692 = vpop.f32.mrb[0].mxu0
  %v4693 = vadd.f32 0.0, %v4692
  %v4694 = vpop.f32.mrb[0].mxu0
  %v4695 = vpop.f32.mrb[0].mxu0
  %v4696 = vadd.f32 0.0, %v4695
  %v4697 = vpop.f32.mrb[0].mxu0
  %4698 = vmatprep.mubr.bf16.mxu0 0
  %4699 = vmatmul.mubr.bf16.gmra.mrb[0].mxu0 %v4411
  %v4700 = vpop.f32.mrb[0].mxu0
  %v4701 = vadd.f32 0.0, %v4700
  %v4702 = vpop.f32.mrb[0].mxu0
  %v4703 = vpop.f32.mrb[0].mxu0
  %v4704 = vadd.f32 0.0, %v4703
  %v4705 = vpop.f32.mrb[0].mxu0
  %4706 = vmatprep.mubr.bf16.mxu0 0
  %4707 = vmatmul.mubr.bf16.gmra.mrb[0].mxu0 %v4415
  %v4708 = vpop.f32.mrb[0].mxu0
  %v4709 = vadd.f32 0.0, %v4708
  %v4710 = vpop.f32.mrb[0].mxu0
  %v4711 = vpop.f32.mrb[0].mxu0
  %v4712 = vadd.f32 0.0, %v4711
  %v4713 = vpop.f32.mrb[0].mxu0
  %4714 = vmatprep.mubr.bf16.mxu0 0
  %4715 = vmatmul.mubr.bf16.gmra.mrb[0].mxu0 %v4419
  %v4716 = vpop.f32.mrb[0].mxu0
  %v4717 = vadd.f32 0.0, %v4716
  %v4718 = vpop.f32.mrb[0].mxu0
  %v4719 = vpop.f32.mrb[0].mxu0
  %v4720 = vadd.f32 0.0, %v4719
  %v4721 = vpop.f32.mrb[0].mxu0
  %4722 = vmatprep.mubr.bf16.mxu0 0
  %4723 = vmatmul.mubr.bf16.gmra.mrb[0].mxu0 %v4423
  %v4724 = vpop.f32.mrb[0].mxu0
  %v4725 = vadd.f32 0.0, %v4724
  %v4726 = vpop.f32.mrb[0].mxu0
  %v4727 = vpop.f32.mrb[0].mxu0
  %v4728 = vadd.f32 0.0, %v4727
  %v4729 = vpop.f32.mrb[0].mxu0
  %4730 = vmatprep.mubr.bf16.mxu0 0
  %4731 = vmatmul.mubr.bf16.gmra.mrb[0].mxu0 %v4427
  %v4732 = vpop.f32.mrb[0].mxu0
  %v4733 = vadd.f32 0.0, %v4732
  %v4734 = vpop.f32.mrb[0].mxu0
  %v4735 = vpop.f32.mrb[0].mxu0
  %v4736 = vadd.f32 0.0, %v4735
  %v4737 = vpop.f32.mrb[0].mxu0
  %4738 = vmatprep.mubr.bf16.mxu0 0
  %4739 = vmatmul.mubr.bf16.gmra.mrb[0].mxu0 %v4431
  %v4740 = vpop.f32.mrb[0].mxu0
  %v4741 = vadd.f32 0.0, %v4740
  %v4742 = vpop.f32.mrb[0].mxu0
  %v4743 = vpop.f32.mrb[0].mxu0
  %v4744 = vadd.f32 0.0, %v4743
  %v4745 = vpop.f32.mrb[0].mxu0
  %4746 = vmatprep.mubr.bf16.mxu0 0
  %4747 = vmatmul.mubr.bf16.gmra.mrb[0].mxu0 %v4435
  %v4748 = vpop.f32.mrb[0].mxu0
  %v4749 = vadd.f32 0.0, %v4748
  %v4750 = vpop.f32.mrb[0].mxu0
  %v4751 = vpop.f32.mrb[0].mxu0
  %v4752 = vadd.f32 0.0, %v4751
  %v4753 = vpop.f32.mrb[0].mxu0
  %4754 = vmatprep.mubr.bf16.mxu0 0
  %4755 = vmatmul.mubr.bf16.gmra.mrb[0].mxu0 %v4439
  %v4756 = vpop.f32.mrb[0].mxu0
  %v4757 = vadd.f32 0.0, %v4756
  %v4758 = vpop.f32.mrb[0].mxu0
  %v4759 = vpop.f32.mrb[0].mxu0
  %v4760 = vadd.f32 0.0, %v4759
  %v4761 = vpop.f32.mrb[0].mxu0
  %4762 = vmatprep.mubr.bf16.mxu0 0
  %4763 = vmatmul.mubr.bf16.gmra.mrb[0].mxu0 %v4443
  %v4764 = vpop.f32.mrb[0].mxu0
  %v4765 = vadd.f32 0.0, %v4764
  %v4766 = vpop.f32.mrb[0].mxu0
  %v4767 = vpop.f32.mrb[0].mxu0
  %v4768 = vadd.f32 0.0, %v4767
  %v4769 = vpop.f32.mrb[0].mxu0
  %4770 = vmatprep.mubr.bf16.mxu0 0
  %4771 = vmatmul.mubr.bf16.gmra.mrb[0].mxu0 %v4447
  %v4772 = vpop.f32.mrb[0].mxu0
  %v4773 = vadd.f32 0.0, %v4772
  %v4774 = vpop.f32.mrb[0].mxu0
  %v4775 = vpop.f32.mrb[0].mxu0
  %v4776 = vadd.f32 0.0, %v4775
  %v4777 = vpop.f32.mrb[0].mxu0
  %4778 = vmatprep.mubr.bf16.mxu0 0
  %4779 = vmatmul.mubr.bf16.gmra.mrb[0].mxu0 %v4451
  %v4780 = vpop.f32.mrb[0].mxu0
  %v4781 = vadd.f32 0.0, %v4780
  %v4782 = vpop.f32.mrb[0].mxu0
  %v4783 = vpop.f32.mrb[0].mxu0
  %v4784 = vadd.f32 0.0, %v4783
  %v4785 = vpop.f32.mrb[0].mxu0
  %4786 = vmatprep.mubr.bf16.mxu0 0
  %4787 = vmatmul.mubr.bf16.gmra.mrb[0].mxu0 %v4455
  %v4788 = vpop.f32.mrb[0].mxu0
  %v4789 = vadd.f32 0.0, %v4788
  %v4790 = vpop.f32.mrb[0].mxu0
  %v4791 = vpop.f32.mrb[0].mxu0
  %v4792 = vadd.f32 0.0, %v4791
  %v4793 = vpop.f32.mrb[0].mxu0
  %4794 = vmatprep.mubr.bf16.mxu0 0
  %4795 = vmatmul.mubr.bf16.gmra.mrb[0].mxu0 %v4459
  %v4796 = vpop.f32.mrb[0].mxu0
  %v4797 = vadd.f32 0.0, %v4796
  %v4798 = vpop.f32.mrb[0].mxu0
  %v4799 = vpop.f32.mrb[0].mxu0
  %v4800 = vadd.f32 0.0, %v4799
  %v4801 = vpop.f32.mrb[0].mxu0
  %4802 = vmatprep.mubr.bf16.mxu0 0
  %4803 = vmatmul.mubr.bf16.gmra.mrb[0].mxu0 %v4463
  %v4804 = vpop.f32.mrb[0].mxu0
  %v4805 = vadd.f32 0.0, %v4804
  %v4806 = vpop.f32.mrb[0].mxu0
  %v4807 = vpop.f32.mrb[0].mxu0
  %v4808 = vadd.f32 0.0, %v4807
  %v4809 = vpop.f32.mrb[0].mxu0
  %4810 = vmatprep.mubr.bf16.mxu0 0
  %4811 = vmatmul.mubr.bf16.gmra.mrb[0].mxu0 %v4467
  %v4812 = vpop.f32.mrb[0].mxu0
  %v4813 = vadd.f32 0.0, %v4812
  %v4814 = vpop.f32.mrb[0].mxu0
  %v4815 = vpop.f32.mrb[0].mxu0
  %v4816 = vadd.f32 0.0, %v4815
  %v4817 = vpop.f32.mrb[0].mxu0
  %4818 = vmatprep.mubr.bf16.mxu0 0
  %4819 = vmatmul.mubr.bf16.gmra.mrb[0].mxu0 %v4471
  %v4820 = vpop.f32.mrb[0].mxu0
  %v4821 = vadd.f32 0.0, %v4820
  %v4822 = vpop.f32.mrb[0].mxu0
  %v4823 = vpop.f32.mrb[0].mxu0
  %v4824 = vadd.f32 0.0, %v4823
  %v4825 = vpop.f32.mrb[0].mxu0
  %4826 = vmatprep.mubr.bf16.mxu0 0
  %4827 = vmatmul.mubr.bf16.gmra.mrb[0].mxu0 %v4475
  %v4828 = vpop.f32.mrb[0].mxu0
  %v4829 = vadd.f32 0.0, %v4828
  %v4830 = vpop.f32.mrb[0].mxu0
  %v4831 = vpop.f32.mrb[0].mxu0
  %v4832 = vadd.f32 0.0, %v4831
  %v4833 = vpop.f32.mrb[0].mxu0
  %4834 = vmatprep.mubr.bf16.mxu0 0
  %4835 = vmatmul.mubr.bf16.gmra.mrb[0].mxu0 %v4479
  %v4836 = vpop.f32.mrb[0].mxu0
  %v4837 = vadd.f32 0.0, %v4836
  %v4838 = vpop.f32.mrb[0].mxu0
  %v4839 = vpop.f32.mrb[0].mxu0
  %v4840 = vadd.f32 0.0, %v4839
  %v4841 = vpop.f32.mrb[0].mxu0
  %4842 = vmatprep.mubr.bf16.mxu0 0
  %4843 = vmatmul.mubr.bf16.gmra.mrb[0].mxu0 %v4483
  %v4844 = vpop.f32.mrb[0].mxu0
  %v4845 = vadd.f32 0.0, %v4844
  %v4846 = vpop.f32.mrb[0].mxu0
  %v4847 = vpop.f32.mrb[0].mxu0
  %v4848 = vadd.f32 0.0, %v4847
  %v4849 = vpop.f32.mrb[0].mxu0
  %4850 = vmatprep.mubr.bf16.mxu0 0
  %4851 = vmatmul.mubr.bf16.gmra.mrb[0].mxu0 %v4487
  %v4852 = vpop.f32.mrb[0].mxu0
  %v4853 = vadd.f32 0.0, %v4852
  %v4854 = vpop.f32.mrb[0].mxu0
  %v4855 = vpop.f32.mrb[0].mxu0
  %v4856 = vadd.f32 0.0, %v4855
  %v4857 = vpop.f32.mrb[0].mxu0
  %4858 = vmatprep.mubr.bf16.mxu0 0
  %4859 = vmatmul.mubr.bf16.gmra.mrb[0].mxu0 %v4491
  %v4860 = vpop.f32.mrb[0].mxu0
  %v4861 = vadd.f32 0.0, %v4860
  %v4862 = vpop.f32.mrb[0].mxu0
  %v4863 = vpop.f32.mrb[0].mxu0
  %v4864 = vadd.f32 0.0, %v4863
  %v4865 = vpop.f32.mrb[0].mxu0
  %4866 = vmatprep.mubr.bf16.mxu0 0
  %4867 = vmatmul.mubr.bf16.gmra.mrb[0].mxu0 %v4495
  %v4868 = vpop.f32.mrb[0].mxu0
  %v4869 = vadd.f32 0.0, %v4868
  %v4870 = vpop.f32.mrb[0].mxu0
  %v4871 = vpop.f32.mrb[0].mxu0
  %v4872 = vadd.f32 0.0, %v4871
  %v4873 = vpop.f32.mrb[0].mxu0
  %4874 = vmatprep.mubr.bf16.mxu0 0
  %4875 = vmatmul.mubr.bf16.gmra.mrb[0].mxu0 %v4499
  %v4876 = vpop.f32.mrb[0].mxu0
  %v4877 = vadd.f32 0.0, %v4876
  %v4878 = vpop.f32.mrb[0].mxu0
  %v4879 = vpop.f32.mrb[0].mxu0
  %v4880 = vadd.f32 0.0, %v4879
  %v4881 = vpop.f32.mrb[0].mxu0
  %4882 = vmatprep.mubr.bf16.mxu0 0
  %4883 = vmatmul.mubr.bf16.gmra.mrb[0].mxu0 %v4503
  %v4884 = vpop.f32.mrb[0].mxu0
  %v4885 = vadd.f32 0.0, %v4884
  %v4886 = vpop.f32.mrb[0].mxu0
  %v4887 = vpop.f32.mrb[0].mxu0
  %v4888 = vadd.f32 0.0, %v4887
  %v4889 = vpop.f32.mrb[0].mxu0
  %4890 = vmatprep.mubr.bf16.mxu0 0
  %4891 = vmatmul.mubr.bf16.gmra.mrb[0].mxu0 %v4507
  %v4892 = vpop.f32.mrb[0].mxu0
  %v4893 = vadd.f32 0.0, %v4892
  %v4894 = vpop.f32.mrb[0].mxu0
  %v4895 = vpop.f32.mrb[0].mxu0
  %v4896 = vadd.f32 0.0, %v4895
  %v4897 = vpop.f32.mrb[0].mxu0
  %4898 = vmatprep.mubr.bf16.mxu0 0
  %4899 = vmatmul.mubr.bf16.gmra.mrb[0].mxu0 %v4511
  %v4900 = vpop.f32.mrb[0].mxu0
  %v4901 = vadd.f32 0.0, %v4900
  %v4902 = vpop.f32.mrb[0].mxu0
  %v4903 = vpop.f32.mrb[0].mxu0
  %v4904 = vadd.f32 0.0, %v4903
  %v4905 = vpop.f32.mrb[0].mxu0
  %4906 = vmatprep.mubr.bf16.mxu0 0
  %4907 = vmatmul.mubr.bf16.gmra.mrb[0].mxu0 %v4515
  %v4908 = vpop.f32.mrb[0].mxu0
  %v4909 = vadd.f32 0.0, %v4908
  %v4910 = vpop.f32.mrb[0].mxu0
  %v4911 = vpop.f32.mrb[0].mxu0
  %v4912 = vadd.f32 0.0, %v4911
  %v4913 = vpop.f32.mrb[0].mxu0
  %4914 = vmatprep.mubr.bf16.mxu0 0
  %4915 = vmatmul.mubr.bf16.gmra.mrb[0].mxu0 %v4519
  %v4916 = vpop.f32.mrb[0].mxu0
  %v4917 = vadd.f32 0.0, %v4916
  %v4918 = vpop.f32.mrb[0].mxu0
  %v4919 = vpop.f32.mrb[0].mxu0
  %v4920 = vadd.f32 0.0, %v4919
  %v4921 = vpop.f32.mrb[0].mxu0
  %4922 = vmatprep.mubr.bf16.mxu0 0
  %4923 = vmatmul.mubr.bf16.gmra.mrb[0].mxu0 %v4523
  %v4924 = vpop.f32.mrb[0].mxu0
  %v4925 = vadd.f32 0.0, %v4924
  %v4926 = vpop.f32.mrb[0].mxu0
  %v4927 = vpop.f32.mrb[0].mxu0
  %v4928 = vadd.f32 0.0, %v4927
  %v4929 = vpop.f32.mrb[0].mxu0
  %4930 = vmatprep.mubr.bf16.mxu0 0
  %4931 = vmatmul.mubr.bf16.gmra.mrb[0].mxu0 %v4527
  %v4932 = vpop.f32.mrb[0].mxu0
  %v4933 = vadd.f32 0.0, %v4932
  %v4934 = vpop.f32.mrb[0].mxu0
  %v4935 = vpop.f32.mrb[0].mxu0
  %v4936 = vadd.f32 0.0, %v4935
  %v4937 = vpop.f32.mrb[0].mxu0
  %4938 = vmatprep.mubr.bf16.mxu0 0
  %4939 = vmatmul.mubr.bf16.gmra.mrb[0].mxu0 %v4531
  %v4940 = vpop.f32.mrb[0].mxu0
  %v4941 = vadd.f32 0.0, %v4940
  %v4942 = vpop.f32.mrb[0].mxu0
  %v4943 = vpop.f32.mrb[0].mxu0
  %v4944 = vadd.f32 0.0, %v4943
  %v4945 = vpop.f32.mrb[0].mxu0
  %4946 = vmatprep.mubr.bf16.mxu0 0
  %4947 = vmatmul.mubr.bf16.gmra.mrb[0].mxu0 %v4535
  %v4948 = vpop.f32.mrb[0].mxu0
  %v4949 = vadd.f32 0.0, %v4948
  %v4950 = vpop.f32.mrb[0].mxu0
  %v4951 = vpop.f32.mrb[0].mxu0
  %v4952 = vadd.f32 0.0, %v4951
  %v4953 = vpop.f32.mrb[0].mxu0
  %4954 = vmatprep.mubr.bf16.mxu0 0
  %4955 = vmatmul.mubr.bf16.gmra.mrb[0].mxu0 %v4539
  %v4956 = vpop.f32.mrb[0].mxu0
  %v4957 = vadd.f32 0.0, %v4956
  %v4958 = vpop.f32.mrb[0].mxu0
  %v4959 = vpop.f32.mrb[0].mxu0
  %v4960 = vadd.f32 0.0, %v4959
  %v4961 = vpop.f32.mrb[0].mxu0
  %4962 = vmatprep.mubr.bf16.mxu0 0
  %4963 = vmatmul.mubr.bf16.gmra.mrb[0].mxu0 %v4543
  %v4964 = vpop.f32.mrb[0].mxu0
  %v4965 = vadd.f32 0.0, %v4964
  %v4966 = vpop.f32.mrb[0].mxu0
  %v4967 = vpop.f32.mrb[0].mxu0
  %v4968 = vadd.f32 0.0, %v4967
  %v4969 = vpop.f32.mrb[0].mxu0
  %4970 = vmatprep.mubr.bf16.mxu0 0
  %4971 = vmatmul.mubr.bf16.gmra.mrb[0].mxu0 %v4547
  %v4972 = vpop.f32.mrb[0].mxu0
  %v4973 = vadd.f32 0.0, %v4972
  %v4974 = vpop.f32.mrb[0].mxu0
  %v4975 = vpop.f32.mrb[0].mxu0
  %v4976 = vadd.f32 0.0, %v4975
  %v4977 = vpop.f32.mrb[0].mxu0
  %4978 = vmatprep.mubr.bf16.mxu0 0
  %4979 = vmatmul.mubr.bf16.gmra.mrb[0].mxu0 %v4551
  %v4980 = vpop.f32.mrb[0].mxu0
  %v4981 = vadd.f32 0.0, %v4980
  %v4982 = vpop.f32.mrb[0].mxu0
  %v4983 = vpop.f32.mrb[0].mxu0
  %v4984 = vadd.f32 0.0, %v4983
  %v4985 = vpop.f32.mrb[0].mxu0
  %4986 = vmatprep.mubr.bf16.mxu0 0
  %4987 = vmatmul.mubr.bf16.gmra.mrb[0].mxu0 %v4555
  %v4988 = vpop.f32.mrb[0].mxu0
  %v4989 = vadd.f32 0.0, %v4988
  %v4990 = vpop.f32.mrb[0].mxu0
  %v4991 = vpop.f32.mrb[0].mxu0
  %v4992 = vadd.f32 0.0, %v4991
  %v4993 = vpop.f32.mrb[0].mxu0
  %4994 = vmatprep.mubr.bf16.mxu0 0
  %4995 = vmatmul.mubr.bf16.gmra.mrb[0].mxu0 %v4559
  %v4996 = vpop.f32.mrb[0].mxu0
  %v4997 = vadd.f32 0.0, %v4996
  %v4998 = vpop.f32.mrb[0].mxu0
  %v4999 = vpop.f32.mrb[0].mxu0
  %v5000 = vadd.f32 0.0, %v4999
  %v5001 = vpop.f32.mrb[0].mxu0
  %5002 = vmatprep.mubr.bf16.mxu0 0
  %5003 = vmatmul.mubr.bf16.gmra.mrb[0].mxu0 %v4568
  %v5004 = vpop.f32.mrb[0].mxu0
  %v5005 = vadd.f32 0.0, %v5004
  %v5006 = vpop.f32.mrb[0].mxu0
  %v5007 = vpop.f32.mrb[0].mxu0
  %v5008 = vadd.f32 0.0, %v5007
  %v5009 = vpop.f32.mrb[0].mxu0
  %5010 = vmatprep.mubr.bf16.mxu0 0
  %5011 = vmatmul.mubr.bf16.gmra.mrb[0].mxu0 %v4567
  %v5012 = vpop.f32.mrb[0].mxu0
  %v5013 = vadd.f32 0.0, %v5012
  %v5014 = vpop.f32.mrb[0].mxu0
  %v5015 = vpop.f32.mrb[0].mxu0
  %v5016 = vpop.f32.mrb[0].mxu0
  %5017 = vdwg.mxu0
  %v5018 = vadd.f32 %v4049, %v4693
  %v5019 = vadd.f32 %v4052, %v4696
  %v5020 = vadd.f32 %v4057, %v4701
  %v5021 = vadd.f32 %v4060, %v4704
  %v5022 = vadd.f32 %v4065, %v4709
  %v5023 = vadd.f32 %v4068, %v4712
  %v5024 = vadd.f32 %v4073, %v4717
  %v5025 = vadd.f32 %v4076, %v4720
  %v5026 = vadd.f32 %v4081, %v4725
  %v5027 = vadd.f32 %v4084, %v4728
  %v5028 = vadd.f32 %v4089, %v4733
  %v5029 = vadd.f32 %v4092, %v4736
  %v5030 = vadd.f32 %v4097, %v4741
  %v5031 = vadd.f32 %v4100, %v4744
  %v5032 = vadd.f32 %v4105, %v4749
  %v5033 = vadd.f32 %v4108, %v4752
  %v5034 = vadd.f32 %v4113, %v4757
  %v5035 = vadd.f32 %v4116, %v4760
  %v5036 = vadd.f32 %v4121, %v4765
  %v5037 = vadd.f32 %v4124, %v4768
  %v5038 = vadd.f32 %v4129, %v4773
  %v5039 = vadd.f32 %v4132, %v4776
  %v5040 = vadd.f32 %v4137, %v4781
  %v5041 = vadd.f32 %v4140, %v4784
  %v5042 = vadd.f32 %v4145, %v4789
  %v5043 = vadd.f32 %v4148, %v4792
  %v5044 = vadd.f32 %v4153, %v4797
  %v5045 = vadd.f32 %v4156, %v4800
  %v5046 = vadd.f32 %v4161, %v4805
  %v5047 = vadd.f32 %v4164, %v4808
  %v5048 = vadd.f32 %v4169, %v4813
  %v5049 = vadd.f32 %v4172, %v4816
  %v5050 = vadd.f32 %v4177, %v4821
  %v5051 = vadd.f32 %v4180, %v4824
  %v5052 = vadd.f32 %v4185, %v4829
  %v5053 = vadd.f32 %v4188, %v4832
  %v5054 = vadd.f32 %v4193, %v4837
  %v5055 = vadd.f32 %v4196, %v4840
  %v5056 = vadd.f32 %v4201, %v4845
  %v5057 = vadd.f32 %v4204, %v4848
  %v5058 = vadd.f32 %v4209, %v4853
  %v5059 = vadd.f32 %v4212, %v4856
  %v5060 = vadd.f32 %v4217, %v4861
  %v5061 = vadd.f32 %v4220, %v4864
  %v5062 = vadd.f32 %v4225, %v4869
  %v5063 = vadd.f32 %v4228, %v4872
  %v5064 = vadd.f32 %v4233, %v4877
  %v5065 = vadd.f32 %v4236, %v4880
  %v5066 = vadd.f32 %v4241, %v4885
  %v5067 = vadd.f32 %v4244, %v4888
  %v5068 = vadd.f32 %v4249, %v4893
  %v5069 = vadd.f32 %v4252, %v4896
  %v5070 = vadd.f32 %v4257, %v4901
  %v5071 = vadd.f32 %v4260, %v4904
  %v5072 = vadd.f32 %v4265, %v4909
  %v5073 = vadd.f32 %v4268, %v4912
  %v5074 = vadd.f32 %v4273, %v4917
  %v5075 = vadd.f32 %v4276, %v4920
  %v5076 = vadd.f32 %v4281, %v4925
  %v5077 = vadd.f32 %v4284, %v4928
  %v5078 = vadd.f32 %v4289, %v4933
  %v5079 = vadd.f32 %v4292, %v4936
  %v5080 = vadd.f32 %v4297, %v4941
  %v5081 = vadd.f32 %v4300, %v4944
  %v5082 = vadd.f32 %v4305, %v4949
  %v5083 = vadd.f32 %v4308, %v4952
  %v5084 = vadd.f32 %v4313, %v4957
  %v5085 = vadd.f32 %v4316, %v4960
  %v5086 = vadd.f32 %v4321, %v4965
  %v5087 = vadd.f32 %v4324, %v4968
  %v5088 = vadd.f32 %v4329, %v4973
  %v5089 = vadd.f32 %v4332, %v4976
  %v5090 = vadd.f32 %v4337, %v4981
  %v5091 = vadd.f32 %v4340, %v4984
  %v5092 = vadd.f32 %v4345, %v4989
  %v5093 = vadd.f32 %v4348, %v4992
  %v5094 = vadd.f32 %v4353, %v4997
  %v5095 = vadd.f32 %v4356, %v5000
  %v5096 = vadd.f32 %v4361, %v5005
  %v5097 = vadd.f32 %v4364, %v5008
  %v5098 = vadd.f32 %v4369, %v5013
  %v5099 = vld [vmem:[#allocation2 + $0x8] sm:$0x8]
  %v5100 = vld [vmem:[#allocation2 + $0xc] sm:$0xf]
  %v5101 = vld [vmem:[#allocation2 + $0x10] sm:$0xf]
  %v5102 = vld [vmem:[#allocation2 + $0x14] sm:$0xf]
  %v5103 = vld [vmem:[#allocation2 + $0x18] sm:$0xf]
  %v5104 = vld [vmem:[#allocation2 + $0x1c] sm:$0xf]
  %v5105 = vld [vmem:[#allocation2 + $0x20] sm:$0xf]
  %v5106 = vld [vmem:[#allocation2 + $0x24] sm:$0xf]
  %v5107 = vld [vmem:[#allocation2 + $0x28] sm:$0xf]
  %v5108 = vld [vmem:[#allocation2 + $0x2c] sm:$0xf]
  %v5109 = vld [vmem:[#allocation2 + $0x30] sm:$0xf]
  %v5110 = vld [vmem:[#allocation2 + $0x34] sm:$0xf]
  %v5111 = vld [vmem:[#allocation2 + $0x38] sm:$0xf]
  %v5112 = vld [vmem:[#allocation2 + $0x3c] sm:$0xf]
  %v5113 = vld [vmem:[#allocation2 + $0x40] sm:$0xf]
  %v5114 = vld [vmem:[#allocation2 + $0x44] sm:$0xf]
  %v5115 = vld [vmem:[#allocation2 + $0x48] sm:$0xf]
  %v5116 = vld [vmem:[#allocation2 + $0x4c] sm:$0xf]
  %v5117 = vld [vmem:[#allocation2 + $0x50] sm:$0xf]
  %v5118 = vld [vmem:[#allocation2 + $0x54] sm:$0xf]
  %v5119 = vld [vmem:[#allocation2 + $0x58] sm:$0xf]
  %v5120 = vld [vmem:[#allocation2 + $0x5c] sm:$0xf]
  %v5121 = vld [vmem:[#allocation2 + $0x60] sm:$0xf]
  %v5122 = vld [vmem:[#allocation2 + $0x64] sm:$0xf]
  %v5123 = vld [vmem:[#allocation2 + $0x68] sm:$0xf]
  %v5124 = vld [vmem:[#allocation2 + $0x6c] sm:$0xf]
  %v5125 = vld [vmem:[#allocation2 + $0x70] sm:$0xf]
  %v5126 = vld [vmem:[#allocation2 + $0x74] sm:$0xf]
  %v5127 = vld [vmem:[#allocation2 + $0x78] sm:$0xf]
  %v5128 = vld [vmem:[#allocation2 + $0x7c] sm:$0xf]
  %v5129 = vld [vmem:[#allocation2 + $0x80] sm:$0xf]
  %v5130 = vld [vmem:[#allocation2 + $0x84] sm:$0xf]
  %v5131 = vld [vmem:[#allocation2 + $0x88] sm:$0xf]
  %v5132 = vld [vmem:[#allocation2 + $0x8c] sm:$0xf]
  %v5133 = vld [vmem:[#allocation2 + $0x90] sm:$0xf]
  %v5134 = vld [vmem:[#allocation2 + $0x94] sm:$0xf]
  %v5135 = vld [vmem:[#allocation2 + $0x98] sm:$0xf]
  %v5136 = vld [vmem:[#allocation2 + $0x9c] sm:$0xf]
  %v5137 = vld [vmem:[#allocation2 + $0xa0] sm:$0xf]
  %v5138 = vld [vmem:[#allocation2 + $0xa4] sm:$0xf]
  %v5139 = vld [vmem:[#allocation2 + $0xa8] sm:$0xf]
  %v5140 = vld [vmem:[#allocation2 + $0xac] sm:$0xf]
  %v5141 = vld [vmem:[#allocation2 + $0xb0] sm:$0xf]
  %v5142 = vld [vmem:[#allocation2 + $0xb4] sm:$0xf]
  %v5143 = vld [vmem:[#allocation2 + $0xb8] sm:$0xf]
  %v5144 = vld [vmem:[#allocation2 + $0xbc] sm:$0xf]
  %v5145 = vld [vmem:[#allocation2 + $0xc0] sm:$0xf]
  %v5146 = vld [vmem:[#allocation2 + $0xc4] sm:$0xf]
  %v5147 = vld [vmem:[#allocation2 + $0xc8] sm:$0xf]
  %v5148 = vld [vmem:[#allocation2 + $0xcc] sm:$0xf]
  %v5149 = vld [vmem:[#allocation2 + $0xd0] sm:$0xf]
  %v5150 = vld [vmem:[#allocation2 + $0xd4] sm:$0xf]
  %v5151 = vld [vmem:[#allocation2 + $0xd8] sm:$0xf]
  %v5152 = vld [vmem:[#allocation2 + $0xdc] sm:$0xf]
  %v5153 = vld [vmem:[#allocation2 + $0xe0] sm:$0xf]
  %v5154 = vld [vmem:[#allocation2 + $0xe4] sm:$0xf]
  %v5155 = vld [vmem:[#allocation2 + $0xe8] sm:$0xf]
  %v5156 = vld [vmem:[#allocation2 + $0xec] sm:$0xf]
  %v5157 = vld [vmem:[#allocation2 + $0xf0] sm:$0xf]
  %v5158 = vld [vmem:[#allocation2 + $0xf4] sm:$0xf]
  %v5159 = vld [vmem:[#allocation2 + $0xf8] sm:$0xf]
  %v5160 = vld [vmem:[#allocation2 + $0xfc] sm:$0xf]
  %v5161 = vld [vmem:[#allocation2 + $0x100] sm:$0xf]
  %v5162 = vld [vmem:[#allocation2 + $0x104] sm:$0xf]
  %v5163 = vld [vmem:[#allocation2 + $0x108] sm:$0xf]
  %v5164 = vld [vmem:[#allocation2 + $0x10c] sm:$0xf]
  %v5165 = vld [vmem:[#allocation2 + $0x110] sm:$0xf]
  %v5166 = vld [vmem:[#allocation2 + $0x114] sm:$0xf]
  %v5167 = vld [vmem:[#allocation2 + $0x118] sm:$0xf]
  %v5168 = vld [vmem:[#allocation2 + $0x11c] sm:$0xf]
  %v5169 = vld [vmem:[#allocation2 + $0x120] sm:$0xf]
  %v5170 = vld [vmem:[#allocation2 + $0x124] sm:$0xf]
  %v5171 = vld [vmem:[#allocation2 + $0x128] sm:$0xf]
  %v5172 = vld [vmem:[#allocation2 + $0x12c] sm:$0xf]
  %v5173 = vld [vmem:[#allocation2 + $0x130] sm:$0xf]
  %v5174 = vld [vmem:[#allocation2 + $0x134] sm:$0xf]
  %v5175 = vld [vmem:[#allocation2 + $0x138] sm:$0xf]
  %v5176 = vld [vmem:[#allocation2 + $0x13c] sm:$0xf]
  %v5177 = vld [vmem:[#allocation2 + $0x140] sm:$0xf]
  %v5178 = vld [vmem:[#allocation2 + $0x144] sm:$0xf]
  %v5179 = vld [vmem:[#allocation2 + $0x148] sm:$0xf]
  %v5180 = vld [vmem:[#allocation2 + $0x14c] sm:$0xf]
  %s5181 = scalar_lea.vmem %s4, 192
  %v5182 = vld [vmem:[%s5181] sm:$0xf]
  %v5183 = vld [vmem:[%s5181 + $0x4] sm:$0xf]
  %v5184 = vld [vmem:[%s5181 + $0x8] sm:$0xf]
  %v5185 = vld [vmem:[%s5181 + $0xc] sm:$0xf]
  %v5186 = vld [vmem:[%s5181 + $0x10] sm:$0xf]
  %v5187 = vld [vmem:[%s5181 + $0x14] sm:$0xf]
  %v5188 = vld [vmem:[%s5181 + $0x18] sm:$0xf]
  %v5189 = vld [vmem:[%s5181 + $0x1c] sm:$0xf]
  %v5190 = vld [vmem:[%s5181 + $0x20] sm:$0xf]
  %v5191 = vld [vmem:[%s5181 + $0x24] sm:$0xf]
  %v5192 = vld [vmem:[%s5181 + $0x28] sm:$0xf]
  %v5193 = vld [vmem:[%s5181 + $0x2c] sm:$0xf]
  %v5194 = vld [vmem:[%s5181 + $0x30] sm:$0xf]
  %v5195 = vld [vmem:[%s5181 + $0x34] sm:$0xf]
  %v5196 = vld [vmem:[%s5181 + $0x38] sm:$0xf]
  %v5197 = vld [vmem:[%s5181 + $0x3c] sm:$0xf]
  %v5280 = vunpack.c.l.b16 %v5099
  %v5281 = vunpack.c.l.b16 %v5100
  %v5282 = vunpack.c.l.b16 %v5101
  %v5283 = vunpack.c.l.b16 %v5102
  %v5284 = vunpack.c.l.b16 %v5103
  %v5285 = vunpack.c.l.b16 %v5104
  %v5286 = vunpack.c.l.b16 %v5105
  %v5287 = vunpack.c.l.b16 %v5106
  %v5288 = vunpack.c.l.b16 %v5107
  %v5289 = vunpack.c.l.b16 %v5108
  %v5290 = vunpack.c.l.b16 %v5109
  %v5291 = vunpack.c.l.b16 %v5110
  %v5292 = vunpack.c.l.b16 %v5111
  %v5293 = vunpack.c.l.b16 %v5112
  %v5294 = vunpack.c.l.b16 %v5113
  %v5295 = vunpack.c.l.b16 %v5114
  %v5296 = vunpack.c.l.b16 %v5115
  %v5297 = vunpack.c.l.b16 %v5116
  %v5298 = vunpack.c.l.b16 %v5117
  %v5299 = vunpack.c.l.b16 %v5118
  %v5300 = vunpack.c.l.b16 %v5119
  %v5301 = vunpack.c.l.b16 %v5120
  %v5302 = vunpack.c.l.b16 %v5121
  %v5303 = vunpack.c.l.b16 %v5122
  %v5304 = vunpack.c.l.b16 %v5123
  %v5305 = vunpack.c.l.b16 %v5124
  %v5306 = vunpack.c.l.b16 %v5125
  %v5307 = vunpack.c.l.b16 %v5126
  %v5308 = vunpack.c.l.b16 %v5127
  %v5309 = vunpack.c.l.b16 %v5128
  %v5310 = vunpack.c.l.b16 %v5129
  %v5311 = vunpack.c.l.b16 %v5130
  %v5312 = vunpack.c.l.b16 %v5131
  %v5313 = vunpack.c.l.b16 %v5132
  %v5314 = vunpack.c.l.b16 %v5133
  %v5315 = vunpack.c.l.b16 %v5134
  %v5316 = vunpack.c.l.b16 %v5135
  %v5317 = vunpack.c.l.b16 %v5136
  %v5318 = vunpack.c.l.b16 %v5137
  %v5319 = vunpack.c.l.b16 %v5138
  %v5320 = vunpack.c.l.b16 %v5139
  %v5321 = vunpack.c.l.b16 %v5140
  %v5322 = vunpack.c.l.b16 %v5141
  %v5323 = vunpack.c.l.b16 %v5142
  %v5324 = vunpack.c.l.b16 %v5143
  %v5325 = vunpack.c.l.b16 %v5144
  %v5326 = vunpack.c.l.b16 %v5145
  %v5327 = vunpack.c.l.b16 %v5146
  %v5328 = vunpack.c.l.b16 %v5147
  %v5329 = vunpack.c.l.b16 %v5148
  %v5330 = vunpack.c.l.b16 %v5149
  %v5331 = vunpack.c.l.b16 %v5150
  %v5332 = vunpack.c.l.b16 %v5151
  %v5333 = vunpack.c.l.b16 %v5152
  %v5334 = vunpack.c.l.b16 %v5153
  %v5335 = vunpack.c.l.b16 %v5154
  %v5336 = vunpack.c.l.b16 %v5155
  %v5337 = vunpack.c.l.b16 %v5156
  %v5338 = vunpack.c.l.b16 %v5157
  %v5339 = vunpack.c.l.b16 %v5158
  %v5340 = vunpack.c.l.b16 %v5159
  %v5341 = vunpack.c.l.b16 %v5160
  %v5342 = vunpack.c.l.b16 %v5161
  %v5343 = vunpack.c.l.b16 %v5162
  %v5344 = vunpack.c.l.b16 %v5163
  %v5345 = vunpack.c.l.b16 %v5164
  %v5346 = vunpack.c.l.b16 %v5165
  %v5347 = vunpack.c.l.b16 %v5166
  %v5348 = vunpack.c.l.b16 %v5167
  %v5349 = vunpack.c.l.b16 %v5168
  %v5350 = vunpack.c.l.b16 %v5169
  %v5351 = vunpack.c.l.b16 %v5170
  %v5352 = vunpack.c.l.b16 %v5171
  %v5353 = vunpack.c.l.b16 %v5172
  %v5354 = vunpack.c.l.b16 %v5173
  %v5355 = vunpack.c.l.b16 %v5174
  %v5356 = vunpack.c.l.b16 %v5175
  %v5357 = vunpack.c.l.b16 %v5176
  %v5358 = vunpack.c.l.b16 %v5177
  %v5359 = vunpack.c.l.b16 %v5178
  %v5360 = vunpack.c.l.b16 %v5179
  %v5361 = vunpack.c.l.b16 %v5180
  %v5362 = vpack.c.b16 %v5281, %v5280
  %v5363 = vpack.c.b16 %v5283, %v5282
  %v5364 = vpack.c.b16 %v5285, %v5284
  %v5365 = vpack.c.b16 %v5287, %v5286
  %v5366 = vpack.c.b16 %v5289, %v5288
  %v5367 = vpack.c.b16 %v5291, %v5290
  %v5368 = vpack.c.b16 %v5293, %v5292
  %v5369 = vpack.c.b16 %v5295, %v5294
  %v5370 = vpack.c.b16 %v5297, %v5296
  %v5371 = vpack.c.b16 %v5299, %v5298
  %v5372 = vpack.c.b16 %v5301, %v5300
  %v5373 = vpack.c.b16 %v5303, %v5302
  %v5374 = vpack.c.b16 %v5305, %v5304
  %v5375 = vpack.c.b16 %v5307, %v5306
  %v5376 = vpack.c.b16 %v5309, %v5308
  %v5377 = vpack.c.b16 %v5311, %v5310
  %v5378 = vpack.c.b16 %v5313, %v5312
  %v5379 = vpack.c.b16 %v5315, %v5314
  %v5380 = vpack.c.b16 %v5317, %v5316
  %v5381 = vpack.c.b16 %v5319, %v5318
  %v5382 = vpack.c.b16 %v5321, %v5320
  %v5383 = vpack.c.b16 %v5323, %v5322
  %v5384 = vpack.c.b16 %v5325, %v5324
  %v5385 = vpack.c.b16 %v5327, %v5326
  %v5386 = vpack.c.b16 %v5329, %v5328
  %v5387 = vpack.c.b16 %v5331, %v5330
  %v5388 = vpack.c.b16 %v5333, %v5332
  %v5389 = vpack.c.b16 %v5335, %v5334
  %v5390 = vpack.c.b16 %v5337, %v5336
  %v5391 = vpack.c.b16 %v5339, %v5338
  %v5392 = vpack.c.b16 %v5341, %v5340
  %v5393 = vpack.c.b16 %v5343, %v5342
  %v5394 = vpack.c.b16 %v5345, %v5344
  %v5395 = vpack.c.b16 %v5347, %v5346
  %v5396 = vpack.c.b16 %v5349, %v5348
  %v5397 = vpack.c.b16 %v5351, %v5350
  %v5398 = vpack.c.b16 %v5353, %v5352
  %v5399 = vpack.c.b16 %v5355, %v5354
  %v5400 = vpack.c.b16 %v5357, %v5356
  %v5401 = vpack.c.b16 %v5359, %v5358
  %v5402 = vpack.c.b16 %v5361, %v5360
  %v5404 = vshrl.u32 %v5362, 16
  %v5406 = vrot.slane %v5404, 3
  %v5407 = vshll.u32 %v5362, 16
  %v5409 = vrot.slane %v5407, 4
  %v5410 = vor.u32 %v5406, %v5409
  %v5412 = vshrl.u32 %v5363, 16
  %v5414 = vrot.slane %v5412, 3
  %v5415 = vshll.u32 %v5363, 16
  %v5417 = vrot.slane %v5415, 4
  %v5418 = vor.u32 %v5414, %v5417
  %v5419 = vsel %vm4395, %v5410, %v5418
  %v5421 = vshrl.u32 %v5364, 16
  %v5423 = vrot.slane %v5421, 3
  %v5424 = vshll.u32 %v5364, 16
  %v5426 = vrot.slane %v5424, 4
  %v5427 = vor.u32 %v5423, %v5426
  %v5428 = vsel %vm4395, %v5418, %v5427
  %v5430 = vshrl.u32 %v5365, 16
  %v5432 = vrot.slane %v5430, 3
  %v5433 = vshll.u32 %v5365, 16
  %v5435 = vrot.slane %v5433, 4
  %v5436 = vor.u32 %v5432, %v5435
  %v5437 = vsel %vm4395, %v5427, %v5436
  %v5439 = vshrl.u32 %v5366, 16
  %v5441 = vrot.slane %v5439, 3
  %v5442 = vshll.u32 %v5366, 16
  %v5444 = vrot.slane %v5442, 4
  %v5445 = vor.u32 %v5441, %v5444
  %v5446 = vsel %vm4395, %v5436, %v5445
  %v5448 = vshrl.u32 %v5367, 16
  %v5450 = vrot.slane %v5448, 3
  %v5451 = vshll.u32 %v5367, 16
  %v5453 = vrot.slane %v5451, 4
  %v5454 = vor.u32 %v5450, %v5453
  %v5455 = vsel %vm4395, %v5445, %v5454
  %v5457 = vshrl.u32 %v5368, 16
  %v5459 = vrot.slane %v5457, 3
  %v5460 = vshll.u32 %v5368, 16
  %v5462 = vrot.slane %v5460, 4
  %v5463 = vor.u32 %v5459, %v5462
  %v5464 = vsel %vm4395, %v5454, %v5463
  %v5466 = vshrl.u32 %v5369, 16
  %v5468 = vrot.slane %v5466, 3
  %v5469 = vshll.u32 %v5369, 16
  %v5471 = vrot.slane %v5469, 4
  %v5472 = vor.u32 %v5468, %v5471
  %v5473 = vsel %vm4395, %v5463, %v5472
  %v5475 = vshrl.u32 %v5370, 16
  %v5477 = vrot.slane %v5475, 3
  %v5478 = vshll.u32 %v5370, 16
  %v5480 = vrot.slane %v5478, 4
  %v5481 = vor.u32 %v5477, %v5480
  %v5482 = vsel %vm4395, %v5472, %v5481
  %v5484 = vshrl.u32 %v5371, 16
  %v5486 = vrot.slane %v5484, 3
  %v5487 = vshll.u32 %v5371, 16
  %v5489 = vrot.slane %v5487, 4
  %v5490 = vor.u32 %v5486, %v5489
  %v5491 = vsel %vm4395, %v5481, %v5490
  %v5493 = vshrl.u32 %v5372, 16
  %v5495 = vrot.slane %v5493, 3
  %v5496 = vshll.u32 %v5372, 16
  %v5498 = vrot.slane %v5496, 4
  %v5499 = vor.u32 %v5495, %v5498
  %v5500 = vsel %vm4395, %v5490, %v5499
  %v5502 = vshrl.u32 %v5373, 16
  %v5504 = vrot.slane %v5502, 3
  %v5505 = vshll.u32 %v5373, 16
  %v5507 = vrot.slane %v5505, 4
  %v5508 = vor.u32 %v5504, %v5507
  %v5509 = vsel %vm4395, %v5499, %v5508
  %v5511 = vshrl.u32 %v5374, 16
  %v5513 = vrot.slane %v5511, 3
  %v5514 = vshll.u32 %v5374, 16
  %v5516 = vrot.slane %v5514, 4
  %v5517 = vor.u32 %v5513, %v5516
  %v5518 = vsel %vm4395, %v5508, %v5517
  %v5520 = vshrl.u32 %v5375, 16
  %v5522 = vrot.slane %v5520, 3
  %v5523 = vshll.u32 %v5375, 16
  %v5525 = vrot.slane %v5523, 4
  %v5526 = vor.u32 %v5522, %v5525
  %v5527 = vsel %vm4395, %v5517, %v5526
  %v5529 = vshrl.u32 %v5376, 16
  %v5531 = vrot.slane %v5529, 3
  %v5532 = vshll.u32 %v5376, 16
  %v5534 = vrot.slane %v5532, 4
  %v5535 = vor.u32 %v5531, %v5534
  %v5536 = vsel %vm4395, %v5526, %v5535
  %v5538 = vshrl.u32 %v5377, 16
  %v5540 = vrot.slane %v5538, 3
  %v5541 = vshll.u32 %v5377, 16
  %v5543 = vrot.slane %v5541, 4
  %v5544 = vor.u32 %v5540, %v5543
  %v5545 = vsel %vm4395, %v5535, %v5544
  %v5547 = vshrl.u32 %v5378, 16
  %v5549 = vrot.slane %v5547, 3
  %v5550 = vshll.u32 %v5378, 16
  %v5552 = vrot.slane %v5550, 4
  %v5553 = vor.u32 %v5549, %v5552
  %v5554 = vsel %vm4395, %v5544, %v5553
  %v5556 = vshrl.u32 %v5379, 16
  %v5558 = vrot.slane %v5556, 3
  %v5559 = vshll.u32 %v5379, 16
  %v5561 = vrot.slane %v5559, 4
  %v5562 = vor.u32 %v5558, %v5561
  %v5563 = vsel %vm4395, %v5553, %v5562
  %v5565 = vshrl.u32 %v5380, 16
  %v5567 = vrot.slane %v5565, 3
  %v5568 = vshll.u32 %v5380, 16
  %v5570 = vrot.slane %v5568, 4
  %v5571 = vor.u32 %v5567, %v5570
  %v5572 = vsel %vm4395, %v5562, %v5571
  %v5574 = vshrl.u32 %v5381, 16
  %v5576 = vrot.slane %v5574, 3
  %v5577 = vshll.u32 %v5381, 16
  %v5579 = vrot.slane %v5577, 4
  %v5580 = vor.u32 %v5576, %v5579
  %v5581 = vsel %vm4395, %v5571, %v5580
  %v5583 = vshrl.u32 %v5382, 16
  %v5585 = vrot.slane %v5583, 3
  %v5586 = vshll.u32 %v5382, 16
  %v5588 = vrot.slane %v5586, 4
  %v5589 = vor.u32 %v5585, %v5588
  %v5590 = vsel %vm4395, %v5580, %v5589
  %v5592 = vshrl.u32 %v5383, 16
  %v5594 = vrot.slane %v5592, 3
  %v5595 = vshll.u32 %v5383, 16
  %v5597 = vrot.slane %v5595, 4
  %v5598 = vor.u32 %v5594, %v5597
  %v5599 = vsel %vm4395, %v5589, %v5598
  %v5601 = vshrl.u32 %v5384, 16
  %v5603 = vrot.slane %v5601, 3
  %v5604 = vshll.u32 %v5384, 16
  %v5606 = vrot.slane %v5604, 4
  %v5607 = vor.u32 %v5603, %v5606
  %v5608 = vsel %vm4395, %v5598, %v5607
  %v5610 = vshrl.u32 %v5385, 16
  %v5612 = vrot.slane %v5610, 3
  %v5613 = vshll.u32 %v5385, 16
  %v5615 = vrot.slane %v5613, 4
  %v5616 = vor.u32 %v5612, %v5615
  %v5617 = vsel %vm4395, %v5607, %v5616
  %v5619 = vshrl.u32 %v5386, 16
  %v5621 = vrot.slane %v5619, 3
  %v5622 = vshll.u32 %v5386, 16
  %v5624 = vrot.slane %v5622, 4
  %v5625 = vor.u32 %v5621, %v5624
  %v5626 = vsel %vm4395, %v5616, %v5625
  %v5628 = vshrl.u32 %v5387, 16
  %v5630 = vrot.slane %v5628, 3
  %v5631 = vshll.u32 %v5387, 16
  %v5633 = vrot.slane %v5631, 4
  %v5634 = vor.u32 %v5630, %v5633
  %v5635 = vsel %vm4395, %v5625, %v5634
  %v5637 = vshrl.u32 %v5388, 16
  %v5639 = vrot.slane %v5637, 3
  %v5640 = vshll.u32 %v5388, 16
  %v5642 = vrot.slane %v5640, 4
  %v5643 = vor.u32 %v5639, %v5642
  %v5644 = vsel %vm4395, %v5634, %v5643
  %v5646 = vshrl.u32 %v5389, 16
  %v5648 = vrot.slane %v5646, 3
  %v5649 = vshll.u32 %v5389, 16
  %v5651 = vrot.slane %v5649, 4
  %v5652 = vor.u32 %v5648, %v5651
  %v5653 = vsel %vm4395, %v5643, %v5652
  %v5655 = vshrl.u32 %v5390, 16
  %v5657 = vrot.slane %v5655, 3
  %v5658 = vshll.u32 %v5390, 16
  %v5660 = vrot.slane %v5658, 4
  %v5661 = vor.u32 %v5657, %v5660
  %v5662 = vsel %vm4395, %v5652, %v5661
  %v5664 = vshrl.u32 %v5391, 16
  %v5666 = vrot.slane %v5664, 3
  %v5667 = vshll.u32 %v5391, 16
  %v5669 = vrot.slane %v5667, 4
  %v5670 = vor.u32 %v5666, %v5669
  %v5671 = vsel %vm4395, %v5661, %v5670
  %v5673 = vshrl.u32 %v5392, 16
  %v5675 = vrot.slane %v5673, 3
  %v5676 = vshll.u32 %v5392, 16
  %v5678 = vrot.slane %v5676, 4
  %v5679 = vor.u32 %v5675, %v5678
  %v5680 = vsel %vm4395, %v5670, %v5679
  %v5682 = vshrl.u32 %v5393, 16
  %v5684 = vrot.slane %v5682, 3
  %v5685 = vshll.u32 %v5393, 16
  %v5687 = vrot.slane %v5685, 4
  %v5688 = vor.u32 %v5684, %v5687
  %v5689 = vsel %vm4395, %v5679, %v5688
  %v5691 = vshrl.u32 %v5394, 16
  %v5693 = vrot.slane %v5691, 3
  %v5694 = vshll.u32 %v5394, 16
  %v5696 = vrot.slane %v5694, 4
  %v5697 = vor.u32 %v5693, %v5696
  %v5698 = vsel %vm4395, %v5688, %v5697
  %v5700 = vshrl.u32 %v5395, 16
  %v5702 = vrot.slane %v5700, 3
  %v5703 = vshll.u32 %v5395, 16
  %v5705 = vrot.slane %v5703, 4
  %v5706 = vor.u32 %v5702, %v5705
  %v5707 = vsel %vm4395, %v5697, %v5706
  %v5709 = vshrl.u32 %v5396, 16
  %v5711 = vrot.slane %v5709, 3
  %v5712 = vshll.u32 %v5396, 16
  %v5714 = vrot.slane %v5712, 4
  %v5715 = vor.u32 %v5711, %v5714
  %v5716 = vsel %vm4395, %v5706, %v5715
  %v5718 = vshrl.u32 %v5397, 16
  %v5720 = vrot.slane %v5718, 3
  %v5721 = vshll.u32 %v5397, 16
  %v5723 = vrot.slane %v5721, 4
  %v5724 = vor.u32 %v5720, %v5723
  %v5725 = vsel %vm4395, %v5715, %v5724
  %v5727 = vshrl.u32 %v5398, 16
  %v5729 = vrot.slane %v5727, 3
  %v5730 = vshll.u32 %v5398, 16
  %v5732 = vrot.slane %v5730, 4
  %v5733 = vor.u32 %v5729, %v5732
  %v5734 = vsel %vm4395, %v5724, %v5733
  %v5736 = vshrl.u32 %v5399, 16
  %v5738 = vrot.slane %v5736, 3
  %v5739 = vshll.u32 %v5399, 16
  %v5741 = vrot.slane %v5739, 4
  %v5742 = vor.u32 %v5738, %v5741
  %v5743 = vsel %vm4395, %v5733, %v5742
  %v5745 = vshrl.u32 %v5400, 16
  %v5747 = vrot.slane %v5745, 3
  %v5748 = vshll.u32 %v5400, 16
  %v5750 = vrot.slane %v5748, 4
  %v5751 = vor.u32 %v5747, %v5750
  %v5752 = vsel %vm4395, %v5742, %v5751
  %v5754 = vshrl.u32 %v5401, 16
  %v5756 = vrot.slane %v5754, 3
  %v5757 = vshll.u32 %v5401, 16
  %v5759 = vrot.slane %v5757, 4
  %v5760 = vor.u32 %v5756, %v5759
  %v5761 = vsel %vm4395, %v5751, %v5760
  %v5763 = vshrl.u32 %v5402, 16
  %v5765 = vrot.slane %v5763, 3
  %v5766 = vshll.u32 %v5402, 16
  %v5768 = vrot.slane %v5766, 4
  %v5769 = vor.u32 %v5765, %v5768
  %v5770 = vsel %vm4395, %v5760, %v5769
  %v5828 = vunpack.c.l.b16 %v5182
  %v5829 = vunpack.c.l.b16 %v5183
  %v5830 = vunpack.c.l.b16 %v5184
  %v5831 = vunpack.c.l.b16 %v5185
  %v5832 = vunpack.c.l.b16 %v5186
  %v5833 = vunpack.c.l.b16 %v5187
  %v5834 = vunpack.c.l.b16 %v5188
  %v5835 = vunpack.c.l.b16 %v5189
  %v5836 = vunpack.c.l.b16 %v5190
  %v5837 = vunpack.c.l.b16 %v5191
  %v5838 = vunpack.c.l.b16 %v5192
  %v5839 = vunpack.c.l.b16 %v5193
  %v5840 = vunpack.c.l.b16 %v5194
  %v5841 = vunpack.c.l.b16 %v5195
  %v5842 = vunpack.c.l.b16 %v5196
  %v5843 = vunpack.c.l.b16 %v5197
  %v5844 = vpack.c.b16 %v5829, %v5828
  %v5845 = vpack.c.b16 %v5831, %v5830
  %v5846 = vpack.c.b16 %v5833, %v5832
  %v5847 = vpack.c.b16 %v5835, %v5834
  %v5848 = vpack.c.b16 %v5837, %v5836
  %v5849 = vpack.c.b16 %v5839, %v5838
  %v5850 = vpack.c.b16 %v5841, %v5840
  %v5851 = vpack.c.b16 %v5843, %v5842
  %5860 = vmatprep.subr.bf16.mxu0 0
  %5861 = vmatpush1.bf16.msra.mxu0 %v5844
  %5862 = vmatprep.subr.bf16.mxu0 0
  %5863 = vmatpush1.bf16.msra.mxu0 %v5845
  %5864 = vmatprep.subr.bf16.mxu0 0
  %5865 = vmatpush1.bf16.msra.mxu0 %v5846
  %5866 = vmatprep.subr.bf16.mxu0 0
  %5867 = vmatpush1.bf16.msra.mxu0 %v5847
  %5868 = vmatprep.subr.bf16.mxu0 0
  %5869 = vmatpush1.bf16.msra.mxu0 %v5848
  %5870 = vmatprep.subr.bf16.mxu0 0
  %5871 = vmatpush1.bf16.msra.mxu0 %v5849
  %5872 = vmatprep.subr.bf16.mxu0 0
  %5873 = vmatpush1.bf16.msra.mxu0 %v5850
  %5874 = vmatprep.subr.bf16.mxu0 0
  %5875 = vmatpush1.bf16.msra.mxu0 %v5851
  %5876 = vmatprep.subr.bf16.mxu0 0
  %5877 = vmatpush1.bf16.msra.mxu0 0
  %5878 = vmatprep.subr.bf16.mxu0 0
  %5879 = vmatpush1.bf16.msra.mxu0 0
  %5880 = vmatprep.subr.bf16.mxu0 0
  %5881 = vmatpush1.bf16.msra.mxu0 0
  %5882 = vmatprep.subr.bf16.mxu0 0
  %5883 = vmatpush1.bf16.msra.mxu0 0
  %5884 = vmatprep.subr.bf16.mxu0 0
  %5885 = vmatpush1.bf16.msra.mxu0 0
  %5886 = vmatprep.subr.bf16.mxu0 0
  %5887 = vmatpush1.bf16.msra.mxu0 0
  %5888 = vmatprep.subr.bf16.mxu0 0
  %5889 = vmatpush1.bf16.msra.mxu0 0
  %5890 = vmatprep.subr.bf16.mxu0 0
  %5891 = vmatpush1.bf16.msra.mxu0 0
  %5892 = vmatprep.mubr.bf16.mxu0 0
  %5893 = vmatmul.mubr.bf16.gmra.mrb[0].mxu0 %v5419
  %v5894 = vpop.f32.mrb[0].mxu0
  %v5895 = vadd.f32 0.0, %v5894
  %v5896 = vpop.f32.mrb[0].mxu0
  %v5897 = vpop.f32.mrb[0].mxu0
  %v5898 = vadd.f32 0.0, %v5897
  %v5899 = vpop.f32.mrb[0].mxu0
  %5900 = vmatprep.mubr.bf16.mxu0 0
  %5901 = vmatmul.mubr.bf16.gmra.mrb[0].mxu0 %v5428
  %v5902 = vpop.f32.mrb[0].mxu0
  %v5903 = vadd.f32 0.0, %v5902
  %v5904 = vpop.f32.mrb[0].mxu0
  %v5905 = vpop.f32.mrb[0].mxu0
  %v5906 = vadd.f32 0.0, %v5905
  %v5907 = vpop.f32.mrb[0].mxu0
  %5908 = vmatprep.mubr.bf16.mxu0 0
  %5909 = vmatmul.mubr.bf16.gmra.mrb[0].mxu0 %v5437
  %v5910 = vpop.f32.mrb[0].mxu0
  %v5911 = vadd.f32 0.0, %v5910
  %v5912 = vpop.f32.mrb[0].mxu0
  %v5913 = vpop.f32.mrb[0].mxu0
  %v5914 = vadd.f32 0.0, %v5913
  %v5915 = vpop.f32.mrb[0].mxu0
  %5916 = vmatprep.mubr.bf16.mxu0 0
  %5917 = vmatmul.mubr.bf16.gmra.mrb[0].mxu0 %v5446
  %v5918 = vpop.f32.mrb[0].mxu0
  %v5919 = vadd.f32 0.0, %v5918
  %v5920 = vpop.f32.mrb[0].mxu0
  %v5921 = vpop.f32.mrb[0].mxu0
  %v5922 = vadd.f32 0.0, %v5921
  %v5923 = vpop.f32.mrb[0].mxu0
  %5924 = vmatprep.mubr.bf16.mxu0 0
  %5925 = vmatmul.mubr.bf16.gmra.mrb[0].mxu0 %v5455
  %v5926 = vpop.f32.mrb[0].mxu0
  %v5927 = vadd.f32 0.0, %v5926
  %v5928 = vpop.f32.mrb[0].mxu0
  %v5929 = vpop.f32.mrb[0].mxu0
  %v5930 = vadd.f32 0.0, %v5929
  %v5931 = vpop.f32.mrb[0].mxu0
  %5932 = vmatprep.mubr.bf16.mxu0 0
  %5933 = vmatmul.mubr.bf16.gmra.mrb[0].mxu0 %v5464
  %v5934 = vpop.f32.mrb[0].mxu0
  %v5935 = vadd.f32 0.0, %v5934
  %v5936 = vpop.f32.mrb[0].mxu0
  %v5937 = vpop.f32.mrb[0].mxu0
  %v5938 = vadd.f32 0.0, %v5937
  %v5939 = vpop.f32.mrb[0].mxu0
  %5940 = vmatprep.mubr.bf16.mxu0 0
  %5941 = vmatmul.mubr.bf16.gmra.mrb[0].mxu0 %v5473
  %v5942 = vpop.f32.mrb[0].mxu0
  %v5943 = vadd.f32 0.0, %v5942
  %v5944 = vpop.f32.mrb[0].mxu0
  %v5945 = vpop.f32.mrb[0].mxu0
  %v5946 = vadd.f32 0.0, %v5945
  %v5947 = vpop.f32.mrb[0].mxu0
  %5948 = vmatprep.mubr.bf16.mxu0 0
  %5949 = vmatmul.mubr.bf16.gmra.mrb[0].mxu0 %v5482
  %v5950 = vpop.f32.mrb[0].mxu0
  %v5951 = vadd.f32 0.0, %v5950
  %v5952 = vpop.f32.mrb[0].mxu0
  %v5953 = vpop.f32.mrb[0].mxu0
  %v5954 = vadd.f32 0.0, %v5953
  %v5955 = vpop.f32.mrb[0].mxu0
  %5956 = vmatprep.mubr.bf16.mxu0 0
  %5957 = vmatmul.mubr.bf16.gmra.mrb[0].mxu0 %v5491
  %v5958 = vpop.f32.mrb[0].mxu0
  %v5959 = vadd.f32 0.0, %v5958
  %v5960 = vpop.f32.mrb[0].mxu0
  %v5961 = vpop.f32.mrb[0].mxu0
  %v5962 = vadd.f32 0.0, %v5961
  %v5963 = vpop.f32.mrb[0].mxu0
  %5964 = vmatprep.mubr.bf16.mxu0 0
  %5965 = vmatmul.mubr.bf16.gmra.mrb[0].mxu0 %v5500
  %v5966 = vpop.f32.mrb[0].mxu0
  %v5967 = vadd.f32 0.0, %v5966
  %v5968 = vpop.f32.mrb[0].mxu0
  %v5969 = vpop.f32.mrb[0].mxu0
  %v5970 = vadd.f32 0.0, %v5969
  %v5971 = vpop.f32.mrb[0].mxu0
  %5972 = vmatprep.mubr.bf16.mxu0 0
  %5973 = vmatmul.mubr.bf16.gmra.mrb[0].mxu0 %v5509
  %v5974 = vpop.f32.mrb[0].mxu0
  %v5975 = vadd.f32 0.0, %v5974
  %v5976 = vpop.f32.mrb[0].mxu0
  %v5977 = vpop.f32.mrb[0].mxu0
  %v5978 = vadd.f32 0.0, %v5977
  %v5979 = vpop.f32.mrb[0].mxu0
  %5980 = vmatprep.mubr.bf16.mxu0 0
  %5981 = vmatmul.mubr.bf16.gmra.mrb[0].mxu0 %v5518
  %v5982 = vpop.f32.mrb[0].mxu0
  %v5983 = vadd.f32 0.0, %v5982
  %v5984 = vpop.f32.mrb[0].mxu0
  %v5985 = vpop.f32.mrb[0].mxu0
  %v5986 = vadd.f32 0.0, %v5985
  %v5987 = vpop.f32.mrb[0].mxu0
  %5988 = vmatprep.mubr.bf16.mxu0 0
  %5989 = vmatmul.mubr.bf16.gmra.mrb[0].mxu0 %v5527
  %v5990 = vpop.f32.mrb[0].mxu0
  %v5991 = vadd.f32 0.0, %v5990
  %v5992 = vpop.f32.mrb[0].mxu0
  %v5993 = vpop.f32.mrb[0].mxu0
  %v5994 = vadd.f32 0.0, %v5993
  %v5995 = vpop.f32.mrb[0].mxu0
  %5996 = vmatprep.mubr.bf16.mxu0 0
  %5997 = vmatmul.mubr.bf16.gmra.mrb[0].mxu0 %v5536
  %v5998 = vpop.f32.mrb[0].mxu0
  %v5999 = vadd.f32 0.0, %v5998
  %v6000 = vpop.f32.mrb[0].mxu0
  %v6001 = vpop.f32.mrb[0].mxu0
  %v6002 = vadd.f32 0.0, %v6001
  %v6003 = vpop.f32.mrb[0].mxu0
  %6004 = vmatprep.mubr.bf16.mxu0 0
  %6005 = vmatmul.mubr.bf16.gmra.mrb[0].mxu0 %v5545
  %v6006 = vpop.f32.mrb[0].mxu0
  %v6007 = vadd.f32 0.0, %v6006
  %v6008 = vpop.f32.mrb[0].mxu0
  %v6009 = vpop.f32.mrb[0].mxu0
  %v6010 = vadd.f32 0.0, %v6009
  %v6011 = vpop.f32.mrb[0].mxu0
  %6012 = vmatprep.mubr.bf16.mxu0 0
  %6013 = vmatmul.mubr.bf16.gmra.mrb[0].mxu0 %v5554
  %v6014 = vpop.f32.mrb[0].mxu0
  %v6015 = vadd.f32 0.0, %v6014
  %v6016 = vpop.f32.mrb[0].mxu0
  %v6017 = vpop.f32.mrb[0].mxu0
  %v6018 = vadd.f32 0.0, %v6017
  %v6019 = vpop.f32.mrb[0].mxu0
  %6020 = vmatprep.mubr.bf16.mxu0 0
  %6021 = vmatmul.mubr.bf16.gmra.mrb[0].mxu0 %v5563
  %v6022 = vpop.f32.mrb[0].mxu0
  %v6023 = vadd.f32 0.0, %v6022
  %v6024 = vpop.f32.mrb[0].mxu0
  %v6025 = vpop.f32.mrb[0].mxu0
  %v6026 = vadd.f32 0.0, %v6025
  %v6027 = vpop.f32.mrb[0].mxu0
  %6028 = vmatprep.mubr.bf16.mxu0 0
  %6029 = vmatmul.mubr.bf16.gmra.mrb[0].mxu0 %v5572
  %v6030 = vpop.f32.mrb[0].mxu0
  %v6031 = vadd.f32 0.0, %v6030
  %v6032 = vpop.f32.mrb[0].mxu0
  %v6033 = vpop.f32.mrb[0].mxu0
  %v6034 = vadd.f32 0.0, %v6033
  %v6035 = vpop.f32.mrb[0].mxu0
  %6036 = vmatprep.mubr.bf16.mxu0 0
  %6037 = vmatmul.mubr.bf16.gmra.mrb[0].mxu0 %v5581
  %v6038 = vpop.f32.mrb[0].mxu0
  %v6039 = vadd.f32 0.0, %v6038
  %v6040 = vpop.f32.mrb[0].mxu0
  %v6041 = vpop.f32.mrb[0].mxu0
  %v6042 = vadd.f32 0.0, %v6041
  %v6043 = vpop.f32.mrb[0].mxu0
  %6044 = vmatprep.mubr.bf16.mxu0 0
  %6045 = vmatmul.mubr.bf16.gmra.mrb[0].mxu0 %v5590
  %v6046 = vpop.f32.mrb[0].mxu0
  %v6047 = vadd.f32 0.0, %v6046
  %v6048 = vpop.f32.mrb[0].mxu0
  %v6049 = vpop.f32.mrb[0].mxu0
  %v6050 = vadd.f32 0.0, %v6049
  %v6051 = vpop.f32.mrb[0].mxu0
  %6052 = vmatprep.mubr.bf16.mxu0 0
  %6053 = vmatmul.mubr.bf16.gmra.mrb[0].mxu0 %v5599
  %v6054 = vpop.f32.mrb[0].mxu0
  %v6055 = vadd.f32 0.0, %v6054
  %v6056 = vpop.f32.mrb[0].mxu0
  %v6057 = vpop.f32.mrb[0].mxu0
  %v6058 = vadd.f32 0.0, %v6057
  %v6059 = vpop.f32.mrb[0].mxu0
  %6060 = vmatprep.mubr.bf16.mxu0 0
  %6061 = vmatmul.mubr.bf16.gmra.mrb[0].mxu0 %v5608
  %v6062 = vpop.f32.mrb[0].mxu0
  %v6063 = vadd.f32 0.0, %v6062
  %v6064 = vpop.f32.mrb[0].mxu0
  %v6065 = vpop.f32.mrb[0].mxu0
  %v6066 = vadd.f32 0.0, %v6065
  %v6067 = vpop.f32.mrb[0].mxu0
  %6068 = vmatprep.mubr.bf16.mxu0 0
  %6069 = vmatmul.mubr.bf16.gmra.mrb[0].mxu0 %v5617
  %v6070 = vpop.f32.mrb[0].mxu0
  %v6071 = vadd.f32 0.0, %v6070
  %v6072 = vpop.f32.mrb[0].mxu0
  %v6073 = vpop.f32.mrb[0].mxu0
  %v6074 = vadd.f32 0.0, %v6073
  %v6075 = vpop.f32.mrb[0].mxu0
  %6076 = vmatprep.mubr.bf16.mxu0 0
  %6077 = vmatmul.mubr.bf16.gmra.mrb[0].mxu0 %v5626
  %v6078 = vpop.f32.mrb[0].mxu0
  %v6079 = vadd.f32 0.0, %v6078
  %v6080 = vpop.f32.mrb[0].mxu0
  %v6081 = vpop.f32.mrb[0].mxu0
  %v6082 = vadd.f32 0.0, %v6081
  %v6083 = vpop.f32.mrb[0].mxu0
  %6084 = vmatprep.mubr.bf16.mxu0 0
  %6085 = vmatmul.mubr.bf16.gmra.mrb[0].mxu0 %v5635
  %v6086 = vpop.f32.mrb[0].mxu0
  %v6087 = vadd.f32 0.0, %v6086
  %v6088 = vpop.f32.mrb[0].mxu0
  %v6089 = vpop.f32.mrb[0].mxu0
  %v6090 = vadd.f32 0.0, %v6089
  %v6091 = vpop.f32.mrb[0].mxu0
  %6092 = vmatprep.mubr.bf16.mxu0 0
  %6093 = vmatmul.mubr.bf16.gmra.mrb[0].mxu0 %v5644
  %v6094 = vpop.f32.mrb[0].mxu0
  %v6095 = vadd.f32 0.0, %v6094
  %v6096 = vpop.f32.mrb[0].mxu0
  %v6097 = vpop.f32.mrb[0].mxu0
  %v6098 = vadd.f32 0.0, %v6097
  %v6099 = vpop.f32.mrb[0].mxu0
  %6100 = vmatprep.mubr.bf16.mxu0 0
  %6101 = vmatmul.mubr.bf16.gmra.mrb[0].mxu0 %v5653
  %v6102 = vpop.f32.mrb[0].mxu0
  %v6103 = vadd.f32 0.0, %v6102
  %v6104 = vpop.f32.mrb[0].mxu0
  %v6105 = vpop.f32.mrb[0].mxu0
  %v6106 = vadd.f32 0.0, %v6105
  %v6107 = vpop.f32.mrb[0].mxu0
  %6108 = vmatprep.mubr.bf16.mxu0 0
  %6109 = vmatmul.mubr.bf16.gmra.mrb[0].mxu0 %v5662
  %v6110 = vpop.f32.mrb[0].mxu0
  %v6111 = vadd.f32 0.0, %v6110
  %v6112 = vpop.f32.mrb[0].mxu0
  %v6113 = vpop.f32.mrb[0].mxu0
  %v6114 = vadd.f32 0.0, %v6113
  %v6115 = vpop.f32.mrb[0].mxu0
  %6116 = vmatprep.mubr.bf16.mxu0 0
  %6117 = vmatmul.mubr.bf16.gmra.mrb[0].mxu0 %v5671
  %v6118 = vpop.f32.mrb[0].mxu0
  %v6119 = vadd.f32 0.0, %v6118
  %v6120 = vpop.f32.mrb[0].mxu0
  %v6121 = vpop.f32.mrb[0].mxu0
  %v6122 = vadd.f32 0.0, %v6121
  %v6123 = vpop.f32.mrb[0].mxu0
  %6124 = vmatprep.mubr.bf16.mxu0 0
  %6125 = vmatmul.mubr.bf16.gmra.mrb[0].mxu0 %v5680
  %v6126 = vpop.f32.mrb[0].mxu0
  %v6127 = vadd.f32 0.0, %v6126
  %v6128 = vpop.f32.mrb[0].mxu0
  %v6129 = vpop.f32.mrb[0].mxu0
  %v6130 = vadd.f32 0.0, %v6129
  %v6131 = vpop.f32.mrb[0].mxu0
  %6132 = vmatprep.mubr.bf16.mxu0 0
  %6133 = vmatmul.mubr.bf16.gmra.mrb[0].mxu0 %v5689
  %v6134 = vpop.f32.mrb[0].mxu0
  %v6135 = vadd.f32 0.0, %v6134
  %v6136 = vpop.f32.mrb[0].mxu0
  %v6137 = vpop.f32.mrb[0].mxu0
  %v6138 = vadd.f32 0.0, %v6137
  %v6139 = vpop.f32.mrb[0].mxu0
  %6140 = vmatprep.mubr.bf16.mxu0 0
  %6141 = vmatmul.mubr.bf16.gmra.mrb[0].mxu0 %v5698
  %v6142 = vpop.f32.mrb[0].mxu0
  %v6143 = vadd.f32 0.0, %v6142
  %v6144 = vpop.f32.mrb[0].mxu0
  %v6145 = vpop.f32.mrb[0].mxu0
  %v6146 = vadd.f32 0.0, %v6145
  %v6147 = vpop.f32.mrb[0].mxu0
  %6148 = vmatprep.mubr.bf16.mxu0 0
  %6149 = vmatmul.mubr.bf16.gmra.mrb[0].mxu0 %v5707
  %v6150 = vpop.f32.mrb[0].mxu0
  %v6151 = vadd.f32 0.0, %v6150
  %v6152 = vpop.f32.mrb[0].mxu0
  %v6153 = vpop.f32.mrb[0].mxu0
  %v6154 = vadd.f32 0.0, %v6153
  %v6155 = vpop.f32.mrb[0].mxu0
  %6156 = vmatprep.mubr.bf16.mxu0 0
  %6157 = vmatmul.mubr.bf16.gmra.mrb[0].mxu0 %v5716
  %v6158 = vpop.f32.mrb[0].mxu0
  %v6159 = vadd.f32 0.0, %v6158
  %v6160 = vpop.f32.mrb[0].mxu0
  %v6161 = vpop.f32.mrb[0].mxu0
  %v6162 = vadd.f32 0.0, %v6161
  %v6163 = vpop.f32.mrb[0].mxu0
  %6164 = vmatprep.mubr.bf16.mxu0 0
  %6165 = vmatmul.mubr.bf16.gmra.mrb[0].mxu0 %v5725
  %v6166 = vpop.f32.mrb[0].mxu0
  %v6167 = vadd.f32 0.0, %v6166
  %v6168 = vpop.f32.mrb[0].mxu0
  %v6169 = vpop.f32.mrb[0].mxu0
  %v6170 = vadd.f32 0.0, %v6169
  %v6171 = vpop.f32.mrb[0].mxu0
  %6172 = vmatprep.mubr.bf16.mxu0 0
  %6173 = vmatmul.mubr.bf16.gmra.mrb[0].mxu0 %v5734
  %v6174 = vpop.f32.mrb[0].mxu0
  %v6175 = vadd.f32 0.0, %v6174
  %v6176 = vpop.f32.mrb[0].mxu0
  %v6177 = vpop.f32.mrb[0].mxu0
  %v6178 = vadd.f32 0.0, %v6177
  %v6179 = vpop.f32.mrb[0].mxu0
  %6180 = vmatprep.mubr.bf16.mxu0 0
  %6181 = vmatmul.mubr.bf16.gmra.mrb[0].mxu0 %v5743
  %v6182 = vpop.f32.mrb[0].mxu0
  %v6183 = vadd.f32 0.0, %v6182
  %v6184 = vpop.f32.mrb[0].mxu0
  %v6185 = vpop.f32.mrb[0].mxu0
  %v6186 = vadd.f32 0.0, %v6185
  %v6187 = vpop.f32.mrb[0].mxu0
  %6188 = vmatprep.mubr.bf16.mxu0 0
  %6189 = vmatmul.mubr.bf16.gmra.mrb[0].mxu0 %v5752
  %v6190 = vpop.f32.mrb[0].mxu0
  %v6191 = vadd.f32 0.0, %v6190
  %v6192 = vpop.f32.mrb[0].mxu0
  %v6193 = vpop.f32.mrb[0].mxu0
  %v6194 = vadd.f32 0.0, %v6193
  %v6195 = vpop.f32.mrb[0].mxu0
  %6196 = vmatprep.mubr.bf16.mxu0 0
  %6197 = vmatmul.mubr.bf16.gmra.mrb[0].mxu0 %v5761
  %v6198 = vpop.f32.mrb[0].mxu0
  %v6199 = vadd.f32 0.0, %v6198
  %v6200 = vpop.f32.mrb[0].mxu0
  %v6201 = vpop.f32.mrb[0].mxu0
  %v6202 = vadd.f32 0.0, %v6201
  %v6203 = vpop.f32.mrb[0].mxu0
  %6204 = vmatprep.mubr.bf16.mxu0 0
  %6205 = vmatmul.mubr.bf16.gmra.mrb[0].mxu0 %v5770
  %v6206 = vpop.f32.mrb[0].mxu0
  %v6207 = vadd.f32 0.0, %v6206
  %v6208 = vpop.f32.mrb[0].mxu0
  %v6209 = vpop.f32.mrb[0].mxu0
  %v6210 = vadd.f32 0.0, %v6209
  %v6211 = vpop.f32.mrb[0].mxu0
  %6212 = vmatprep.mubr.bf16.mxu0 0
  %6213 = vmatmul.mubr.bf16.gmra.mrb[0].mxu0 %v5769
  %v6214 = vpop.f32.mrb[0].mxu0
  %v6215 = vadd.f32 0.0, %v6214
  %v6216 = vpop.f32.mrb[0].mxu0
  %v6217 = vpop.f32.mrb[0].mxu0
  %v6218 = vpop.f32.mrb[0].mxu0
  %6219 = vdwg.mxu0
  %v6220 = vadd.f32 %v5018, %v5895
  %v6221 = vadd.f32 %v5019, %v5898
  %v6222 = vadd.f32 %v5020, %v5903
  %v6223 = vadd.f32 %v5021, %v5906
  %v6224 = vadd.f32 %v5022, %v5911
  %v6225 = vadd.f32 %v5023, %v5914
  %v6226 = vadd.f32 %v5024, %v5919
  %v6227 = vadd.f32 %v5025, %v5922
  %v6228 = vadd.f32 %v5026, %v5927
  %v6229 = vadd.f32 %v5027, %v5930
  %v6230 = vadd.f32 %v5028, %v5935
  %v6231 = vadd.f32 %v5029, %v5938
  %v6232 = vadd.f32 %v5030, %v5943
  %v6233 = vadd.f32 %v5031, %v5946
  %v6234 = vadd.f32 %v5032, %v5951
  %v6235 = vadd.f32 %v5033, %v5954
  %v6236 = vadd.f32 %v5034, %v5959
  %v6237 = vadd.f32 %v5035, %v5962
  %v6238 = vadd.f32 %v5036, %v5967
  %v6239 = vadd.f32 %v5037, %v5970
  %v6240 = vadd.f32 %v5038, %v5975
  %v6241 = vadd.f32 %v5039, %v5978
  %v6242 = vadd.f32 %v5040, %v5983
  %v6243 = vadd.f32 %v5041, %v5986
  %v6244 = vadd.f32 %v5042, %v5991
  %v6245 = vadd.f32 %v5043, %v5994
  %v6246 = vadd.f32 %v5044, %v5999
  %v6247 = vadd.f32 %v5045, %v6002
  %v6248 = vadd.f32 %v5046, %v6007
  %v6249 = vadd.f32 %v5047, %v6010
  %v6250 = vadd.f32 %v5048, %v6015
  %v6251 = vadd.f32 %v5049, %v6018
  %v6252 = vadd.f32 %v5050, %v6023
  %v6253 = vadd.f32 %v5051, %v6026
  %v6254 = vadd.f32 %v5052, %v6031
  %v6255 = vadd.f32 %v5053, %v6034
  %v6256 = vadd.f32 %v5054, %v6039
  %v6257 = vadd.f32 %v5055, %v6042
  %v6258 = vadd.f32 %v5056, %v6047
  %v6259 = vadd.f32 %v5057, %v6050
  %v6260 = vadd.f32 %v5058, %v6055
  %v6261 = vadd.f32 %v5059, %v6058
  %v6262 = vadd.f32 %v5060, %v6063
  %v6263 = vadd.f32 %v5061, %v6066
  %v6264 = vadd.f32 %v5062, %v6071
  %v6265 = vadd.f32 %v5063, %v6074
  %v6266 = vadd.f32 %v5064, %v6079
  %v6267 = vadd.f32 %v5065, %v6082
  %v6268 = vadd.f32 %v5066, %v6087
  %v6269 = vadd.f32 %v5067, %v6090
  %v6270 = vadd.f32 %v5068, %v6095
  %v6271 = vadd.f32 %v5069, %v6098
  %v6272 = vadd.f32 %v5070, %v6103
  %v6273 = vadd.f32 %v5071, %v6106
  %v6274 = vadd.f32 %v5072, %v6111
  %v6275 = vadd.f32 %v5073, %v6114
  %v6276 = vadd.f32 %v5074, %v6119
  %v6277 = vadd.f32 %v5075, %v6122
  %v6278 = vadd.f32 %v5076, %v6127
  %v6279 = vadd.f32 %v5077, %v6130
  %v6280 = vadd.f32 %v5078, %v6135
  %v6281 = vadd.f32 %v5079, %v6138
  %v6282 = vadd.f32 %v5080, %v6143
  %v6283 = vadd.f32 %v5081, %v6146
  %v6284 = vadd.f32 %v5082, %v6151
  %v6285 = vadd.f32 %v5083, %v6154
  %v6286 = vadd.f32 %v5084, %v6159
  %v6287 = vadd.f32 %v5085, %v6162
  %v6288 = vadd.f32 %v5086, %v6167
  %v6289 = vadd.f32 %v5087, %v6170
  %v6290 = vadd.f32 %v5088, %v6175
  %v6291 = vadd.f32 %v5089, %v6178
  %v6292 = vadd.f32 %v5090, %v6183
  %v6293 = vadd.f32 %v5091, %v6186
  %v6294 = vadd.f32 %v5092, %v6191
  %v6295 = vadd.f32 %v5093, %v6194
  %v6296 = vadd.f32 %v5094, %v6199
  %v6297 = vadd.f32 %v5095, %v6202
  %v6298 = vadd.f32 %v5096, %v6207
  %v6299 = vadd.f32 %v5097, %v6210
  %v6300 = vadd.f32 %v5098, %v6215
  %s6301 = scalar_lea.vmem %s4, 256
  %v6302 = vld [vmem:[%s6301] sm:$0xf]
  %v6303 = vld [vmem:[%s6301 + $0x4] sm:$0xf]
  %v6304 = vld [vmem:[%s6301 + $0x8] sm:$0xf]
  %v6305 = vld [vmem:[%s6301 + $0xc] sm:$0xf]
  %v6306 = vld [vmem:[%s6301 + $0x10] sm:$0xf]
  %v6307 = vld [vmem:[%s6301 + $0x14] sm:$0xf]
  %v6308 = vld [vmem:[%s6301 + $0x18] sm:$0xf]
  %v6309 = vld [vmem:[%s6301 + $0x1c] sm:$0xf]
  %v6310 = vld [vmem:[%s6301 + $0x20] sm:$0xf]
  %v6311 = vld [vmem:[%s6301 + $0x24] sm:$0xf]
  %v6312 = vld [vmem:[%s6301 + $0x28] sm:$0xf]
  %v6313 = vld [vmem:[%s6301 + $0x2c] sm:$0xf]
  %v6314 = vld [vmem:[%s6301 + $0x30] sm:$0xf]
  %v6315 = vld [vmem:[%s6301 + $0x34] sm:$0xf]
  %v6316 = vld [vmem:[%s6301 + $0x38] sm:$0xf]
  %v6317 = vld [vmem:[%s6301 + $0x3c] sm:$0xf]
  %v6318 = vpack.c.b16 %v5282, %v5281
  %v6319 = vpack.c.b16 %v5284, %v5283
  %v6320 = vpack.c.b16 %v5286, %v5285
  %v6321 = vpack.c.b16 %v5288, %v5287
  %v6322 = vpack.c.b16 %v5290, %v5289
  %v6323 = vpack.c.b16 %v5292, %v5291
  %v6324 = vpack.c.b16 %v5294, %v5293
  %v6325 = vpack.c.b16 %v5296, %v5295
  %v6326 = vpack.c.b16 %v5298, %v5297
  %v6327 = vpack.c.b16 %v5300, %v5299
  %v6328 = vpack.c.b16 %v5302, %v5301
  %v6329 = vpack.c.b16 %v5304, %v5303
  %v6330 = vpack.c.b16 %v5306, %v5305
  %v6331 = vpack.c.b16 %v5308, %v5307
  %v6332 = vpack.c.b16 %v5310, %v5309
  %v6333 = vpack.c.b16 %v5312, %v5311
  %v6334 = vpack.c.b16 %v5314, %v5313
  %v6335 = vpack.c.b16 %v5316, %v5315
  %v6336 = vpack.c.b16 %v5318, %v5317
  %v6337 = vpack.c.b16 %v5320, %v5319
  %v6338 = vpack.c.b16 %v5322, %v5321
  %v6339 = vpack.c.b16 %v5324, %v5323
  %v6340 = vpack.c.b16 %v5326, %v5325
  %v6341 = vpack.c.b16 %v5328, %v5327
  %v6342 = vpack.c.b16 %v5330, %v5329
  %v6343 = vpack.c.b16 %v5332, %v5331
  %v6344 = vpack.c.b16 %v5334, %v5333
  %v6345 = vpack.c.b16 %v5336, %v5335
  %v6346 = vpack.c.b16 %v5338, %v5337
  %v6347 = vpack.c.b16 %v5340, %v5339
  %v6348 = vpack.c.b16 %v5342, %v5341
  %v6349 = vpack.c.b16 %v5344, %v5343
  %v6350 = vpack.c.b16 %v5346, %v5345
  %v6351 = vpack.c.b16 %v5348, %v5347
  %v6352 = vpack.c.b16 %v5350, %v5349
  %v6353 = vpack.c.b16 %v5352, %v5351
  %v6354 = vpack.c.b16 %v5354, %v5353
  %v6355 = vpack.c.b16 %v5356, %v5355
  %v6356 = vpack.c.b16 %v5358, %v5357
  %v6357 = vpack.c.b16 %v5360, %v5359
  %v6358 = vpack.c.b16 %v5361, %v5361
  %v6416 = vunpack.c.l.b16 %v6302
  %v6417 = vunpack.c.l.b16 %v6303
  %v6418 = vunpack.c.l.b16 %v6304
  %v6419 = vunpack.c.l.b16 %v6305
  %v6420 = vunpack.c.l.b16 %v6306
  %v6421 = vunpack.c.l.b16 %v6307
  %v6422 = vunpack.c.l.b16 %v6308
  %v6423 = vunpack.c.l.b16 %v6309
  %v6424 = vunpack.c.l.b16 %v6310
  %v6425 = vunpack.c.l.b16 %v6311
  %v6426 = vunpack.c.l.b16 %v6312
  %v6427 = vunpack.c.l.b16 %v6313
  %v6428 = vunpack.c.l.b16 %v6314
  %v6429 = vunpack.c.l.b16 %v6315
  %v6430 = vunpack.c.l.b16 %v6316
  %v6431 = vunpack.c.l.b16 %v6317
  %v6432 = vpack.c.b16 %v6417, %v6416
  %v6433 = vpack.c.b16 %v6419, %v6418
  %v6434 = vpack.c.b16 %v6421, %v6420
  %v6435 = vpack.c.b16 %v6423, %v6422
  %v6436 = vpack.c.b16 %v6425, %v6424
  %v6437 = vpack.c.b16 %v6427, %v6426
  %v6438 = vpack.c.b16 %v6429, %v6428
  %v6439 = vpack.c.b16 %v6431, %v6430
  %6448 = vmatprep.subr.bf16.mxu0 0
  %6449 = vmatpush1.bf16.msra.mxu0 %v6432
  %6450 = vmatprep.subr.bf16.mxu0 0
  %6451 = vmatpush1.bf16.msra.mxu0 %v6433
  %6452 = vmatprep.subr.bf16.mxu0 0
  %6453 = vmatpush1.bf16.msra.mxu0 %v6434
  %6454 = vmatprep.subr.bf16.mxu0 0
  %6455 = vmatpush1.bf16.msra.mxu0 %v6435
  %6456 = vmatprep.subr.bf16.mxu0 0
  %6457 = vmatpush1.bf16.msra.mxu0 %v6436
  %6458 = vmatprep.subr.bf16.mxu0 0
  %6459 = vmatpush1.bf16.msra.mxu0 %v6437
  %6460 = vmatprep.subr.bf16.mxu0 0
  %6461 = vmatpush1.bf16.msra.mxu0 %v6438
  %6462 = vmatprep.subr.bf16.mxu0 0
  %6463 = vmatpush1.bf16.msra.mxu0 %v6439
  %6464 = vmatprep.subr.bf16.mxu0 0
  %6465 = vmatpush1.bf16.msra.mxu0 0
  %6466 = vmatprep.subr.bf16.mxu0 0
  %6467 = vmatpush1.bf16.msra.mxu0 0
  %6468 = vmatprep.subr.bf16.mxu0 0
  %6469 = vmatpush1.bf16.msra.mxu0 0
  %6470 = vmatprep.subr.bf16.mxu0 0
  %6471 = vmatpush1.bf16.msra.mxu0 0
  %6472 = vmatprep.subr.bf16.mxu0 0
  %6473 = vmatpush1.bf16.msra.mxu0 0
  %6474 = vmatprep.subr.bf16.mxu0 0
  %6475 = vmatpush1.bf16.msra.mxu0 0
  %6476 = vmatprep.subr.bf16.mxu0 0
  %6477 = vmatpush1.bf16.msra.mxu0 0
  %6478 = vmatprep.subr.bf16.mxu0 0
  %6479 = vmatpush1.bf16.msra.mxu0 0
  %6480 = vmatprep.mubr.bf16.mxu0 0
  %6481 = vmatmul.mubr.bf16.gmra.mrb[0].mxu0 %v6318
  %v6482 = vpop.f32.mrb[0].mxu0
  %v6483 = vadd.f32 0.0, %v6482
  %v6484 = vpop.f32.mrb[0].mxu0
  %v6485 = vpop.f32.mrb[0].mxu0
  %v6486 = vadd.f32 0.0, %v6485
  %v6487 = vpop.f32.mrb[0].mxu0
  %6488 = vmatprep.mubr.bf16.mxu0 0
  %6489 = vmatmul.mubr.bf16.gmra.mrb[0].mxu0 %v6319
  %v6490 = vpop.f32.mrb[0].mxu0
  %v6491 = vadd.f32 0.0, %v6490
  %v6492 = vpop.f32.mrb[0].mxu0
  %v6493 = vpop.f32.mrb[0].mxu0
  %v6494 = vadd.f32 0.0, %v6493
  %v6495 = vpop.f32.mrb[0].mxu0
  %6496 = vmatprep.mubr.bf16.mxu0 0
  %6497 = vmatmul.mubr.bf16.gmra.mrb[0].mxu0 %v6320
  %v6498 = vpop.f32.mrb[0].mxu0
  %v6499 = vadd.f32 0.0, %v6498
  %v6500 = vpop.f32.mrb[0].mxu0
  %v6501 = vpop.f32.mrb[0].mxu0
  %v6502 = vadd.f32 0.0, %v6501
  %v6503 = vpop.f32.mrb[0].mxu0
  %6504 = vmatprep.mubr.bf16.mxu0 0
  %6505 = vmatmul.mubr.bf16.gmra.mrb[0].mxu0 %v6321
  %v6506 = vpop.f32.mrb[0].mxu0
  %v6507 = vadd.f32 0.0, %v6506
  %v6508 = vpop.f32.mrb[0].mxu0
  %v6509 = vpop.f32.mrb[0].mxu0
  %v6510 = vadd.f32 0.0, %v6509
  %v6511 = vpop.f32.mrb[0].mxu0
  %6512 = vmatprep.mubr.bf16.mxu0 0
  %6513 = vmatmul.mubr.bf16.gmra.mrb[0].mxu0 %v6322
  %v6514 = vpop.f32.mrb[0].mxu0
  %v6515 = vadd.f32 0.0, %v6514
  %v6516 = vpop.f32.mrb[0].mxu0
  %v6517 = vpop.f32.mrb[0].mxu0
  %v6518 = vadd.f32 0.0, %v6517
  %v6519 = vpop.f32.mrb[0].mxu0
  %6520 = vmatprep.mubr.bf16.mxu0 0
  %6521 = vmatmul.mubr.bf16.gmra.mrb[0].mxu0 %v6323
  %v6522 = vpop.f32.mrb[0].mxu0
  %v6523 = vadd.f32 0.0, %v6522
  %v6524 = vpop.f32.mrb[0].mxu0
  %v6525 = vpop.f32.mrb[0].mxu0
  %v6526 = vadd.f32 0.0, %v6525
  %v6527 = vpop.f32.mrb[0].mxu0
  %6528 = vmatprep.mubr.bf16.mxu0 0
  %6529 = vmatmul.mubr.bf16.gmra.mrb[0].mxu0 %v6324
  %v6530 = vpop.f32.mrb[0].mxu0
  %v6531 = vadd.f32 0.0, %v6530
  %v6532 = vpop.f32.mrb[0].mxu0
  %v6533 = vpop.f32.mrb[0].mxu0
  %v6534 = vadd.f32 0.0, %v6533
  %v6535 = vpop.f32.mrb[0].mxu0
  %6536 = vmatprep.mubr.bf16.mxu0 0
  %6537 = vmatmul.mubr.bf16.gmra.mrb[0].mxu0 %v6325
  %v6538 = vpop.f32.mrb[0].mxu0
  %v6539 = vadd.f32 0.0, %v6538
  %v6540 = vpop.f32.mrb[0].mxu0
  %v6541 = vpop.f32.mrb[0].mxu0
  %v6542 = vadd.f32 0.0, %v6541
  %v6543 = vpop.f32.mrb[0].mxu0
  %6544 = vmatprep.mubr.bf16.mxu0 0
  %6545 = vmatmul.mubr.bf16.gmra.mrb[0].mxu0 %v6326
  %v6546 = vpop.f32.mrb[0].mxu0
  %v6547 = vadd.f32 0.0, %v6546
  %v6548 = vpop.f32.mrb[0].mxu0
  %v6549 = vpop.f32.mrb[0].mxu0
  %v6550 = vadd.f32 0.0, %v6549
  %v6551 = vpop.f32.mrb[0].mxu0
  %6552 = vmatprep.mubr.bf16.mxu0 0
  %6553 = vmatmul.mubr.bf16.gmra.mrb[0].mxu0 %v6327
  %v6554 = vpop.f32.mrb[0].mxu0
  %v6555 = vadd.f32 0.0, %v6554
  %v6556 = vpop.f32.mrb[0].mxu0
  %v6557 = vpop.f32.mrb[0].mxu0
  %v6558 = vadd.f32 0.0, %v6557
  %v6559 = vpop.f32.mrb[0].mxu0
  %6560 = vmatprep.mubr.bf16.mxu0 0
  %6561 = vmatmul.mubr.bf16.gmra.mrb[0].mxu0 %v6328
  %v6562 = vpop.f32.mrb[0].mxu0
  %v6563 = vadd.f32 0.0, %v6562
  %v6564 = vpop.f32.mrb[0].mxu0
  %v6565 = vpop.f32.mrb[0].mxu0
  %v6566 = vadd.f32 0.0, %v6565
  %v6567 = vpop.f32.mrb[0].mxu0
  %6568 = vmatprep.mubr.bf16.mxu0 0
  %6569 = vmatmul.mubr.bf16.gmra.mrb[0].mxu0 %v6329
  %v6570 = vpop.f32.mrb[0].mxu0
  %v6571 = vadd.f32 0.0, %v6570
  %v6572 = vpop.f32.mrb[0].mxu0
  %v6573 = vpop.f32.mrb[0].mxu0
  %v6574 = vadd.f32 0.0, %v6573
  %v6575 = vpop.f32.mrb[0].mxu0
  %6576 = vmatprep.mubr.bf16.mxu0 0
  %6577 = vmatmul.mubr.bf16.gmra.mrb[0].mxu0 %v6330
  %v6578 = vpop.f32.mrb[0].mxu0
  %v6579 = vadd.f32 0.0, %v6578
  %v6580 = vpop.f32.mrb[0].mxu0
  %v6581 = vpop.f32.mrb[0].mxu0
  %v6582 = vadd.f32 0.0, %v6581
  %v6583 = vpop.f32.mrb[0].mxu0
  %6584 = vmatprep.mubr.bf16.mxu0 0
  %6585 = vmatmul.mubr.bf16.gmra.mrb[0].mxu0 %v6331
  %v6586 = vpop.f32.mrb[0].mxu0
  %v6587 = vadd.f32 0.0, %v6586
  %v6588 = vpop.f32.mrb[0].mxu0
  %v6589 = vpop.f32.mrb[0].mxu0
  %v6590 = vadd.f32 0.0, %v6589
  %v6591 = vpop.f32.mrb[0].mxu0
  %6592 = vmatprep.mubr.bf16.mxu0 0
  %6593 = vmatmul.mubr.bf16.gmra.mrb[0].mxu0 %v6332
  %v6594 = vpop.f32.mrb[0].mxu0
  %v6595 = vadd.f32 0.0, %v6594
  %v6596 = vpop.f32.mrb[0].mxu0
  %v6597 = vpop.f32.mrb[0].mxu0
  %v6598 = vadd.f32 0.0, %v6597
  %v6599 = vpop.f32.mrb[0].mxu0
  %6600 = vmatprep.mubr.bf16.mxu0 0
  %6601 = vmatmul.mubr.bf16.gmra.mrb[0].mxu0 %v6333
  %v6602 = vpop.f32.mrb[0].mxu0
  %v6603 = vadd.f32 0.0, %v6602
  %v6604 = vpop.f32.mrb[0].mxu0
  %v6605 = vpop.f32.mrb[0].mxu0
  %v6606 = vadd.f32 0.0, %v6605
  %v6607 = vpop.f32.mrb[0].mxu0
  %6608 = vmatprep.mubr.bf16.mxu0 0
  %6609 = vmatmul.mubr.bf16.gmra.mrb[0].mxu0 %v6334
  %v6610 = vpop.f32.mrb[0].mxu0
  %v6611 = vadd.f32 0.0, %v6610
  %v6612 = vpop.f32.mrb[0].mxu0
  %v6613 = vpop.f32.mrb[0].mxu0
  %v6614 = vadd.f32 0.0, %v6613
  %v6615 = vpop.f32.mrb[0].mxu0
  %6616 = vmatprep.mubr.bf16.mxu0 0
  %6617 = vmatmul.mubr.bf16.gmra.mrb[0].mxu0 %v6335
  %v6618 = vpop.f32.mrb[0].mxu0
  %v6619 = vadd.f32 0.0, %v6618
  %v6620 = vpop.f32.mrb[0].mxu0
  %v6621 = vpop.f32.mrb[0].mxu0
  %v6622 = vadd.f32 0.0, %v6621
  %v6623 = vpop.f32.mrb[0].mxu0
  %6624 = vmatprep.mubr.bf16.mxu0 0
  %6625 = vmatmul.mubr.bf16.gmra.mrb[0].mxu0 %v6336
  %v6626 = vpop.f32.mrb[0].mxu0
  %v6627 = vadd.f32 0.0, %v6626
  %v6628 = vpop.f32.mrb[0].mxu0
  %v6629 = vpop.f32.mrb[0].mxu0
  %v6630 = vadd.f32 0.0, %v6629
  %v6631 = vpop.f32.mrb[0].mxu0
  %6632 = vmatprep.mubr.bf16.mxu0 0
  %6633 = vmatmul.mubr.bf16.gmra.mrb[0].mxu0 %v6337
  %v6634 = vpop.f32.mrb[0].mxu0
  %v6635 = vadd.f32 0.0, %v6634
  %v6636 = vpop.f32.mrb[0].mxu0
  %v6637 = vpop.f32.mrb[0].mxu0
  %v6638 = vadd.f32 0.0, %v6637
  %v6639 = vpop.f32.mrb[0].mxu0
  %6640 = vmatprep.mubr.bf16.mxu0 0
  %6641 = vmatmul.mubr.bf16.gmra.mrb[0].mxu0 %v6338
  %v6642 = vpop.f32.mrb[0].mxu0
  %v6643 = vadd.f32 0.0, %v6642
  %v6644 = vpop.f32.mrb[0].mxu0
  %v6645 = vpop.f32.mrb[0].mxu0
  %v6646 = vadd.f32 0.0, %v6645
  %v6647 = vpop.f32.mrb[0].mxu0
  %6648 = vmatprep.mubr.bf16.mxu0 0
  %6649 = vmatmul.mubr.bf16.gmra.mrb[0].mxu0 %v6339
  %v6650 = vpop.f32.mrb[0].mxu0
  %v6651 = vadd.f32 0.0, %v6650
  %v6652 = vpop.f32.mrb[0].mxu0
  %v6653 = vpop.f32.mrb[0].mxu0
  %v6654 = vadd.f32 0.0, %v6653
  %v6655 = vpop.f32.mrb[0].mxu0
  %6656 = vmatprep.mubr.bf16.mxu0 0
  %6657 = vmatmul.mubr.bf16.gmra.mrb[0].mxu0 %v6340
  %v6658 = vpop.f32.mrb[0].mxu0
  %v6659 = vadd.f32 0.0, %v6658
  %v6660 = vpop.f32.mrb[0].mxu0
  %v6661 = vpop.f32.mrb[0].mxu0
  %v6662 = vadd.f32 0.0, %v6661
  %v6663 = vpop.f32.mrb[0].mxu0
  %6664 = vmatprep.mubr.bf16.mxu0 0
  %6665 = vmatmul.mubr.bf16.gmra.mrb[0].mxu0 %v6341
  %v6666 = vpop.f32.mrb[0].mxu0
  %v6667 = vadd.f32 0.0, %v6666
  %v6668 = vpop.f32.mrb[0].mxu0
  %v6669 = vpop.f32.mrb[0].mxu0
  %v6670 = vadd.f32 0.0, %v6669
  %v6671 = vpop.f32.mrb[0].mxu0
  %6672 = vmatprep.mubr.bf16.mxu0 0
  %6673 = vmatmul.mubr.bf16.gmra.mrb[0].mxu0 %v6342
  %v6674 = vpop.f32.mrb[0].mxu0
  %v6675 = vadd.f32 0.0, %v6674
  %v6676 = vpop.f32.mrb[0].mxu0
  %v6677 = vpop.f32.mrb[0].mxu0
  %v6678 = vadd.f32 0.0, %v6677
  %v6679 = vpop.f32.mrb[0].mxu0
  %6680 = vmatprep.mubr.bf16.mxu0 0
  %6681 = vmatmul.mubr.bf16.gmra.mrb[0].mxu0 %v6343
  %v6682 = vpop.f32.mrb[0].mxu0
  %v6683 = vadd.f32 0.0, %v6682
  %v6684 = vpop.f32.mrb[0].mxu0
  %v6685 = vpop.f32.mrb[0].mxu0
  %v6686 = vadd.f32 0.0, %v6685
  %v6687 = vpop.f32.mrb[0].mxu0
  %6688 = vmatprep.mubr.bf16.mxu0 0
  %6689 = vmatmul.mubr.bf16.gmra.mrb[0].mxu0 %v6344
  %v6690 = vpop.f32.mrb[0].mxu0
  %v6691 = vadd.f32 0.0, %v6690
  %v6692 = vpop.f32.mrb[0].mxu0
  %v6693 = vpop.f32.mrb[0].mxu0
  %v6694 = vadd.f32 0.0, %v6693
  %v6695 = vpop.f32.mrb[0].mxu0
  %6696 = vmatprep.mubr.bf16.mxu0 0
  %6697 = vmatmul.mubr.bf16.gmra.mrb[0].mxu0 %v6345
  %v6698 = vpop.f32.mrb[0].mxu0
  %v6699 = vadd.f32 0.0, %v6698
  %v6700 = vpop.f32.mrb[0].mxu0
  %v6701 = vpop.f32.mrb[0].mxu0
  %v6702 = vadd.f32 0.0, %v6701
  %v6703 = vpop.f32.mrb[0].mxu0
  %6704 = vmatprep.mubr.bf16.mxu0 0
  %6705 = vmatmul.mubr.bf16.gmra.mrb[0].mxu0 %v6346
  %v6706 = vpop.f32.mrb[0].mxu0
  %v6707 = vadd.f32 0.0, %v6706
  %v6708 = vpop.f32.mrb[0].mxu0
  %v6709 = vpop.f32.mrb[0].mxu0
  %v6710 = vadd.f32 0.0, %v6709
  %v6711 = vpop.f32.mrb[0].mxu0
  %6712 = vmatprep.mubr.bf16.mxu0 0
  %6713 = vmatmul.mubr.bf16.gmra.mrb[0].mxu0 %v6347
  %v6714 = vpop.f32.mrb[0].mxu0
  %v6715 = vadd.f32 0.0, %v6714
  %v6716 = vpop.f32.mrb[0].mxu0
  %v6717 = vpop.f32.mrb[0].mxu0
  %v6718 = vadd.f32 0.0, %v6717
  %v6719 = vpop.f32.mrb[0].mxu0
  %6720 = vmatprep.mubr.bf16.mxu0 0
  %6721 = vmatmul.mubr.bf16.gmra.mrb[0].mxu0 %v6348
  %v6722 = vpop.f32.mrb[0].mxu0
  %v6723 = vadd.f32 0.0, %v6722
  %v6724 = vpop.f32.mrb[0].mxu0
  %v6725 = vpop.f32.mrb[0].mxu0
  %v6726 = vadd.f32 0.0, %v6725
  %v6727 = vpop.f32.mrb[0].mxu0
  %6728 = vmatprep.mubr.bf16.mxu0 0
  %6729 = vmatmul.mubr.bf16.gmra.mrb[0].mxu0 %v6349
  %v6730 = vpop.f32.mrb[0].mxu0
  %v6731 = vadd.f32 0.0, %v6730
  %v6732 = vpop.f32.mrb[0].mxu0
  %v6733 = vpop.f32.mrb[0].mxu0
  %v6734 = vadd.f32 0.0, %v6733
  %v6735 = vpop.f32.mrb[0].mxu0
  %6736 = vmatprep.mubr.bf16.mxu0 0
  %6737 = vmatmul.mubr.bf16.gmra.mrb[0].mxu0 %v6350
  %v6738 = vpop.f32.mrb[0].mxu0
  %v6739 = vadd.f32 0.0, %v6738
  %v6740 = vpop.f32.mrb[0].mxu0
  %v6741 = vpop.f32.mrb[0].mxu0
  %v6742 = vadd.f32 0.0, %v6741
  %v6743 = vpop.f32.mrb[0].mxu0
  %6744 = vmatprep.mubr.bf16.mxu0 0
  %6745 = vmatmul.mubr.bf16.gmra.mrb[0].mxu0 %v6351
  %v6746 = vpop.f32.mrb[0].mxu0
  %v6747 = vadd.f32 0.0, %v6746
  %v6748 = vpop.f32.mrb[0].mxu0
  %v6749 = vpop.f32.mrb[0].mxu0
  %v6750 = vadd.f32 0.0, %v6749
  %v6751 = vpop.f32.mrb[0].mxu0
  %6752 = vmatprep.mubr.bf16.mxu0 0
  %6753 = vmatmul.mubr.bf16.gmra.mrb[0].mxu0 %v6352
  %v6754 = vpop.f32.mrb[0].mxu0
  %v6755 = vadd.f32 0.0, %v6754
  %v6756 = vpop.f32.mrb[0].mxu0
  %v6757 = vpop.f32.mrb[0].mxu0
  %v6758 = vadd.f32 0.0, %v6757
  %v6759 = vpop.f32.mrb[0].mxu0
  %6760 = vmatprep.mubr.bf16.mxu0 0
  %6761 = vmatmul.mubr.bf16.gmra.mrb[0].mxu0 %v6353
  %v6762 = vpop.f32.mrb[0].mxu0
  %v6763 = vadd.f32 0.0, %v6762
  %v6764 = vpop.f32.mrb[0].mxu0
  %v6765 = vpop.f32.mrb[0].mxu0
  %v6766 = vadd.f32 0.0, %v6765
  %v6767 = vpop.f32.mrb[0].mxu0
  %6768 = vmatprep.mubr.bf16.mxu0 0
  %6769 = vmatmul.mubr.bf16.gmra.mrb[0].mxu0 %v6354
  %v6770 = vpop.f32.mrb[0].mxu0
  %v6771 = vadd.f32 0.0, %v6770
  %v6772 = vpop.f32.mrb[0].mxu0
  %v6773 = vpop.f32.mrb[0].mxu0
  %v6774 = vadd.f32 0.0, %v6773
  %v6775 = vpop.f32.mrb[0].mxu0
  %6776 = vmatprep.mubr.bf16.mxu0 0
  %6777 = vmatmul.mubr.bf16.gmra.mrb[0].mxu0 %v6355
  %v6778 = vpop.f32.mrb[0].mxu0
  %v6779 = vadd.f32 0.0, %v6778
  %v6780 = vpop.f32.mrb[0].mxu0
  %v6781 = vpop.f32.mrb[0].mxu0
  %v6782 = vadd.f32 0.0, %v6781
  %v6783 = vpop.f32.mrb[0].mxu0
  %6784 = vmatprep.mubr.bf16.mxu0 0
  %6785 = vmatmul.mubr.bf16.gmra.mrb[0].mxu0 %v6356
  %v6786 = vpop.f32.mrb[0].mxu0
  %v6787 = vadd.f32 0.0, %v6786
  %v6788 = vpop.f32.mrb[0].mxu0
  %v6789 = vpop.f32.mrb[0].mxu0
  %v6790 = vadd.f32 0.0, %v6789
  %v6791 = vpop.f32.mrb[0].mxu0
  %6792 = vmatprep.mubr.bf16.mxu0 0
  %6793 = vmatmul.mubr.bf16.gmra.mrb[0].mxu0 %v6357
  %v6794 = vpop.f32.mrb[0].mxu0
  %v6795 = vadd.f32 0.0, %v6794
  %v6796 = vpop.f32.mrb[0].mxu0
  %v6797 = vpop.f32.mrb[0].mxu0
  %v6798 = vadd.f32 0.0, %v6797
  %v6799 = vpop.f32.mrb[0].mxu0
  %6800 = vmatprep.mubr.bf16.mxu0 0
  %6801 = vmatmul.mubr.bf16.gmra.mrb[0].mxu0 %v6358
  %v6802 = vpop.f32.mrb[0].mxu0
  %v6803 = vadd.f32 0.0, %v6802
  %v6804 = vpop.f32.mrb[0].mxu0
  %v6805 = vpop.f32.mrb[0].mxu0
  %v6806 = vpop.f32.mrb[0].mxu0
  %6807 = vdwg.mxu0
  %v6808 = vadd.f32 %v6220, %v6483
  %v6809 = vadd.f32 %v6221, %v6486
  %v6810 = vadd.f32 %v6222, %v6491
  %v6811 = vadd.f32 %v6223, %v6494
  %v6812 = vadd.f32 %v6224, %v6499
  %v6813 = vadd.f32 %v6225, %v6502
  %v6814 = vadd.f32 %v6226, %v6507
  %v6815 = vadd.f32 %v6227, %v6510
  %v6816 = vadd.f32 %v6228, %v6515
  %v6817 = vadd.f32 %v6229, %v6518
  %v6818 = vadd.f32 %v6230, %v6523
  %v6819 = vadd.f32 %v6231, %v6526
  %v6820 = vadd.f32 %v6232, %v6531
  %v6821 = vadd.f32 %v6233, %v6534
  %v6822 = vadd.f32 %v6234, %v6539
  %v6823 = vadd.f32 %v6235, %v6542
  %v6824 = vadd.f32 %v6236, %v6547
  %v6825 = vadd.f32 %v6237, %v6550
  %v6826 = vadd.f32 %v6238, %v6555
  %v6827 = vadd.f32 %v6239, %v6558
  %v6828 = vadd.f32 %v6240, %v6563
  %v6829 = vadd.f32 %v6241, %v6566
  %v6830 = vadd.f32 %v6242, %v6571
  %v6831 = vadd.f32 %v6243, %v6574
  %v6832 = vadd.f32 %v6244, %v6579
  %v6833 = vadd.f32 %v6245, %v6582
  %v6834 = vadd.f32 %v6246, %v6587
  %v6835 = vadd.f32 %v6247, %v6590
  %v6836 = vadd.f32 %v6248, %v6595
  %v6837 = vadd.f32 %v6249, %v6598
  %v6838 = vadd.f32 %v6250, %v6603
  %v6839 = vadd.f32 %v6251, %v6606
  %v6840 = vadd.f32 %v6252, %v6611
  %v6841 = vadd.f32 %v6253, %v6614
  %v6842 = vadd.f32 %v6254, %v6619
  %v6843 = vadd.f32 %v6255, %v6622
  %v6844 = vadd.f32 %v6256, %v6627
  %v6845 = vadd.f32 %v6257, %v6630
  %v6846 = vadd.f32 %v6258, %v6635
  %v6847 = vadd.f32 %v6259, %v6638
  %v6848 = vadd.f32 %v6260, %v6643
  %v6849 = vadd.f32 %v6261, %v6646
  %v6850 = vadd.f32 %v6262, %v6651
  %v6851 = vadd.f32 %v6263, %v6654
  %v6852 = vadd.f32 %v6264, %v6659
  %v6853 = vadd.f32 %v6265, %v6662
  %v6854 = vadd.f32 %v6266, %v6667
  %v6855 = vadd.f32 %v6267, %v6670
  %v6856 = vadd.f32 %v6268, %v6675
  %v6857 = vadd.f32 %v6269, %v6678
  %v6858 = vadd.f32 %v6270, %v6683
  %v6859 = vadd.f32 %v6271, %v6686
  %v6860 = vadd.f32 %v6272, %v6691
  %v6861 = vadd.f32 %v6273, %v6694
  %v6862 = vadd.f32 %v6274, %v6699
  %v6863 = vadd.f32 %v6275, %v6702
  %v6864 = vadd.f32 %v6276, %v6707
  %v6865 = vadd.f32 %v6277, %v6710
  %v6866 = vadd.f32 %v6278, %v6715
  %v6867 = vadd.f32 %v6279, %v6718
  %v6868 = vadd.f32 %v6280, %v6723
  %v6869 = vadd.f32 %v6281, %v6726
  %v6870 = vadd.f32 %v6282, %v6731
  %v6871 = vadd.f32 %v6283, %v6734
  %v6872 = vadd.f32 %v6284, %v6739
  %v6873 = vadd.f32 %v6285, %v6742
  %v6874 = vadd.f32 %v6286, %v6747
  %v6875 = vadd.f32 %v6287, %v6750
  %v6876 = vadd.f32 %v6288, %v6755
  %v6877 = vadd.f32 %v6289, %v6758
  %v6878 = vadd.f32 %v6290, %v6763
  %v6879 = vadd.f32 %v6291, %v6766
  %v6880 = vadd.f32 %v6292, %v6771
  %v6881 = vadd.f32 %v6293, %v6774
  %v6882 = vadd.f32 %v6294, %v6779
  %v6883 = vadd.f32 %v6295, %v6782
  %v6884 = vadd.f32 %v6296, %v6787
  %v6885 = vadd.f32 %v6297, %v6790
  %v6886 = vadd.f32 %v6298, %v6795
  %v6887 = vadd.f32 %v6299, %v6798
  %v6888 = vadd.f32 %v6300, %v6803
  %v6889 = vld [vmem:[#allocation2 + $0xc] sm:$0xf]
  %v6890 = vld [vmem:[#allocation2 + $0x10] sm:$0xf]
  %v6891 = vld [vmem:[#allocation2 + $0x14] sm:$0xf]
  %v6892 = vld [vmem:[#allocation2 + $0x18] sm:$0xf]
  %v6893 = vld [vmem:[#allocation2 + $0x1c] sm:$0xf]
  %v6894 = vld [vmem:[#allocation2 + $0x20] sm:$0xf]
  %v6895 = vld [vmem:[#allocation2 + $0x24] sm:$0xf]
  %v6896 = vld [vmem:[#allocation2 + $0x28] sm:$0xf]
  %v6897 = vld [vmem:[#allocation2 + $0x2c] sm:$0xf]
  %v6898 = vld [vmem:[#allocation2 + $0x30] sm:$0xf]
  %v6899 = vld [vmem:[#allocation2 + $0x34] sm:$0xf]
  %v6900 = vld [vmem:[#allocation2 + $0x38] sm:$0xf]
  %v6901 = vld [vmem:[#allocation2 + $0x3c] sm:$0xf]
  %v6902 = vld [vmem:[#allocation2 + $0x40] sm:$0xf]
  %v6903 = vld [vmem:[#allocation2 + $0x44] sm:$0xf]
  %v6904 = vld [vmem:[#allocation2 + $0x48] sm:$0xf]
  %v6905 = vld [vmem:[#allocation2 + $0x4c] sm:$0xf]
  %v6906 = vld [vmem:[#allocation2 + $0x50] sm:$0xf]
  %v6907 = vld [vmem:[#allocation2 + $0x54] sm:$0xf]
  %v6908 = vld [vmem:[#allocation2 + $0x58] sm:$0xf]
  %v6909 = vld [vmem:[#allocation2 + $0x5c] sm:$0xf]
  %v6910 = vld [vmem:[#allocation2 + $0x60] sm:$0xf]
  %v6911 = vld [vmem:[#allocation2 + $0x64] sm:$0xf]
  %v6912 = vld [vmem:[#allocation2 + $0x68] sm:$0xf]
  %v6913 = vld [vmem:[#allocation2 + $0x6c] sm:$0xf]
  %v6914 = vld [vmem:[#allocation2 + $0x70] sm:$0xf]
  %v6915 = vld [vmem:[#allocation2 + $0x74] sm:$0xf]
  %v6916 = vld [vmem:[#allocation2 + $0x78] sm:$0xf]
  %v6917 = vld [vmem:[#allocation2 + $0x7c] sm:$0xf]
  %v6918 = vld [vmem:[#allocation2 + $0x80] sm:$0xf]
  %v6919 = vld [vmem:[#allocation2 + $0x84] sm:$0xf]
  %v6920 = vld [vmem:[#allocation2 + $0x88] sm:$0xf]
  %v6921 = vld [vmem:[#allocation2 + $0x8c] sm:$0xf]
  %v6922 = vld [vmem:[#allocation2 + $0x90] sm:$0xf]
  %v6923 = vld [vmem:[#allocation2 + $0x94] sm:$0xf]
  %v6924 = vld [vmem:[#allocation2 + $0x98] sm:$0xf]
  %v6925 = vld [vmem:[#allocation2 + $0x9c] sm:$0xf]
  %v6926 = vld [vmem:[#allocation2 + $0xa0] sm:$0xf]
  %v6927 = vld [vmem:[#allocation2 + $0xa4] sm:$0xf]
  %v6928 = vld [vmem:[#allocation2 + $0xa8] sm:$0xf]
  %v6929 = vld [vmem:[#allocation2 + $0xac] sm:$0xf]
  %v6930 = vld [vmem:[#allocation2 + $0xb0] sm:$0xf]
  %v6931 = vld [vmem:[#allocation2 + $0xb4] sm:$0xf]
  %v6932 = vld [vmem:[#allocation2 + $0xb8] sm:$0xf]
  %v6933 = vld [vmem:[#allocation2 + $0xbc] sm:$0xf]
  %v6934 = vld [vmem:[#allocation2 + $0xc0] sm:$0xf]
  %v6935 = vld [vmem:[#allocation2 + $0xc4] sm:$0xf]
  %v6936 = vld [vmem:[#allocation2 + $0xc8] sm:$0xf]
  %v6937 = vld [vmem:[#allocation2 + $0xcc] sm:$0xf]
  %v6938 = vld [vmem:[#allocation2 + $0xd0] sm:$0xf]
  %v6939 = vld [vmem:[#allocation2 + $0xd4] sm:$0xf]
  %v6940 = vld [vmem:[#allocation2 + $0xd8] sm:$0xf]
  %v6941 = vld [vmem:[#allocation2 + $0xdc] sm:$0xf]
  %v6942 = vld [vmem:[#allocation2 + $0xe0] sm:$0xf]
  %v6943 = vld [vmem:[#allocation2 + $0xe4] sm:$0xf]
  %v6944 = vld [vmem:[#allocation2 + $0xe8] sm:$0xf]
  %v6945 = vld [vmem:[#allocation2 + $0xec] sm:$0xf]
  %v6946 = vld [vmem:[#allocation2 + $0xf0] sm:$0xf]
  %v6947 = vld [vmem:[#allocation2 + $0xf4] sm:$0xf]
  %v6948 = vld [vmem:[#allocation2 + $0xf8] sm:$0xf]
  %v6949 = vld [vmem:[#allocation2 + $0xfc] sm:$0xf]
  %v6950 = vld [vmem:[#allocation2 + $0x100] sm:$0xf]
  %v6951 = vld [vmem:[#allocation2 + $0x104] sm:$0xf]
  %v6952 = vld [vmem:[#allocation2 + $0x108] sm:$0xf]
  %v6953 = vld [vmem:[#allocation2 + $0x10c] sm:$0xf]
  %v6954 = vld [vmem:[#allocation2 + $0x110] sm:$0xf]
  %v6955 = vld [vmem:[#allocation2 + $0x114] sm:$0xf]
  %v6956 = vld [vmem:[#allocation2 + $0x118] sm:$0xf]
  %v6957 = vld [vmem:[#allocation2 + $0x11c] sm:$0xf]
  %v6958 = vld [vmem:[#allocation2 + $0x120] sm:$0xf]
  %v6959 = vld [vmem:[#allocation2 + $0x124] sm:$0xf]
  %v6960 = vld [vmem:[#allocation2 + $0x128] sm:$0xf]
  %v6961 = vld [vmem:[#allocation2 + $0x12c] sm:$0xf]
  %v6962 = vld [vmem:[#allocation2 + $0x130] sm:$0xf]
  %v6963 = vld [vmem:[#allocation2 + $0x134] sm:$0xf]
  %v6964 = vld [vmem:[#allocation2 + $0x138] sm:$0xf]
  %v6965 = vld [vmem:[#allocation2 + $0x13c] sm:$0xf]
  %v6966 = vld [vmem:[#allocation2 + $0x140] sm:$0xf]
  %v6967 = vld [vmem:[#allocation2 + $0x144] sm:$0xf]
  %v6968 = vld [vmem:[#allocation2 + $0x148] sm:$0xf]
  %v6969 = vld [vmem:[#allocation2 + $0x14c] sm:$0xf]
  %v6970 = vld [vmem:[#allocation2 + $0x150] sm:$0x1]
  %s6971 = scalar_lea.vmem %s4, 320
  %v6972 = vld [vmem:[%s6971] sm:$0xf]
  %v6973 = vld [vmem:[%s6971 + $0x4] sm:$0xf]
  %v6974 = vld [vmem:[%s6971 + $0x8] sm:$0xf]
  %v6975 = vld [vmem:[%s6971 + $0xc] sm:$0xf]
  %v6976 = vld [vmem:[%s6971 + $0x10] sm:$0xf]
  %v6977 = vld [vmem:[%s6971 + $0x14] sm:$0xf]
  %v6978 = vld [vmem:[%s6971 + $0x18] sm:$0xf]
  %v6979 = vld [vmem:[%s6971 + $0x1c] sm:$0xf]
  %v6980 = vld [vmem:[%s6971 + $0x20] sm:$0xf]
  %v6981 = vld [vmem:[%s6971 + $0x24] sm:$0xf]
  %v6982 = vld [vmem:[%s6971 + $0x28] sm:$0xf]
  %v6983 = vld [vmem:[%s6971 + $0x2c] sm:$0xf]
  %v6984 = vld [vmem:[%s6971 + $0x30] sm:$0xf]
  %v6985 = vld [vmem:[%s6971 + $0x34] sm:$0xf]
  %v6986 = vld [vmem:[%s6971 + $0x38] sm:$0xf]
  %v6987 = vld [vmem:[%s6971 + $0x3c] sm:$0xf]
  %v7070 = vunpack.c.l.b16 %v6889
  %v7071 = vunpack.c.l.b16 %v6890
  %v7072 = vunpack.c.l.b16 %v6891
  %v7073 = vunpack.c.l.b16 %v6892
  %v7074 = vunpack.c.l.b16 %v6893
  %v7075 = vunpack.c.l.b16 %v6894
  %v7076 = vunpack.c.l.b16 %v6895
  %v7077 = vunpack.c.l.b16 %v6896
  %v7078 = vunpack.c.l.b16 %v6897
  %v7079 = vunpack.c.l.b16 %v6898
  %v7080 = vunpack.c.l.b16 %v6899
  %v7081 = vunpack.c.l.b16 %v6900
  %v7082 = vunpack.c.l.b16 %v6901
  %v7083 = vunpack.c.l.b16 %v6902
  %v7084 = vunpack.c.l.b16 %v6903
  %v7085 = vunpack.c.l.b16 %v6904
  %v7086 = vunpack.c.l.b16 %v6905
  %v7087 = vunpack.c.l.b16 %v6906
  %v7088 = vunpack.c.l.b16 %v6907
  %v7089 = vunpack.c.l.b16 %v6908
  %v7090 = vunpack.c.l.b16 %v6909
  %v7091 = vunpack.c.l.b16 %v6910
  %v7092 = vunpack.c.l.b16 %v6911
  %v7093 = vunpack.c.l.b16 %v6912
  %v7094 = vunpack.c.l.b16 %v6913
  %v7095 = vunpack.c.l.b16 %v6914
  %v7096 = vunpack.c.l.b16 %v6915
  %v7097 = vunpack.c.l.b16 %v6916
  %v7098 = vunpack.c.l.b16 %v6917
  %v7099 = vunpack.c.l.b16 %v6918
  %v7100 = vunpack.c.l.b16 %v6919
  %v7101 = vunpack.c.l.b16 %v6920
  %v7102 = vunpack.c.l.b16 %v6921
  %v7103 = vunpack.c.l.b16 %v6922
  %v7104 = vunpack.c.l.b16 %v6923
  %v7105 = vunpack.c.l.b16 %v6924
  %v7106 = vunpack.c.l.b16 %v6925
  %v7107 = vunpack.c.l.b16 %v6926
  %v7108 = vunpack.c.l.b16 %v6927
  %v7109 = vunpack.c.l.b16 %v6928
  %v7110 = vunpack.c.l.b16 %v6929
  %v7111 = vunpack.c.l.b16 %v6930
  %v7112 = vunpack.c.l.b16 %v6931
  %v7113 = vunpack.c.l.b16 %v6932
  %v7114 = vunpack.c.l.b16 %v6933
  %v7115 = vunpack.c.l.b16 %v6934
  %v7116 = vunpack.c.l.b16 %v6935
  %v7117 = vunpack.c.l.b16 %v6936
  %v7118 = vunpack.c.l.b16 %v6937
  %v7119 = vunpack.c.l.b16 %v6938
  %v7120 = vunpack.c.l.b16 %v6939
  %v7121 = vunpack.c.l.b16 %v6940
  %v7122 = vunpack.c.l.b16 %v6941
  %v7123 = vunpack.c.l.b16 %v6942
  %v7124 = vunpack.c.l.b16 %v6943
  %v7125 = vunpack.c.l.b16 %v6944
  %v7126 = vunpack.c.l.b16 %v6945
  %v7127 = vunpack.c.l.b16 %v6946
  %v7128 = vunpack.c.l.b16 %v6947
  %v7129 = vunpack.c.l.b16 %v6948
  %v7130 = vunpack.c.l.b16 %v6949
  %v7131 = vunpack.c.l.b16 %v6950
  %v7132 = vunpack.c.l.b16 %v6951
  %v7133 = vunpack.c.l.b16 %v6952
  %v7134 = vunpack.c.l.b16 %v6953
  %v7135 = vunpack.c.l.b16 %v6954
  %v7136 = vunpack.c.l.b16 %v6955
  %v7137 = vunpack.c.l.b16 %v6956
  %v7138 = vunpack.c.l.b16 %v6957
  %v7139 = vunpack.c.l.b16 %v6958
  %v7140 = vunpack.c.l.b16 %v6959
  %v7141 = vunpack.c.l.b16 %v6960
  %v7142 = vunpack.c.l.b16 %v6961
  %v7143 = vunpack.c.l.b16 %v6962
  %v7144 = vunpack.c.l.b16 %v6963
  %v7145 = vunpack.c.l.b16 %v6964
  %v7146 = vunpack.c.l.b16 %v6965
  %v7147 = vunpack.c.l.b16 %v6966
  %v7148 = vunpack.c.l.b16 %v6967
  %v7149 = vunpack.c.l.b16 %v6968
  %v7150 = vunpack.c.l.b16 %v6969
  %v7151 = vunpack.c.l.b16 %v6970
  %v7152 = vpack.c.b16 %v7071, %v7070
  %v7153 = vpack.c.b16 %v7073, %v7072
  %v7154 = vpack.c.b16 %v7075, %v7074
  %v7155 = vpack.c.b16 %v7077, %v7076
  %v7156 = vpack.c.b16 %v7079, %v7078
  %v7157 = vpack.c.b16 %v7081, %v7080
  %v7158 = vpack.c.b16 %v7083, %v7082
  %v7159 = vpack.c.b16 %v7085, %v7084
  %v7160 = vpack.c.b16 %v7087, %v7086
  %v7161 = vpack.c.b16 %v7089, %v7088
  %v7162 = vpack.c.b16 %v7091, %v7090
  %v7163 = vpack.c.b16 %v7093, %v7092
  %v7164 = vpack.c.b16 %v7095, %v7094
  %v7165 = vpack.c.b16 %v7097, %v7096
  %v7166 = vpack.c.b16 %v7099, %v7098
  %v7167 = vpack.c.b16 %v7101, %v7100
  %v7168 = vpack.c.b16 %v7103, %v7102
  %v7169 = vpack.c.b16 %v7105, %v7104
  %v7170 = vpack.c.b16 %v7107, %v7106
  %v7171 = vpack.c.b16 %v7109, %v7108
  %v7172 = vpack.c.b16 %v7111, %v7110
  %v7173 = vpack.c.b16 %v7113, %v7112
  %v7174 = vpack.c.b16 %v7115, %v7114
  %v7175 = vpack.c.b16 %v7117, %v7116
  %v7176 = vpack.c.b16 %v7119, %v7118
  %v7177 = vpack.c.b16 %v7121, %v7120
  %v7178 = vpack.c.b16 %v7123, %v7122
  %v7179 = vpack.c.b16 %v7125, %v7124
  %v7180 = vpack.c.b16 %v7127, %v7126
  %v7181 = vpack.c.b16 %v7129, %v7128
  %v7182 = vpack.c.b16 %v7131, %v7130
  %v7183 = vpack.c.b16 %v7133, %v7132
  %v7184 = vpack.c.b16 %v7135, %v7134
  %v7185 = vpack.c.b16 %v7137, %v7136
  %v7186 = vpack.c.b16 %v7139, %v7138
  %v7187 = vpack.c.b16 %v7141, %v7140
  %v7188 = vpack.c.b16 %v7143, %v7142
  %v7189 = vpack.c.b16 %v7145, %v7144
  %v7190 = vpack.c.b16 %v7147, %v7146
  %v7191 = vpack.c.b16 %v7149, %v7148
  %v7192 = vpack.c.b16 %v7151, %v7150
  %vm7193 = vsmask.f32 7424
  %v7195 = vshrl.u32 %v7152, 16
  %v7197 = vshll.u32 %v7152, 16
  %v7199 = vrot.slane %v7197, 1
  %v7200 = vor.u32 %v7195, %v7199
  %v7202 = vshll.u32 %v7153, 16
  %v7204 = vrot.slane %v7202, 1
  %v7205 = vsel %vm7193, %v7200, %v7204
  %v7206 = vshrl.u32 %v7153, 16
  %v7208 = vor.u32 %v7206, %v7204
  %v7210 = vshll.u32 %v7154, 16
  %v7212 = vrot.slane %v7210, 1
  %v7213 = vsel %vm7193, %v7208, %v7212
  %v7214 = vshrl.u32 %v7154, 16
  %v7216 = vor.u32 %v7214, %v7212
  %v7218 = vshll.u32 %v7155, 16
  %v7220 = vrot.slane %v7218, 1
  %v7221 = vsel %vm7193, %v7216, %v7220
  %v7222 = vshrl.u32 %v7155, 16
  %v7224 = vor.u32 %v7222, %v7220
  %v7226 = vshll.u32 %v7156, 16
  %v7228 = vrot.slane %v7226, 1
  %v7229 = vsel %vm7193, %v7224, %v7228
  %v7230 = vshrl.u32 %v7156, 16
  %v7232 = vor.u32 %v7230, %v7228
  %v7234 = vshll.u32 %v7157, 16
  %v7236 = vrot.slane %v7234, 1
  %v7237 = vsel %vm7193, %v7232, %v7236
  %v7238 = vshrl.u32 %v7157, 16
  %v7240 = vor.u32 %v7238, %v7236
  %v7242 = vshll.u32 %v7158, 16
  %v7244 = vrot.slane %v7242, 1
  %v7245 = vsel %vm7193, %v7240, %v7244
  %v7246 = vshrl.u32 %v7158, 16
  %v7248 = vor.u32 %v7246, %v7244
  %v7250 = vshll.u32 %v7159, 16
  %v7252 = vrot.slane %v7250, 1
  %v7253 = vsel %vm7193, %v7248, %v7252
  %v7254 = vshrl.u32 %v7159, 16
  %v7256 = vor.u32 %v7254, %v7252
  %v7258 = vshll.u32 %v7160, 16
  %v7260 = vrot.slane %v7258, 1
  %v7261 = vsel %vm7193, %v7256, %v7260
  %v7262 = vshrl.u32 %v7160, 16
  %v7264 = vor.u32 %v7262, %v7260
  %v7266 = vshll.u32 %v7161, 16
  %v7268 = vrot.slane %v7266, 1
  %v7269 = vsel %vm7193, %v7264, %v7268
  %v7270 = vshrl.u32 %v7161, 16
  %v7272 = vor.u32 %v7270, %v7268
  %v7274 = vshll.u32 %v7162, 16
  %v7276 = vrot.slane %v7274, 1
  %v7277 = vsel %vm7193, %v7272, %v7276
  %v7278 = vshrl.u32 %v7162, 16
  %v7280 = vor.u32 %v7278, %v7276
  %v7282 = vshll.u32 %v7163, 16
  %v7284 = vrot.slane %v7282, 1
  %v7285 = vsel %vm7193, %v7280, %v7284
  %v7286 = vshrl.u32 %v7163, 16
  %v7288 = vor.u32 %v7286, %v7284
  %v7290 = vshll.u32 %v7164, 16
  %v7292 = vrot.slane %v7290, 1
  %v7293 = vsel %vm7193, %v7288, %v7292
  %v7294 = vshrl.u32 %v7164, 16
  %v7296 = vor.u32 %v7294, %v7292
  %v7298 = vshll.u32 %v7165, 16
  %v7300 = vrot.slane %v7298, 1
  %v7301 = vsel %vm7193, %v7296, %v7300
  %v7302 = vshrl.u32 %v7165, 16
  %v7304 = vor.u32 %v7302, %v7300
  %v7306 = vshll.u32 %v7166, 16
  %v7308 = vrot.slane %v7306, 1
  %v7309 = vsel %vm7193, %v7304, %v7308
  %v7310 = vshrl.u32 %v7166, 16
  %v7312 = vor.u32 %v7310, %v7308
  %v7314 = vshll.u32 %v7167, 16
  %v7316 = vrot.slane %v7314, 1
  %v7317 = vsel %vm7193, %v7312, %v7316
  %v7318 = vshrl.u32 %v7167, 16
  %v7320 = vor.u32 %v7318, %v7316
  %v7322 = vshll.u32 %v7168, 16
  %v7324 = vrot.slane %v7322, 1
  %v7325 = vsel %vm7193, %v7320, %v7324
  %v7326 = vshrl.u32 %v7168, 16
  %v7328 = vor.u32 %v7326, %v7324
  %v7330 = vshll.u32 %v7169, 16
  %v7332 = vrot.slane %v7330, 1
  %v7333 = vsel %vm7193, %v7328, %v7332
  %v7334 = vshrl.u32 %v7169, 16
  %v7336 = vor.u32 %v7334, %v7332
  %v7338 = vshll.u32 %v7170, 16
  %v7340 = vrot.slane %v7338, 1
  %v7341 = vsel %vm7193, %v7336, %v7340
  %v7342 = vshrl.u32 %v7170, 16
  %v7344 = vor.u32 %v7342, %v7340
  %v7346 = vshll.u32 %v7171, 16
  %v7348 = vrot.slane %v7346, 1
  %v7349 = vsel %vm7193, %v7344, %v7348
  %v7350 = vshrl.u32 %v7171, 16
  %v7352 = vor.u32 %v7350, %v7348
  %v7354 = vshll.u32 %v7172, 16
  %v7356 = vrot.slane %v7354, 1
  %v7357 = vsel %vm7193, %v7352, %v7356
  %v7358 = vshrl.u32 %v7172, 16
  %v7360 = vor.u32 %v7358, %v7356
  %v7362 = vshll.u32 %v7173, 16
  %v7364 = vrot.slane %v7362, 1
  %v7365 = vsel %vm7193, %v7360, %v7364
  %v7366 = vshrl.u32 %v7173, 16
  %v7368 = vor.u32 %v7366, %v7364
  %v7370 = vshll.u32 %v7174, 16
  %v7372 = vrot.slane %v7370, 1
  %v7373 = vsel %vm7193, %v7368, %v7372
  %v7374 = vshrl.u32 %v7174, 16
  %v7376 = vor.u32 %v7374, %v7372
  %v7378 = vshll.u32 %v7175, 16
  %v7380 = vrot.slane %v7378, 1
  %v7381 = vsel %vm7193, %v7376, %v7380
  %v7382 = vshrl.u32 %v7175, 16
  %v7384 = vor.u32 %v7382, %v7380
  %v7386 = vshll.u32 %v7176, 16
  %v7388 = vrot.slane %v7386, 1
  %v7389 = vsel %vm7193, %v7384, %v7388
  %v7390 = vshrl.u32 %v7176, 16
  %v7392 = vor.u32 %v7390, %v7388
  %v7394 = vshll.u32 %v7177, 16
  %v7396 = vrot.slane %v7394, 1
  %v7397 = vsel %vm7193, %v7392, %v7396
  %v7398 = vshrl.u32 %v7177, 16
  %v7400 = vor.u32 %v7398, %v7396
  %v7402 = vshll.u32 %v7178, 16
  %v7404 = vrot.slane %v7402, 1
  %v7405 = vsel %vm7193, %v7400, %v7404
  %v7406 = vshrl.u32 %v7178, 16
  %v7408 = vor.u32 %v7406, %v7404
  %v7410 = vshll.u32 %v7179, 16
  %v7412 = vrot.slane %v7410, 1
  %v7413 = vsel %vm7193, %v7408, %v7412
  %v7414 = vshrl.u32 %v7179, 16
  %v7416 = vor.u32 %v7414, %v7412
  %v7418 = vshll.u32 %v7180, 16
  %v7420 = vrot.slane %v7418, 1
  %v7421 = vsel %vm7193, %v7416, %v7420
  %v7422 = vshrl.u32 %v7180, 16
  %v7424 = vor.u32 %v7422, %v7420
  %v7426 = vshll.u32 %v7181, 16
  %v7428 = vrot.slane %v7426, 1
  %v7429 = vsel %vm7193, %v7424, %v7428
  %v7430 = vshrl.u32 %v7181, 16
  %v7432 = vor.u32 %v7430, %v7428
  %v7434 = vshll.u32 %v7182, 16
  %v7436 = vrot.slane %v7434, 1
  %v7437 = vsel %vm7193, %v7432, %v7436
  %v7438 = vshrl.u32 %v7182, 16
  %v7440 = vor.u32 %v7438, %v7436
  %v7442 = vshll.u32 %v7183, 16
  %v7444 = vrot.slane %v7442, 1
  %v7445 = vsel %vm7193, %v7440, %v7444
  %v7446 = vshrl.u32 %v7183, 16
  %v7448 = vor.u32 %v7446, %v7444
  %v7450 = vshll.u32 %v7184, 16
  %v7452 = vrot.slane %v7450, 1
  %v7453 = vsel %vm7193, %v7448, %v7452
  %v7454 = vshrl.u32 %v7184, 16
  %v7456 = vor.u32 %v7454, %v7452
  %v7458 = vshll.u32 %v7185, 16
  %v7460 = vrot.slane %v7458, 1
  %v7461 = vsel %vm7193, %v7456, %v7460
  %v7462 = vshrl.u32 %v7185, 16
  %v7464 = vor.u32 %v7462, %v7460
  %v7466 = vshll.u32 %v7186, 16
  %v7468 = vrot.slane %v7466, 1
  %v7469 = vsel %vm7193, %v7464, %v7468
  %v7470 = vshrl.u32 %v7186, 16
  %v7472 = vor.u32 %v7470, %v7468
  %v7474 = vshll.u32 %v7187, 16
  %v7476 = vrot.slane %v7474, 1
  %v7477 = vsel %vm7193, %v7472, %v7476
  %v7478 = vshrl.u32 %v7187, 16
  %v7480 = vor.u32 %v7478, %v7476
  %v7482 = vshll.u32 %v7188, 16
  %v7484 = vrot.slane %v7482, 1
  %v7485 = vsel %vm7193, %v7480, %v7484
  %v7486 = vshrl.u32 %v7188, 16
  %v7488 = vor.u32 %v7486, %v7484
  %v7490 = vshll.u32 %v7189, 16
  %v7492 = vrot.slane %v7490, 1
  %v7493 = vsel %vm7193, %v7488, %v7492
  %v7494 = vshrl.u32 %v7189, 16
  %v7496 = vor.u32 %v7494, %v7492
  %v7498 = vshll.u32 %v7190, 16
  %v7500 = vrot.slane %v7498, 1
  %v7501 = vsel %vm7193, %v7496, %v7500
  %v7502 = vshrl.u32 %v7190, 16
  %v7504 = vor.u32 %v7502, %v7500
  %v7506 = vshll.u32 %v7191, 16
  %v7508 = vrot.slane %v7506, 1
  %v7509 = vsel %vm7193, %v7504, %v7508
  %v7510 = vshrl.u32 %v7191, 16
  %v7512 = vor.u32 %v7510, %v7508
  %v7514 = vshll.u32 %v7192, 16
  %v7516 = vrot.slane %v7514, 1
  %v7517 = vsel %vm7193, %v7512, %v7516
  %v7518 = vshrl.u32 %v7192, 16
  %v7520 = vor.u32 %v7518, %v7516
  %v7578 = vunpack.c.l.b16 %v6972
  %v7579 = vunpack.c.l.b16 %v6973
  %v7580 = vunpack.c.l.b16 %v6974
  %v7581 = vunpack.c.l.b16 %v6975
  %v7582 = vunpack.c.l.b16 %v6976
  %v7583 = vunpack.c.l.b16 %v6977
  %v7584 = vunpack.c.l.b16 %v6978
  %v7585 = vunpack.c.l.b16 %v6979
  %v7586 = vunpack.c.l.b16 %v6980
  %v7587 = vunpack.c.l.b16 %v6981
  %v7588 = vunpack.c.l.b16 %v6982
  %v7589 = vunpack.c.l.b16 %v6983
  %v7590 = vunpack.c.l.b16 %v6984
  %v7591 = vunpack.c.l.b16 %v6985
  %v7592 = vunpack.c.l.b16 %v6986
  %v7593 = vunpack.c.l.b16 %v6987
  %v7594 = vpack.c.b16 %v7579, %v7578
  %v7595 = vpack.c.b16 %v7581, %v7580
  %v7596 = vpack.c.b16 %v7583, %v7582
  %v7597 = vpack.c.b16 %v7585, %v7584
  %v7598 = vpack.c.b16 %v7587, %v7586
  %v7599 = vpack.c.b16 %v7589, %v7588
  %v7600 = vpack.c.b16 %v7591, %v7590
  %v7601 = vpack.c.b16 %v7593, %v7592
  %7610 = vmatprep.subr.bf16.mxu0 0
  %7611 = vmatpush1.bf16.msra.mxu0 %v7594
  %7612 = vmatprep.subr.bf16.mxu0 0
  %7613 = vmatpush1.bf16.msra.mxu0 %v7595
  %7614 = vmatprep.subr.bf16.mxu0 0
  %7615 = vmatpush1.bf16.msra.mxu0 %v7596
  %7616 = vmatprep.subr.bf16.mxu0 0
  %7617 = vmatpush1.bf16.msra.mxu0 %v7597
  %7618 = vmatprep.subr.bf16.mxu0 0
  %7619 = vmatpush1.bf16.msra.mxu0 %v7598
  %7620 = vmatprep.subr.bf16.mxu0 0
  %7621 = vmatpush1.bf16.msra.mxu0 %v7599
  %7622 = vmatprep.subr.bf16.mxu0 0
  %7623 = vmatpush1.bf16.msra.mxu0 %v7600
  %7624 = vmatprep.subr.bf16.mxu0 0
  %7625 = vmatpush1.bf16.msra.mxu0 %v7601
  %7626 = vmatprep.subr.bf16.mxu0 0
  %7627 = vmatpush1.bf16.msra.mxu0 0
  %7628 = vmatprep.subr.bf16.mxu0 0
  %7629 = vmatpush1.bf16.msra.mxu0 0
  %7630 = vmatprep.subr.bf16.mxu0 0
  %7631 = vmatpush1.bf16.msra.mxu0 0
  %7632 = vmatprep.subr.bf16.mxu0 0
  %7633 = vmatpush1.bf16.msra.mxu0 0
  %7634 = vmatprep.subr.bf16.mxu0 0
  %7635 = vmatpush1.bf16.msra.mxu0 0
  %7636 = vmatprep.subr.bf16.mxu0 0
  %7637 = vmatpush1.bf16.msra.mxu0 0
  %7638 = vmatprep.subr.bf16.mxu0 0
  %7639 = vmatpush1.bf16.msra.mxu0 0
  %7640 = vmatprep.subr.bf16.mxu0 0
  %7641 = vmatpush1.bf16.msra.mxu0 0
  %7642 = vmatprep.mubr.bf16.mxu0 0
  %7643 = vmatmul.mubr.bf16.gmra.mrb[0].mxu0 %v7205
  %v7644 = vpop.f32.mrb[0].mxu0
  %v7645 = vadd.f32 0.0, %v7644
  %v7646 = vpop.f32.mrb[0].mxu0
  %v7647 = vpop.f32.mrb[0].mxu0
  %v7648 = vadd.f32 0.0, %v7647
  %v7649 = vpop.f32.mrb[0].mxu0
  %7650 = vmatprep.mubr.bf16.mxu0 0
  %7651 = vmatmul.mubr.bf16.gmra.mrb[0].mxu0 %v7213
  %v7652 = vpop.f32.mrb[0].mxu0
  %v7653 = vadd.f32 0.0, %v7652
  %v7654 = vpop.f32.mrb[0].mxu0
  %v7655 = vpop.f32.mrb[0].mxu0
  %v7656 = vadd.f32 0.0, %v7655
  %v7657 = vpop.f32.mrb[0].mxu0
  %7658 = vmatprep.mubr.bf16.mxu0 0
  %7659 = vmatmul.mubr.bf16.gmra.mrb[0].mxu0 %v7221
  %v7660 = vpop.f32.mrb[0].mxu0
  %v7661 = vadd.f32 0.0, %v7660
  %v7662 = vpop.f32.mrb[0].mxu0
  %v7663 = vpop.f32.mrb[0].mxu0
  %v7664 = vadd.f32 0.0, %v7663
  %v7665 = vpop.f32.mrb[0].mxu0
  %7666 = vmatprep.mubr.bf16.mxu0 0
  %7667 = vmatmul.mubr.bf16.gmra.mrb[0].mxu0 %v7229
  %v7668 = vpop.f32.mrb[0].mxu0
  %v7669 = vadd.f32 0.0, %v7668
  %v7670 = vpop.f32.mrb[0].mxu0
  %v7671 = vpop.f32.mrb[0].mxu0
  %v7672 = vadd.f32 0.0, %v7671
  %v7673 = vpop.f32.mrb[0].mxu0
  %7674 = vmatprep.mubr.bf16.mxu0 0
  %7675 = vmatmul.mubr.bf16.gmra.mrb[0].mxu0 %v7237
  %v7676 = vpop.f32.mrb[0].mxu0
  %v7677 = vadd.f32 0.0, %v7676
  %v7678 = vpop.f32.mrb[0].mxu0
  %v7679 = vpop.f32.mrb[0].mxu0
  %v7680 = vadd.f32 0.0, %v7679
  %v7681 = vpop.f32.mrb[0].mxu0
  %7682 = vmatprep.mubr.bf16.mxu0 0
  %7683 = vmatmul.mubr.bf16.gmra.mrb[0].mxu0 %v7245
  %v7684 = vpop.f32.mrb[0].mxu0
  %v7685 = vadd.f32 0.0, %v7684
  %v7686 = vpop.f32.mrb[0].mxu0
  %v7687 = vpop.f32.mrb[0].mxu0
  %v7688 = vadd.f32 0.0, %v7687
  %v7689 = vpop.f32.mrb[0].mxu0
  %7690 = vmatprep.mubr.bf16.mxu0 0
  %7691 = vmatmul.mubr.bf16.gmra.mrb[0].mxu0 %v7253
  %v7692 = vpop.f32.mrb[0].mxu0
  %v7693 = vadd.f32 0.0, %v7692
  %v7694 = vpop.f32.mrb[0].mxu0
  %v7695 = vpop.f32.mrb[0].mxu0
  %v7696 = vadd.f32 0.0, %v7695
  %v7697 = vpop.f32.mrb[0].mxu0
  %7698 = vmatprep.mubr.bf16.mxu0 0
  %7699 = vmatmul.mubr.bf16.gmra.mrb[0].mxu0 %v7261
  %v7700 = vpop.f32.mrb[0].mxu0
  %v7701 = vadd.f32 0.0, %v7700
  %v7702 = vpop.f32.mrb[0].mxu0
  %v7703 = vpop.f32.mrb[0].mxu0
  %v7704 = vadd.f32 0.0, %v7703
  %v7705 = vpop.f32.mrb[0].mxu0
  %7706 = vmatprep.mubr.bf16.mxu0 0
  %7707 = vmatmul.mubr.bf16.gmra.mrb[0].mxu0 %v7269
  %v7708 = vpop.f32.mrb[0].mxu0
  %v7709 = vadd.f32 0.0, %v7708
  %v7710 = vpop.f32.mrb[0].mxu0
  %v7711 = vpop.f32.mrb[0].mxu0
  %v7712 = vadd.f32 0.0, %v7711
  %v7713 = vpop.f32.mrb[0].mxu0
  %7714 = vmatprep.mubr.bf16.mxu0 0
  %7715 = vmatmul.mubr.bf16.gmra.mrb[0].mxu0 %v7277
  %v7716 = vpop.f32.mrb[0].mxu0
  %v7717 = vadd.f32 0.0, %v7716
  %v7718 = vpop.f32.mrb[0].mxu0
  %v7719 = vpop.f32.mrb[0].mxu0
  %v7720 = vadd.f32 0.0, %v7719
  %v7721 = vpop.f32.mrb[0].mxu0
  %7722 = vmatprep.mubr.bf16.mxu0 0
  %7723 = vmatmul.mubr.bf16.gmra.mrb[0].mxu0 %v7285
  %v7724 = vpop.f32.mrb[0].mxu0
  %v7725 = vadd.f32 0.0, %v7724
  %v7726 = vpop.f32.mrb[0].mxu0
  %v7727 = vpop.f32.mrb[0].mxu0
  %v7728 = vadd.f32 0.0, %v7727
  %v7729 = vpop.f32.mrb[0].mxu0
  %7730 = vmatprep.mubr.bf16.mxu0 0
  %7731 = vmatmul.mubr.bf16.gmra.mrb[0].mxu0 %v7293
  %v7732 = vpop.f32.mrb[0].mxu0
  %v7733 = vadd.f32 0.0, %v7732
  %v7734 = vpop.f32.mrb[0].mxu0
  %v7735 = vpop.f32.mrb[0].mxu0
  %v7736 = vadd.f32 0.0, %v7735
  %v7737 = vpop.f32.mrb[0].mxu0
  %7738 = vmatprep.mubr.bf16.mxu0 0
  %7739 = vmatmul.mubr.bf16.gmra.mrb[0].mxu0 %v7301
  %v7740 = vpop.f32.mrb[0].mxu0
  %v7741 = vadd.f32 0.0, %v7740
  %v7742 = vpop.f32.mrb[0].mxu0
  %v7743 = vpop.f32.mrb[0].mxu0
  %v7744 = vadd.f32 0.0, %v7743
  %v7745 = vpop.f32.mrb[0].mxu0
  %7746 = vmatprep.mubr.bf16.mxu0 0
  %7747 = vmatmul.mubr.bf16.gmra.mrb[0].mxu0 %v7309
  %v7748 = vpop.f32.mrb[0].mxu0
  %v7749 = vadd.f32 0.0, %v7748
  %v7750 = vpop.f32.mrb[0].mxu0
  %v7751 = vpop.f32.mrb[0].mxu0
  %v7752 = vadd.f32 0.0, %v7751
  %v7753 = vpop.f32.mrb[0].mxu0
  %7754 = vmatprep.mubr.bf16.mxu0 0
  %7755 = vmatmul.mubr.bf16.gmra.mrb[0].mxu0 %v7317
  %v7756 = vpop.f32.mrb[0].mxu0
  %v7757 = vadd.f32 0.0, %v7756
  %v7758 = vpop.f32.mrb[0].mxu0
  %v7759 = vpop.f32.mrb[0].mxu0
  %v7760 = vadd.f32 0.0, %v7759
  %v7761 = vpop.f32.mrb[0].mxu0
  %7762 = vmatprep.mubr.bf16.mxu0 0
  %7763 = vmatmul.mubr.bf16.gmra.mrb[0].mxu0 %v7325
  %v7764 = vpop.f32.mrb[0].mxu0
  %v7765 = vadd.f32 0.0, %v7764
  %v7766 = vpop.f32.mrb[0].mxu0
  %v7767 = vpop.f32.mrb[0].mxu0
  %v7768 = vadd.f32 0.0, %v7767
  %v7769 = vpop.f32.mrb[0].mxu0
  %7770 = vmatprep.mubr.bf16.mxu0 0
  %7771 = vmatmul.mubr.bf16.gmra.mrb[0].mxu0 %v7333
  %v7772 = vpop.f32.mrb[0].mxu0
  %v7773 = vadd.f32 0.0, %v7772
  %v7774 = vpop.f32.mrb[0].mxu0
  %v7775 = vpop.f32.mrb[0].mxu0
  %v7776 = vadd.f32 0.0, %v7775
  %v7777 = vpop.f32.mrb[0].mxu0
  %7778 = vmatprep.mubr.bf16.mxu0 0
  %7779 = vmatmul.mubr.bf16.gmra.mrb[0].mxu0 %v7341
  %v7780 = vpop.f32.mrb[0].mxu0
  %v7781 = vadd.f32 0.0, %v7780
  %v7782 = vpop.f32.mrb[0].mxu0
  %v7783 = vpop.f32.mrb[0].mxu0
  %v7784 = vadd.f32 0.0, %v7783
  %v7785 = vpop.f32.mrb[0].mxu0
  %7786 = vmatprep.mubr.bf16.mxu0 0
  %7787 = vmatmul.mubr.bf16.gmra.mrb[0].mxu0 %v7349
  %v7788 = vpop.f32.mrb[0].mxu0
  %v7789 = vadd.f32 0.0, %v7788
  %v7790 = vpop.f32.mrb[0].mxu0
  %v7791 = vpop.f32.mrb[0].mxu0
  %v7792 = vadd.f32 0.0, %v7791
  %v7793 = vpop.f32.mrb[0].mxu0
  %7794 = vmatprep.mubr.bf16.mxu0 0
  %7795 = vmatmul.mubr.bf16.gmra.mrb[0].mxu0 %v7357
  %v7796 = vpop.f32.mrb[0].mxu0
  %v7797 = vadd.f32 0.0, %v7796
  %v7798 = vpop.f32.mrb[0].mxu0
  %v7799 = vpop.f32.mrb[0].mxu0
  %v7800 = vadd.f32 0.0, %v7799
  %v7801 = vpop.f32.mrb[0].mxu0
  %7802 = vmatprep.mubr.bf16.mxu0 0
  %7803 = vmatmul.mubr.bf16.gmra.mrb[0].mxu0 %v7365
  %v7804 = vpop.f32.mrb[0].mxu0
  %v7805 = vadd.f32 0.0, %v7804
  %v7806 = vpop.f32.mrb[0].mxu0
  %v7807 = vpop.f32.mrb[0].mxu0
  %v7808 = vadd.f32 0.0, %v7807
  %v7809 = vpop.f32.mrb[0].mxu0
  %7810 = vmatprep.mubr.bf16.mxu0 0
  %7811 = vmatmul.mubr.bf16.gmra.mrb[0].mxu0 %v7373
  %v7812 = vpop.f32.mrb[0].mxu0
  %v7813 = vadd.f32 0.0, %v7812
  %v7814 = vpop.f32.mrb[0].mxu0
  %v7815 = vpop.f32.mrb[0].mxu0
  %v7816 = vadd.f32 0.0, %v7815
  %v7817 = vpop.f32.mrb[0].mxu0
  %7818 = vmatprep.mubr.bf16.mxu0 0
  %7819 = vmatmul.mubr.bf16.gmra.mrb[0].mxu0 %v7381
  %v7820 = vpop.f32.mrb[0].mxu0
  %v7821 = vadd.f32 0.0, %v7820
  %v7822 = vpop.f32.mrb[0].mxu0
  %v7823 = vpop.f32.mrb[0].mxu0
  %v7824 = vadd.f32 0.0, %v7823
  %v7825 = vpop.f32.mrb[0].mxu0
  %7826 = vmatprep.mubr.bf16.mxu0 0
  %7827 = vmatmul.mubr.bf16.gmra.mrb[0].mxu0 %v7389
  %v7828 = vpop.f32.mrb[0].mxu0
  %v7829 = vadd.f32 0.0, %v7828
  %v7830 = vpop.f32.mrb[0].mxu0
  %v7831 = vpop.f32.mrb[0].mxu0
  %v7832 = vadd.f32 0.0, %v7831
  %v7833 = vpop.f32.mrb[0].mxu0
  %7834 = vmatprep.mubr.bf16.mxu0 0
  %7835 = vmatmul.mubr.bf16.gmra.mrb[0].mxu0 %v7397
  %v7836 = vpop.f32.mrb[0].mxu0
  %v7837 = vadd.f32 0.0, %v7836
  %v7838 = vpop.f32.mrb[0].mxu0
  %v7839 = vpop.f32.mrb[0].mxu0
  %v7840 = vadd.f32 0.0, %v7839
  %v7841 = vpop.f32.mrb[0].mxu0
  %7842 = vmatprep.mubr.bf16.mxu0 0
  %7843 = vmatmul.mubr.bf16.gmra.mrb[0].mxu0 %v7405
  %v7844 = vpop.f32.mrb[0].mxu0
  %v7845 = vadd.f32 0.0, %v7844
  %v7846 = vpop.f32.mrb[0].mxu0
  %v7847 = vpop.f32.mrb[0].mxu0
  %v7848 = vadd.f32 0.0, %v7847
  %v7849 = vpop.f32.mrb[0].mxu0
  %7850 = vmatprep.mubr.bf16.mxu0 0
  %7851 = vmatmul.mubr.bf16.gmra.mrb[0].mxu0 %v7413
  %v7852 = vpop.f32.mrb[0].mxu0
  %v7853 = vadd.f32 0.0, %v7852
  %v7854 = vpop.f32.mrb[0].mxu0
  %v7855 = vpop.f32.mrb[0].mxu0
  %v7856 = vadd.f32 0.0, %v7855
  %v7857 = vpop.f32.mrb[0].mxu0
  %7858 = vmatprep.mubr.bf16.mxu0 0
  %7859 = vmatmul.mubr.bf16.gmra.mrb[0].mxu0 %v7421
  %v7860 = vpop.f32.mrb[0].mxu0
  %v7861 = vadd.f32 0.0, %v7860
  %v7862 = vpop.f32.mrb[0].mxu0
  %v7863 = vpop.f32.mrb[0].mxu0
  %v7864 = vadd.f32 0.0, %v7863
  %v7865 = vpop.f32.mrb[0].mxu0
  %7866 = vmatprep.mubr.bf16.mxu0 0
  %7867 = vmatmul.mubr.bf16.gmra.mrb[0].mxu0 %v7429
  %v7868 = vpop.f32.mrb[0].mxu0
  %v7869 = vadd.f32 0.0, %v7868
  %v7870 = vpop.f32.mrb[0].mxu0
  %v7871 = vpop.f32.mrb[0].mxu0
  %v7872 = vadd.f32 0.0, %v7871
  %v7873 = vpop.f32.mrb[0].mxu0
  %7874 = vmatprep.mubr.bf16.mxu0 0
  %7875 = vmatmul.mubr.bf16.gmra.mrb[0].mxu0 %v7437
  %v7876 = vpop.f32.mrb[0].mxu0
  %v7877 = vadd.f32 0.0, %v7876
  %v7878 = vpop.f32.mrb[0].mxu0
  %v7879 = vpop.f32.mrb[0].mxu0
  %v7880 = vadd.f32 0.0, %v7879
  %v7881 = vpop.f32.mrb[0].mxu0
  %7882 = vmatprep.mubr.bf16.mxu0 0
  %7883 = vmatmul.mubr.bf16.gmra.mrb[0].mxu0 %v7445
  %v7884 = vpop.f32.mrb[0].mxu0
  %v7885 = vadd.f32 0.0, %v7884
  %v7886 = vpop.f32.mrb[0].mxu0
  %v7887 = vpop.f32.mrb[0].mxu0
  %v7888 = vadd.f32 0.0, %v7887
  %v7889 = vpop.f32.mrb[0].mxu0
  %7890 = vmatprep.mubr.bf16.mxu0 0
  %7891 = vmatmul.mubr.bf16.gmra.mrb[0].mxu0 %v7453
  %v7892 = vpop.f32.mrb[0].mxu0
  %v7893 = vadd.f32 0.0, %v7892
  %v7894 = vpop.f32.mrb[0].mxu0
  %v7895 = vpop.f32.mrb[0].mxu0
  %v7896 = vadd.f32 0.0, %v7895
  %v7897 = vpop.f32.mrb[0].mxu0
  %7898 = vmatprep.mubr.bf16.mxu0 0
  %7899 = vmatmul.mubr.bf16.gmra.mrb[0].mxu0 %v7461
  %v7900 = vpop.f32.mrb[0].mxu0
  %v7901 = vadd.f32 0.0, %v7900
  %v7902 = vpop.f32.mrb[0].mxu0
  %v7903 = vpop.f32.mrb[0].mxu0
  %v7904 = vadd.f32 0.0, %v7903
  %v7905 = vpop.f32.mrb[0].mxu0
  %7906 = vmatprep.mubr.bf16.mxu0 0
  %7907 = vmatmul.mubr.bf16.gmra.mrb[0].mxu0 %v7469
  %v7908 = vpop.f32.mrb[0].mxu0
  %v7909 = vadd.f32 0.0, %v7908
  %v7910 = vpop.f32.mrb[0].mxu0
  %v7911 = vpop.f32.mrb[0].mxu0
  %v7912 = vadd.f32 0.0, %v7911
  %v7913 = vpop.f32.mrb[0].mxu0
  %7914 = vmatprep.mubr.bf16.mxu0 0
  %7915 = vmatmul.mubr.bf16.gmra.mrb[0].mxu0 %v7477
  %v7916 = vpop.f32.mrb[0].mxu0
  %v7917 = vadd.f32 0.0, %v7916
  %v7918 = vpop.f32.mrb[0].mxu0
  %v7919 = vpop.f32.mrb[0].mxu0
  %v7920 = vadd.f32 0.0, %v7919
  %v7921 = vpop.f32.mrb[0].mxu0
  %7922 = vmatprep.mubr.bf16.mxu0 0
  %7923 = vmatmul.mubr.bf16.gmra.mrb[0].mxu0 %v7485
  %v7924 = vpop.f32.mrb[0].mxu0
  %v7925 = vadd.f32 0.0, %v7924
  %v7926 = vpop.f32.mrb[0].mxu0
  %v7927 = vpop.f32.mrb[0].mxu0
  %v7928 = vadd.f32 0.0, %v7927
  %v7929 = vpop.f32.mrb[0].mxu0
  %7930 = vmatprep.mubr.bf16.mxu0 0
  %7931 = vmatmul.mubr.bf16.gmra.mrb[0].mxu0 %v7493
  %v7932 = vpop.f32.mrb[0].mxu0
  %v7933 = vadd.f32 0.0, %v7932
  %v7934 = vpop.f32.mrb[0].mxu0
  %v7935 = vpop.f32.mrb[0].mxu0
  %v7936 = vadd.f32 0.0, %v7935
  %v7937 = vpop.f32.mrb[0].mxu0
  %7938 = vmatprep.mubr.bf16.mxu0 0
  %7939 = vmatmul.mubr.bf16.gmra.mrb[0].mxu0 %v7501
  %v7940 = vpop.f32.mrb[0].mxu0
  %v7941 = vadd.f32 0.0, %v7940
  %v7942 = vpop.f32.mrb[0].mxu0
  %v7943 = vpop.f32.mrb[0].mxu0
  %v7944 = vadd.f32 0.0, %v7943
  %v7945 = vpop.f32.mrb[0].mxu0
  %7946 = vmatprep.mubr.bf16.mxu0 0
  %7947 = vmatmul.mubr.bf16.gmra.mrb[0].mxu0 %v7509
  %v7948 = vpop.f32.mrb[0].mxu0
  %v7949 = vadd.f32 0.0, %v7948
  %v7950 = vpop.f32.mrb[0].mxu0
  %v7951 = vpop.f32.mrb[0].mxu0
  %v7952 = vadd.f32 0.0, %v7951
  %v7953 = vpop.f32.mrb[0].mxu0
  %7954 = vmatprep.mubr.bf16.mxu0 0
  %7955 = vmatmul.mubr.bf16.gmra.mrb[0].mxu0 %v7517
  %v7956 = vpop.f32.mrb[0].mxu0
  %v7957 = vadd.f32 0.0, %v7956
  %v7958 = vpop.f32.mrb[0].mxu0
  %v7959 = vpop.f32.mrb[0].mxu0
  %v7960 = vadd.f32 0.0, %v7959
  %v7961 = vpop.f32.mrb[0].mxu0
  %7962 = vmatprep.mubr.bf16.mxu0 0
  %7963 = vmatmul.mubr.bf16.gmra.mrb[0].mxu0 %v7520
  %v7964 = vpop.f32.mrb[0].mxu0
  %v7965 = vadd.f32 0.0, %v7964
  %v7966 = vpop.f32.mrb[0].mxu0
  %v7967 = vpop.f32.mrb[0].mxu0
  %v7968 = vpop.f32.mrb[0].mxu0
  %7969 = vdwg.mxu0
  %v7970 = vadd.f32 %v6808, %v7645
  %v7971 = vadd.f32 %v6809, %v7648
  %v7972 = vadd.f32 %v6810, %v7653
  %v7973 = vadd.f32 %v6811, %v7656
  %v7974 = vadd.f32 %v6812, %v7661
  %v7975 = vadd.f32 %v6813, %v7664
  %v7976 = vadd.f32 %v6814, %v7669
  %v7977 = vadd.f32 %v6815, %v7672
  %v7978 = vadd.f32 %v6816, %v7677
  %v7979 = vadd.f32 %v6817, %v7680
  %v7980 = vadd.f32 %v6818, %v7685
  %v7981 = vadd.f32 %v6819, %v7688
  %v7982 = vadd.f32 %v6820, %v7693
  %v7983 = vadd.f32 %v6821, %v7696
  %v7984 = vadd.f32 %v6822, %v7701
  %v7985 = vadd.f32 %v6823, %v7704
  %v7986 = vadd.f32 %v6824, %v7709
  %v7987 = vadd.f32 %v6825, %v7712
  %v7988 = vadd.f32 %v6826, %v7717
  %v7989 = vadd.f32 %v6827, %v7720
  %v7990 = vadd.f32 %v6828, %v7725
  %v7991 = vadd.f32 %v6829, %v7728
  %v7992 = vadd.f32 %v6830, %v7733
  %v7993 = vadd.f32 %v6831, %v7736
  %v7994 = vadd.f32 %v6832, %v7741
  %v7995 = vadd.f32 %v6833, %v7744
  %v7996 = vadd.f32 %v6834, %v7749
  %v7997 = vadd.f32 %v6835, %v7752
  %v7998 = vadd.f32 %v6836, %v7757
  %v7999 = vadd.f32 %v6837, %v7760
  %v8000 = vadd.f32 %v6838, %v7765
  %v8001 = vadd.f32 %v6839, %v7768
  %v8002 = vadd.f32 %v6840, %v7773
  %v8003 = vadd.f32 %v6841, %v7776
  %v8004 = vadd.f32 %v6842, %v7781
  %v8005 = vadd.f32 %v6843, %v7784
  %v8006 = vadd.f32 %v6844, %v7789
  %v8007 = vadd.f32 %v6845, %v7792
  %v8008 = vadd.f32 %v6846, %v7797
  %v8009 = vadd.f32 %v6847, %v7800
  %v8010 = vadd.f32 %v6848, %v7805
  %v8011 = vadd.f32 %v6849, %v7808
  %v8012 = vadd.f32 %v6850, %v7813
  %v8013 = vadd.f32 %v6851, %v7816
  %v8014 = vadd.f32 %v6852, %v7821
  %v8015 = vadd.f32 %v6853, %v7824
  %v8016 = vadd.f32 %v6854, %v7829
  %v8017 = vadd.f32 %v6855, %v7832
  %v8018 = vadd.f32 %v6856, %v7837
  %v8019 = vadd.f32 %v6857, %v7840
  %v8020 = vadd.f32 %v6858, %v7845
  %v8021 = vadd.f32 %v6859, %v7848
  %v8022 = vadd.f32 %v6860, %v7853
  %v8023 = vadd.f32 %v6861, %v7856
  %v8024 = vadd.f32 %v6862, %v7861
  %v8025 = vadd.f32 %v6863, %v7864
  %v8026 = vadd.f32 %v6864, %v7869
  %v8027 = vadd.f32 %v6865, %v7872
  %v8028 = vadd.f32 %v6866, %v7877
  %v8029 = vadd.f32 %v6867, %v7880
  %v8030 = vadd.f32 %v6868, %v7885
  %v8031 = vadd.f32 %v6869, %v7888
  %v8032 = vadd.f32 %v6870, %v7893
  %v8033 = vadd.f32 %v6871, %v7896
  %v8034 = vadd.f32 %v6872, %v7901
  %v8035 = vadd.f32 %v6873, %v7904
  %v8036 = vadd.f32 %v6874, %v7909
  %v8037 = vadd.f32 %v6875, %v7912
  %v8038 = vadd.f32 %v6876, %v7917
  %v8039 = vadd.f32 %v6877, %v7920
  %v8040 = vadd.f32 %v6878, %v7925
  %v8041 = vadd.f32 %v6879, %v7928
  %v8042 = vadd.f32 %v6880, %v7933
  %v8043 = vadd.f32 %v6881, %v7936
  %v8044 = vadd.f32 %v6882, %v7941
  %v8045 = vadd.f32 %v6883, %v7944
  %v8046 = vadd.f32 %v6884, %v7949
  %v8047 = vadd.f32 %v6885, %v7952
  %v8048 = vadd.f32 %v6886, %v7957
  %v8049 = vadd.f32 %v6887, %v7960
  %v8050 = vadd.f32 %v6888, %v7965
  %v8051 = vld [vmem:[#allocation2 + $0x14] sm:$0xf]
  %v8052 = vld [vmem:[#allocation2 + $0x18] sm:$0xf]
  %v8053 = vld [vmem:[#allocation2 + $0x1c] sm:$0xf]
  %v8054 = vld [vmem:[#allocation2 + $0x20] sm:$0xf]
  %v8055 = vld [vmem:[#allocation2 + $0x24] sm:$0xf]
  %v8056 = vld [vmem:[#allocation2 + $0x28] sm:$0xf]
  %v8057 = vld [vmem:[#allocation2 + $0x2c] sm:$0xf]
  %v8058 = vld [vmem:[#allocation2 + $0x30] sm:$0xf]
  %v8059 = vld [vmem:[#allocation2 + $0x34] sm:$0xf]
  %v8060 = vld [vmem:[#allocation2 + $0x38] sm:$0xf]
  %v8061 = vld [vmem:[#allocation2 + $0x3c] sm:$0xf]
  %v8062 = vld [vmem:[#allocation2 + $0x40] sm:$0xf]
  %v8063 = vld [vmem:[#allocation2 + $0x44] sm:$0xf]
  %v8064 = vld [vmem:[#allocation2 + $0x48] sm:$0xf]
  %v8065 = vld [vmem:[#allocation2 + $0x4c] sm:$0xf]
  %v8066 = vld [vmem:[#allocation2 + $0x50] sm:$0xf]
  %v8067 = vld [vmem:[#allocation2 + $0x54] sm:$0xf]
  %v8068 = vld [vmem:[#allocation2 + $0x58] sm:$0xf]
  %v8069 = vld [vmem:[#allocation2 + $0x5c] sm:$0xf]
  %v8070 = vld [vmem:[#allocation2 + $0x60] sm:$0xf]
  %v8071 = vld [vmem:[#allocation2 + $0x64] sm:$0xf]
  %v8072 = vld [vmem:[#allocation2 + $0x68] sm:$0xf]
  %v8073 = vld [vmem:[#allocation2 + $0x6c] sm:$0xf]
  %v8074 = vld [vmem:[#allocation2 + $0x70] sm:$0xf]
  %v8075 = vld [vmem:[#allocation2 + $0x74] sm:$0xf]
  %v8076 = vld [vmem:[#allocation2 + $0x78] sm:$0xf]
  %v8077 = vld [vmem:[#allocation2 + $0x7c] sm:$0xf]
  %v8078 = vld [vmem:[#allocation2 + $0x80] sm:$0xf]
  %v8079 = vld [vmem:[#allocation2 + $0x84] sm:$0xf]
  %v8080 = vld [vmem:[#allocation2 + $0x88] sm:$0xf]
  %v8081 = vld [vmem:[#allocation2 + $0x8c] sm:$0xf]
  %v8082 = vld [vmem:[#allocation2 + $0x90] sm:$0xf]
  %v8083 = vld [vmem:[#allocation2 + $0x94] sm:$0xf]
  %v8084 = vld [vmem:[#allocation2 + $0x98] sm:$0xf]
  %v8085 = vld [vmem:[#allocation2 + $0x9c] sm:$0xf]
  %v8086 = vld [vmem:[#allocation2 + $0xa0] sm:$0xf]
  %v8087 = vld [vmem:[#allocation2 + $0xa4] sm:$0xf]
  %v8088 = vld [vmem:[#allocation2 + $0xa8] sm:$0xf]
  %v8089 = vld [vmem:[#allocation2 + $0xac] sm:$0xf]
  %v8090 = vld [vmem:[#allocation2 + $0xb0] sm:$0xf]
  %v8091 = vld [vmem:[#allocation2 + $0xb4] sm:$0xf]
  %v8092 = vld [vmem:[#allocation2 + $0xb8] sm:$0xf]
  %v8093 = vld [vmem:[#allocation2 + $0xbc] sm:$0xf]
  %v8094 = vld [vmem:[#allocation2 + $0xc0] sm:$0xf]
  %v8095 = vld [vmem:[#allocation2 + $0xc4] sm:$0xf]
  %v8096 = vld [vmem:[#allocation2 + $0xc8] sm:$0xf]
  %v8097 = vld [vmem:[#allocation2 + $0xcc] sm:$0xf]
  %v8098 = vld [vmem:[#allocation2 + $0xd0] sm:$0xf]
  %v8099 = vld [vmem:[#allocation2 + $0xd4] sm:$0xf]
  %v8100 = vld [vmem:[#allocation2 + $0xd8] sm:$0xf]
  %v8101 = vld [vmem:[#allocation2 + $0xdc] sm:$0xf]
  %v8102 = vld [vmem:[#allocation2 + $0xe0] sm:$0xf]
  %v8103 = vld [vmem:[#allocation2 + $0xe4] sm:$0xf]
  %v8104 = vld [vmem:[#allocation2 + $0xe8] sm:$0xf]
  %v8105 = vld [vmem:[#allocation2 + $0xec] sm:$0xf]
  %v8106 = vld [vmem:[#allocation2 + $0xf0] sm:$0xf]
  %v8107 = vld [vmem:[#allocation2 + $0xf4] sm:$0xf]
  %v8108 = vld [vmem:[#allocation2 + $0xf8] sm:$0xf]
  %v8109 = vld [vmem:[#allocation2 + $0xfc] sm:$0xf]
  %v8110 = vld [vmem:[#allocation2 + $0x100] sm:$0xf]
  %v8111 = vld [vmem:[#allocation2 + $0x104] sm:$0xf]
  %v8112 = vld [vmem:[#allocation2 + $0x108] sm:$0xf]
  %v8113 = vld [vmem:[#allocation2 + $0x10c] sm:$0xf]
  %v8114 = vld [vmem:[#allocation2 + $0x110] sm:$0xf]
  %v8115 = vld [vmem:[#allocation2 + $0x114] sm:$0xf]
  %v8116 = vld [vmem:[#allocation2 + $0x118] sm:$0xf]
  %v8117 = vld [vmem:[#allocation2 + $0x11c] sm:$0xf]
  %v8118 = vld [vmem:[#allocation2 + $0x120] sm:$0xf]
  %v8119 = vld [vmem:[#allocation2 + $0x124] sm:$0xf]
  %v8120 = vld [vmem:[#allocation2 + $0x128] sm:$0xf]
  %v8121 = vld [vmem:[#allocation2 + $0x12c] sm:$0xf]
  %v8122 = vld [vmem:[#allocation2 + $0x130] sm:$0xf]
  %v8123 = vld [vmem:[#allocation2 + $0x134] sm:$0xf]
  %v8124 = vld [vmem:[#allocation2 + $0x138] sm:$0xf]
  %v8125 = vld [vmem:[#allocation2 + $0x13c] sm:$0xf]
  %v8126 = vld [vmem:[#allocation2 + $0x140] sm:$0xf]
  %v8127 = vld [vmem:[#allocation2 + $0x144] sm:$0xf]
  %v8128 = vld [vmem:[#allocation2 + $0x148] sm:$0xf]
  %v8129 = vld [vmem:[#allocation2 + $0x14c] sm:$0xf]
  %v8130 = vld [vmem:[#allocation2 + $0x150] sm:$0xf]
  %v8131 = vld [vmem:[#allocation2 + $0x154] sm:$0xf]
  %v8132 = vld [vmem:[#allocation2 + $0x158] sm:$0x1]
  %s8133 = scalar_lea.vmem %s4, 384
  %v8134 = vld [vmem:[%s8133] sm:$0xf]
  %v8135 = vld [vmem:[%s8133 + $0x4] sm:$0xf]
  %v8136 = vld [vmem:[%s8133 + $0x8] sm:$0xf]
  %v8137 = vld [vmem:[%s8133 + $0xc] sm:$0xf]
  %v8138 = vld [vmem:[%s8133 + $0x10] sm:$0xf]
  %v8139 = vld [vmem:[%s8133 + $0x14] sm:$0xf]
  %v8140 = vld [vmem:[%s8133 + $0x18] sm:$0xf]
  %v8141 = vld [vmem:[%s8133 + $0x1c] sm:$0xf]
  %v8142 = vld [vmem:[%s8133 + $0x20] sm:$0xf]
  %v8143 = vld [vmem:[%s8133 + $0x24] sm:$0xf]
  %v8144 = vld [vmem:[%s8133 + $0x28] sm:$0xf]
  %v8145 = vld [vmem:[%s8133 + $0x2c] sm:$0xf]
  %v8146 = vld [vmem:[%s8133 + $0x30] sm:$0xf]
  %v8147 = vld [vmem:[%s8133 + $0x34] sm:$0xf]
  %v8148 = vld [vmem:[%s8133 + $0x38] sm:$0xf]
  %v8149 = vld [vmem:[%s8133 + $0x3c] sm:$0xf]
  %v8232 = vunpack.c.l.b16 %v8051
  %v8233 = vunpack.c.l.b16 %v8052
  %v8234 = vunpack.c.l.b16 %v8053
  %v8235 = vunpack.c.l.b16 %v8054
  %v8236 = vunpack.c.l.b16 %v8055
  %v8237 = vunpack.c.l.b16 %v8056
  %v8238 = vunpack.c.l.b16 %v8057
  %v8239 = vunpack.c.l.b16 %v8058
  %v8240 = vunpack.c.l.b16 %v8059
  %v8241 = vunpack.c.l.b16 %v8060
  %v8242 = vunpack.c.l.b16 %v8061
  %v8243 = vunpack.c.l.b16 %v8062
  %v8244 = vunpack.c.l.b16 %v8063
  %v8245 = vunpack.c.l.b16 %v8064
  %v8246 = vunpack.c.l.b16 %v8065
  %v8247 = vunpack.c.l.b16 %v8066
  %v8248 = vunpack.c.l.b16 %v8067
  %v8249 = vunpack.c.l.b16 %v8068
  %v8250 = vunpack.c.l.b16 %v8069
  %v8251 = vunpack.c.l.b16 %v8070
  %v8252 = vunpack.c.l.b16 %v8071
  %v8253 = vunpack.c.l.b16 %v8072
  %v8254 = vunpack.c.l.b16 %v8073
  %v8255 = vunpack.c.l.b16 %v8074
  %v8256 = vunpack.c.l.b16 %v8075
  %v8257 = vunpack.c.l.b16 %v8076
  %v8258 = vunpack.c.l.b16 %v8077
  %v8259 = vunpack.c.l.b16 %v8078
  %v8260 = vunpack.c.l.b16 %v8079
  %v8261 = vunpack.c.l.b16 %v8080
  %v8262 = vunpack.c.l.b16 %v8081
  %v8263 = vunpack.c.l.b16 %v8082
  %v8264 = vunpack.c.l.b16 %v8083
  %v8265 = vunpack.c.l.b16 %v8084
  %v8266 = vunpack.c.l.b16 %v8085
  %v8267 = vunpack.c.l.b16 %v8086
  %v8268 = vunpack.c.l.b16 %v8087
  %v8269 = vunpack.c.l.b16 %v8088
  %v8270 = vunpack.c.l.b16 %v8089
  %v8271 = vunpack.c.l.b16 %v8090
  %v8272 = vunpack.c.l.b16 %v8091
  %v8273 = vunpack.c.l.b16 %v8092
  %v8274 = vunpack.c.l.b16 %v8093
  %v8275 = vunpack.c.l.b16 %v8094
  %v8276 = vunpack.c.l.b16 %v8095
  %v8277 = vunpack.c.l.b16 %v8096
  %v8278 = vunpack.c.l.b16 %v8097
  %v8279 = vunpack.c.l.b16 %v8098
  %v8280 = vunpack.c.l.b16 %v8099
  %v8281 = vunpack.c.l.b16 %v8100
  %v8282 = vunpack.c.l.b16 %v8101
  %v8283 = vunpack.c.l.b16 %v8102
  %v8284 = vunpack.c.l.b16 %v8103
  %v8285 = vunpack.c.l.b16 %v8104
  %v8286 = vunpack.c.l.b16 %v8105
  %v8287 = vunpack.c.l.b16 %v8106
  %v8288 = vunpack.c.l.b16 %v8107
  %v8289 = vunpack.c.l.b16 %v8108
  %v8290 = vunpack.c.l.b16 %v8109
  %v8291 = vunpack.c.l.b16 %v8110
  %v8292 = vunpack.c.l.b16 %v8111
  %v8293 = vunpack.c.l.b16 %v8112
  %v8294 = vunpack.c.l.b16 %v8113
  %v8295 = vunpack.c.l.b16 %v8114
  %v8296 = vunpack.c.l.b16 %v8115
  %v8297 = vunpack.c.l.b16 %v8116
  %v8298 = vunpack.c.l.b16 %v8117
  %v8299 = vunpack.c.l.b16 %v8118
  %v8300 = vunpack.c.l.b16 %v8119
  %v8301 = vunpack.c.l.b16 %v8120
  %v8302 = vunpack.c.l.b16 %v8121
  %v8303 = vunpack.c.l.b16 %v8122
  %v8304 = vunpack.c.l.b16 %v8123
  %v8305 = vunpack.c.l.b16 %v8124
  %v8306 = vunpack.c.l.b16 %v8125
  %v8307 = vunpack.c.l.b16 %v8126
  %v8308 = vunpack.c.l.b16 %v8127
  %v8309 = vunpack.c.l.b16 %v8128
  %v8310 = vunpack.c.l.b16 %v8129
  %v8311 = vunpack.c.l.b16 %v8130
  %v8312 = vunpack.c.l.b16 %v8131
  %v8313 = vunpack.c.l.b16 %v8132
  %v8314 = vpack.c.b16 %v8233, %v8232
  %v8315 = vpack.c.b16 %v8235, %v8234
  %v8316 = vpack.c.b16 %v8237, %v8236
  %v8317 = vpack.c.b16 %v8239, %v8238
  %v8318 = vpack.c.b16 %v8241, %v8240
  %v8319 = vpack.c.b16 %v8243, %v8242
  %v8320 = vpack.c.b16 %v8245, %v8244
  %v8321 = vpack.c.b16 %v8247, %v8246
  %v8322 = vpack.c.b16 %v8249, %v8248
  %v8323 = vpack.c.b16 %v8251, %v8250
  %v8324 = vpack.c.b16 %v8253, %v8252
  %v8325 = vpack.c.b16 %v8255, %v8254
  %v8326 = vpack.c.b16 %v8257, %v8256
  %v8327 = vpack.c.b16 %v8259, %v8258
  %v8328 = vpack.c.b16 %v8261, %v8260
  %v8329 = vpack.c.b16 %v8263, %v8262
  %v8330 = vpack.c.b16 %v8265, %v8264
  %v8331 = vpack.c.b16 %v8267, %v8266
  %v8332 = vpack.c.b16 %v8269, %v8268
  %v8333 = vpack.c.b16 %v8271, %v8270
  %v8334 = vpack.c.b16 %v8273, %v8272
  %v8335 = vpack.c.b16 %v8275, %v8274
  %v8336 = vpack.c.b16 %v8277, %v8276
  %v8337 = vpack.c.b16 %v8279, %v8278
  %v8338 = vpack.c.b16 %v8281, %v8280
  %v8339 = vpack.c.b16 %v8283, %v8282
  %v8340 = vpack.c.b16 %v8285, %v8284
  %v8341 = vpack.c.b16 %v8287, %v8286
  %v8342 = vpack.c.b16 %v8289, %v8288
  %v8343 = vpack.c.b16 %v8291, %v8290
  %v8344 = vpack.c.b16 %v8293, %v8292
  %v8345 = vpack.c.b16 %v8295, %v8294
  %v8346 = vpack.c.b16 %v8297, %v8296
  %v8347 = vpack.c.b16 %v8299, %v8298
  %v8348 = vpack.c.b16 %v8301, %v8300
  %v8349 = vpack.c.b16 %v8303, %v8302
  %v8350 = vpack.c.b16 %v8305, %v8304
  %v8351 = vpack.c.b16 %v8307, %v8306
  %v8352 = vpack.c.b16 %v8309, %v8308
  %v8353 = vpack.c.b16 %v8311, %v8310
  %v8354 = vpack.c.b16 %v8313, %v8312
  %v8356 = vshrl.u32 %v8314, 16
  %v8358 = vshll.u32 %v8314, 16
  %v8360 = vrot.slane %v8358, 1
  %v8361 = vor.u32 %v8356, %v8360
  %v8363 = vshll.u32 %v8315, 16
  %v8365 = vrot.slane %v8363, 1
  %v8366 = vsel %vm7193, %v8361, %v8365
  %v8367 = vshrl.u32 %v8315, 16
  %v8369 = vor.u32 %v8367, %v8365
  %v8371 = vshll.u32 %v8316, 16
  %v8373 = vrot.slane %v8371, 1
  %v8374 = vsel %vm7193, %v8369, %v8373
  %v8375 = vshrl.u32 %v8316, 16
  %v8377 = vor.u32 %v8375, %v8373
  %v8379 = vshll.u32 %v8317, 16
  %v8381 = vrot.slane %v8379, 1
  %v8382 = vsel %vm7193, %v8377, %v8381
  %v8383 = vshrl.u32 %v8317, 16
  %v8385 = vor.u32 %v8383, %v8381
  %v8387 = vshll.u32 %v8318, 16
  %v8389 = vrot.slane %v8387, 1
  %v8390 = vsel %vm7193, %v8385, %v8389
  %v8391 = vshrl.u32 %v8318, 16
  %v8393 = vor.u32 %v8391, %v8389
  %v8395 = vshll.u32 %v8319, 16
  %v8397 = vrot.slane %v8395, 1
  %v8398 = vsel %vm7193, %v8393, %v8397
  %v8399 = vshrl.u32 %v8319, 16
  %v8401 = vor.u32 %v8399, %v8397
  %v8403 = vshll.u32 %v8320, 16
  %v8405 = vrot.slane %v8403, 1
  %v8406 = vsel %vm7193, %v8401, %v8405
  %v8407 = vshrl.u32 %v8320, 16
  %v8409 = vor.u32 %v8407, %v8405
  %v8411 = vshll.u32 %v8321, 16
  %v8413 = vrot.slane %v8411, 1
  %v8414 = vsel %vm7193, %v8409, %v8413
  %v8415 = vshrl.u32 %v8321, 16
  %v8417 = vor.u32 %v8415, %v8413
  %v8419 = vshll.u32 %v8322, 16
  %v8421 = vrot.slane %v8419, 1
  %v8422 = vsel %vm7193, %v8417, %v8421
  %v8423 = vshrl.u32 %v8322, 16
  %v8425 = vor.u32 %v8423, %v8421
  %v8427 = vshll.u32 %v8323, 16
  %v8429 = vrot.slane %v8427, 1
  %v8430 = vsel %vm7193, %v8425, %v8429
  %v8431 = vshrl.u32 %v8323, 16
  %v8433 = vor.u32 %v8431, %v8429
  %v8435 = vshll.u32 %v8324, 16
  %v8437 = vrot.slane %v8435, 1
  %v8438 = vsel %vm7193, %v8433, %v8437
  %v8439 = vshrl.u32 %v8324, 16
  %v8441 = vor.u32 %v8439, %v8437
  %v8443 = vshll.u32 %v8325, 16
  %v8445 = vrot.slane %v8443, 1
  %v8446 = vsel %vm7193, %v8441, %v8445
  %v8447 = vshrl.u32 %v8325, 16
  %v8449 = vor.u32 %v8447, %v8445
  %v8451 = vshll.u32 %v8326, 16
  %v8453 = vrot.slane %v8451, 1
  %v8454 = vsel %vm7193, %v8449, %v8453
  %v8455 = vshrl.u32 %v8326, 16
  %v8457 = vor.u32 %v8455, %v8453
  %v8459 = vshll.u32 %v8327, 16
  %v8461 = vrot.slane %v8459, 1
  %v8462 = vsel %vm7193, %v8457, %v8461
  %v8463 = vshrl.u32 %v8327, 16
  %v8465 = vor.u32 %v8463, %v8461
  %v8467 = vshll.u32 %v8328, 16
  %v8469 = vrot.slane %v8467, 1
  %v8470 = vsel %vm7193, %v8465, %v8469
  %v8471 = vshrl.u32 %v8328, 16
  %v8473 = vor.u32 %v8471, %v8469
  %v8475 = vshll.u32 %v8329, 16
  %v8477 = vrot.slane %v8475, 1
  %v8478 = vsel %vm7193, %v8473, %v8477
  %v8479 = vshrl.u32 %v8329, 16
  %v8481 = vor.u32 %v8479, %v8477
  %v8483 = vshll.u32 %v8330, 16
  %v8485 = vrot.slane %v8483, 1
  %v8486 = vsel %vm7193, %v8481, %v8485
  %v8487 = vshrl.u32 %v8330, 16
  %v8489 = vor.u32 %v8487, %v8485
  %v8491 = vshll.u32 %v8331, 16
  %v8493 = vrot.slane %v8491, 1
  %v8494 = vsel %vm7193, %v8489, %v8493
  %v8495 = vshrl.u32 %v8331, 16
  %v8497 = vor.u32 %v8495, %v8493
  %v8499 = vshll.u32 %v8332, 16
  %v8501 = vrot.slane %v8499, 1
  %v8502 = vsel %vm7193, %v8497, %v8501
  %v8503 = vshrl.u32 %v8332, 16
  %v8505 = vor.u32 %v8503, %v8501
  %v8507 = vshll.u32 %v8333, 16
  %v8509 = vrot.slane %v8507, 1
  %v8510 = vsel %vm7193, %v8505, %v8509
  %v8511 = vshrl.u32 %v8333, 16
  %v8513 = vor.u32 %v8511, %v8509
  %v8515 = vshll.u32 %v8334, 16
  %v8517 = vrot.slane %v8515, 1
  %v8518 = vsel %vm7193, %v8513, %v8517
  %v8519 = vshrl.u32 %v8334, 16
  %v8521 = vor.u32 %v8519, %v8517
  %v8523 = vshll.u32 %v8335, 16
  %v8525 = vrot.slane %v8523, 1
  %v8526 = vsel %vm7193, %v8521, %v8525
  %v8527 = vshrl.u32 %v8335, 16
  %v8529 = vor.u32 %v8527, %v8525
  %v8531 = vshll.u32 %v8336, 16
  %v8533 = vrot.slane %v8531, 1
  %v8534 = vsel %vm7193, %v8529, %v8533
  %v8535 = vshrl.u32 %v8336, 16
  %v8537 = vor.u32 %v8535, %v8533
  %v8539 = vshll.u32 %v8337, 16
  %v8541 = vrot.slane %v8539, 1
  %v8542 = vsel %vm7193, %v8537, %v8541
  %v8543 = vshrl.u32 %v8337, 16
  %v8545 = vor.u32 %v8543, %v8541
  %v8547 = vshll.u32 %v8338, 16
  %v8549 = vrot.slane %v8547, 1
  %v8550 = vsel %vm7193, %v8545, %v8549
  %v8551 = vshrl.u32 %v8338, 16
  %v8553 = vor.u32 %v8551, %v8549
  %v8555 = vshll.u32 %v8339, 16
  %v8557 = vrot.slane %v8555, 1
  %v8558 = vsel %vm7193, %v8553, %v8557
  %v8559 = vshrl.u32 %v8339, 16
  %v8561 = vor.u32 %v8559, %v8557
  %v8563 = vshll.u32 %v8340, 16
  %v8565 = vrot.slane %v8563, 1
  %v8566 = vsel %vm7193, %v8561, %v8565
  %v8567 = vshrl.u32 %v8340, 16
  %v8569 = vor.u32 %v8567, %v8565
  %v8571 = vshll.u32 %v8341, 16
  %v8573 = vrot.slane %v8571, 1
  %v8574 = vsel %vm7193, %v8569, %v8573
  %v8575 = vshrl.u32 %v8341, 16
  %v8577 = vor.u32 %v8575, %v8573
  %v8579 = vshll.u32 %v8342, 16
  %v8581 = vrot.slane %v8579, 1
  %v8582 = vsel %vm7193, %v8577, %v8581
  %v8583 = vshrl.u32 %v8342, 16
  %v8585 = vor.u32 %v8583, %v8581
  %v8587 = vshll.u32 %v8343, 16
  %v8589 = vrot.slane %v8587, 1
  %v8590 = vsel %vm7193, %v8585, %v8589
  %v8591 = vshrl.u32 %v8343, 16
  %v8593 = vor.u32 %v8591, %v8589
  %v8595 = vshll.u32 %v8344, 16
  %v8597 = vrot.slane %v8595, 1
  %v8598 = vsel %vm7193, %v8593, %v8597
  %v8599 = vshrl.u32 %v8344, 16
  %v8601 = vor.u32 %v8599, %v8597
  %v8603 = vshll.u32 %v8345, 16
  %v8605 = vrot.slane %v8603, 1
  %v8606 = vsel %vm7193, %v8601, %v8605
  %v8607 = vshrl.u32 %v8345, 16
  %v8609 = vor.u32 %v8607, %v8605
  %v8611 = vshll.u32 %v8346, 16
  %v8613 = vrot.slane %v8611, 1
  %v8614 = vsel %vm7193, %v8609, %v8613
  %v8615 = vshrl.u32 %v8346, 16
  %v8617 = vor.u32 %v8615, %v8613
  %v8619 = vshll.u32 %v8347, 16
  %v8621 = vrot.slane %v8619, 1
  %v8622 = vsel %vm7193, %v8617, %v8621
  %v8623 = vshrl.u32 %v8347, 16
  %v8625 = vor.u32 %v8623, %v8621
  %v8627 = vshll.u32 %v8348, 16
  %v8629 = vrot.slane %v8627, 1
  %v8630 = vsel %vm7193, %v8625, %v8629
  %v8631 = vshrl.u32 %v8348, 16
  %v8633 = vor.u32 %v8631, %v8629
  %v8635 = vshll.u32 %v8349, 16
  %v8637 = vrot.slane %v8635, 1
  %v8638 = vsel %vm7193, %v8633, %v8637
  %v8639 = vshrl.u32 %v8349, 16
  %v8641 = vor.u32 %v8639, %v8637
  %v8643 = vshll.u32 %v8350, 16
  %v8645 = vrot.slane %v8643, 1
  %v8646 = vsel %vm7193, %v8641, %v8645
  %v8647 = vshrl.u32 %v8350, 16
  %v8649 = vor.u32 %v8647, %v8645
  %v8651 = vshll.u32 %v8351, 16
  %v8653 = vrot.slane %v8651, 1
  %v8654 = vsel %vm7193, %v8649, %v8653
  %v8655 = vshrl.u32 %v8351, 16
  %v8657 = vor.u32 %v8655, %v8653
  %v8659 = vshll.u32 %v8352, 16
  %v8661 = vrot.slane %v8659, 1
  %v8662 = vsel %vm7193, %v8657, %v8661
  %v8663 = vshrl.u32 %v8352, 16
  %v8665 = vor.u32 %v8663, %v8661
  %v8667 = vshll.u32 %v8353, 16
  %v8669 = vrot.slane %v8667, 1
  %v8670 = vsel %vm7193, %v8665, %v8669
  %v8671 = vshrl.u32 %v8353, 16
  %v8673 = vor.u32 %v8671, %v8669
  %v8675 = vshll.u32 %v8354, 16
  %v8677 = vrot.slane %v8675, 1
  %v8678 = vsel %vm7193, %v8673, %v8677
  %v8679 = vshrl.u32 %v8354, 16
  %v8681 = vor.u32 %v8679, %v8677
  %v8739 = vunpack.c.l.b16 %v8134
  %v8740 = vunpack.c.l.b16 %v8135
  %v8741 = vunpack.c.l.b16 %v8136
  %v8742 = vunpack.c.l.b16 %v8137
  %v8743 = vunpack.c.l.b16 %v8138
  %v8744 = vunpack.c.l.b16 %v8139
  %v8745 = vunpack.c.l.b16 %v8140
  %v8746 = vunpack.c.l.b16 %v8141
  %v8747 = vunpack.c.l.b16 %v8142
  %v8748 = vunpack.c.l.b16 %v8143
  %v8749 = vunpack.c.l.b16 %v8144
  %v8750 = vunpack.c.l.b16 %v8145
  %v8751 = vunpack.c.l.b16 %v8146
  %v8752 = vunpack.c.l.b16 %v8147
  %v8753 = vunpack.c.l.b16 %v8148
  %v8754 = vunpack.c.l.b16 %v8149
  %v8755 = vpack.c.b16 %v8740, %v8739
  %v8756 = vpack.c.b16 %v8742, %v8741
  %v8757 = vpack.c.b16 %v8744, %v8743
  %v8758 = vpack.c.b16 %v8746, %v8745
  %v8759 = vpack.c.b16 %v8748, %v8747
  %v8760 = vpack.c.b16 %v8750, %v8749
  %v8761 = vpack.c.b16 %v8752, %v8751
  %v8762 = vpack.c.b16 %v8754, %v8753
  %8771 = vmatprep.subr.bf16.mxu0 0
  %8772 = vmatpush1.bf16.msra.mxu0 %v8755
  %8773 = vmatprep.subr.bf16.mxu0 0
  %8774 = vmatpush1.bf16.msra.mxu0 %v8756
  %8775 = vmatprep.subr.bf16.mxu0 0
  %8776 = vmatpush1.bf16.msra.mxu0 %v8757
  %8777 = vmatprep.subr.bf16.mxu0 0
  %8778 = vmatpush1.bf16.msra.mxu0 %v8758
  %8779 = vmatprep.subr.bf16.mxu0 0
  %8780 = vmatpush1.bf16.msra.mxu0 %v8759
  %8781 = vmatprep.subr.bf16.mxu0 0
  %8782 = vmatpush1.bf16.msra.mxu0 %v8760
  %8783 = vmatprep.subr.bf16.mxu0 0
  %8784 = vmatpush1.bf16.msra.mxu0 %v8761
  %8785 = vmatprep.subr.bf16.mxu0 0
  %8786 = vmatpush1.bf16.msra.mxu0 %v8762
  %8787 = vmatprep.subr.bf16.mxu0 0
  %8788 = vmatpush1.bf16.msra.mxu0 0
  %8789 = vmatprep.subr.bf16.mxu0 0
  %8790 = vmatpush1.bf16.msra.mxu0 0
  %8791 = vmatprep.subr.bf16.mxu0 0
  %8792 = vmatpush1.bf16.msra.mxu0 0
  %8793 = vmatprep.subr.bf16.mxu0 0
  %8794 = vmatpush1.bf16.msra.mxu0 0
  %8795 = vmatprep.subr.bf16.mxu0 0
  %8796 = vmatpush1.bf16.msra.mxu0 0
  %8797 = vmatprep.subr.bf16.mxu0 0
  %8798 = vmatpush1.bf16.msra.mxu0 0
  %8799 = vmatprep.subr.bf16.mxu0 0
  %8800 = vmatpush1.bf16.msra.mxu0 0
  %8801 = vmatprep.subr.bf16.mxu0 0
  %8802 = vmatpush1.bf16.msra.mxu0 0
  %8803 = vmatprep.mubr.bf16.mxu0 0
  %8804 = vmatmul.mubr.bf16.gmra.mrb[0].mxu0 %v8366
  %v8805 = vpop.f32.mrb[0].mxu0
  %v8806 = vadd.f32 0.0, %v8805
  %v8807 = vpop.f32.mrb[0].mxu0
  %v8808 = vpop.f32.mrb[0].mxu0
  %v8809 = vadd.f32 0.0, %v8808
  %v8810 = vpop.f32.mrb[0].mxu0
  %8811 = vmatprep.mubr.bf16.mxu0 0
  %8812 = vmatmul.mubr.bf16.gmra.mrb[0].mxu0 %v8374
  %v8813 = vpop.f32.mrb[0].mxu0
  %v8814 = vadd.f32 0.0, %v8813
  %v8815 = vpop.f32.mrb[0].mxu0
  %v8816 = vpop.f32.mrb[0].mxu0
  %v8817 = vadd.f32 0.0, %v8816
  %v8818 = vpop.f32.mrb[0].mxu0
  %8819 = vmatprep.mubr.bf16.mxu0 0
  %8820 = vmatmul.mubr.bf16.gmra.mrb[0].mxu0 %v8382
  %v8821 = vpop.f32.mrb[0].mxu0
  %v8822 = vadd.f32 0.0, %v8821
  %v8823 = vpop.f32.mrb[0].mxu0
  %v8824 = vpop.f32.mrb[0].mxu0
  %v8825 = vadd.f32 0.0, %v8824
  %v8826 = vpop.f32.mrb[0].mxu0
  %8827 = vmatprep.mubr.bf16.mxu0 0
  %8828 = vmatmul.mubr.bf16.gmra.mrb[0].mxu0 %v8390
  %v8829 = vpop.f32.mrb[0].mxu0
  %v8830 = vadd.f32 0.0, %v8829
  %v8831 = vpop.f32.mrb[0].mxu0
  %v8832 = vpop.f32.mrb[0].mxu0
  %v8833 = vadd.f32 0.0, %v8832
  %v8834 = vpop.f32.mrb[0].mxu0
  %8835 = vmatprep.mubr.bf16.mxu0 0
  %8836 = vmatmul.mubr.bf16.gmra.mrb[0].mxu0 %v8398
  %v8837 = vpop.f32.mrb[0].mxu0
  %v8838 = vadd.f32 0.0, %v8837
  %v8839 = vpop.f32.mrb[0].mxu0
  %v8840 = vpop.f32.mrb[0].mxu0
  %v8841 = vadd.f32 0.0, %v8840
  %v8842 = vpop.f32.mrb[0].mxu0
  %8843 = vmatprep.mubr.bf16.mxu0 0
  %8844 = vmatmul.mubr.bf16.gmra.mrb[0].mxu0 %v8406
  %v8845 = vpop.f32.mrb[0].mxu0
  %v8846 = vadd.f32 0.0, %v8845
  %v8847 = vpop.f32.mrb[0].mxu0
  %v8848 = vpop.f32.mrb[0].mxu0
  %v8849 = vadd.f32 0.0, %v8848
  %v8850 = vpop.f32.mrb[0].mxu0
  %8851 = vmatprep.mubr.bf16.mxu0 0
  %8852 = vmatmul.mubr.bf16.gmra.mrb[0].mxu0 %v8414
  %v8853 = vpop.f32.mrb[0].mxu0
  %v8854 = vadd.f32 0.0, %v8853
  %v8855 = vpop.f32.mrb[0].mxu0
  %v8856 = vpop.f32.mrb[0].mxu0
  %v8857 = vadd.f32 0.0, %v8856
  %v8858 = vpop.f32.mrb[0].mxu0
  %8859 = vmatprep.mubr.bf16.mxu0 0
  %8860 = vmatmul.mubr.bf16.gmra.mrb[0].mxu0 %v8422
  %v8861 = vpop.f32.mrb[0].mxu0
  %v8862 = vadd.f32 0.0, %v8861
  %v8863 = vpop.f32.mrb[0].mxu0
  %v8864 = vpop.f32.mrb[0].mxu0
  %v8865 = vadd.f32 0.0, %v8864
  %v8866 = vpop.f32.mrb[0].mxu0
  %8867 = vmatprep.mubr.bf16.mxu0 0
  %8868 = vmatmul.mubr.bf16.gmra.mrb[0].mxu0 %v8430
  %v8869 = vpop.f32.mrb[0].mxu0
  %v8870 = vadd.f32 0.0, %v8869
  %v8871 = vpop.f32.mrb[0].mxu0
  %v8872 = vpop.f32.mrb[0].mxu0
  %v8873 = vadd.f32 0.0, %v8872
  %v8874 = vpop.f32.mrb[0].mxu0
  %8875 = vmatprep.mubr.bf16.mxu0 0
  %8876 = vmatmul.mubr.bf16.gmra.mrb[0].mxu0 %v8438
  %v8877 = vpop.f32.mrb[0].mxu0
  %v8878 = vadd.f32 0.0, %v8877
  %v8879 = vpop.f32.mrb[0].mxu0
  %v8880 = vpop.f32.mrb[0].mxu0
  %v8881 = vadd.f32 0.0, %v8880
  %v8882 = vpop.f32.mrb[0].mxu0
  %8883 = vmatprep.mubr.bf16.mxu0 0
  %8884 = vmatmul.mubr.bf16.gmra.mrb[0].mxu0 %v8446
  %v8885 = vpop.f32.mrb[0].mxu0
  %v8886 = vadd.f32 0.0, %v8885
  %v8887 = vpop.f32.mrb[0].mxu0
  %v8888 = vpop.f32.mrb[0].mxu0
  %v8889 = vadd.f32 0.0, %v8888
  %v8890 = vpop.f32.mrb[0].mxu0
  %8891 = vmatprep.mubr.bf16.mxu0 0
  %8892 = vmatmul.mubr.bf16.gmra.mrb[0].mxu0 %v8454
  %v8893 = vpop.f32.mrb[0].mxu0
  %v8894 = vadd.f32 0.0, %v8893
  %v8895 = vpop.f32.mrb[0].mxu0
  %v8896 = vpop.f32.mrb[0].mxu0
  %v8897 = vadd.f32 0.0, %v8896
  %v8898 = vpop.f32.mrb[0].mxu0
  %8899 = vmatprep.mubr.bf16.mxu0 0
  %8900 = vmatmul.mubr.bf16.gmra.mrb[0].mxu0 %v8462
  %v8901 = vpop.f32.mrb[0].mxu0
  %v8902 = vadd.f32 0.0, %v8901
  %v8903 = vpop.f32.mrb[0].mxu0
  %v8904 = vpop.f32.mrb[0].mxu0
  %v8905 = vadd.f32 0.0, %v8904
  %v8906 = vpop.f32.mrb[0].mxu0
  %8907 = vmatprep.mubr.bf16.mxu0 0
  %8908 = vmatmul.mubr.bf16.gmra.mrb[0].mxu0 %v8470
  %v8909 = vpop.f32.mrb[0].mxu0
  %v8910 = vadd.f32 0.0, %v8909
  %v8911 = vpop.f32.mrb[0].mxu0
  %v8912 = vpop.f32.mrb[0].mxu0
  %v8913 = vadd.f32 0.0, %v8912
  %v8914 = vpop.f32.mrb[0].mxu0
  %8915 = vmatprep.mubr.bf16.mxu0 0
  %8916 = vmatmul.mubr.bf16.gmra.mrb[0].mxu0 %v8478
  %v8917 = vpop.f32.mrb[0].mxu0
  %v8918 = vadd.f32 0.0, %v8917
  %v8919 = vpop.f32.mrb[0].mxu0
  %v8920 = vpop.f32.mrb[0].mxu0
  %v8921 = vadd.f32 0.0, %v8920
  %v8922 = vpop.f32.mrb[0].mxu0
  %8923 = vmatprep.mubr.bf16.mxu0 0
  %8924 = vmatmul.mubr.bf16.gmra.mrb[0].mxu0 %v8486
  %v8925 = vpop.f32.mrb[0].mxu0
  %v8926 = vadd.f32 0.0, %v8925
  %v8927 = vpop.f32.mrb[0].mxu0
  %v8928 = vpop.f32.mrb[0].mxu0
  %v8929 = vadd.f32 0.0, %v8928
  %v8930 = vpop.f32.mrb[0].mxu0
  %8931 = vmatprep.mubr.bf16.mxu0 0
  %8932 = vmatmul.mubr.bf16.gmra.mrb[0].mxu0 %v8494
  %v8933 = vpop.f32.mrb[0].mxu0
  %v8934 = vadd.f32 0.0, %v8933
  %v8935 = vpop.f32.mrb[0].mxu0
  %v8936 = vpop.f32.mrb[0].mxu0
  %v8937 = vadd.f32 0.0, %v8936
  %v8938 = vpop.f32.mrb[0].mxu0
  %8939 = vmatprep.mubr.bf16.mxu0 0
  %8940 = vmatmul.mubr.bf16.gmra.mrb[0].mxu0 %v8502
  %v8941 = vpop.f32.mrb[0].mxu0
  %v8942 = vadd.f32 0.0, %v8941
  %v8943 = vpop.f32.mrb[0].mxu0
  %v8944 = vpop.f32.mrb[0].mxu0
  %v8945 = vadd.f32 0.0, %v8944
  %v8946 = vpop.f32.mrb[0].mxu0
  %8947 = vmatprep.mubr.bf16.mxu0 0
  %8948 = vmatmul.mubr.bf16.gmra.mrb[0].mxu0 %v8510
  %v8949 = vpop.f32.mrb[0].mxu0
  %v8950 = vadd.f32 0.0, %v8949
  %v8951 = vpop.f32.mrb[0].mxu0
  %v8952 = vpop.f32.mrb[0].mxu0
  %v8953 = vadd.f32 0.0, %v8952
  %v8954 = vpop.f32.mrb[0].mxu0
  %8955 = vmatprep.mubr.bf16.mxu0 0
  %8956 = vmatmul.mubr.bf16.gmra.mrb[0].mxu0 %v8518
  %v8957 = vpop.f32.mrb[0].mxu0
  %v8958 = vadd.f32 0.0, %v8957
  %v8959 = vpop.f32.mrb[0].mxu0
  %v8960 = vpop.f32.mrb[0].mxu0
  %v8961 = vadd.f32 0.0, %v8960
  %v8962 = vpop.f32.mrb[0].mxu0
  %8963 = vmatprep.mubr.bf16.mxu0 0
  %8964 = vmatmul.mubr.bf16.gmra.mrb[0].mxu0 %v8526
  %v8965 = vpop.f32.mrb[0].mxu0
  %v8966 = vadd.f32 0.0, %v8965
  %v8967 = vpop.f32.mrb[0].mxu0
  %v8968 = vpop.f32.mrb[0].mxu0
  %v8969 = vadd.f32 0.0, %v8968
  %v8970 = vpop.f32.mrb[0].mxu0
  %8971 = vmatprep.mubr.bf16.mxu0 0
  %8972 = vmatmul.mubr.bf16.gmra.mrb[0].mxu0 %v8534
  %v8973 = vpop.f32.mrb[0].mxu0
  %v8974 = vadd.f32 0.0, %v8973
  %v8975 = vpop.f32.mrb[0].mxu0
  %v8976 = vpop.f32.mrb[0].mxu0
  %v8977 = vadd.f32 0.0, %v8976
  %v8978 = vpop.f32.mrb[0].mxu0
  %8979 = vmatprep.mubr.bf16.mxu0 0
  %8980 = vmatmul.mubr.bf16.gmra.mrb[0].mxu0 %v8542
  %v8981 = vpop.f32.mrb[0].mxu0
  %v8982 = vadd.f32 0.0, %v8981
  %v8983 = vpop.f32.mrb[0].mxu0
  %v8984 = vpop.f32.mrb[0].mxu0
  %v8985 = vadd.f32 0.0, %v8984
  %v8986 = vpop.f32.mrb[0].mxu0
  %8987 = vmatprep.mubr.bf16.mxu0 0
  %8988 = vmatmul.mubr.bf16.gmra.mrb[0].mxu0 %v8550
  %v8989 = vpop.f32.mrb[0].mxu0
  %v8990 = vadd.f32 0.0, %v8989
  %v8991 = vpop.f32.mrb[0].mxu0
  %v8992 = vpop.f32.mrb[0].mxu0
  %v8993 = vadd.f32 0.0, %v8992
  %v8994 = vpop.f32.mrb[0].mxu0
  %8995 = vmatprep.mubr.bf16.mxu0 0
  %8996 = vmatmul.mubr.bf16.gmra.mrb[0].mxu0 %v8558
  %v8997 = vpop.f32.mrb[0].mxu0
  %v8998 = vadd.f32 0.0, %v8997
  %v8999 = vpop.f32.mrb[0].mxu0
  %v9000 = vpop.f32.mrb[0].mxu0
  %v9001 = vadd.f32 0.0, %v9000
  %v9002 = vpop.f32.mrb[0].mxu0
  %9003 = vmatprep.mubr.bf16.mxu0 0
  %9004 = vmatmul.mubr.bf16.gmra.mrb[0].mxu0 %v8566
  %v9005 = vpop.f32.mrb[0].mxu0
  %v9006 = vadd.f32 0.0, %v9005
  %v9007 = vpop.f32.mrb[0].mxu0
  %v9008 = vpop.f32.mrb[0].mxu0
  %v9009 = vadd.f32 0.0, %v9008
  %v9010 = vpop.f32.mrb[0].mxu0
  %9011 = vmatprep.mubr.bf16.mxu0 0
  %9012 = vmatmul.mubr.bf16.gmra.mrb[0].mxu0 %v8574
  %v9013 = vpop.f32.mrb[0].mxu0
  %v9014 = vadd.f32 0.0, %v9013
  %v9015 = vpop.f32.mrb[0].mxu0
  %v9016 = vpop.f32.mrb[0].mxu0
  %v9017 = vadd.f32 0.0, %v9016
  %v9018 = vpop.f32.mrb[0].mxu0
  %9019 = vmatprep.mubr.bf16.mxu0 0
  %9020 = vmatmul.mubr.bf16.gmra.mrb[0].mxu0 %v8582
  %v9021 = vpop.f32.mrb[0].mxu0
  %v9022 = vadd.f32 0.0, %v9021
  %v9023 = vpop.f32.mrb[0].mxu0
  %v9024 = vpop.f32.mrb[0].mxu0
  %v9025 = vadd.f32 0.0, %v9024
  %v9026 = vpop.f32.mrb[0].mxu0
  %9027 = vmatprep.mubr.bf16.mxu0 0
  %9028 = vmatmul.mubr.bf16.gmra.mrb[0].mxu0 %v8590
  %v9029 = vpop.f32.mrb[0].mxu0
  %v9030 = vadd.f32 0.0, %v9029
  %v9031 = vpop.f32.mrb[0].mxu0
  %v9032 = vpop.f32.mrb[0].mxu0
  %v9033 = vadd.f32 0.0, %v9032
  %v9034 = vpop.f32.mrb[0].mxu0
  %9035 = vmatprep.mubr.bf16.mxu0 0
  %9036 = vmatmul.mubr.bf16.gmra.mrb[0].mxu0 %v8598
  %v9037 = vpop.f32.mrb[0].mxu0
  %v9038 = vadd.f32 0.0, %v9037
  %v9039 = vpop.f32.mrb[0].mxu0
  %v9040 = vpop.f32.mrb[0].mxu0
  %v9041 = vadd.f32 0.0, %v9040
  %v9042 = vpop.f32.mrb[0].mxu0
  %9043 = vmatprep.mubr.bf16.mxu0 0
  %9044 = vmatmul.mubr.bf16.gmra.mrb[0].mxu0 %v8606
  %v9045 = vpop.f32.mrb[0].mxu0
  %v9046 = vadd.f32 0.0, %v9045
  %v9047 = vpop.f32.mrb[0].mxu0
  %v9048 = vpop.f32.mrb[0].mxu0
  %v9049 = vadd.f32 0.0, %v9048
  %v9050 = vpop.f32.mrb[0].mxu0
  %9051 = vmatprep.mubr.bf16.mxu0 0
  %9052 = vmatmul.mubr.bf16.gmra.mrb[0].mxu0 %v8614
  %v9053 = vpop.f32.mrb[0].mxu0
  %v9054 = vadd.f32 0.0, %v9053
  %v9055 = vpop.f32.mrb[0].mxu0
  %v9056 = vpop.f32.mrb[0].mxu0
  %v9057 = vadd.f32 0.0, %v9056
  %v9058 = vpop.f32.mrb[0].mxu0
  %9059 = vmatprep.mubr.bf16.mxu0 0
  %9060 = vmatmul.mubr.bf16.gmra.mrb[0].mxu0 %v8622
  %v9061 = vpop.f32.mrb[0].mxu0
  %v9062 = vadd.f32 0.0, %v9061
  %v9063 = vpop.f32.mrb[0].mxu0
  %v9064 = vpop.f32.mrb[0].mxu0
  %v9065 = vadd.f32 0.0, %v9064
  %v9066 = vpop.f32.mrb[0].mxu0
  %9067 = vmatprep.mubr.bf16.mxu0 0
  %9068 = vmatmul.mubr.bf16.gmra.mrb[0].mxu0 %v8630
  %v9069 = vpop.f32.mrb[0].mxu0
  %v9070 = vadd.f32 0.0, %v9069
  %v9071 = vpop.f32.mrb[0].mxu0
  %v9072 = vpop.f32.mrb[0].mxu0
  %v9073 = vadd.f32 0.0, %v9072
  %v9074 = vpop.f32.mrb[0].mxu0
  %9075 = vmatprep.mubr.bf16.mxu0 0
  %9076 = vmatmul.mubr.bf16.gmra.mrb[0].mxu0 %v8638
  %v9077 = vpop.f32.mrb[0].mxu0
  %v9078 = vadd.f32 0.0, %v9077
  %v9079 = vpop.f32.mrb[0].mxu0
  %v9080 = vpop.f32.mrb[0].mxu0
  %v9081 = vadd.f32 0.0, %v9080
  %v9082 = vpop.f32.mrb[0].mxu0
  %9083 = vmatprep.mubr.bf16.mxu0 0
  %9084 = vmatmul.mubr.bf16.gmra.mrb[0].mxu0 %v8646
  %v9085 = vpop.f32.mrb[0].mxu0
  %v9086 = vadd.f32 0.0, %v9085
  %v9087 = vpop.f32.mrb[0].mxu0
  %v9088 = vpop.f32.mrb[0].mxu0
  %v9089 = vadd.f32 0.0, %v9088
  %v9090 = vpop.f32.mrb[0].mxu0
  %9091 = vmatprep.mubr.bf16.mxu0 0
  %9092 = vmatmul.mubr.bf16.gmra.mrb[0].mxu0 %v8654
  %v9093 = vpop.f32.mrb[0].mxu0
  %v9094 = vadd.f32 0.0, %v9093
  %v9095 = vpop.f32.mrb[0].mxu0
  %v9096 = vpop.f32.mrb[0].mxu0
  %v9097 = vadd.f32 0.0, %v9096
  %v9098 = vpop.f32.mrb[0].mxu0
  %9099 = vmatprep.mubr.bf16.mxu0 0
  %9100 = vmatmul.mubr.bf16.gmra.mrb[0].mxu0 %v8662
  %v9101 = vpop.f32.mrb[0].mxu0
  %v9102 = vadd.f32 0.0, %v9101
  %v9103 = vpop.f32.mrb[0].mxu0
  %v9104 = vpop.f32.mrb[0].mxu0
  %v9105 = vadd.f32 0.0, %v9104
  %v9106 = vpop.f32.mrb[0].mxu0
  %9107 = vmatprep.mubr.bf16.mxu0 0
  %9108 = vmatmul.mubr.bf16.gmra.mrb[0].mxu0 %v8670
  %v9109 = vpop.f32.mrb[0].mxu0
  %v9110 = vadd.f32 0.0, %v9109
  %v9111 = vpop.f32.mrb[0].mxu0
  %v9112 = vpop.f32.mrb[0].mxu0
  %v9113 = vadd.f32 0.0, %v9112
  %v9114 = vpop.f32.mrb[0].mxu0
  %9115 = vmatprep.mubr.bf16.mxu0 0
  %9116 = vmatmul.mubr.bf16.gmra.mrb[0].mxu0 %v8678
  %v9117 = vpop.f32.mrb[0].mxu0
  %v9118 = vadd.f32 0.0, %v9117
  %v9119 = vpop.f32.mrb[0].mxu0
  %v9120 = vpop.f32.mrb[0].mxu0
  %v9121 = vadd.f32 0.0, %v9120
  %v9122 = vpop.f32.mrb[0].mxu0
  %9123 = vmatprep.mubr.bf16.mxu0 0
  %9124 = vmatmul.mubr.bf16.gmra.mrb[0].mxu0 %v8681
  %v9125 = vpop.f32.mrb[0].mxu0
  %v9126 = vadd.f32 0.0, %v9125
  %v9127 = vpop.f32.mrb[0].mxu0
  %v9128 = vpop.f32.mrb[0].mxu0
  %v9129 = vpop.f32.mrb[0].mxu0
  %9130 = vdwg.mxu0
  %v9131 = vadd.f32 %v7970, %v8806
  %v9132 = vadd.f32 %v7971, %v8809
  %v9133 = vadd.f32 %v7972, %v8814
  %v9134 = vadd.f32 %v7973, %v8817
  %v9135 = vadd.f32 %v7974, %v8822
  %v9136 = vadd.f32 %v7975, %v8825
  %v9137 = vadd.f32 %v7976, %v8830
  %v9138 = vadd.f32 %v7977, %v8833
  %v9139 = vadd.f32 %v7978, %v8838
  %v9140 = vadd.f32 %v7979, %v8841
  %v9141 = vadd.f32 %v7980, %v8846
  %v9142 = vadd.f32 %v7981, %v8849
  %v9143 = vadd.f32 %v7982, %v8854
  %v9144 = vadd.f32 %v7983, %v8857
  %v9145 = vadd.f32 %v7984, %v8862
  %v9146 = vadd.f32 %v7985, %v8865
  %v9147 = vadd.f32 %v7986, %v8870
  %v9148 = vadd.f32 %v7987, %v8873
  %v9149 = vadd.f32 %v7988, %v8878
  %v9150 = vadd.f32 %v7989, %v8881
  %v9151 = vadd.f32 %v7990, %v8886
  %v9152 = vadd.f32 %v7991, %v8889
  %v9153 = vadd.f32 %v7992, %v8894
  %v9154 = vadd.f32 %v7993, %v8897
  %v9155 = vadd.f32 %v7994, %v8902
  %v9156 = vadd.f32 %v7995, %v8905
  %v9157 = vadd.f32 %v7996, %v8910
  %v9158 = vadd.f32 %v7997, %v8913
  %v9159 = vadd.f32 %v7998, %v8918
  %v9160 = vadd.f32 %v7999, %v8921
  %v9161 = vadd.f32 %v8000, %v8926
  %v9162 = vadd.f32 %v8001, %v8929
  %v9163 = vadd.f32 %v8002, %v8934
  %v9164 = vadd.f32 %v8003, %v8937
  %v9165 = vadd.f32 %v8004, %v8942
  %v9166 = vadd.f32 %v8005, %v8945
  %v9167 = vadd.f32 %v8006, %v8950
  %v9168 = vadd.f32 %v8007, %v8953
  %v9169 = vadd.f32 %v8008, %v8958
  %v9170 = vadd.f32 %v8009, %v8961
  %v9171 = vadd.f32 %v8010, %v8966
  %v9172 = vadd.f32 %v8011, %v8969
  %v9173 = vadd.f32 %v8012, %v8974
  %v9174 = vadd.f32 %v8013, %v8977
  %v9175 = vadd.f32 %v8014, %v8982
  %v9176 = vadd.f32 %v8015, %v8985
  %v9177 = vadd.f32 %v8016, %v8990
  %v9178 = vadd.f32 %v8017, %v8993
  %v9179 = vadd.f32 %v8018, %v8998
  %v9180 = vadd.f32 %v8019, %v9001
  %v9181 = vadd.f32 %v8020, %v9006
  %v9182 = vadd.f32 %v8021, %v9009
  %v9183 = vadd.f32 %v8022, %v9014
  %v9184 = vadd.f32 %v8023, %v9017
  %v9185 = vadd.f32 %v8024, %v9022
  %v9186 = vadd.f32 %v8025, %v9025
  %v9187 = vadd.f32 %v8026, %v9030
  %v9188 = vadd.f32 %v8027, %v9033
  %v9189 = vadd.f32 %v8028, %v9038
  %v9190 = vadd.f32 %v8029, %v9041
  %v9191 = vadd.f32 %v8030, %v9046
  %v9192 = vadd.f32 %v8031, %v9049
  %v9193 = vadd.f32 %v8032, %v9054
  %v9194 = vadd.f32 %v8033, %v9057
  %v9195 = vadd.f32 %v8034, %v9062
  %v9196 = vadd.f32 %v8035, %v9065
  %v9197 = vadd.f32 %v8036, %v9070
  %v9198 = vadd.f32 %v8037, %v9073
  %v9199 = vadd.f32 %v8038, %v9078
  %v9200 = vadd.f32 %v8039, %v9081
  %v9201 = vadd.f32 %v8040, %v9086
  %v9202 = vadd.f32 %v8041, %v9089
  %v9203 = vadd.f32 %v8042, %v9094
  %v9204 = vadd.f32 %v8043, %v9097
  %v9205 = vadd.f32 %v8044, %v9102
  %v9206 = vadd.f32 %v8045, %v9105
  %v9207 = vadd.f32 %v8046, %v9110
  %v9208 = vadd.f32 %v8047, %v9113
  %v9209 = vadd.f32 %v8048, %v9118
  %v9210 = vadd.f32 %v8049, %v9121
  %v9211 = vadd.f32 %v8050, %v9126
  %v9212 = vld [vmem:[#allocation2 + $0x14] sm:$0xe]
  %s9213 = scalar_lea.vmem %s4, 448
  %v9214 = vld [vmem:[%s9213] sm:$0xf]
  %v9215 = vld [vmem:[%s9213 + $0x4] sm:$0xf]
  %v9216 = vld [vmem:[%s9213 + $0x8] sm:$0xf]
  %v9217 = vld [vmem:[%s9213 + $0xc] sm:$0xf]
  %v9218 = vld [vmem:[%s9213 + $0x10] sm:$0xf]
  %v9219 = vld [vmem:[%s9213 + $0x14] sm:$0xf]
  %v9220 = vld [vmem:[%s9213 + $0x18] sm:$0xf]
  %v9221 = vld [vmem:[%s9213 + $0x1c] sm:$0xf]
  %v9222 = vld [vmem:[%s9213 + $0x20] sm:$0xf]
  %v9223 = vld [vmem:[%s9213 + $0x24] sm:$0xf]
  %v9224 = vld [vmem:[%s9213 + $0x28] sm:$0xf]
  %v9225 = vld [vmem:[%s9213 + $0x2c] sm:$0xf]
  %v9226 = vld [vmem:[%s9213 + $0x30] sm:$0xf]
  %v9227 = vld [vmem:[%s9213 + $0x34] sm:$0xf]
  %v9228 = vld [vmem:[%s9213 + $0x38] sm:$0xf]
  %v9229 = vld [vmem:[%s9213 + $0x3c] sm:$0xf]
  %v9231 = vunpack.c.l.b16 %v9212
  %v9232 = vpack.c.b16 %v8233, %v9231
  %vm9233 = vcmask 1046528
  %v9234 = vrot.slane %v9232, 1
  %v9235 = vrot.slane %v8315, 1
  %v9236 = vsel %vm9233, %v9234, %v9235
  %v9237 = vrot.slane %v8316, 1
  %v9238 = vsel %vm9233, %v9235, %v9237
  %v9239 = vrot.slane %v8317, 1
  %v9240 = vsel %vm9233, %v9237, %v9239
  %v9241 = vrot.slane %v8318, 1
  %v9242 = vsel %vm9233, %v9239, %v9241
  %v9243 = vrot.slane %v8319, 1
  %v9244 = vsel %vm9233, %v9241, %v9243
  %v9245 = vrot.slane %v8320, 1
  %v9246 = vsel %vm9233, %v9243, %v9245
  %v9247 = vrot.slane %v8321, 1
  %v9248 = vsel %vm9233, %v9245, %v9247
  %v9249 = vrot.slane %v8322, 1
  %v9250 = vsel %vm9233, %v9247, %v9249
  %v9251 = vrot.slane %v8323, 1
  %v9252 = vsel %vm9233, %v9249, %v9251
  %v9253 = vrot.slane %v8324, 1
  %v9254 = vsel %vm9233, %v9251, %v9253
  %v9255 = vrot.slane %v8325, 1
  %v9256 = vsel %vm9233, %v9253, %v9255
  %v9257 = vrot.slane %v8326, 1
  %v9258 = vsel %vm9233, %v9255, %v9257
  %v9259 = vrot.slane %v8327, 1
  %v9260 = vsel %vm9233, %v9257, %v9259
  %v9261 = vrot.slane %v8328, 1
  %v9262 = vsel %vm9233, %v9259, %v9261
  %v9263 = vrot.slane %v8329, 1
  %v9264 = vsel %vm9233, %v9261, %v9263
  %v9265 = vrot.slane %v8330, 1
  %v9266 = vsel %vm9233, %v9263, %v9265
  %v9267 = vrot.slane %v8331, 1
  %v9268 = vsel %vm9233, %v9265, %v9267
  %v9269 = vrot.slane %v8332, 1
  %v9270 = vsel %vm9233, %v9267, %v9269
  %v9271 = vrot.slane %v8333, 1
  %v9272 = vsel %vm9233, %v9269, %v9271
  %v9273 = vrot.slane %v8334, 1
  %v9274 = vsel %vm9233, %v9271, %v9273
  %v9275 = vrot.slane %v8335, 1
  %v9276 = vsel %vm9233, %v9273, %v9275
  %v9277 = vrot.slane %v8336, 1
  %v9278 = vsel %vm9233, %v9275, %v9277
  %v9279 = vrot.slane %v8337, 1
  %v9280 = vsel %vm9233, %v9277, %v9279
  %v9281 = vrot.slane %v8338, 1
  %v9282 = vsel %vm9233, %v9279, %v9281
  %v9283 = vrot.slane %v8339, 1
  %v9284 = vsel %vm9233, %v9281, %v9283
  %v9285 = vrot.slane %v8340, 1
  %v9286 = vsel %vm9233, %v9283, %v9285
  %v9287 = vrot.slane %v8341, 1
  %v9288 = vsel %vm9233, %v9285, %v9287
  %v9289 = vrot.slane %v8342, 1
  %v9290 = vsel %vm9233, %v9287, %v9289
  %v9291 = vrot.slane %v8343, 1
  %v9292 = vsel %vm9233, %v9289, %v9291
  %v9293 = vrot.slane %v8344, 1
  %v9294 = vsel %vm9233, %v9291, %v9293
  %v9295 = vrot.slane %v8345, 1
  %v9296 = vsel %vm9233, %v9293, %v9295
  %v9297 = vrot.slane %v8346, 1
  %v9298 = vsel %vm9233, %v9295, %v9297
  %v9299 = vrot.slane %v8347, 1
  %v9300 = vsel %vm9233, %v9297, %v9299
  %v9301 = vrot.slane %v8348, 1
  %v9302 = vsel %vm9233, %v9299, %v9301
  %v9303 = vrot.slane %v8349, 1
  %v9304 = vsel %vm9233, %v9301, %v9303
  %v9305 = vrot.slane %v8350, 1
  %v9306 = vsel %vm9233, %v9303, %v9305
  %v9307 = vrot.slane %v8351, 1
  %v9308 = vsel %vm9233, %v9305, %v9307
  %v9309 = vrot.slane %v8352, 1
  %v9310 = vsel %vm9233, %v9307, %v9309
  %v9311 = vrot.slane %v8353, 1
  %v9312 = vsel %vm9233, %v9309, %v9311
  %v9313 = vrot.slane %v8354, 1
  %v9314 = vsel %vm9233, %v9311, %v9313
  %v9372 = vunpack.c.l.b16 %v9214
  %v9373 = vunpack.c.l.b16 %v9215
  %v9374 = vunpack.c.l.b16 %v9216
  %v9375 = vunpack.c.l.b16 %v9217
  %v9376 = vunpack.c.l.b16 %v9218
  %v9377 = vunpack.c.l.b16 %v9219
  %v9378 = vunpack.c.l.b16 %v9220
  %v9379 = vunpack.c.l.b16 %v9221
  %v9380 = vunpack.c.l.b16 %v9222
  %v9381 = vunpack.c.l.b16 %v9223
  %v9382 = vunpack.c.l.b16 %v9224
  %v9383 = vunpack.c.l.b16 %v9225
  %v9384 = vunpack.c.l.b16 %v9226
  %v9385 = vunpack.c.l.b16 %v9227
  %v9386 = vunpack.c.l.b16 %v9228
  %v9387 = vunpack.c.l.b16 %v9229
  %v9388 = vpack.c.b16 %v9373, %v9372
  %v9389 = vpack.c.b16 %v9375, %v9374
  %v9390 = vpack.c.b16 %v9377, %v9376
  %v9391 = vpack.c.b16 %v9379, %v9378
  %v9392 = vpack.c.b16 %v9381, %v9380
  %v9393 = vpack.c.b16 %v9383, %v9382
  %v9394 = vpack.c.b16 %v9385, %v9384
  %v9395 = vpack.c.b16 %v9387, %v9386
  %9404 = vmatprep.subr.bf16.mxu0 0
  %9405 = vmatpush1.bf16.msra.mxu0 %v9388
  %9406 = vmatprep.subr.bf16.mxu0 0
  %9407 = vmatpush1.bf16.msra.mxu0 %v9389
  %9408 = vmatprep.subr.bf16.mxu0 0
  %9409 = vmatpush1.bf16.msra.mxu0 %v9390
  %9410 = vmatprep.subr.bf16.mxu0 0
  %9411 = vmatpush1.bf16.msra.mxu0 %v9391
  %9412 = vmatprep.subr.bf16.mxu0 0
  %9413 = vmatpush1.bf16.msra.mxu0 %v9392
  %9414 = vmatprep.subr.bf16.mxu0 0
  %9415 = vmatpush1.bf16.msra.mxu0 %v9393
  %9416 = vmatprep.subr.bf16.mxu0 0
  %9417 = vmatpush1.bf16.msra.mxu0 %v9394
  %9418 = vmatprep.subr.bf16.mxu0 0
  %9419 = vmatpush1.bf16.msra.mxu0 %v9395
  %9420 = vmatprep.subr.bf16.mxu0 0
  %9421 = vmatpush1.bf16.msra.mxu0 0
  %9422 = vmatprep.subr.bf16.mxu0 0
  %9423 = vmatpush1.bf16.msra.mxu0 0
  %9424 = vmatprep.subr.bf16.mxu0 0
  %9425 = vmatpush1.bf16.msra.mxu0 0
  %9426 = vmatprep.subr.bf16.mxu0 0
  %9427 = vmatpush1.bf16.msra.mxu0 0
  %9428 = vmatprep.subr.bf16.mxu0 0
  %9429 = vmatpush1.bf16.msra.mxu0 0
  %9430 = vmatprep.subr.bf16.mxu0 0
  %9431 = vmatpush1.bf16.msra.mxu0 0
  %9432 = vmatprep.subr.bf16.mxu0 0
  %9433 = vmatpush1.bf16.msra.mxu0 0
  %9434 = vmatprep.subr.bf16.mxu0 0
  %9435 = vmatpush1.bf16.msra.mxu0 0
  %9436 = vmatprep.mubr.bf16.mxu0 0
  %9437 = vmatmul.mubr.bf16.gmra.mrb[0].mxu0 %v9236
  %v9438 = vpop.f32.mrb[0].mxu0
  %v9439 = vadd.f32 0.0, %v9438
  %v9440 = vpop.f32.mrb[0].mxu0
  %v9441 = vpop.f32.mrb[0].mxu0
  %v9442 = vadd.f32 0.0, %v9441
  %v9443 = vpop.f32.mrb[0].mxu0
  %9444 = vmatprep.mubr.bf16.mxu0 0
  %9445 = vmatmul.mubr.bf16.gmra.mrb[0].mxu0 %v9238
  %v9446 = vpop.f32.mrb[0].mxu0
  %v9447 = vadd.f32 0.0, %v9446
  %v9448 = vpop.f32.mrb[0].mxu0
  %v9449 = vpop.f32.mrb[0].mxu0
  %v9450 = vadd.f32 0.0, %v9449
  %v9451 = vpop.f32.mrb[0].mxu0
  %9452 = vmatprep.mubr.bf16.mxu0 0
  %9453 = vmatmul.mubr.bf16.gmra.mrb[0].mxu0 %v9240
  %v9454 = vpop.f32.mrb[0].mxu0
  %v9455 = vadd.f32 0.0, %v9454
  %v9456 = vpop.f32.mrb[0].mxu0
  %v9457 = vpop.f32.mrb[0].mxu0
  %v9458 = vadd.f32 0.0, %v9457
  %v9459 = vpop.f32.mrb[0].mxu0
  %9460 = vmatprep.mubr.bf16.mxu0 0
  %9461 = vmatmul.mubr.bf16.gmra.mrb[0].mxu0 %v9242
  %v9462 = vpop.f32.mrb[0].mxu0
  %v9463 = vadd.f32 0.0, %v9462
  %v9464 = vpop.f32.mrb[0].mxu0
  %v9465 = vpop.f32.mrb[0].mxu0
  %v9466 = vadd.f32 0.0, %v9465
  %v9467 = vpop.f32.mrb[0].mxu0
  %9468 = vmatprep.mubr.bf16.mxu0 0
  %9469 = vmatmul.mubr.bf16.gmra.mrb[0].mxu0 %v9244
  %v9470 = vpop.f32.mrb[0].mxu0
  %v9471 = vadd.f32 0.0, %v9470
  %v9472 = vpop.f32.mrb[0].mxu0
  %v9473 = vpop.f32.mrb[0].mxu0
  %v9474 = vadd.f32 0.0, %v9473
  %v9475 = vpop.f32.mrb[0].mxu0
  %9476 = vmatprep.mubr.bf16.mxu0 0
  %9477 = vmatmul.mubr.bf16.gmra.mrb[0].mxu0 %v9246
  %v9478 = vpop.f32.mrb[0].mxu0
  %v9479 = vadd.f32 0.0, %v9478
  %v9480 = vpop.f32.mrb[0].mxu0
  %v9481 = vpop.f32.mrb[0].mxu0
  %v9482 = vadd.f32 0.0, %v9481
  %v9483 = vpop.f32.mrb[0].mxu0
  %9484 = vmatprep.mubr.bf16.mxu0 0
  %9485 = vmatmul.mubr.bf16.gmra.mrb[0].mxu0 %v9248
  %v9486 = vpop.f32.mrb[0].mxu0
  %v9487 = vadd.f32 0.0, %v9486
  %v9488 = vpop.f32.mrb[0].mxu0
  %v9489 = vpop.f32.mrb[0].mxu0
  %v9490 = vadd.f32 0.0, %v9489
  %v9491 = vpop.f32.mrb[0].mxu0
  %9492 = vmatprep.mubr.bf16.mxu0 0
  %9493 = vmatmul.mubr.bf16.gmra.mrb[0].mxu0 %v9250
  %v9494 = vpop.f32.mrb[0].mxu0
  %v9495 = vadd.f32 0.0, %v9494
  %v9496 = vpop.f32.mrb[0].mxu0
  %v9497 = vpop.f32.mrb[0].mxu0
  %v9498 = vadd.f32 0.0, %v9497
  %v9499 = vpop.f32.mrb[0].mxu0
  %9500 = vmatprep.mubr.bf16.mxu0 0
  %9501 = vmatmul.mubr.bf16.gmra.mrb[0].mxu0 %v9252
  %v9502 = vpop.f32.mrb[0].mxu0
  %v9503 = vadd.f32 0.0, %v9502
  %v9504 = vpop.f32.mrb[0].mxu0
  %v9505 = vpop.f32.mrb[0].mxu0
  %v9506 = vadd.f32 0.0, %v9505
  %v9507 = vpop.f32.mrb[0].mxu0
  %9508 = vmatprep.mubr.bf16.mxu0 0
  %9509 = vmatmul.mubr.bf16.gmra.mrb[0].mxu0 %v9254
  %v9510 = vpop.f32.mrb[0].mxu0
  %v9511 = vadd.f32 0.0, %v9510
  %v9512 = vpop.f32.mrb[0].mxu0
  %v9513 = vpop.f32.mrb[0].mxu0
  %v9514 = vadd.f32 0.0, %v9513
  %v9515 = vpop.f32.mrb[0].mxu0
  %9516 = vmatprep.mubr.bf16.mxu0 0
  %9517 = vmatmul.mubr.bf16.gmra.mrb[0].mxu0 %v9256
  %v9518 = vpop.f32.mrb[0].mxu0
  %v9519 = vadd.f32 0.0, %v9518
  %v9520 = vpop.f32.mrb[0].mxu0
  %v9521 = vpop.f32.mrb[0].mxu0
  %v9522 = vadd.f32 0.0, %v9521
  %v9523 = vpop.f32.mrb[0].mxu0
  %9524 = vmatprep.mubr.bf16.mxu0 0
  %9525 = vmatmul.mubr.bf16.gmra.mrb[0].mxu0 %v9258
  %v9526 = vpop.f32.mrb[0].mxu0
  %v9527 = vadd.f32 0.0, %v9526
  %v9528 = vpop.f32.mrb[0].mxu0
  %v9529 = vpop.f32.mrb[0].mxu0
  %v9530 = vadd.f32 0.0, %v9529
  %v9531 = vpop.f32.mrb[0].mxu0
  %9532 = vmatprep.mubr.bf16.mxu0 0
  %9533 = vmatmul.mubr.bf16.gmra.mrb[0].mxu0 %v9260
  %v9534 = vpop.f32.mrb[0].mxu0
  %v9535 = vadd.f32 0.0, %v9534
  %v9536 = vpop.f32.mrb[0].mxu0
  %v9537 = vpop.f32.mrb[0].mxu0
  %v9538 = vadd.f32 0.0, %v9537
  %v9539 = vpop.f32.mrb[0].mxu0
  %9540 = vmatprep.mubr.bf16.mxu0 0
  %9541 = vmatmul.mubr.bf16.gmra.mrb[0].mxu0 %v9262
  %v9542 = vpop.f32.mrb[0].mxu0
  %v9543 = vadd.f32 0.0, %v9542
  %v9544 = vpop.f32.mrb[0].mxu0
  %v9545 = vpop.f32.mrb[0].mxu0
  %v9546 = vadd.f32 0.0, %v9545
  %v9547 = vpop.f32.mrb[0].mxu0
  %9548 = vmatprep.mubr.bf16.mxu0 0
  %9549 = vmatmul.mubr.bf16.gmra.mrb[0].mxu0 %v9264
  %v9550 = vpop.f32.mrb[0].mxu0
  %v9551 = vadd.f32 0.0, %v9550
  %v9552 = vpop.f32.mrb[0].mxu0
  %v9553 = vpop.f32.mrb[0].mxu0
  %v9554 = vadd.f32 0.0, %v9553
  %v9555 = vpop.f32.mrb[0].mxu0
  %9556 = vmatprep.mubr.bf16.mxu0 0
  %9557 = vmatmul.mubr.bf16.gmra.mrb[0].mxu0 %v9266
  %v9558 = vpop.f32.mrb[0].mxu0
  %v9559 = vadd.f32 0.0, %v9558
  %v9560 = vpop.f32.mrb[0].mxu0
  %v9561 = vpop.f32.mrb[0].mxu0
  %v9562 = vadd.f32 0.0, %v9561
  %v9563 = vpop.f32.mrb[0].mxu0
  %9564 = vmatprep.mubr.bf16.mxu0 0
  %9565 = vmatmul.mubr.bf16.gmra.mrb[0].mxu0 %v9268
  %v9566 = vpop.f32.mrb[0].mxu0
  %v9567 = vadd.f32 0.0, %v9566
  %v9568 = vpop.f32.mrb[0].mxu0
  %v9569 = vpop.f32.mrb[0].mxu0
  %v9570 = vadd.f32 0.0, %v9569
  %v9571 = vpop.f32.mrb[0].mxu0
  %9572 = vmatprep.mubr.bf16.mxu0 0
  %9573 = vmatmul.mubr.bf16.gmra.mrb[0].mxu0 %v9270
  %v9574 = vpop.f32.mrb[0].mxu0
  %v9575 = vadd.f32 0.0, %v9574
  %v9576 = vpop.f32.mrb[0].mxu0
  %v9577 = vpop.f32.mrb[0].mxu0
  %v9578 = vadd.f32 0.0, %v9577
  %v9579 = vpop.f32.mrb[0].mxu0
  %9580 = vmatprep.mubr.bf16.mxu0 0
  %9581 = vmatmul.mubr.bf16.gmra.mrb[0].mxu0 %v9272
  %v9582 = vpop.f32.mrb[0].mxu0
  %v9583 = vadd.f32 0.0, %v9582
  %v9584 = vpop.f32.mrb[0].mxu0
  %v9585 = vpop.f32.mrb[0].mxu0
  %v9586 = vadd.f32 0.0, %v9585
  %v9587 = vpop.f32.mrb[0].mxu0
  %9588 = vmatprep.mubr.bf16.mxu0 0
  %9589 = vmatmul.mubr.bf16.gmra.mrb[0].mxu0 %v9274
  %v9590 = vpop.f32.mrb[0].mxu0
  %v9591 = vadd.f32 0.0, %v9590
  %v9592 = vpop.f32.mrb[0].mxu0
  %v9593 = vpop.f32.mrb[0].mxu0
  %v9594 = vadd.f32 0.0, %v9593
  %v9595 = vpop.f32.mrb[0].mxu0
  %9596 = vmatprep.mubr.bf16.mxu0 0
  %9597 = vmatmul.mubr.bf16.gmra.mrb[0].mxu0 %v9276
  %v9598 = vpop.f32.mrb[0].mxu0
  %v9599 = vadd.f32 0.0, %v9598
  %v9600 = vpop.f32.mrb[0].mxu0
  %v9601 = vpop.f32.mrb[0].mxu0
  %v9602 = vadd.f32 0.0, %v9601
  %v9603 = vpop.f32.mrb[0].mxu0
  %9604 = vmatprep.mubr.bf16.mxu0 0
  %9605 = vmatmul.mubr.bf16.gmra.mrb[0].mxu0 %v9278
  %v9606 = vpop.f32.mrb[0].mxu0
  %v9607 = vadd.f32 0.0, %v9606
  %v9608 = vpop.f32.mrb[0].mxu0
  %v9609 = vpop.f32.mrb[0].mxu0
  %v9610 = vadd.f32 0.0, %v9609
  %v9611 = vpop.f32.mrb[0].mxu0
  %9612 = vmatprep.mubr.bf16.mxu0 0
  %9613 = vmatmul.mubr.bf16.gmra.mrb[0].mxu0 %v9280
  %v9614 = vpop.f32.mrb[0].mxu0
  %v9615 = vadd.f32 0.0, %v9614
  %v9616 = vpop.f32.mrb[0].mxu0
  %v9617 = vpop.f32.mrb[0].mxu0
  %v9618 = vadd.f32 0.0, %v9617
  %v9619 = vpop.f32.mrb[0].mxu0
  %9620 = vmatprep.mubr.bf16.mxu0 0
  %9621 = vmatmul.mubr.bf16.gmra.mrb[0].mxu0 %v9282
  %v9622 = vpop.f32.mrb[0].mxu0
  %v9623 = vadd.f32 0.0, %v9622
  %v9624 = vpop.f32.mrb[0].mxu0
  %v9625 = vpop.f32.mrb[0].mxu0
  %v9626 = vadd.f32 0.0, %v9625
  %v9627 = vpop.f32.mrb[0].mxu0
  %9628 = vmatprep.mubr.bf16.mxu0 0
  %9629 = vmatmul.mubr.bf16.gmra.mrb[0].mxu0 %v9284
  %v9630 = vpop.f32.mrb[0].mxu0
  %v9631 = vadd.f32 0.0, %v9630
  %v9632 = vpop.f32.mrb[0].mxu0
  %v9633 = vpop.f32.mrb[0].mxu0
  %v9634 = vadd.f32 0.0, %v9633
  %v9635 = vpop.f32.mrb[0].mxu0
  %9636 = vmatprep.mubr.bf16.mxu0 0
  %9637 = vmatmul.mubr.bf16.gmra.mrb[0].mxu0 %v9286
  %v9638 = vpop.f32.mrb[0].mxu0
  %v9639 = vadd.f32 0.0, %v9638
  %v9640 = vpop.f32.mrb[0].mxu0
  %v9641 = vpop.f32.mrb[0].mxu0
  %v9642 = vadd.f32 0.0, %v9641
  %v9643 = vpop.f32.mrb[0].mxu0
  %9644 = vmatprep.mubr.bf16.mxu0 0
  %9645 = vmatmul.mubr.bf16.gmra.mrb[0].mxu0 %v9288
  %v9646 = vpop.f32.mrb[0].mxu0
  %v9647 = vadd.f32 0.0, %v9646
  %v9648 = vpop.f32.mrb[0].mxu0
  %v9649 = vpop.f32.mrb[0].mxu0
  %v9650 = vadd.f32 0.0, %v9649
  %v9651 = vpop.f32.mrb[0].mxu0
  %9652 = vmatprep.mubr.bf16.mxu0 0
  %9653 = vmatmul.mubr.bf16.gmra.mrb[0].mxu0 %v9290
  %v9654 = vpop.f32.mrb[0].mxu0
  %v9655 = vadd.f32 0.0, %v9654
  %v9656 = vpop.f32.mrb[0].mxu0
  %v9657 = vpop.f32.mrb[0].mxu0
  %v9658 = vadd.f32 0.0, %v9657
  %v9659 = vpop.f32.mrb[0].mxu0
  %9660 = vmatprep.mubr.bf16.mxu0 0
  %9661 = vmatmul.mubr.bf16.gmra.mrb[0].mxu0 %v9292
  %v9662 = vpop.f32.mrb[0].mxu0
  %v9663 = vadd.f32 0.0, %v9662
  %v9664 = vpop.f32.mrb[0].mxu0
  %v9665 = vpop.f32.mrb[0].mxu0
  %v9666 = vadd.f32 0.0, %v9665
  %v9667 = vpop.f32.mrb[0].mxu0
  %9668 = vmatprep.mubr.bf16.mxu0 0
  %9669 = vmatmul.mubr.bf16.gmra.mrb[0].mxu0 %v9294
  %v9670 = vpop.f32.mrb[0].mxu0
  %v9671 = vadd.f32 0.0, %v9670
  %v9672 = vpop.f32.mrb[0].mxu0
  %v9673 = vpop.f32.mrb[0].mxu0
  %v9674 = vadd.f32 0.0, %v9673
  %v9675 = vpop.f32.mrb[0].mxu0
  %9676 = vmatprep.mubr.bf16.mxu0 0
  %9677 = vmatmul.mubr.bf16.gmra.mrb[0].mxu0 %v9296
  %v9678 = vpop.f32.mrb[0].mxu0
  %v9679 = vadd.f32 0.0, %v9678
  %v9680 = vpop.f32.mrb[0].mxu0
  %v9681 = vpop.f32.mrb[0].mxu0
  %v9682 = vadd.f32 0.0, %v9681
  %v9683 = vpop.f32.mrb[0].mxu0
  %9684 = vmatprep.mubr.bf16.mxu0 0
  %9685 = vmatmul.mubr.bf16.gmra.mrb[0].mxu0 %v9298
  %v9686 = vpop.f32.mrb[0].mxu0
  %v9687 = vadd.f32 0.0, %v9686
  %v9688 = vpop.f32.mrb[0].mxu0
  %v9689 = vpop.f32.mrb[0].mxu0
  %v9690 = vadd.f32 0.0, %v9689
  %v9691 = vpop.f32.mrb[0].mxu0
  %9692 = vmatprep.mubr.bf16.mxu0 0
  %9693 = vmatmul.mubr.bf16.gmra.mrb[0].mxu0 %v9300
  %v9694 = vpop.f32.mrb[0].mxu0
  %v9695 = vadd.f32 0.0, %v9694
  %v9696 = vpop.f32.mrb[0].mxu0
  %v9697 = vpop.f32.mrb[0].mxu0
  %v9698 = vadd.f32 0.0, %v9697
  %v9699 = vpop.f32.mrb[0].mxu0
  %9700 = vmatprep.mubr.bf16.mxu0 0
  %9701 = vmatmul.mubr.bf16.gmra.mrb[0].mxu0 %v9302
  %v9702 = vpop.f32.mrb[0].mxu0
  %v9703 = vadd.f32 0.0, %v9702
  %v9704 = vpop.f32.mrb[0].mxu0
  %v9705 = vpop.f32.mrb[0].mxu0
  %v9706 = vadd.f32 0.0, %v9705
  %v9707 = vpop.f32.mrb[0].mxu0
  %9708 = vmatprep.mubr.bf16.mxu0 0
  %9709 = vmatmul.mubr.bf16.gmra.mrb[0].mxu0 %v9304
  %v9710 = vpop.f32.mrb[0].mxu0
  %v9711 = vadd.f32 0.0, %v9710
  %v9712 = vpop.f32.mrb[0].mxu0
  %v9713 = vpop.f32.mrb[0].mxu0
  %v9714 = vadd.f32 0.0, %v9713
  %v9715 = vpop.f32.mrb[0].mxu0
  %9716 = vmatprep.mubr.bf16.mxu0 0
  %9717 = vmatmul.mubr.bf16.gmra.mrb[0].mxu0 %v9306
  %v9718 = vpop.f32.mrb[0].mxu0
  %v9719 = vadd.f32 0.0, %v9718
  %v9720 = vpop.f32.mrb[0].mxu0
  %v9721 = vpop.f32.mrb[0].mxu0
  %v9722 = vadd.f32 0.0, %v9721
  %v9723 = vpop.f32.mrb[0].mxu0
  %9724 = vmatprep.mubr.bf16.mxu0 0
  %9725 = vmatmul.mubr.bf16.gmra.mrb[0].mxu0 %v9308
  %v9726 = vpop.f32.mrb[0].mxu0
  %v9727 = vadd.f32 0.0, %v9726
  %v9728 = vpop.f32.mrb[0].mxu0
  %v9729 = vpop.f32.mrb[0].mxu0
  %v9730 = vadd.f32 0.0, %v9729
  %v9731 = vpop.f32.mrb[0].mxu0
  %9732 = vmatprep.mubr.bf16.mxu0 0
  %9733 = vmatmul.mubr.bf16.gmra.mrb[0].mxu0 %v9310
  %v9734 = vpop.f32.mrb[0].mxu0
  %v9735 = vadd.f32 0.0, %v9734
  %v9736 = vpop.f32.mrb[0].mxu0
  %v9737 = vpop.f32.mrb[0].mxu0
  %v9738 = vadd.f32 0.0, %v9737
  %v9739 = vpop.f32.mrb[0].mxu0
  %9740 = vmatprep.mubr.bf16.mxu0 0
  %9741 = vmatmul.mubr.bf16.gmra.mrb[0].mxu0 %v9312
  %v9742 = vpop.f32.mrb[0].mxu0
  %v9743 = vadd.f32 0.0, %v9742
  %v9744 = vpop.f32.mrb[0].mxu0
  %v9745 = vpop.f32.mrb[0].mxu0
  %v9746 = vadd.f32 0.0, %v9745
  %v9747 = vpop.f32.mrb[0].mxu0
  %9748 = vmatprep.mubr.bf16.mxu0 0
  %9749 = vmatmul.mubr.bf16.gmra.mrb[0].mxu0 %v9314
  %v9750 = vpop.f32.mrb[0].mxu0
  %v9751 = vadd.f32 0.0, %v9750
  %v9752 = vpop.f32.mrb[0].mxu0
  %v9753 = vpop.f32.mrb[0].mxu0
  %v9754 = vadd.f32 0.0, %v9753
  %v9755 = vpop.f32.mrb[0].mxu0
  %9756 = vmatprep.mubr.bf16.mxu0 0
  %9757 = vmatmul.mubr.bf16.gmra.mrb[0].mxu0 %v9313
  %v9758 = vpop.f32.mrb[0].mxu0
  %v9759 = vadd.f32 0.0, %v9758
  %v9760 = vpop.f32.mrb[0].mxu0
  %v9761 = vpop.f32.mrb[0].mxu0
  %v9762 = vpop.f32.mrb[0].mxu0
  %9763 = vdwg.mxu0
  %v9764 = vadd.f32 %v9131, %v9439
  %v9765 = vadd.f32 %v9132, %v9442
  %v9766 = vadd.f32 %v9133, %v9447
  %v9767 = vadd.f32 %v9134, %v9450
  %v9768 = vadd.f32 %v9135, %v9455
  %v9769 = vadd.f32 %v9136, %v9458
  %v9770 = vadd.f32 %v9137, %v9463
  %v9771 = vadd.f32 %v9138, %v9466
  %v9772 = vadd.f32 %v9139, %v9471
  %v9773 = vadd.f32 %v9140, %v9474
  %v9774 = vadd.f32 %v9141, %v9479
  %v9775 = vadd.f32 %v9142, %v9482
  %v9776 = vadd.f32 %v9143, %v9487
  %v9777 = vadd.f32 %v9144, %v9490
  %v9778 = vadd.f32 %v9145, %v9495
  %v9779 = vadd.f32 %v9146, %v9498
  %v9780 = vadd.f32 %v9147, %v9503
  %v9781 = vadd.f32 %v9148, %v9506
  %v9782 = vadd.f32 %v9149, %v9511
  %v9783 = vadd.f32 %v9150, %v9514
  %v9784 = vadd.f32 %v9151, %v9519
  %v9785 = vadd.f32 %v9152, %v9522
  %v9786 = vadd.f32 %v9153, %v9527
  %v9787 = vadd.f32 %v9154, %v9530
  %v9788 = vadd.f32 %v9155, %v9535
  %v9789 = vadd.f32 %v9156, %v9538
  %v9790 = vadd.f32 %v9157, %v9543
  %v9791 = vadd.f32 %v9158, %v9546
  %v9792 = vadd.f32 %v9159, %v9551
  %v9793 = vadd.f32 %v9160, %v9554
  %v9794 = vadd.f32 %v9161, %v9559
  %v9795 = vadd.f32 %v9162, %v9562
  %v9796 = vadd.f32 %v9163, %v9567
  %v9797 = vadd.f32 %v9164, %v9570
  %v9798 = vadd.f32 %v9165, %v9575
  %v9799 = vadd.f32 %v9166, %v9578
  %v9800 = vadd.f32 %v9167, %v9583
  %v9801 = vadd.f32 %v9168, %v9586
  %v9802 = vadd.f32 %v9169, %v9591
  %v9803 = vadd.f32 %v9170, %v9594
  %v9804 = vadd.f32 %v9171, %v9599
  %v9805 = vadd.f32 %v9172, %v9602
  %v9806 = vadd.f32 %v9173, %v9607
  %v9807 = vadd.f32 %v9174, %v9610
  %v9808 = vadd.f32 %v9175, %v9615
  %v9809 = vadd.f32 %v9176, %v9618
  %v9810 = vadd.f32 %v9177, %v9623
  %v9811 = vadd.f32 %v9178, %v9626
  %v9812 = vadd.f32 %v9179, %v9631
  %v9813 = vadd.f32 %v9180, %v9634
  %v9814 = vadd.f32 %v9181, %v9639
  %v9815 = vadd.f32 %v9182, %v9642
  %v9816 = vadd.f32 %v9183, %v9647
  %v9817 = vadd.f32 %v9184, %v9650
  %v9818 = vadd.f32 %v9185, %v9655
  %v9819 = vadd.f32 %v9186, %v9658
  %v9820 = vadd.f32 %v9187, %v9663
  %v9821 = vadd.f32 %v9188, %v9666
  %v9822 = vadd.f32 %v9189, %v9671
  %v9823 = vadd.f32 %v9190, %v9674
  %v9824 = vadd.f32 %v9191, %v9679
  %v9825 = vadd.f32 %v9192, %v9682
  %v9826 = vadd.f32 %v9193, %v9687
  %v9827 = vadd.f32 %v9194, %v9690
  %v9828 = vadd.f32 %v9195, %v9695
  %v9829 = vadd.f32 %v9196, %v9698
  %v9830 = vadd.f32 %v9197, %v9703
  %v9831 = vadd.f32 %v9198, %v9706
  %v9832 = vadd.f32 %v9199, %v9711
  %v9833 = vadd.f32 %v9200, %v9714
  %v9834 = vadd.f32 %v9201, %v9719
  %v9835 = vadd.f32 %v9202, %v9722
  %v9836 = vadd.f32 %v9203, %v9727
  %v9837 = vadd.f32 %v9204, %v9730
  %v9838 = vadd.f32 %v9205, %v9735
  %v9839 = vadd.f32 %v9206, %v9738
  %v9840 = vadd.f32 %v9207, %v9743
  %v9841 = vadd.f32 %v9208, %v9746
  %v9842 = vadd.f32 %v9209, %v9751
  %v9843 = vadd.f32 %v9210, %v9754
  %v9844 = vadd.f32 %v9211, %v9759
  %v9845 = vld [vmem:[#allocation2 + $0x158] sm:$0x3]
  %s9846 = scalar_lea.vmem %s4, 512
  %v9847 = vld [vmem:[%s9846] sm:$0xf]
  %v9848 = vld [vmem:[%s9846 + $0x4] sm:$0xf]
  %v9849 = vld [vmem:[%s9846 + $0x8] sm:$0xf]
  %v9850 = vld [vmem:[%s9846 + $0xc] sm:$0xf]
  %v9851 = vld [vmem:[%s9846 + $0x10] sm:$0xf]
  %v9852 = vld [vmem:[%s9846 + $0x14] sm:$0xf]
  %v9853 = vld [vmem:[%s9846 + $0x18] sm:$0xf]
  %v9854 = vld [vmem:[%s9846 + $0x1c] sm:$0xf]
  %v9855 = vld [vmem:[%s9846 + $0x20] sm:$0xf]
  %v9856 = vld [vmem:[%s9846 + $0x24] sm:$0xf]
  %v9857 = vld [vmem:[%s9846 + $0x28] sm:$0xf]
  %v9858 = vld [vmem:[%s9846 + $0x2c] sm:$0xf]
  %v9859 = vld [vmem:[%s9846 + $0x30] sm:$0xf]
  %v9860 = vld [vmem:[%s9846 + $0x34] sm:$0xf]
  %v9861 = vld [vmem:[%s9846 + $0x38] sm:$0xf]
  %v9862 = vld [vmem:[%s9846 + $0x3c] sm:$0xf]
  %v9864 = vunpack.c.l.b16 %v9845
  %v9865 = vpack.c.b16 %v9864, %v8312
  %vm9866 = vsmask.f32 6400
  %v9868 = vshrl.u32 %v9232, 16
  %v9870 = vrot.slane %v9868, 1
  %v9871 = vshll.u32 %v9232, 16
  %v9873 = vrot.slane %v9871, 2
  %v9874 = vor.u32 %v9870, %v9873
  %v9875 = vrot.slane %v8367, 1
  %v9876 = vrot.slane %v8363, 2
  %v9877 = vor.u32 %v9875, %v9876
  %v9878 = vsel %vm9866, %v9874, %v9877
  %v9879 = vrot.slane %v8375, 1
  %v9880 = vrot.slane %v8371, 2
  %v9881 = vor.u32 %v9879, %v9880
  %v9882 = vsel %vm9866, %v9877, %v9881
  %v9883 = vrot.slane %v8383, 1
  %v9884 = vrot.slane %v8379, 2
  %v9885 = vor.u32 %v9883, %v9884
  %v9886 = vsel %vm9866, %v9881, %v9885
  %v9887 = vrot.slane %v8391, 1
  %v9888 = vrot.slane %v8387, 2
  %v9889 = vor.u32 %v9887, %v9888
  %v9890 = vsel %vm9866, %v9885, %v9889
  %v9891 = vrot.slane %v8399, 1
  %v9892 = vrot.slane %v8395, 2
  %v9893 = vor.u32 %v9891, %v9892
  %v9894 = vsel %vm9866, %v9889, %v9893
  %v9895 = vrot.slane %v8407, 1
  %v9896 = vrot.slane %v8403, 2
  %v9897 = vor.u32 %v9895, %v9896
  %v9898 = vsel %vm9866, %v9893, %v9897
  %v9899 = vrot.slane %v8415, 1
  %v9900 = vrot.slane %v8411, 2
  %v9901 = vor.u32 %v9899, %v9900
  %v9902 = vsel %vm9866, %v9897, %v9901
  %v9903 = vrot.slane %v8423, 1
  %v9904 = vrot.slane %v8419, 2
  %v9905 = vor.u32 %v9903, %v9904
  %v9906 = vsel %vm9866, %v9901, %v9905
  %v9907 = vrot.slane %v8431, 1
  %v9908 = vrot.slane %v8427, 2
  %v9909 = vor.u32 %v9907, %v9908
  %v9910 = vsel %vm9866, %v9905, %v9909
  %v9911 = vrot.slane %v8439, 1
  %v9912 = vrot.slane %v8435, 2
  %v9913 = vor.u32 %v9911, %v9912
  %v9914 = vsel %vm9866, %v9909, %v9913
  %v9915 = vrot.slane %v8447, 1
  %v9916 = vrot.slane %v8443, 2
  %v9917 = vor.u32 %v9915, %v9916
  %v9918 = vsel %vm9866, %v9913, %v9917
  %v9919 = vrot.slane %v8455, 1
  %v9920 = vrot.slane %v8451, 2
  %v9921 = vor.u32 %v9919, %v9920
  %v9922 = vsel %vm9866, %v9917, %v9921
  %v9923 = vrot.slane %v8463, 1
  %v9924 = vrot.slane %v8459, 2
  %v9925 = vor.u32 %v9923, %v9924
  %v9926 = vsel %vm9866, %v9921, %v9925
  %v9927 = vrot.slane %v8471, 1
  %v9928 = vrot.slane %v8467, 2
  %v9929 = vor.u32 %v9927, %v9928
  %v9930 = vsel %vm9866, %v9925, %v9929
  %v9931 = vrot.slane %v8479, 1
  %v9932 = vrot.slane %v8475, 2
  %v9933 = vor.u32 %v9931, %v9932
  %v9934 = vsel %vm9866, %v9929, %v9933
  %v9935 = vrot.slane %v8487, 1
  %v9936 = vrot.slane %v8483, 2
  %v9937 = vor.u32 %v9935, %v9936
  %v9938 = vsel %vm9866, %v9933, %v9937
  %v9939 = vrot.slane %v8495, 1
  %v9940 = vrot.slane %v8491, 2
  %v9941 = vor.u32 %v9939, %v9940
  %v9942 = vsel %vm9866, %v9937, %v9941
  %v9943 = vrot.slane %v8503, 1
  %v9944 = vrot.slane %v8499, 2
  %v9945 = vor.u32 %v9943, %v9944
  %v9946 = vsel %vm9866, %v9941, %v9945
  %v9947 = vrot.slane %v8511, 1
  %v9948 = vrot.slane %v8507, 2
  %v9949 = vor.u32 %v9947, %v9948
  %v9950 = vsel %vm9866, %v9945, %v9949
  %v9951 = vrot.slane %v8519, 1
  %v9952 = vrot.slane %v8515, 2
  %v9953 = vor.u32 %v9951, %v9952
  %v9954 = vsel %vm9866, %v9949, %v9953
  %v9955 = vrot.slane %v8527, 1
  %v9956 = vrot.slane %v8523, 2
  %v9957 = vor.u32 %v9955, %v9956
  %v9958 = vsel %vm9866, %v9953, %v9957
  %v9959 = vrot.slane %v8535, 1
  %v9960 = vrot.slane %v8531, 2
  %v9961 = vor.u32 %v9959, %v9960
  %v9962 = vsel %vm9866, %v9957, %v9961
  %v9963 = vrot.slane %v8543, 1
  %v9964 = vrot.slane %v8539, 2
  %v9965 = vor.u32 %v9963, %v9964
  %v9966 = vsel %vm9866, %v9961, %v9965
  %v9967 = vrot.slane %v8551, 1
  %v9968 = vrot.slane %v8547, 2
  %v9969 = vor.u32 %v9967, %v9968
  %v9970 = vsel %vm9866, %v9965, %v9969
  %v9971 = vrot.slane %v8559, 1
  %v9972 = vrot.slane %v8555, 2
  %v9973 = vor.u32 %v9971, %v9972
  %v9974 = vsel %vm9866, %v9969, %v9973
  %v9975 = vrot.slane %v8567, 1
  %v9976 = vrot.slane %v8563, 2
  %v9977 = vor.u32 %v9975, %v9976
  %v9978 = vsel %vm9866, %v9973, %v9977
  %v9979 = vrot.slane %v8575, 1
  %v9980 = vrot.slane %v8571, 2
  %v9981 = vor.u32 %v9979, %v9980
  %v9982 = vsel %vm9866, %v9977, %v9981
  %v9983 = vrot.slane %v8583, 1
  %v9984 = vrot.slane %v8579, 2
  %v9985 = vor.u32 %v9983, %v9984
  %v9986 = vsel %vm9866, %v9981, %v9985
  %v9987 = vrot.slane %v8591, 1
  %v9988 = vrot.slane %v8587, 2
  %v9989 = vor.u32 %v9987, %v9988
  %v9990 = vsel %vm9866, %v9985, %v9989
  %v9991 = vrot.slane %v8599, 1
  %v9992 = vrot.slane %v8595, 2
  %v9993 = vor.u32 %v9991, %v9992
  %v9994 = vsel %vm9866, %v9989, %v9993
  %v9995 = vrot.slane %v8607, 1
  %v9996 = vrot.slane %v8603, 2
  %v9997 = vor.u32 %v9995, %v9996
  %v9998 = vsel %vm9866, %v9993, %v9997
  %v9999 = vrot.slane %v8615, 1
  %v10000 = vrot.slane %v8611, 2
  %v10001 = vor.u32 %v9999, %v10000
  %v10002 = vsel %vm9866, %v9997, %v10001
  %v10003 = vrot.slane %v8623, 1
  %v10004 = vrot.slane %v8619, 2
  %v10005 = vor.u32 %v10003, %v10004
  %v10006 = vsel %vm9866, %v10001, %v10005
  %v10007 = vrot.slane %v8631, 1
  %v10008 = vrot.slane %v8627, 2
  %v10009 = vor.u32 %v10007, %v10008
  %v10010 = vsel %vm9866, %v10005, %v10009
  %v10011 = vrot.slane %v8639, 1
  %v10012 = vrot.slane %v8635, 2
  %v10013 = vor.u32 %v10011, %v10012
  %v10014 = vsel %vm9866, %v10009, %v10013
  %v10015 = vrot.slane %v8647, 1
  %v10016 = vrot.slane %v8643, 2
  %v10017 = vor.u32 %v10015, %v10016
  %v10018 = vsel %vm9866, %v10013, %v10017
  %v10019 = vrot.slane %v8655, 1
  %v10020 = vrot.slane %v8651, 2
  %v10021 = vor.u32 %v10019, %v10020
  %v10022 = vsel %vm9866, %v10017, %v10021
  %v10023 = vrot.slane %v8663, 1
  %v10024 = vrot.slane %v8659, 2
  %v10025 = vor.u32 %v10023, %v10024
  %v10026 = vsel %vm9866, %v10021, %v10025
  %v10027 = vrot.slane %v8671, 1
  %v10028 = vrot.slane %v8667, 2
  %v10029 = vor.u32 %v10027, %v10028
  %v10030 = vsel %vm9866, %v10025, %v10029
  %v10032 = vshrl.u32 %v9865, 16
  %v10034 = vrot.slane %v10032, 1
  %v10035 = vshll.u32 %v9865, 16
  %v10037 = vrot.slane %v10035, 2
  %v10038 = vor.u32 %v10034, %v10037
  %v10039 = vsel %vm9866, %v10029, %v10038
  %v10097 = vunpack.c.l.b16 %v9847
  %v10098 = vunpack.c.l.b16 %v9848
  %v10099 = vunpack.c.l.b16 %v9849
  %v10100 = vunpack.c.l.b16 %v9850
  %v10101 = vunpack.c.l.b16 %v9851
  %v10102 = vunpack.c.l.b16 %v9852
  %v10103 = vunpack.c.l.b16 %v9853
  %v10104 = vunpack.c.l.b16 %v9854
  %v10105 = vunpack.c.l.b16 %v9855
  %v10106 = vunpack.c.l.b16 %v9856
  %v10107 = vunpack.c.l.b16 %v9857
  %v10108 = vunpack.c.l.b16 %v9858
  %v10109 = vunpack.c.l.b16 %v9859
  %v10110 = vunpack.c.l.b16 %v9860
  %v10111 = vunpack.c.l.b16 %v9861
  %v10112 = vunpack.c.l.b16 %v9862
  %v10113 = vpack.c.b16 %v10098, %v10097
  %v10114 = vpack.c.b16 %v10100, %v10099
  %v10115 = vpack.c.b16 %v10102, %v10101
  %v10116 = vpack.c.b16 %v10104, %v10103
  %v10117 = vpack.c.b16 %v10106, %v10105
  %v10118 = vpack.c.b16 %v10108, %v10107
  %v10119 = vpack.c.b16 %v10110, %v10109
  %v10120 = vpack.c.b16 %v10112, %v10111
  %10129 = vmatprep.subr.bf16.mxu0 0
  %10130 = vmatpush1.bf16.msra.mxu0 %v10113
  %10131 = vmatprep.subr.bf16.mxu0 0
  %10132 = vmatpush1.bf16.msra.mxu0 %v10114
  %10133 = vmatprep.subr.bf16.mxu0 0
  %10134 = vmatpush1.bf16.msra.mxu0 %v10115
  %10135 = vmatprep.subr.bf16.mxu0 0
  %10136 = vmatpush1.bf16.msra.mxu0 %v10116
  %10137 = vmatprep.subr.bf16.mxu0 0
  %10138 = vmatpush1.bf16.msra.mxu0 %v10117
  %10139 = vmatprep.subr.bf16.mxu0 0
  %10140 = vmatpush1.bf16.msra.mxu0 %v10118
  %10141 = vmatprep.subr.bf16.mxu0 0
  %10142 = vmatpush1.bf16.msra.mxu0 %v10119
  %10143 = vmatprep.subr.bf16.mxu0 0
  %10144 = vmatpush1.bf16.msra.mxu0 %v10120
  %10145 = vmatprep.subr.bf16.mxu0 0
  %10146 = vmatpush1.bf16.msra.mxu0 0
  %10147 = vmatprep.subr.bf16.mxu0 0
  %10148 = vmatpush1.bf16.msra.mxu0 0
  %10149 = vmatprep.subr.bf16.mxu0 0
  %10150 = vmatpush1.bf16.msra.mxu0 0
  %10151 = vmatprep.subr.bf16.mxu0 0
  %10152 = vmatpush1.bf16.msra.mxu0 0
  %10153 = vmatprep.subr.bf16.mxu0 0
  %10154 = vmatpush1.bf16.msra.mxu0 0
  %10155 = vmatprep.subr.bf16.mxu0 0
  %10156 = vmatpush1.bf16.msra.mxu0 0
  %10157 = vmatprep.subr.bf16.mxu0 0
  %10158 = vmatpush1.bf16.msra.mxu0 0
  %10159 = vmatprep.subr.bf16.mxu0 0
  %10160 = vmatpush1.bf16.msra.mxu0 0
  %10161 = vmatprep.mubr.bf16.mxu0 0
  %10162 = vmatmul.mubr.bf16.gmra.mrb[0].mxu0 %v9878
  %v10163 = vpop.f32.mrb[0].mxu0
  %v10164 = vadd.f32 0.0, %v10163
  %v10165 = vpop.f32.mrb[0].mxu0
  %v10166 = vpop.f32.mrb[0].mxu0
  %v10167 = vadd.f32 0.0, %v10166
  %v10168 = vpop.f32.mrb[0].mxu0
  %10169 = vmatprep.mubr.bf16.mxu0 0
  %10170 = vmatmul.mubr.bf16.gmra.mrb[0].mxu0 %v9882
  %v10171 = vpop.f32.mrb[0].mxu0
  %v10172 = vadd.f32 0.0, %v10171
  %v10173 = vpop.f32.mrb[0].mxu0
  %v10174 = vpop.f32.mrb[0].mxu0
  %v10175 = vadd.f32 0.0, %v10174
  %v10176 = vpop.f32.mrb[0].mxu0
  %10177 = vmatprep.mubr.bf16.mxu0 0
  %10178 = vmatmul.mubr.bf16.gmra.mrb[0].mxu0 %v9886
  %v10179 = vpop.f32.mrb[0].mxu0
  %v10180 = vadd.f32 0.0, %v10179
  %v10181 = vpop.f32.mrb[0].mxu0
  %v10182 = vpop.f32.mrb[0].mxu0
  %v10183 = vadd.f32 0.0, %v10182
  %v10184 = vpop.f32.mrb[0].mxu0
  %10185 = vmatprep.mubr.bf16.mxu0 0
  %10186 = vmatmul.mubr.bf16.gmra.mrb[0].mxu0 %v9890
  %v10187 = vpop.f32.mrb[0].mxu0
  %v10188 = vadd.f32 0.0, %v10187
  %v10189 = vpop.f32.mrb[0].mxu0
  %v10190 = vpop.f32.mrb[0].mxu0
  %v10191 = vadd.f32 0.0, %v10190
  %v10192 = vpop.f32.mrb[0].mxu0
  %10193 = vmatprep.mubr.bf16.mxu0 0
  %10194 = vmatmul.mubr.bf16.gmra.mrb[0].mxu0 %v9894
  %v10195 = vpop.f32.mrb[0].mxu0
  %v10196 = vadd.f32 0.0, %v10195
  %v10197 = vpop.f32.mrb[0].mxu0
  %v10198 = vpop.f32.mrb[0].mxu0
  %v10199 = vadd.f32 0.0, %v10198
  %v10200 = vpop.f32.mrb[0].mxu0
  %10201 = vmatprep.mubr.bf16.mxu0 0
  %10202 = vmatmul.mubr.bf16.gmra.mrb[0].mxu0 %v9898
  %v10203 = vpop.f32.mrb[0].mxu0
  %v10204 = vadd.f32 0.0, %v10203
  %v10205 = vpop.f32.mrb[0].mxu0
  %v10206 = vpop.f32.mrb[0].mxu0
  %v10207 = vadd.f32 0.0, %v10206
  %v10208 = vpop.f32.mrb[0].mxu0
  %10209 = vmatprep.mubr.bf16.mxu0 0
  %10210 = vmatmul.mubr.bf16.gmra.mrb[0].mxu0 %v9902
  %v10211 = vpop.f32.mrb[0].mxu0
  %v10212 = vadd.f32 0.0, %v10211
  %v10213 = vpop.f32.mrb[0].mxu0
  %v10214 = vpop.f32.mrb[0].mxu0
  %v10215 = vadd.f32 0.0, %v10214
  %v10216 = vpop.f32.mrb[0].mxu0
  %10217 = vmatprep.mubr.bf16.mxu0 0
  %10218 = vmatmul.mubr.bf16.gmra.mrb[0].mxu0 %v9906
  %v10219 = vpop.f32.mrb[0].mxu0
  %v10220 = vadd.f32 0.0, %v10219
  %v10221 = vpop.f32.mrb[0].mxu0
  %v10222 = vpop.f32.mrb[0].mxu0
  %v10223 = vadd.f32 0.0, %v10222
  %v10224 = vpop.f32.mrb[0].mxu0
  %10225 = vmatprep.mubr.bf16.mxu0 0
  %10226 = vmatmul.mubr.bf16.gmra.mrb[0].mxu0 %v9910
  %v10227 = vpop.f32.mrb[0].mxu0
  %v10228 = vadd.f32 0.0, %v10227
  %v10229 = vpop.f32.mrb[0].mxu0
  %v10230 = vpop.f32.mrb[0].mxu0
  %v10231 = vadd.f32 0.0, %v10230
  %v10232 = vpop.f32.mrb[0].mxu0
  %10233 = vmatprep.mubr.bf16.mxu0 0
  %10234 = vmatmul.mubr.bf16.gmra.mrb[0].mxu0 %v9914
  %v10235 = vpop.f32.mrb[0].mxu0
  %v10236 = vadd.f32 0.0, %v10235
  %v10237 = vpop.f32.mrb[0].mxu0
  %v10238 = vpop.f32.mrb[0].mxu0
  %v10239 = vadd.f32 0.0, %v10238
  %v10240 = vpop.f32.mrb[0].mxu0
  %10241 = vmatprep.mubr.bf16.mxu0 0
  %10242 = vmatmul.mubr.bf16.gmra.mrb[0].mxu0 %v9918
  %v10243 = vpop.f32.mrb[0].mxu0
  %v10244 = vadd.f32 0.0, %v10243
  %v10245 = vpop.f32.mrb[0].mxu0
  %v10246 = vpop.f32.mrb[0].mxu0
  %v10247 = vadd.f32 0.0, %v10246
  %v10248 = vpop.f32.mrb[0].mxu0
  %10249 = vmatprep.mubr.bf16.mxu0 0
  %10250 = vmatmul.mubr.bf16.gmra.mrb[0].mxu0 %v9922
  %v10251 = vpop.f32.mrb[0].mxu0
  %v10252 = vadd.f32 0.0, %v10251
  %v10253 = vpop.f32.mrb[0].mxu0
  %v10254 = vpop.f32.mrb[0].mxu0
  %v10255 = vadd.f32 0.0, %v10254
  %v10256 = vpop.f32.mrb[0].mxu0
  %10257 = vmatprep.mubr.bf16.mxu0 0
  %10258 = vmatmul.mubr.bf16.gmra.mrb[0].mxu0 %v9926
  %v10259 = vpop.f32.mrb[0].mxu0
  %v10260 = vadd.f32 0.0, %v10259
  %v10261 = vpop.f32.mrb[0].mxu0
  %v10262 = vpop.f32.mrb[0].mxu0
  %v10263 = vadd.f32 0.0, %v10262
  %v10264 = vpop.f32.mrb[0].mxu0
  %10265 = vmatprep.mubr.bf16.mxu0 0
  %10266 = vmatmul.mubr.bf16.gmra.mrb[0].mxu0 %v9930
  %v10267 = vpop.f32.mrb[0].mxu0
  %v10268 = vadd.f32 0.0, %v10267
  %v10269 = vpop.f32.mrb[0].mxu0
  %v10270 = vpop.f32.mrb[0].mxu0
  %v10271 = vadd.f32 0.0, %v10270
  %v10272 = vpop.f32.mrb[0].mxu0
  %10273 = vmatprep.mubr.bf16.mxu0 0
  %10274 = vmatmul.mubr.bf16.gmra.mrb[0].mxu0 %v9934
  %v10275 = vpop.f32.mrb[0].mxu0
  %v10276 = vadd.f32 0.0, %v10275
  %v10277 = vpop.f32.mrb[0].mxu0
  %v10278 = vpop.f32.mrb[0].mxu0
  %v10279 = vadd.f32 0.0, %v10278
  %v10280 = vpop.f32.mrb[0].mxu0
  %10281 = vmatprep.mubr.bf16.mxu0 0
  %10282 = vmatmul.mubr.bf16.gmra.mrb[0].mxu0 %v9938
  %v10283 = vpop.f32.mrb[0].mxu0
  %v10284 = vadd.f32 0.0, %v10283
  %v10285 = vpop.f32.mrb[0].mxu0
  %v10286 = vpop.f32.mrb[0].mxu0
  %v10287 = vadd.f32 0.0, %v10286
  %v10288 = vpop.f32.mrb[0].mxu0
  %10289 = vmatprep.mubr.bf16.mxu0 0
  %10290 = vmatmul.mubr.bf16.gmra.mrb[0].mxu0 %v9942
  %v10291 = vpop.f32.mrb[0].mxu0
  %v10292 = vadd.f32 0.0, %v10291
  %v10293 = vpop.f32.mrb[0].mxu0
  %v10294 = vpop.f32.mrb[0].mxu0
  %v10295 = vadd.f32 0.0, %v10294
  %v10296 = vpop.f32.mrb[0].mxu0
  %10297 = vmatprep.mubr.bf16.mxu0 0
  %10298 = vmatmul.mubr.bf16.gmra.mrb[0].mxu0 %v9946
  %v10299 = vpop.f32.mrb[0].mxu0
  %v10300 = vadd.f32 0.0, %v10299
  %v10301 = vpop.f32.mrb[0].mxu0
  %v10302 = vpop.f32.mrb[0].mxu0
  %v10303 = vadd.f32 0.0, %v10302
  %v10304 = vpop.f32.mrb[0].mxu0
  %10305 = vmatprep.mubr.bf16.mxu0 0
  %10306 = vmatmul.mubr.bf16.gmra.mrb[0].mxu0 %v9950
  %v10307 = vpop.f32.mrb[0].mxu0
  %v10308 = vadd.f32 0.0, %v10307
  %v10309 = vpop.f32.mrb[0].mxu0
  %v10310 = vpop.f32.mrb[0].mxu0
  %v10311 = vadd.f32 0.0, %v10310
  %v10312 = vpop.f32.mrb[0].mxu0
  %10313 = vmatprep.mubr.bf16.mxu0 0
  %10314 = vmatmul.mubr.bf16.gmra.mrb[0].mxu0 %v9954
  %v10315 = vpop.f32.mrb[0].mxu0
  %v10316 = vadd.f32 0.0, %v10315
  %v10317 = vpop.f32.mrb[0].mxu0
  %v10318 = vpop.f32.mrb[0].mxu0
  %v10319 = vadd.f32 0.0, %v10318
  %v10320 = vpop.f32.mrb[0].mxu0
  %10321 = vmatprep.mubr.bf16.mxu0 0
  %10322 = vmatmul.mubr.bf16.gmra.mrb[0].mxu0 %v9958
  %v10323 = vpop.f32.mrb[0].mxu0
  %v10324 = vadd.f32 0.0, %v10323
  %v10325 = vpop.f32.mrb[0].mxu0
  %v10326 = vpop.f32.mrb[0].mxu0
  %v10327 = vadd.f32 0.0, %v10326
  %v10328 = vpop.f32.mrb[0].mxu0
  %10329 = vmatprep.mubr.bf16.mxu0 0
  %10330 = vmatmul.mubr.bf16.gmra.mrb[0].mxu0 %v9962
  %v10331 = vpop.f32.mrb[0].mxu0
  %v10332 = vadd.f32 0.0, %v10331
  %v10333 = vpop.f32.mrb[0].mxu0
  %v10334 = vpop.f32.mrb[0].mxu0
  %v10335 = vadd.f32 0.0, %v10334
  %v10336 = vpop.f32.mrb[0].mxu0
  %10337 = vmatprep.mubr.bf16.mxu0 0
  %10338 = vmatmul.mubr.bf16.gmra.mrb[0].mxu0 %v9966
  %v10339 = vpop.f32.mrb[0].mxu0
  %v10340 = vadd.f32 0.0, %v10339
  %v10341 = vpop.f32.mrb[0].mxu0
  %v10342 = vpop.f32.mrb[0].mxu0
  %v10343 = vadd.f32 0.0, %v10342
  %v10344 = vpop.f32.mrb[0].mxu0
  %10345 = vmatprep.mubr.bf16.mxu0 0
  %10346 = vmatmul.mubr.bf16.gmra.mrb[0].mxu0 %v9970
  %v10347 = vpop.f32.mrb[0].mxu0
  %v10348 = vadd.f32 0.0, %v10347
  %v10349 = vpop.f32.mrb[0].mxu0
  %v10350 = vpop.f32.mrb[0].mxu0
  %v10351 = vadd.f32 0.0, %v10350
  %v10352 = vpop.f32.mrb[0].mxu0
  %10353 = vmatprep.mubr.bf16.mxu0 0
  %10354 = vmatmul.mubr.bf16.gmra.mrb[0].mxu0 %v9974
  %v10355 = vpop.f32.mrb[0].mxu0
  %v10356 = vadd.f32 0.0, %v10355
  %v10357 = vpop.f32.mrb[0].mxu0
  %v10358 = vpop.f32.mrb[0].mxu0
  %v10359 = vadd.f32 0.0, %v10358
  %v10360 = vpop.f32.mrb[0].mxu0
  %10361 = vmatprep.mubr.bf16.mxu0 0
  %10362 = vmatmul.mubr.bf16.gmra.mrb[0].mxu0 %v9978
  %v10363 = vpop.f32.mrb[0].mxu0
  %v10364 = vadd.f32 0.0, %v10363
  %v10365 = vpop.f32.mrb[0].mxu0
  %v10366 = vpop.f32.mrb[0].mxu0
  %v10367 = vadd.f32 0.0, %v10366
  %v10368 = vpop.f32.mrb[0].mxu0
  %10369 = vmatprep.mubr.bf16.mxu0 0
  %10370 = vmatmul.mubr.bf16.gmra.mrb[0].mxu0 %v9982
  %v10371 = vpop.f32.mrb[0].mxu0
  %v10372 = vadd.f32 0.0, %v10371
  %v10373 = vpop.f32.mrb[0].mxu0
  %v10374 = vpop.f32.mrb[0].mxu0
  %v10375 = vadd.f32 0.0, %v10374
  %v10376 = vpop.f32.mrb[0].mxu0
  %10377 = vmatprep.mubr.bf16.mxu0 0
  %10378 = vmatmul.mubr.bf16.gmra.mrb[0].mxu0 %v9986
  %v10379 = vpop.f32.mrb[0].mxu0
  %v10380 = vadd.f32 0.0, %v10379
  %v10381 = vpop.f32.mrb[0].mxu0
  %v10382 = vpop.f32.mrb[0].mxu0
  %v10383 = vadd.f32 0.0, %v10382
  %v10384 = vpop.f32.mrb[0].mxu0
  %10385 = vmatprep.mubr.bf16.mxu0 0
  %10386 = vmatmul.mubr.bf16.gmra.mrb[0].mxu0 %v9990
  %v10387 = vpop.f32.mrb[0].mxu0
  %v10388 = vadd.f32 0.0, %v10387
  %v10389 = vpop.f32.mrb[0].mxu0
  %v10390 = vpop.f32.mrb[0].mxu0
  %v10391 = vadd.f32 0.0, %v10390
  %v10392 = vpop.f32.mrb[0].mxu0
  %10393 = vmatprep.mubr.bf16.mxu0 0
  %10394 = vmatmul.mubr.bf16.gmra.mrb[0].mxu0 %v9994
  %v10395 = vpop.f32.mrb[0].mxu0
  %v10396 = vadd.f32 0.0, %v10395
  %v10397 = vpop.f32.mrb[0].mxu0
  %v10398 = vpop.f32.mrb[0].mxu0
  %v10399 = vadd.f32 0.0, %v10398
  %v10400 = vpop.f32.mrb[0].mxu0
  %10401 = vmatprep.mubr.bf16.mxu0 0
  %10402 = vmatmul.mubr.bf16.gmra.mrb[0].mxu0 %v9998
  %v10403 = vpop.f32.mrb[0].mxu0
  %v10404 = vadd.f32 0.0, %v10403
  %v10405 = vpop.f32.mrb[0].mxu0
  %v10406 = vpop.f32.mrb[0].mxu0
  %v10407 = vadd.f32 0.0, %v10406
  %v10408 = vpop.f32.mrb[0].mxu0
  %10409 = vmatprep.mubr.bf16.mxu0 0
  %10410 = vmatmul.mubr.bf16.gmra.mrb[0].mxu0 %v10002
  %v10411 = vpop.f32.mrb[0].mxu0
  %v10412 = vadd.f32 0.0, %v10411
  %v10413 = vpop.f32.mrb[0].mxu0
  %v10414 = vpop.f32.mrb[0].mxu0
  %v10415 = vadd.f32 0.0, %v10414
  %v10416 = vpop.f32.mrb[0].mxu0
  %10417 = vmatprep.mubr.bf16.mxu0 0
  %10418 = vmatmul.mubr.bf16.gmra.mrb[0].mxu0 %v10006
  %v10419 = vpop.f32.mrb[0].mxu0
  %v10420 = vadd.f32 0.0, %v10419
  %v10421 = vpop.f32.mrb[0].mxu0
  %v10422 = vpop.f32.mrb[0].mxu0
  %v10423 = vadd.f32 0.0, %v10422
  %v10424 = vpop.f32.mrb[0].mxu0
  %10425 = vmatprep.mubr.bf16.mxu0 0
  %10426 = vmatmul.mubr.bf16.gmra.mrb[0].mxu0 %v10010
  %v10427 = vpop.f32.mrb[0].mxu0
  %v10428 = vadd.f32 0.0, %v10427
  %v10429 = vpop.f32.mrb[0].mxu0
  %v10430 = vpop.f32.mrb[0].mxu0
  %v10431 = vadd.f32 0.0, %v10430
  %v10432 = vpop.f32.mrb[0].mxu0
  %10433 = vmatprep.mubr.bf16.mxu0 0
  %10434 = vmatmul.mubr.bf16.gmra.mrb[0].mxu0 %v10014
  %v10435 = vpop.f32.mrb[0].mxu0
  %v10436 = vadd.f32 0.0, %v10435
  %v10437 = vpop.f32.mrb[0].mxu0
  %v10438 = vpop.f32.mrb[0].mxu0
  %v10439 = vadd.f32 0.0, %v10438
  %v10440 = vpop.f32.mrb[0].mxu0
  %10441 = vmatprep.mubr.bf16.mxu0 0
  %10442 = vmatmul.mubr.bf16.gmra.mrb[0].mxu0 %v10018
  %v10443 = vpop.f32.mrb[0].mxu0
  %v10444 = vadd.f32 0.0, %v10443
  %v10445 = vpop.f32.mrb[0].mxu0
  %v10446 = vpop.f32.mrb[0].mxu0
  %v10447 = vadd.f32 0.0, %v10446
  %v10448 = vpop.f32.mrb[0].mxu0
  %10449 = vmatprep.mubr.bf16.mxu0 0
  %10450 = vmatmul.mubr.bf16.gmra.mrb[0].mxu0 %v10022
  %v10451 = vpop.f32.mrb[0].mxu0
  %v10452 = vadd.f32 0.0, %v10451
  %v10453 = vpop.f32.mrb[0].mxu0
  %v10454 = vpop.f32.mrb[0].mxu0
  %v10455 = vadd.f32 0.0, %v10454
  %v10456 = vpop.f32.mrb[0].mxu0
  %10457 = vmatprep.mubr.bf16.mxu0 0
  %10458 = vmatmul.mubr.bf16.gmra.mrb[0].mxu0 %v10026
  %v10459 = vpop.f32.mrb[0].mxu0
  %v10460 = vadd.f32 0.0, %v10459
  %v10461 = vpop.f32.mrb[0].mxu0
  %v10462 = vpop.f32.mrb[0].mxu0
  %v10463 = vadd.f32 0.0, %v10462
  %v10464 = vpop.f32.mrb[0].mxu0
  %10465 = vmatprep.mubr.bf16.mxu0 0
  %10466 = vmatmul.mubr.bf16.gmra.mrb[0].mxu0 %v10030
  %v10467 = vpop.f32.mrb[0].mxu0
  %v10468 = vadd.f32 0.0, %v10467
  %v10469 = vpop.f32.mrb[0].mxu0
  %v10470 = vpop.f32.mrb[0].mxu0
  %v10471 = vadd.f32 0.0, %v10470
  %v10472 = vpop.f32.mrb[0].mxu0
  %10473 = vmatprep.mubr.bf16.mxu0 0
  %10474 = vmatmul.mubr.bf16.gmra.mrb[0].mxu0 %v10039
  %v10475 = vpop.f32.mrb[0].mxu0
  %v10476 = vadd.f32 0.0, %v10475
  %v10477 = vpop.f32.mrb[0].mxu0
  %v10478 = vpop.f32.mrb[0].mxu0
  %v10479 = vadd.f32 0.0, %v10478
  %v10480 = vpop.f32.mrb[0].mxu0
  %10481 = vmatprep.mubr.bf16.mxu0 0
  %10482 = vmatmul.mubr.bf16.gmra.mrb[0].mxu0 %v10038
  %v10483 = vpop.f32.mrb[0].mxu0
  %v10484 = vadd.f32 0.0, %v10483
  %v10485 = vpop.f32.mrb[0].mxu0
  %v10486 = vpop.f32.mrb[0].mxu0
  %v10487 = vpop.f32.mrb[0].mxu0
  %10488 = vdwg.mxu0
  %v10489 = vadd.f32 %v9764, %v10164
  %v10490 = vadd.f32 %v9765, %v10167
  %v10491 = vadd.f32 %v9766, %v10172
  %v10492 = vadd.f32 %v9767, %v10175
  %v10493 = vadd.f32 %v9768, %v10180
  %v10494 = vadd.f32 %v9769, %v10183
  %v10495 = vadd.f32 %v9770, %v10188
  %v10496 = vadd.f32 %v9771, %v10191
  %v10497 = vadd.f32 %v9772, %v10196
  %v10498 = vadd.f32 %v9773, %v10199
  %v10499 = vadd.f32 %v9774, %v10204
  %v10500 = vadd.f32 %v9775, %v10207
  %v10501 = vadd.f32 %v9776, %v10212
  %v10502 = vadd.f32 %v9777, %v10215
  %v10503 = vadd.f32 %v9778, %v10220
  %v10504 = vadd.f32 %v9779, %v10223
  %v10505 = vadd.f32 %v9780, %v10228
  %v10506 = vadd.f32 %v9781, %v10231
  %v10507 = vadd.f32 %v9782, %v10236
  %v10508 = vadd.f32 %v9783, %v10239
  %v10509 = vadd.f32 %v9784, %v10244
  %v10510 = vadd.f32 %v9785, %v10247
  %v10511 = vadd.f32 %v9786, %v10252
  %v10512 = vadd.f32 %v9787, %v10255
  %v10513 = vadd.f32 %v9788, %v10260
  %v10514 = vadd.f32 %v9789, %v10263
  %v10515 = vadd.f32 %v9790, %v10268
  %v10516 = vadd.f32 %v9791, %v10271
  %v10517 = vadd.f32 %v9792, %v10276
  %v10518 = vadd.f32 %v9793, %v10279
  %v10519 = vadd.f32 %v9794, %v10284
  %v10520 = vadd.f32 %v9795, %v10287
  %v10521 = vadd.f32 %v9796, %v10292
  %v10522 = vadd.f32 %v9797, %v10295
  %v10523 = vadd.f32 %v9798, %v10300
  %v10524 = vadd.f32 %v9799, %v10303
  %v10525 = vadd.f32 %v9800, %v10308
  %v10526 = vadd.f32 %v9801, %v10311
  %v10527 = vadd.f32 %v9802, %v10316
  %v10528 = vadd.f32 %v9803, %v10319
  %v10529 = vadd.f32 %v9804, %v10324
  %v10530 = vadd.f32 %v9805, %v10327
  %v10531 = vadd.f32 %v9806, %v10332
  %v10532 = vadd.f32 %v9807, %v10335
  %v10533 = vadd.f32 %v9808, %v10340
  %v10534 = vadd.f32 %v9809, %v10343
  %v10535 = vadd.f32 %v9810, %v10348
  %v10536 = vadd.f32 %v9811, %v10351
  %v10537 = vadd.f32 %v9812, %v10356
  %v10538 = vadd.f32 %v9813, %v10359
  %v10539 = vadd.f32 %v9814, %v10364
  %v10540 = vadd.f32 %v9815, %v10367
  %v10541 = vadd.f32 %v9816, %v10372
  %v10542 = vadd.f32 %v9817, %v10375
  %v10543 = vadd.f32 %v9818, %v10380
  %v10544 = vadd.f32 %v9819, %v10383
  %v10545 = vadd.f32 %v9820, %v10388
  %v10546 = vadd.f32 %v9821, %v10391
  %v10547 = vadd.f32 %v9822, %v10396
  %v10548 = vadd.f32 %v9823, %v10399
  %v10549 = vadd.f32 %v9824, %v10404
  %v10550 = vadd.f32 %v9825, %v10407
  %v10551 = vadd.f32 %v9826, %v10412
  %v10552 = vadd.f32 %v9827, %v10415
  %v10553 = vadd.f32 %v9828, %v10420
  %v10554 = vadd.f32 %v9829, %v10423
  %v10555 = vadd.f32 %v9830, %v10428
  %v10556 = vadd.f32 %v9831, %v10431
  %v10557 = vadd.f32 %v9832, %v10436
  %v10558 = vadd.f32 %v9833, %v10439
  %v10559 = vadd.f32 %v9834, %v10444
  %v10560 = vadd.f32 %v9835, %v10447
  %v10561 = vadd.f32 %v9836, %v10452
  %v10562 = vadd.f32 %v9837, %v10455
  %v10563 = vadd.f32 %v9838, %v10460
  %v10564 = vadd.f32 %v9839, %v10463
  %v10565 = vadd.f32 %v9840, %v10468
  %v10566 = vadd.f32 %v9841, %v10471
  %v10567 = vadd.f32 %v9842, %v10476
  %v10568 = vadd.f32 %v9843, %v10479
  %v10569 = vadd.f32 %v9844, %v10484
  %v10570 = vld [vmem:[%s9] sm:$0x1]
  %v10571 = vld [vmem:[%s10] sm:$0x1]
  %10573 = vset.pattern.permute.xlu0 0
  %10574 = vperm.xlu0 %10573, %v2620
  %v10575 = vpop.permute.xlu0 %10574
  %10578 = vset.pattern.permute.xlu0 0
  %10579 = vperm.xlu0 %10578, %v2621
  %v10580 = vpop.permute.xlu0 %10579
  %10583 = vset.pattern.permute.xlu0 0
  %10584 = vperm.xlu0 %10583, %v2622
  %v10585 = vpop.permute.xlu0 %10584
  %10588 = vset.pattern.permute.xlu0 0
  %10589 = vperm.xlu0 %10588, %v2623
  %v10590 = vpop.permute.xlu0 %10589
  %10593 = vset.pattern.permute.xlu0 0
  %10594 = vperm.xlu0 %10593, %v2624
  %v10595 = vpop.permute.xlu0 %10594
  %10598 = vset.pattern.permute.xlu0 0
  %10599 = vperm.xlu0 %10598, %v2625
  %v10600 = vpop.permute.xlu0 %10599
  %10603 = vset.pattern.permute.xlu0 0
  %10604 = vperm.xlu0 %10603, %v2626
  %v10605 = vpop.permute.xlu0 %10604
  %10608 = vset.pattern.permute.xlu0 0
  %10609 = vperm.xlu0 %10608, %v2627
  %v10610 = vpop.permute.xlu0 %10609
  %10613 = vset.pattern.permute.xlu0 0
  %10614 = vperm.xlu0 %10613, %v2628
  %v10615 = vpop.permute.xlu0 %10614
  %10618 = vset.pattern.permute.xlu0 0
  %10619 = vperm.xlu0 %10618, %v2629
  %v10620 = vpop.permute.xlu0 %10619
  %10623 = vset.pattern.permute.xlu0 0
  %10624 = vperm.xlu0 %10623, %v2630
  %v10625 = vpop.permute.xlu0 %10624
  %10628 = vset.pattern.permute.xlu0 0
  %10629 = vperm.xlu0 %10628, %v2631
  %v10630 = vpop.permute.xlu0 %10629
  %10633 = vset.pattern.permute.xlu0 0
  %10634 = vperm.xlu0 %10633, %v2632
  %v10635 = vpop.permute.xlu0 %10634
  %10638 = vset.pattern.permute.xlu0 0
  %10639 = vperm.xlu0 %10638, %v2633
  %v10640 = vpop.permute.xlu0 %10639
  %10643 = vset.pattern.permute.xlu0 0
  %10644 = vperm.xlu0 %10643, %v2634
  %v10645 = vpop.permute.xlu0 %10644
  %10648 = vset.pattern.permute.xlu0 0
  %10649 = vperm.xlu0 %10648, %v2635
  %v10650 = vpop.permute.xlu0 %10649
  %10653 = vset.pattern.permute.xlu0 0
  %10654 = vperm.xlu0 %10653, %v2636
  %v10655 = vpop.permute.xlu0 %10654
  %10658 = vset.pattern.permute.xlu0 0
  %10659 = vperm.xlu0 %10658, %v2637
  %v10660 = vpop.permute.xlu0 %10659
  %10663 = vset.pattern.permute.xlu0 0
  %10664 = vperm.xlu0 %10663, %v2638
  %v10665 = vpop.permute.xlu0 %10664
  %10668 = vset.pattern.permute.xlu0 0
  %10669 = vperm.xlu0 %10668, %v2639
  %v10670 = vpop.permute.xlu0 %10669
  %10673 = vset.pattern.permute.xlu0 0
  %10674 = vperm.xlu0 %10673, %v2640
  %v10675 = vpop.permute.xlu0 %10674
  %10678 = vset.pattern.permute.xlu0 0
  %10679 = vperm.xlu0 %10678, %v2641
  %v10680 = vpop.permute.xlu0 %10679
  %10683 = vset.pattern.permute.xlu0 0
  %10684 = vperm.xlu0 %10683, %v2642
  %v10685 = vpop.permute.xlu0 %10684
  %10688 = vset.pattern.permute.xlu0 0
  %10689 = vperm.xlu0 %10688, %v2643
  %v10690 = vpop.permute.xlu0 %10689
  %10693 = vset.pattern.permute.xlu0 0
  %10694 = vperm.xlu0 %10693, %v2644
  %v10695 = vpop.permute.xlu0 %10694
  %10698 = vset.pattern.permute.xlu0 0
  %10699 = vperm.xlu0 %10698, %v2645
  %v10700 = vpop.permute.xlu0 %10699
  %10703 = vset.pattern.permute.xlu0 0
  %10704 = vperm.xlu0 %10703, %v2646
  %v10705 = vpop.permute.xlu0 %10704
  %10708 = vset.pattern.permute.xlu0 0
  %10709 = vperm.xlu0 %10708, %v2647
  %v10710 = vpop.permute.xlu0 %10709
  %10713 = vset.pattern.permute.xlu0 0
  %10714 = vperm.xlu0 %10713, %v2648
  %v10715 = vpop.permute.xlu0 %10714
  %10718 = vset.pattern.permute.xlu0 0
  %10719 = vperm.xlu0 %10718, %v2649
  %v10720 = vpop.permute.xlu0 %10719
  %10723 = vset.pattern.permute.xlu0 0
  %10724 = vperm.xlu0 %10723, %v2650
  %v10725 = vpop.permute.xlu0 %10724
  %10728 = vset.pattern.permute.xlu0 0
  %10729 = vperm.xlu0 %10728, %v2651
  %v10730 = vpop.permute.xlu0 %10729
  %10733 = vset.pattern.permute.xlu0 0
  %10734 = vperm.xlu0 %10733, %v2652
  %v10735 = vpop.permute.xlu0 %10734
  %10738 = vset.pattern.permute.xlu0 0
  %10739 = vperm.xlu0 %10738, %v2653
  %v10740 = vpop.permute.xlu0 %10739
  %10743 = vset.pattern.permute.xlu0 0
  %10744 = vperm.xlu0 %10743, %v2654
  %v10745 = vpop.permute.xlu0 %10744
  %10748 = vset.pattern.permute.xlu0 0
  %10749 = vperm.xlu0 %10748, %v2655
  %v10750 = vpop.permute.xlu0 %10749
  %10753 = vset.pattern.permute.xlu0 0
  %10754 = vperm.xlu0 %10753, %v2656
  %v10755 = vpop.permute.xlu0 %10754
  %10758 = vset.pattern.permute.xlu0 0
  %10759 = vperm.xlu0 %10758, %v2657
  %v10760 = vpop.permute.xlu0 %10759
  %10763 = vset.pattern.permute.xlu0 0
  %10764 = vperm.xlu0 %10763, %v2658
  %v10765 = vpop.permute.xlu0 %10764
  %10768 = vset.pattern.permute.xlu0 0
  %10769 = vperm.xlu0 %10768, %v2659
  %v10770 = vpop.permute.xlu0 %10769
  %10773 = vset.pattern.permute.xlu0 0
  %10774 = vperm.xlu0 %10773, %v2660
  %v10775 = vpop.permute.xlu0 %10774
  %10778 = vset.pattern.permute.xlu0 0
  %10779 = vperm.xlu0 %10778, %v2661
  %v10780 = vpop.permute.xlu0 %10779
  %10783 = vset.pattern.permute.xlu0 0
  %10784 = vperm.xlu0 %10783, %v2662
  %v10785 = vpop.permute.xlu0 %10784
  %10788 = vset.pattern.permute.xlu0 0
  %10789 = vperm.xlu0 %10788, %v2663
  %v10790 = vpop.permute.xlu0 %10789
  %10793 = vset.pattern.permute.xlu0 0
  %10794 = vperm.xlu0 %10793, %v2664
  %v10795 = vpop.permute.xlu0 %10794
  %10798 = vset.pattern.permute.xlu0 0
  %10799 = vperm.xlu0 %10798, %v2665
  %v10800 = vpop.permute.xlu0 %10799
  %10803 = vset.pattern.permute.xlu0 0
  %10804 = vperm.xlu0 %10803, %v2666
  %v10805 = vpop.permute.xlu0 %10804
  %10808 = vset.pattern.permute.xlu0 0
  %10809 = vperm.xlu0 %10808, %v2667
  %v10810 = vpop.permute.xlu0 %10809
  %10813 = vset.pattern.permute.xlu0 0
  %10814 = vperm.xlu0 %10813, %v2668
  %v10815 = vpop.permute.xlu0 %10814
  %10818 = vset.pattern.permute.xlu0 0
  %10819 = vperm.xlu0 %10818, %v2669
  %v10820 = vpop.permute.xlu0 %10819
  %10823 = vset.pattern.permute.xlu0 0
  %10824 = vperm.xlu0 %10823, %v2670
  %v10825 = vpop.permute.xlu0 %10824
  %10828 = vset.pattern.permute.xlu0 0
  %10829 = vperm.xlu0 %10828, %v2671
  %v10830 = vpop.permute.xlu0 %10829
  %10833 = vset.pattern.permute.xlu0 0
  %10834 = vperm.xlu0 %10833, %v2672
  %v10835 = vpop.permute.xlu0 %10834
  %10838 = vset.pattern.permute.xlu0 0
  %10839 = vperm.xlu0 %10838, %v2673
  %v10840 = vpop.permute.xlu0 %10839
  %10843 = vset.pattern.permute.xlu0 0
  %10844 = vperm.xlu0 %10843, %v2674
  %v10845 = vpop.permute.xlu0 %10844
  %10848 = vset.pattern.permute.xlu0 0
  %10849 = vperm.xlu0 %10848, %v2675
  %v10850 = vpop.permute.xlu0 %10849
  %10853 = vset.pattern.permute.xlu0 0
  %10854 = vperm.xlu0 %10853, %v2676
  %v10855 = vpop.permute.xlu0 %10854
  %10858 = vset.pattern.permute.xlu0 0
  %10859 = vperm.xlu0 %10858, %v2677
  %v10860 = vpop.permute.xlu0 %10859
  %10863 = vset.pattern.permute.xlu0 0
  %10864 = vperm.xlu0 %10863, %v2678
  %v10865 = vpop.permute.xlu0 %10864
  %10868 = vset.pattern.permute.xlu0 0
  %10869 = vperm.xlu0 %10868, %v2679
  %v10870 = vpop.permute.xlu0 %10869
  %10873 = vset.pattern.permute.xlu0 0
  %10874 = vperm.xlu0 %10873, %v2680
  %v10875 = vpop.permute.xlu0 %10874
  %10878 = vset.pattern.permute.xlu0 0
  %10879 = vperm.xlu0 %10878, %v2681
  %v10880 = vpop.permute.xlu0 %10879
  %10883 = vset.pattern.permute.xlu0 0
  %10884 = vperm.xlu0 %10883, %v2682
  %v10885 = vpop.permute.xlu0 %10884
  %10888 = vset.pattern.permute.xlu0 0
  %10889 = vperm.xlu0 %10888, %v2683
  %v10890 = vpop.permute.xlu0 %10889
  %10893 = vset.pattern.permute.xlu0 0
  %10894 = vperm.xlu0 %10893, %v2684
  %v10895 = vpop.permute.xlu0 %10894
  %10898 = vset.pattern.permute.xlu0 0
  %10899 = vperm.xlu0 %10898, %v2685
  %v10900 = vpop.permute.xlu0 %10899
  %10903 = vset.pattern.permute.xlu0 0
  %10904 = vperm.xlu0 %10903, %v2686
  %v10905 = vpop.permute.xlu0 %10904
  %10908 = vset.pattern.permute.xlu0 0
  %10909 = vperm.xlu0 %10908, %v2687
  %v10910 = vpop.permute.xlu0 %10909
  %10913 = vset.pattern.permute.xlu0 0
  %10914 = vperm.xlu0 %10913, %v2688
  %v10915 = vpop.permute.xlu0 %10914
  %10918 = vset.pattern.permute.xlu0 0
  %10919 = vperm.xlu0 %10918, %v2689
  %v10920 = vpop.permute.xlu0 %10919
  %10923 = vset.pattern.permute.xlu0 0
  %10924 = vperm.xlu0 %10923, %v2690
  %v10925 = vpop.permute.xlu0 %10924
  %10928 = vset.pattern.permute.xlu0 0
  %10929 = vperm.xlu0 %10928, %v2691
  %v10930 = vpop.permute.xlu0 %10929
  %10933 = vset.pattern.permute.xlu0 0
  %10934 = vperm.xlu0 %10933, %v2692
  %v10935 = vpop.permute.xlu0 %10934
  %10938 = vset.pattern.permute.xlu0 0
  %10939 = vperm.xlu0 %10938, %v2693
  %v10940 = vpop.permute.xlu0 %10939
  %10943 = vset.pattern.permute.xlu0 0
  %10944 = vperm.xlu0 %10943, %v2694
  %v10945 = vpop.permute.xlu0 %10944
  %10948 = vset.pattern.permute.xlu0 0
  %10949 = vperm.xlu0 %10948, %v2695
  %v10950 = vpop.permute.xlu0 %10949
  %10953 = vset.pattern.permute.xlu0 0
  %10954 = vperm.xlu0 %10953, %v2696
  %v10955 = vpop.permute.xlu0 %10954
  %10958 = vset.pattern.permute.xlu0 0
  %10959 = vperm.xlu0 %10958, %v2697
  %v10960 = vpop.permute.xlu0 %10959
  %10963 = vset.pattern.permute.xlu0 0
  %10964 = vperm.xlu0 %10963, %v2698
  %v10965 = vpop.permute.xlu0 %10964
  %10968 = vset.pattern.permute.xlu0 0
  %10969 = vperm.xlu0 %10968, %v2699
  %v10970 = vpop.permute.xlu0 %10969
  %10973 = vset.pattern.permute.xlu0 0
  %10974 = vperm.xlu0 %10973, %v2700
  %v10975 = vpop.permute.xlu0 %10974
  %v10977 = vmul.f32 %v10489, %v10575
  %v10978 = vmul.f32 %v10490, %v10580
  %v10979 = vmul.f32 %v10491, %v10585
  %v10980 = vmul.f32 %v10492, %v10590
  %v10981 = vmul.f32 %v10493, %v10595
  %v10982 = vmul.f32 %v10494, %v10600
  %v10983 = vmul.f32 %v10495, %v10605
  %v10984 = vmul.f32 %v10496, %v10610
  %v10985 = vmul.f32 %v10497, %v10615
  %v10986 = vmul.f32 %v10498, %v10620
  %v10987 = vmul.f32 %v10499, %v10625
  %v10988 = vmul.f32 %v10500, %v10630
  %v10989 = vmul.f32 %v10501, %v10635
  %v10990 = vmul.f32 %v10502, %v10640
  %v10991 = vmul.f32 %v10503, %v10645
  %v10992 = vmul.f32 %v10504, %v10650
  %v10993 = vmul.f32 %v10505, %v10655
  %v10994 = vmul.f32 %v10506, %v10660
  %v10995 = vmul.f32 %v10507, %v10665
  %v10996 = vmul.f32 %v10508, %v10670
  %v10997 = vmul.f32 %v10509, %v10675
  %v10998 = vmul.f32 %v10510, %v10680
  %v10999 = vmul.f32 %v10511, %v10685
  %v11000 = vmul.f32 %v10512, %v10690
  %v11001 = vmul.f32 %v10513, %v10695
  %v11002 = vmul.f32 %v10514, %v10700
  %v11003 = vmul.f32 %v10515, %v10705
  %v11004 = vmul.f32 %v10516, %v10710
  %v11005 = vmul.f32 %v10517, %v10715
  %v11006 = vmul.f32 %v10518, %v10720
  %v11007 = vmul.f32 %v10519, %v10725
  %v11008 = vmul.f32 %v10520, %v10730
  %v11009 = vmul.f32 %v10521, %v10735
  %v11010 = vmul.f32 %v10522, %v10740
  %v11011 = vmul.f32 %v10523, %v10745
  %v11012 = vmul.f32 %v10524, %v10750
  %v11013 = vmul.f32 %v10525, %v10755
  %v11014 = vmul.f32 %v10526, %v10760
  %v11015 = vmul.f32 %v10527, %v10765
  %v11016 = vmul.f32 %v10528, %v10770
  %v11017 = vmul.f32 %v10529, %v10775
  %v11018 = vmul.f32 %v10530, %v10780
  %v11019 = vmul.f32 %v10531, %v10785
  %v11020 = vmul.f32 %v10532, %v10790
  %v11021 = vmul.f32 %v10533, %v10795
  %v11022 = vmul.f32 %v10534, %v10800
  %v11023 = vmul.f32 %v10535, %v10805
  %v11024 = vmul.f32 %v10536, %v10810
  %v11025 = vmul.f32 %v10537, %v10815
  %v11026 = vmul.f32 %v10538, %v10820
  %v11027 = vmul.f32 %v10539, %v10825
  %v11028 = vmul.f32 %v10540, %v10830
  %v11029 = vmul.f32 %v10541, %v10835
  %v11030 = vmul.f32 %v10542, %v10840
  %v11031 = vmul.f32 %v10543, %v10845
  %v11032 = vmul.f32 %v10544, %v10850
  %v11033 = vmul.f32 %v10545, %v10855
  %v11034 = vmul.f32 %v10546, %v10860
  %v11035 = vmul.f32 %v10547, %v10865
  %v11036 = vmul.f32 %v10548, %v10870
  %v11037 = vmul.f32 %v10549, %v10875
  %v11038 = vmul.f32 %v10550, %v10880
  %v11039 = vmul.f32 %v10551, %v10885
  %v11040 = vmul.f32 %v10552, %v10890
  %v11041 = vmul.f32 %v10553, %v10895
  %v11042 = vmul.f32 %v10554, %v10900
  %v11043 = vmul.f32 %v10555, %v10905
  %v11044 = vmul.f32 %v10556, %v10910
  %v11045 = vmul.f32 %v10557, %v10915
  %v11046 = vmul.f32 %v10558, %v10920
  %v11047 = vmul.f32 %v10559, %v10925
  %v11048 = vmul.f32 %v10560, %v10930
  %v11049 = vmul.f32 %v10561, %v10935
  %v11050 = vmul.f32 %v10562, %v10940
  %v11051 = vmul.f32 %v10563, %v10945
  %v11052 = vmul.f32 %v10564, %v10950
  %v11053 = vmul.f32 %v10565, %v10955
  %v11054 = vmul.f32 %v10566, %v10960
  %v11055 = vmul.f32 %v10567, %v10965
  %v11056 = vmul.f32 %v10568, %v10970
  %v11057 = vmul.f32 %v10569, %v10975
  %v11058 = vadd.f32 %v10977, %v10978
  %v11059 = vadd.f32 %v11058, %v10979
  %v11060 = vadd.f32 %v11059, %v10980
  %v11061 = vadd.f32 %v11060, %v10981
  %v11062 = vadd.f32 %v11061, %v10982
  %v11063 = vadd.f32 %v11062, %v10983
  %v11064 = vadd.f32 %v11063, %v10984
  %v11065 = vadd.f32 %v11064, %v10985
  %v11066 = vadd.f32 %v11065, %v10986
  %v11067 = vadd.f32 %v11066, %v10987
  %v11068 = vadd.f32 %v11067, %v10988
  %v11069 = vadd.f32 %v11068, %v10989
  %v11070 = vadd.f32 %v11069, %v10990
  %v11071 = vadd.f32 %v11070, %v10991
  %v11072 = vadd.f32 %v11071, %v10992
  %v11073 = vadd.f32 %v11072, %v10993
  %v11074 = vadd.f32 %v11073, %v10994
  %v11075 = vadd.f32 %v11074, %v10995
  %v11076 = vadd.f32 %v11075, %v10996
  %v11077 = vadd.f32 %v11076, %v10997
  %v11078 = vadd.f32 %v11077, %v10998
  %v11079 = vadd.f32 %v11078, %v10999
  %v11080 = vadd.f32 %v11079, %v11000
  %v11081 = vadd.f32 %v11080, %v11001
  %v11082 = vadd.f32 %v11081, %v11002
  %v11083 = vadd.f32 %v11082, %v11003
  %v11084 = vadd.f32 %v11083, %v11004
  %v11085 = vadd.f32 %v11084, %v11005
  %v11086 = vadd.f32 %v11085, %v11006
  %v11087 = vadd.f32 %v11086, %v11007
  %v11088 = vadd.f32 %v11087, %v11008
  %v11089 = vadd.f32 %v11088, %v11009
  %v11090 = vadd.f32 %v11089, %v11010
  %v11091 = vadd.f32 %v11090, %v11011
  %v11092 = vadd.f32 %v11091, %v11012
  %v11093 = vadd.f32 %v11092, %v11013
  %v11094 = vadd.f32 %v11093, %v11014
  %v11095 = vadd.f32 %v11094, %v11015
  %v11096 = vadd.f32 %v11095, %v11016
  %v11097 = vadd.f32 %v11096, %v11017
  %v11098 = vadd.f32 %v11097, %v11018
  %v11099 = vadd.f32 %v11098, %v11019
  %v11100 = vadd.f32 %v11099, %v11020
  %v11101 = vadd.f32 %v11100, %v11021
  %v11102 = vadd.f32 %v11101, %v11022
  %v11103 = vadd.f32 %v11102, %v11023
  %v11104 = vadd.f32 %v11103, %v11024
  %v11105 = vadd.f32 %v11104, %v11025
  %v11106 = vadd.f32 %v11105, %v11026
  %v11107 = vadd.f32 %v11106, %v11027
  %v11108 = vadd.f32 %v11107, %v11028
  %v11109 = vadd.f32 %v11108, %v11029
  %v11110 = vadd.f32 %v11109, %v11030
  %v11111 = vadd.f32 %v11110, %v11031
  %v11112 = vadd.f32 %v11111, %v11032
  %v11113 = vadd.f32 %v11112, %v11033
  %v11114 = vadd.f32 %v11113, %v11034
  %v11115 = vadd.f32 %v11114, %v11035
  %v11116 = vadd.f32 %v11115, %v11036
  %v11117 = vadd.f32 %v11116, %v11037
  %v11118 = vadd.f32 %v11117, %v11038
  %v11119 = vadd.f32 %v11118, %v11039
  %v11120 = vadd.f32 %v11119, %v11040
  %v11121 = vadd.f32 %v11120, %v11041
  %v11122 = vadd.f32 %v11121, %v11042
  %v11123 = vadd.f32 %v11122, %v11043
  %v11124 = vadd.f32 %v11123, %v11044
  %v11125 = vadd.f32 %v11124, %v11045
  %v11126 = vadd.f32 %v11125, %v11046
  %v11127 = vadd.f32 %v11126, %v11047
  %v11128 = vadd.f32 %v11127, %v11048
  %v11129 = vadd.f32 %v11128, %v11049
  %v11130 = vadd.f32 %v11129, %v11050
  %v11131 = vadd.f32 %v11130, %v11051
  %v11132 = vadd.f32 %v11131, %v11052
  %v11133 = vadd.f32 %v11132, %v11053
  %v11134 = vadd.f32 %v11133, %v11054
  %v11135 = vadd.f32 %v11134, %v11055
  %v11136 = vadd.f32 %v11135, %v11056
  %v11137 = vadd.f32 %v11136, %v11057
  %v11138 = vrot.slane %v11137, 4
  %v11139 = vadd.f32 %v11137, %v11138
  %v11140 = vrot.slane %v11139, 2
  %v11141 = vadd.f32 %v11139, %v11140
  %v11142 = vrot.slane %v11141, 1
  %v11143 = vadd.f32 %v11141, %v11142
  %v11144 = vmul.f32 %v10977, %v10489
  %v11145 = vmul.f32 %v10978, %v10490
  %v11146 = vmul.f32 %v10979, %v10491
  %v11147 = vmul.f32 %v10980, %v10492
  %v11148 = vmul.f32 %v10981, %v10493
  %v11149 = vmul.f32 %v10982, %v10494
  %v11150 = vmul.f32 %v10983, %v10495
  %v11151 = vmul.f32 %v10984, %v10496
  %v11152 = vmul.f32 %v10985, %v10497
  %v11153 = vmul.f32 %v10986, %v10498
  %v11154 = vmul.f32 %v10987, %v10499
  %v11155 = vmul.f32 %v10988, %v10500
  %v11156 = vmul.f32 %v10989, %v10501
  %v11157 = vmul.f32 %v10990, %v10502
  %v11158 = vmul.f32 %v10991, %v10503
  %v11159 = vmul.f32 %v10992, %v10504
  %v11160 = vmul.f32 %v10993, %v10505
  %v11161 = vmul.f32 %v10994, %v10506
  %v11162 = vmul.f32 %v10995, %v10507
  %v11163 = vmul.f32 %v10996, %v10508
  %v11164 = vmul.f32 %v10997, %v10509
  %v11165 = vmul.f32 %v10998, %v10510
  %v11166 = vmul.f32 %v10999, %v10511
  %v11167 = vmul.f32 %v11000, %v10512
  %v11168 = vmul.f32 %v11001, %v10513
  %v11169 = vmul.f32 %v11002, %v10514
  %v11170 = vmul.f32 %v11003, %v10515
  %v11171 = vmul.f32 %v11004, %v10516
  %v11172 = vmul.f32 %v11005, %v10517
  %v11173 = vmul.f32 %v11006, %v10518
  %v11174 = vmul.f32 %v11007, %v10519
  %v11175 = vmul.f32 %v11008, %v10520
  %v11176 = vmul.f32 %v11009, %v10521
  %v11177 = vmul.f32 %v11010, %v10522
  %v11178 = vmul.f32 %v11011, %v10523
  %v11179 = vmul.f32 %v11012, %v10524
  %v11180 = vmul.f32 %v11013, %v10525
  %v11181 = vmul.f32 %v11014, %v10526
  %v11182 = vmul.f32 %v11015, %v10527
  %v11183 = vmul.f32 %v11016, %v10528
  %v11184 = vmul.f32 %v11017, %v10529
  %v11185 = vmul.f32 %v11018, %v10530
  %v11186 = vmul.f32 %v11019, %v10531
  %v11187 = vmul.f32 %v11020, %v10532
  %v11188 = vmul.f32 %v11021, %v10533
  %v11189 = vmul.f32 %v11022, %v10534
  %v11190 = vmul.f32 %v11023, %v10535
  %v11191 = vmul.f32 %v11024, %v10536
  %v11192 = vmul.f32 %v11025, %v10537
  %v11193 = vmul.f32 %v11026, %v10538
  %v11194 = vmul.f32 %v11027, %v10539
  %v11195 = vmul.f32 %v11028, %v10540
  %v11196 = vmul.f32 %v11029, %v10541
  %v11197 = vmul.f32 %v11030, %v10542
  %v11198 = vmul.f32 %v11031, %v10543
  %v11199 = vmul.f32 %v11032, %v10544
  %v11200 = vmul.f32 %v11033, %v10545
  %v11201 = vmul.f32 %v11034, %v10546
  %v11202 = vmul.f32 %v11035, %v10547
  %v11203 = vmul.f32 %v11036, %v10548
  %v11204 = vmul.f32 %v11037, %v10549
  %v11205 = vmul.f32 %v11038, %v10550
  %v11206 = vmul.f32 %v11039, %v10551
  %v11207 = vmul.f32 %v11040, %v10552
  %v11208 = vmul.f32 %v11041, %v10553
  %v11209 = vmul.f32 %v11042, %v10554
  %v11210 = vmul.f32 %v11043, %v10555
  %v11211 = vmul.f32 %v11044, %v10556
  %v11212 = vmul.f32 %v11045, %v10557
  %v11213 = vmul.f32 %v11046, %v10558
  %v11214 = vmul.f32 %v11047, %v10559
  %v11215 = vmul.f32 %v11048, %v10560
  %v11216 = vmul.f32 %v11049, %v10561
  %v11217 = vmul.f32 %v11050, %v10562
  %v11218 = vmul.f32 %v11051, %v10563
  %v11219 = vmul.f32 %v11052, %v10564
  %v11220 = vmul.f32 %v11053, %v10565
  %v11221 = vmul.f32 %v11054, %v10566
  %v11222 = vmul.f32 %v11055, %v10567
  %v11223 = vmul.f32 %v11056, %v10568
  %v11224 = vmul.f32 %v11057, %v10569
  %v11225 = vadd.f32 %v11144, %v11145
  %v11226 = vadd.f32 %v11225, %v11146
  %v11227 = vadd.f32 %v11226, %v11147
  %v11228 = vadd.f32 %v11227, %v11148
  %v11229 = vadd.f32 %v11228, %v11149
  %v11230 = vadd.f32 %v11229, %v11150
  %v11231 = vadd.f32 %v11230, %v11151
  %v11232 = vadd.f32 %v11231, %v11152
  %v11233 = vadd.f32 %v11232, %v11153
  %v11234 = vadd.f32 %v11233, %v11154
  %v11235 = vadd.f32 %v11234, %v11155
  %v11236 = vadd.f32 %v11235, %v11156
  %v11237 = vadd.f32 %v11236, %v11157
  %v11238 = vadd.f32 %v11237, %v11158
  %v11239 = vadd.f32 %v11238, %v11159
  %v11240 = vadd.f32 %v11239, %v11160
  %v11241 = vadd.f32 %v11240, %v11161
  %v11242 = vadd.f32 %v11241, %v11162
  %v11243 = vadd.f32 %v11242, %v11163
  %v11244 = vadd.f32 %v11243, %v11164
  %v11245 = vadd.f32 %v11244, %v11165
  %v11246 = vadd.f32 %v11245, %v11166
  %v11247 = vadd.f32 %v11246, %v11167
  %v11248 = vadd.f32 %v11247, %v11168
  %v11249 = vadd.f32 %v11248, %v11169
  %v11250 = vadd.f32 %v11249, %v11170
  %v11251 = vadd.f32 %v11250, %v11171
  %v11252 = vadd.f32 %v11251, %v11172
  %v11253 = vadd.f32 %v11252, %v11173
  %v11254 = vadd.f32 %v11253, %v11174
  %v11255 = vadd.f32 %v11254, %v11175
  %v11256 = vadd.f32 %v11255, %v11176
  %v11257 = vadd.f32 %v11256, %v11177
  %v11258 = vadd.f32 %v11257, %v11178
  %v11259 = vadd.f32 %v11258, %v11179
  %v11260 = vadd.f32 %v11259, %v11180
  %v11261 = vadd.f32 %v11260, %v11181
  %v11262 = vadd.f32 %v11261, %v11182
  %v11263 = vadd.f32 %v11262, %v11183
  %v11264 = vadd.f32 %v11263, %v11184
  %v11265 = vadd.f32 %v11264, %v11185
  %v11266 = vadd.f32 %v11265, %v11186
  %v11267 = vadd.f32 %v11266, %v11187
  %v11268 = vadd.f32 %v11267, %v11188
  %v11269 = vadd.f32 %v11268, %v11189
  %v11270 = vadd.f32 %v11269, %v11190
  %v11271 = vadd.f32 %v11270, %v11191
  %v11272 = vadd.f32 %v11271, %v11192
  %v11273 = vadd.f32 %v11272, %v11193
  %v11274 = vadd.f32 %v11273, %v11194
  %v11275 = vadd.f32 %v11274, %v11195
  %v11276 = vadd.f32 %v11275, %v11196
  %v11277 = vadd.f32 %v11276, %v11197
  %v11278 = vadd.f32 %v11277, %v11198
  %v11279 = vadd.f32 %v11278, %v11199
  %v11280 = vadd.f32 %v11279, %v11200
  %v11281 = vadd.f32 %v11280, %v11201
  %v11282 = vadd.f32 %v11281, %v11202
  %v11283 = vadd.f32 %v11282, %v11203
  %v11284 = vadd.f32 %v11283, %v11204
  %v11285 = vadd.f32 %v11284, %v11205
  %v11286 = vadd.f32 %v11285, %v11206
  %v11287 = vadd.f32 %v11286, %v11207
  %v11288 = vadd.f32 %v11287, %v11208
  %v11289 = vadd.f32 %v11288, %v11209
  %v11290 = vadd.f32 %v11289, %v11210
  %v11291 = vadd.f32 %v11290, %v11211
  %v11292 = vadd.f32 %v11291, %v11212
  %v11293 = vadd.f32 %v11292, %v11213
  %v11294 = vadd.f32 %v11293, %v11214
  %v11295 = vadd.f32 %v11294, %v11215
  %v11296 = vadd.f32 %v11295, %v11216
  %v11297 = vadd.f32 %v11296, %v11217
  %v11298 = vadd.f32 %v11297, %v11218
  %v11299 = vadd.f32 %v11298, %v11219
  %v11300 = vadd.f32 %v11299, %v11220
  %v11301 = vadd.f32 %v11300, %v11221
  %v11302 = vadd.f32 %v11301, %v11222
  %v11303 = vadd.f32 %v11302, %v11223
  %v11304 = vadd.f32 %v11303, %v11224
  %v11305 = vrot.slane %v11304, 4
  %v11306 = vadd.f32 %v11304, %v11305
  %v11307 = vrot.slane %v11306, 2
  %v11308 = vadd.f32 %v11306, %v11307
  %v11309 = vrot.slane %v11308, 1
  %v11310 = vadd.f32 %v11308, %v11309
  %v11311 = vmul.f32 %v11143, 0.001953125
  %v11312 = vmul.f32 %v11310, 0.001953125
  %v11313 = vmul.f32 %v11311, %v11311
  %v11314 = vsub.f32 %v11312, %v11313
  %v11315 = vmax.f32 %v11314, 0.0
  %v11316 = vsub.f32 %v10489, %v11311
  %v11317 = vsub.f32 %v10490, %v11311
  %v11318 = vsub.f32 %v10491, %v11311
  %v11319 = vsub.f32 %v10492, %v11311
  %v11320 = vsub.f32 %v10493, %v11311
  %v11321 = vsub.f32 %v10494, %v11311
  %v11322 = vsub.f32 %v10495, %v11311
  %v11323 = vsub.f32 %v10496, %v11311
  %v11324 = vsub.f32 %v10497, %v11311
  %v11325 = vsub.f32 %v10498, %v11311
  %v11326 = vsub.f32 %v10499, %v11311
  %v11327 = vsub.f32 %v10500, %v11311
  %v11328 = vsub.f32 %v10501, %v11311
  %v11329 = vsub.f32 %v10502, %v11311
  %v11330 = vsub.f32 %v10503, %v11311
  %v11331 = vsub.f32 %v10504, %v11311
  %v11332 = vsub.f32 %v10505, %v11311
  %v11333 = vsub.f32 %v10506, %v11311
  %v11334 = vsub.f32 %v10507, %v11311
  %v11335 = vsub.f32 %v10508, %v11311
  %v11336 = vsub.f32 %v10509, %v11311
  %v11337 = vsub.f32 %v10510, %v11311
  %v11338 = vsub.f32 %v10511, %v11311
  %v11339 = vsub.f32 %v10512, %v11311
  %v11340 = vsub.f32 %v10513, %v11311
  %v11341 = vsub.f32 %v10514, %v11311
  %v11342 = vsub.f32 %v10515, %v11311
  %v11343 = vsub.f32 %v10516, %v11311
  %v11344 = vsub.f32 %v10517, %v11311
  %v11345 = vsub.f32 %v10518, %v11311
  %v11346 = vsub.f32 %v10519, %v11311
  %v11347 = vsub.f32 %v10520, %v11311
  %v11348 = vsub.f32 %v10521, %v11311
  %v11349 = vsub.f32 %v10522, %v11311
  %v11350 = vsub.f32 %v10523, %v11311
  %v11351 = vsub.f32 %v10524, %v11311
  %v11352 = vsub.f32 %v10525, %v11311
  %v11353 = vsub.f32 %v10526, %v11311
  %v11354 = vsub.f32 %v10527, %v11311
  %v11355 = vsub.f32 %v10528, %v11311
  %v11356 = vsub.f32 %v10529, %v11311
  %v11357 = vsub.f32 %v10530, %v11311
  %v11358 = vsub.f32 %v10531, %v11311
  %v11359 = vsub.f32 %v10532, %v11311
  %v11360 = vsub.f32 %v10533, %v11311
  %v11361 = vsub.f32 %v10534, %v11311
  %v11362 = vsub.f32 %v10535, %v11311
  %v11363 = vsub.f32 %v10536, %v11311
  %v11364 = vsub.f32 %v10537, %v11311
  %v11365 = vsub.f32 %v10538, %v11311
  %v11366 = vsub.f32 %v10539, %v11311
  %v11367 = vsub.f32 %v10540, %v11311
  %v11368 = vsub.f32 %v10541, %v11311
  %v11369 = vsub.f32 %v10542, %v11311
  %v11370 = vsub.f32 %v10543, %v11311
  %v11371 = vsub.f32 %v10544, %v11311
  %v11372 = vsub.f32 %v10545, %v11311
  %v11373 = vsub.f32 %v10546, %v11311
  %v11374 = vsub.f32 %v10547, %v11311
  %v11375 = vsub.f32 %v10548, %v11311
  %v11376 = vsub.f32 %v10549, %v11311
  %v11377 = vsub.f32 %v10550, %v11311
  %v11378 = vsub.f32 %v10551, %v11311
  %v11379 = vsub.f32 %v10552, %v11311
  %v11380 = vsub.f32 %v10553, %v11311
  %v11381 = vsub.f32 %v10554, %v11311
  %v11382 = vsub.f32 %v10555, %v11311
  %v11383 = vsub.f32 %v10556, %v11311
  %v11384 = vsub.f32 %v10557, %v11311
  %v11385 = vsub.f32 %v10558, %v11311
  %v11386 = vsub.f32 %v10559, %v11311
  %v11387 = vsub.f32 %v10560, %v11311
  %v11388 = vsub.f32 %v10561, %v11311
  %v11389 = vsub.f32 %v10562, %v11311
  %v11390 = vsub.f32 %v10563, %v11311
  %v11391 = vsub.f32 %v10564, %v11311
  %v11392 = vsub.f32 %v10565, %v11311
  %v11393 = vsub.f32 %v10566, %v11311
  %v11394 = vsub.f32 %v10567, %v11311
  %v11395 = vsub.f32 %v10568, %v11311
  %v11396 = vsub.f32 %v10569, %v11311
  %v11397 = vadd.f32 %v11315, 1e-05
  %v11398 = vrsqrt.pop %v11397
  %v11399 = vmul.f32 %v11316, %v11398
  %v11400 = vmul.f32 %v11317, %v11398
  %v11401 = vmul.f32 %v11318, %v11398
  %v11402 = vmul.f32 %v11319, %v11398
  %v11403 = vmul.f32 %v11320, %v11398
  %v11404 = vmul.f32 %v11321, %v11398
  %v11405 = vmul.f32 %v11322, %v11398
  %v11406 = vmul.f32 %v11323, %v11398
  %v11407 = vmul.f32 %v11324, %v11398
  %v11408 = vmul.f32 %v11325, %v11398
  %v11409 = vmul.f32 %v11326, %v11398
  %v11410 = vmul.f32 %v11327, %v11398
  %v11411 = vmul.f32 %v11328, %v11398
  %v11412 = vmul.f32 %v11329, %v11398
  %v11413 = vmul.f32 %v11330, %v11398
  %v11414 = vmul.f32 %v11331, %v11398
  %v11415 = vmul.f32 %v11332, %v11398
  %v11416 = vmul.f32 %v11333, %v11398
  %v11417 = vmul.f32 %v11334, %v11398
  %v11418 = vmul.f32 %v11335, %v11398
  %v11419 = vmul.f32 %v11336, %v11398
  %v11420 = vmul.f32 %v11337, %v11398
  %v11421 = vmul.f32 %v11338, %v11398
  %v11422 = vmul.f32 %v11339, %v11398
  %v11423 = vmul.f32 %v11340, %v11398
  %v11424 = vmul.f32 %v11341, %v11398
  %v11425 = vmul.f32 %v11342, %v11398
  %v11426 = vmul.f32 %v11343, %v11398
  %v11427 = vmul.f32 %v11344, %v11398
  %v11428 = vmul.f32 %v11345, %v11398
  %v11429 = vmul.f32 %v11346, %v11398
  %v11430 = vmul.f32 %v11347, %v11398
  %v11431 = vmul.f32 %v11348, %v11398
  %v11432 = vmul.f32 %v11349, %v11398
  %v11433 = vmul.f32 %v11350, %v11398
  %v11434 = vmul.f32 %v11351, %v11398
  %v11435 = vmul.f32 %v11352, %v11398
  %v11436 = vmul.f32 %v11353, %v11398
  %v11437 = vmul.f32 %v11354, %v11398
  %v11438 = vmul.f32 %v11355, %v11398
  %v11439 = vmul.f32 %v11356, %v11398
  %v11440 = vmul.f32 %v11357, %v11398
  %v11441 = vmul.f32 %v11358, %v11398
  %v11442 = vmul.f32 %v11359, %v11398
  %v11443 = vmul.f32 %v11360, %v11398
  %v11444 = vmul.f32 %v11361, %v11398
  %v11445 = vmul.f32 %v11362, %v11398
  %v11446 = vmul.f32 %v11363, %v11398
  %v11447 = vmul.f32 %v11364, %v11398
  %v11448 = vmul.f32 %v11365, %v11398
  %v11449 = vmul.f32 %v11366, %v11398
  %v11450 = vmul.f32 %v11367, %v11398
  %v11451 = vmul.f32 %v11368, %v11398
  %v11452 = vmul.f32 %v11369, %v11398
  %v11453 = vmul.f32 %v11370, %v11398
  %v11454 = vmul.f32 %v11371, %v11398
  %v11455 = vmul.f32 %v11372, %v11398
  %v11456 = vmul.f32 %v11373, %v11398
  %v11457 = vmul.f32 %v11374, %v11398
  %v11458 = vmul.f32 %v11375, %v11398
  %v11459 = vmul.f32 %v11376, %v11398
  %v11460 = vmul.f32 %v11377, %v11398
  %v11461 = vmul.f32 %v11378, %v11398
  %v11462 = vmul.f32 %v11379, %v11398
  %v11463 = vmul.f32 %v11380, %v11398
  %v11464 = vmul.f32 %v11381, %v11398
  %v11465 = vmul.f32 %v11382, %v11398
  %v11466 = vmul.f32 %v11383, %v11398
  %v11467 = vmul.f32 %v11384, %v11398
  %v11468 = vmul.f32 %v11385, %v11398
  %v11469 = vmul.f32 %v11386, %v11398
  %v11470 = vmul.f32 %v11387, %v11398
  %v11471 = vmul.f32 %v11388, %v11398
  %v11472 = vmul.f32 %v11389, %v11398
  %v11473 = vmul.f32 %v11390, %v11398
  %v11474 = vmul.f32 %v11391, %v11398
  %v11475 = vmul.f32 %v11392, %v11398
  %v11476 = vmul.f32 %v11393, %v11398
  %v11477 = vmul.f32 %v11394, %v11398
  %v11478 = vmul.f32 %v11395, %v11398
  %v11479 = vmul.f32 %v11396, %v11398
  %v11481 = vlaneseq
  %v11482 = vshrl.u32 %v11481, 7
  %v11483 = vsub.s32 0, %v11482
  %v11484 = vrot.slane %v10570, %v11483
  %v11486 = vmul.f32 %v11399, %v11484
  %v11487 = vmul.f32 %v11400, %v11484
  %v11488 = vmul.f32 %v11401, %v11484
  %v11489 = vmul.f32 %v11402, %v11484
  %v11490 = vmul.f32 %v11403, %v11484
  %v11491 = vmul.f32 %v11404, %v11484
  %v11492 = vmul.f32 %v11405, %v11484
  %v11493 = vmul.f32 %v11406, %v11484
  %v11494 = vmul.f32 %v11407, %v11484
  %v11495 = vmul.f32 %v11408, %v11484
  %v11496 = vmul.f32 %v11409, %v11484
  %v11497 = vmul.f32 %v11410, %v11484
  %v11498 = vmul.f32 %v11411, %v11484
  %v11499 = vmul.f32 %v11412, %v11484
  %v11500 = vmul.f32 %v11413, %v11484
  %v11501 = vmul.f32 %v11414, %v11484
  %v11502 = vmul.f32 %v11415, %v11484
  %v11503 = vmul.f32 %v11416, %v11484
  %v11504 = vmul.f32 %v11417, %v11484
  %v11505 = vmul.f32 %v11418, %v11484
  %v11506 = vmul.f32 %v11419, %v11484
  %v11507 = vmul.f32 %v11420, %v11484
  %v11508 = vmul.f32 %v11421, %v11484
  %v11509 = vmul.f32 %v11422, %v11484
  %v11510 = vmul.f32 %v11423, %v11484
  %v11511 = vmul.f32 %v11424, %v11484
  %v11512 = vmul.f32 %v11425, %v11484
  %v11513 = vmul.f32 %v11426, %v11484
  %v11514 = vmul.f32 %v11427, %v11484
  %v11515 = vmul.f32 %v11428, %v11484
  %v11516 = vmul.f32 %v11429, %v11484
  %v11517 = vmul.f32 %v11430, %v11484
  %v11518 = vmul.f32 %v11431, %v11484
  %v11519 = vmul.f32 %v11432, %v11484
  %v11520 = vmul.f32 %v11433, %v11484
  %v11521 = vmul.f32 %v11434, %v11484
  %v11522 = vmul.f32 %v11435, %v11484
  %v11523 = vmul.f32 %v11436, %v11484
  %v11524 = vmul.f32 %v11437, %v11484
  %v11525 = vmul.f32 %v11438, %v11484
  %v11526 = vmul.f32 %v11439, %v11484
  %v11527 = vmul.f32 %v11440, %v11484
  %v11528 = vmul.f32 %v11441, %v11484
  %v11529 = vmul.f32 %v11442, %v11484
  %v11530 = vmul.f32 %v11443, %v11484
  %v11531 = vmul.f32 %v11444, %v11484
  %v11532 = vmul.f32 %v11445, %v11484
  %v11533 = vmul.f32 %v11446, %v11484
  %v11534 = vmul.f32 %v11447, %v11484
  %v11535 = vmul.f32 %v11448, %v11484
  %v11536 = vmul.f32 %v11449, %v11484
  %v11537 = vmul.f32 %v11450, %v11484
  %v11538 = vmul.f32 %v11451, %v11484
  %v11539 = vmul.f32 %v11452, %v11484
  %v11540 = vmul.f32 %v11453, %v11484
  %v11541 = vmul.f32 %v11454, %v11484
  %v11542 = vmul.f32 %v11455, %v11484
  %v11543 = vmul.f32 %v11456, %v11484
  %v11544 = vmul.f32 %v11457, %v11484
  %v11545 = vmul.f32 %v11458, %v11484
  %v11546 = vmul.f32 %v11459, %v11484
  %v11547 = vmul.f32 %v11460, %v11484
  %v11548 = vmul.f32 %v11461, %v11484
  %v11549 = vmul.f32 %v11462, %v11484
  %v11550 = vmul.f32 %v11463, %v11484
  %v11551 = vmul.f32 %v11464, %v11484
  %v11552 = vmul.f32 %v11465, %v11484
  %v11553 = vmul.f32 %v11466, %v11484
  %v11554 = vmul.f32 %v11467, %v11484
  %v11555 = vmul.f32 %v11468, %v11484
  %v11556 = vmul.f32 %v11469, %v11484
  %v11557 = vmul.f32 %v11470, %v11484
  %v11558 = vmul.f32 %v11471, %v11484
  %v11559 = vmul.f32 %v11472, %v11484
  %v11560 = vmul.f32 %v11473, %v11484
  %v11561 = vmul.f32 %v11474, %v11484
  %v11562 = vmul.f32 %v11475, %v11484
  %v11563 = vmul.f32 %v11476, %v11484
  %v11564 = vmul.f32 %v11477, %v11484
  %v11565 = vmul.f32 %v11478, %v11484
  %v11566 = vmul.f32 %v11479, %v11484
  %v11568 = vlaneseq
  %v11569 = vshrl.u32 %v11568, 7
  %v11570 = vsub.s32 0, %v11569
  %v11571 = vrot.slane %v10571, %v11570
  %v11573 = vadd.f32 %v11486, %v11571
  %v11574 = vadd.f32 %v11487, %v11571
  %v11575 = vadd.f32 %v11488, %v11571
  %v11576 = vadd.f32 %v11489, %v11571
  %v11577 = vadd.f32 %v11490, %v11571
  %v11578 = vadd.f32 %v11491, %v11571
  %v11579 = vadd.f32 %v11492, %v11571
  %v11580 = vadd.f32 %v11493, %v11571
  %v11581 = vadd.f32 %v11494, %v11571
  %v11582 = vadd.f32 %v11495, %v11571
  %v11583 = vadd.f32 %v11496, %v11571
  %v11584 = vadd.f32 %v11497, %v11571
  %v11585 = vadd.f32 %v11498, %v11571
  %v11586 = vadd.f32 %v11499, %v11571
  %v11587 = vadd.f32 %v11500, %v11571
  %v11588 = vadd.f32 %v11501, %v11571
  %v11589 = vadd.f32 %v11502, %v11571
  %v11590 = vadd.f32 %v11503, %v11571
  %v11591 = vadd.f32 %v11504, %v11571
  %v11592 = vadd.f32 %v11505, %v11571
  %v11593 = vadd.f32 %v11506, %v11571
  %v11594 = vadd.f32 %v11507, %v11571
  %v11595 = vadd.f32 %v11508, %v11571
  %v11596 = vadd.f32 %v11509, %v11571
  %v11597 = vadd.f32 %v11510, %v11571
  %v11598 = vadd.f32 %v11511, %v11571
  %v11599 = vadd.f32 %v11512, %v11571
  %v11600 = vadd.f32 %v11513, %v11571
  %v11601 = vadd.f32 %v11514, %v11571
  %v11602 = vadd.f32 %v11515, %v11571
  %v11603 = vadd.f32 %v11516, %v11571
  %v11604 = vadd.f32 %v11517, %v11571
  %v11605 = vadd.f32 %v11518, %v11571
  %v11606 = vadd.f32 %v11519, %v11571
  %v11607 = vadd.f32 %v11520, %v11571
  %v11608 = vadd.f32 %v11521, %v11571
  %v11609 = vadd.f32 %v11522, %v11571
  %v11610 = vadd.f32 %v11523, %v11571
  %v11611 = vadd.f32 %v11524, %v11571
  %v11612 = vadd.f32 %v11525, %v11571
  %v11613 = vadd.f32 %v11526, %v11571
  %v11614 = vadd.f32 %v11527, %v11571
  %v11615 = vadd.f32 %v11528, %v11571
  %v11616 = vadd.f32 %v11529, %v11571
  %v11617 = vadd.f32 %v11530, %v11571
  %v11618 = vadd.f32 %v11531, %v11571
  %v11619 = vadd.f32 %v11532, %v11571
  %v11620 = vadd.f32 %v11533, %v11571
  %v11621 = vadd.f32 %v11534, %v11571
  %v11622 = vadd.f32 %v11535, %v11571
  %v11623 = vadd.f32 %v11536, %v11571
  %v11624 = vadd.f32 %v11537, %v11571
  %v11625 = vadd.f32 %v11538, %v11571
  %v11626 = vadd.f32 %v11539, %v11571
  %v11627 = vadd.f32 %v11540, %v11571
  %v11628 = vadd.f32 %v11541, %v11571
  %v11629 = vadd.f32 %v11542, %v11571
  %v11630 = vadd.f32 %v11543, %v11571
  %v11631 = vadd.f32 %v11544, %v11571
  %v11632 = vadd.f32 %v11545, %v11571
  %v11633 = vadd.f32 %v11546, %v11571
  %v11634 = vadd.f32 %v11547, %v11571
  %v11635 = vadd.f32 %v11548, %v11571
  %v11636 = vadd.f32 %v11549, %v11571
  %v11637 = vadd.f32 %v11550, %v11571
  %v11638 = vadd.f32 %v11551, %v11571
  %v11639 = vadd.f32 %v11552, %v11571
  %v11640 = vadd.f32 %v11553, %v11571
  %v11641 = vadd.f32 %v11554, %v11571
  %v11642 = vadd.f32 %v11555, %v11571
  %v11643 = vadd.f32 %v11556, %v11571
  %v11644 = vadd.f32 %v11557, %v11571
  %v11645 = vadd.f32 %v11558, %v11571
  %v11646 = vadd.f32 %v11559, %v11571
  %v11647 = vadd.f32 %v11560, %v11571
  %v11648 = vadd.f32 %v11561, %v11571
  %v11649 = vadd.f32 %v11562, %v11571
  %v11650 = vadd.f32 %v11563, %v11571
  %v11651 = vadd.f32 %v11564, %v11571
  %v11652 = vadd.f32 %v11565, %v11571
  %v11653 = vadd.f32 %v11566, %v11571
  %v11654 = vmax.f32 %v11573, 0.0
  %v11655 = vmax.f32 %v11574, 0.0
  %v11656 = vmax.f32 %v11575, 0.0
  %v11657 = vmax.f32 %v11576, 0.0
  %v11658 = vmax.f32 %v11577, 0.0
  %v11659 = vmax.f32 %v11578, 0.0
  %v11660 = vmax.f32 %v11579, 0.0
  %v11661 = vmax.f32 %v11580, 0.0
  %v11662 = vmax.f32 %v11581, 0.0
  %v11663 = vmax.f32 %v11582, 0.0
  %v11664 = vmax.f32 %v11583, 0.0
  %v11665 = vmax.f32 %v11584, 0.0
  %v11666 = vmax.f32 %v11585, 0.0
  %v11667 = vmax.f32 %v11586, 0.0
  %v11668 = vmax.f32 %v11587, 0.0
  %v11669 = vmax.f32 %v11588, 0.0
  %v11670 = vmax.f32 %v11589, 0.0
  %v11671 = vmax.f32 %v11590, 0.0
  %v11672 = vmax.f32 %v11591, 0.0
  %v11673 = vmax.f32 %v11592, 0.0
  %v11674 = vmax.f32 %v11593, 0.0
  %v11675 = vmax.f32 %v11594, 0.0
  %v11676 = vmax.f32 %v11595, 0.0
  %v11677 = vmax.f32 %v11596, 0.0
  %v11678 = vmax.f32 %v11597, 0.0
  %v11679 = vmax.f32 %v11598, 0.0
  %v11680 = vmax.f32 %v11599, 0.0
  %v11681 = vmax.f32 %v11600, 0.0
  %v11682 = vmax.f32 %v11601, 0.0
  %v11683 = vmax.f32 %v11602, 0.0
  %v11684 = vmax.f32 %v11603, 0.0
  %v11685 = vmax.f32 %v11604, 0.0
  %v11686 = vmax.f32 %v11605, 0.0
  %v11687 = vmax.f32 %v11606, 0.0
  %v11688 = vmax.f32 %v11607, 0.0
  %v11689 = vmax.f32 %v11608, 0.0
  %v11690 = vmax.f32 %v11609, 0.0
  %v11691 = vmax.f32 %v11610, 0.0
  %v11692 = vmax.f32 %v11611, 0.0
  %v11693 = vmax.f32 %v11612, 0.0
  %v11694 = vmax.f32 %v11613, 0.0
  %v11695 = vmax.f32 %v11614, 0.0
  %v11696 = vmax.f32 %v11615, 0.0
  %v11697 = vmax.f32 %v11616, 0.0
  %v11698 = vmax.f32 %v11617, 0.0
  %v11699 = vmax.f32 %v11618, 0.0
  %v11700 = vmax.f32 %v11619, 0.0
  %v11701 = vmax.f32 %v11620, 0.0
  %v11702 = vmax.f32 %v11621, 0.0
  %v11703 = vmax.f32 %v11622, 0.0
  %v11704 = vmax.f32 %v11623, 0.0
  %v11705 = vmax.f32 %v11624, 0.0
  %v11706 = vmax.f32 %v11625, 0.0
  %v11707 = vmax.f32 %v11626, 0.0
  %v11708 = vmax.f32 %v11627, 0.0
  %v11709 = vmax.f32 %v11628, 0.0
  %v11710 = vmax.f32 %v11629, 0.0
  %v11711 = vmax.f32 %v11630, 0.0
  %v11712 = vmax.f32 %v11631, 0.0
  %v11713 = vmax.f32 %v11632, 0.0
  %v11714 = vmax.f32 %v11633, 0.0
  %v11715 = vmax.f32 %v11634, 0.0
  %v11716 = vmax.f32 %v11635, 0.0
  %v11717 = vmax.f32 %v11636, 0.0
  %v11718 = vmax.f32 %v11637, 0.0
  %v11719 = vmax.f32 %v11638, 0.0
  %v11720 = vmax.f32 %v11639, 0.0
  %v11721 = vmax.f32 %v11640, 0.0
  %v11722 = vmax.f32 %v11641, 0.0
  %v11723 = vmax.f32 %v11642, 0.0
  %v11724 = vmax.f32 %v11643, 0.0
  %v11725 = vmax.f32 %v11644, 0.0
  %v11726 = vmax.f32 %v11645, 0.0
  %v11727 = vmax.f32 %v11646, 0.0
  %v11728 = vmax.f32 %v11647, 0.0
  %v11729 = vmax.f32 %v11648, 0.0
  %v11730 = vmax.f32 %v11649, 0.0
  %v11731 = vmax.f32 %v11650, 0.0
  %v11732 = vmax.f32 %v11651, 0.0
  %v11733 = vmax.f32 %v11652, 0.0
  %v11734 = vmax.f32 %v11653, 0.0
  %v11735 = vpack.c.bf16 %v11655, %v11654
  %v11736 = vpack.c.bf16 %v11657, %v11656
  %v11737 = vpack.c.bf16 %v11659, %v11658
  %v11738 = vpack.c.bf16 %v11661, %v11660
  %v11739 = vpack.c.bf16 %v11663, %v11662
  %v11740 = vpack.c.bf16 %v11665, %v11664
  %v11741 = vpack.c.bf16 %v11667, %v11666
  %v11742 = vpack.c.bf16 %v11669, %v11668
  %v11743 = vpack.c.bf16 %v11671, %v11670
  %v11744 = vpack.c.bf16 %v11673, %v11672
  %v11745 = vpack.c.bf16 %v11675, %v11674
  %v11746 = vpack.c.bf16 %v11677, %v11676
  %v11747 = vpack.c.bf16 %v11679, %v11678
  %v11748 = vpack.c.bf16 %v11681, %v11680
  %v11749 = vpack.c.bf16 %v11683, %v11682
  %v11750 = vpack.c.bf16 %v11685, %v11684
  %v11751 = vpack.c.bf16 %v11687, %v11686
  %v11752 = vpack.c.bf16 %v11689, %v11688
  %v11753 = vpack.c.bf16 %v11691, %v11690
  %v11754 = vpack.c.bf16 %v11693, %v11692
  %v11755 = vpack.c.bf16 %v11695, %v11694
  %v11756 = vpack.c.bf16 %v11697, %v11696
  %v11757 = vpack.c.bf16 %v11699, %v11698
  %v11758 = vpack.c.bf16 %v11701, %v11700
  %v11759 = vpack.c.bf16 %v11703, %v11702
  %v11760 = vpack.c.bf16 %v11705, %v11704
  %v11761 = vpack.c.bf16 %v11707, %v11706
  %v11762 = vpack.c.bf16 %v11709, %v11708
  %v11763 = vpack.c.bf16 %v11711, %v11710
  %v11764 = vpack.c.bf16 %v11713, %v11712
  %v11765 = vpack.c.bf16 %v11715, %v11714
  %v11766 = vpack.c.bf16 %v11717, %v11716
  %v11767 = vpack.c.bf16 %v11719, %v11718
  %v11768 = vpack.c.bf16 %v11721, %v11720
  %v11769 = vpack.c.bf16 %v11723, %v11722
  %v11770 = vpack.c.bf16 %v11725, %v11724
  %v11771 = vpack.c.bf16 %v11727, %v11726
  %v11772 = vpack.c.bf16 %v11729, %v11728
  %v11773 = vpack.c.bf16 %v11731, %v11730
  %v11774 = vpack.c.bf16 %v11733, %v11732
  %v11775 = vpack.c.bf16 %v11734, %v11734
  %v11776 = vld [vmem:[%s5] sm:$0xf]
  %v11777 = vld [vmem:[%s5 + $0x4] sm:$0xf]
  %v11778 = vld [vmem:[%s5 + $0x8] sm:$0xf]
  %v11779 = vld [vmem:[%s5 + $0xc] sm:$0xf]
  %v11780 = vld [vmem:[%s5 + $0x10] sm:$0xf]
  %v11781 = vld [vmem:[%s5 + $0x14] sm:$0xf]
  %v11782 = vld [vmem:[%s5 + $0x18] sm:$0xf]
  %v11783 = vld [vmem:[%s5 + $0x1c] sm:$0xf]
  %v11784 = vld [vmem:[%s5 + $0x20] sm:$0xf]
  %v11785 = vld [vmem:[%s5 + $0x24] sm:$0xf]
  %v11786 = vld [vmem:[%s5 + $0x28] sm:$0xf]
  %v11787 = vld [vmem:[%s5 + $0x2c] sm:$0xf]
  %v11788 = vld [vmem:[%s5 + $0x30] sm:$0xf]
  %v11789 = vld [vmem:[%s5 + $0x34] sm:$0xf]
  %v11790 = vld [vmem:[%s5 + $0x38] sm:$0xf]
  %v11791 = vld [vmem:[%s5 + $0x3c] sm:$0xf]
  %v11808 = vunpack.c.l.b16 %v11776
  %v11809 = vunpack.c.l.b16 %v11777
  %v11810 = vunpack.c.l.b16 %v11778
  %v11811 = vunpack.c.l.b16 %v11779
  %v11812 = vunpack.c.l.b16 %v11780
  %v11813 = vunpack.c.l.b16 %v11781
  %v11814 = vunpack.c.l.b16 %v11782
  %v11815 = vunpack.c.l.b16 %v11783
  %v11816 = vunpack.c.l.b16 %v11784
  %v11817 = vunpack.c.l.b16 %v11785
  %v11818 = vunpack.c.l.b16 %v11786
  %v11819 = vunpack.c.l.b16 %v11787
  %v11820 = vunpack.c.l.b16 %v11788
  %v11821 = vunpack.c.l.b16 %v11789
  %v11822 = vunpack.c.l.b16 %v11790
  %v11823 = vunpack.c.l.b16 %v11791
  %v11824 = vpack.c.b16 %v11809, %v11808
  %v11825 = vpack.c.b16 %v11811, %v11810
  %v11826 = vpack.c.b16 %v11813, %v11812
  %v11827 = vpack.c.b16 %v11815, %v11814
  %v11828 = vpack.c.b16 %v11817, %v11816
  %v11829 = vpack.c.b16 %v11819, %v11818
  %v11830 = vpack.c.b16 %v11821, %v11820
  %v11831 = vpack.c.b16 %v11823, %v11822
  %11840 = vmatprep.subr.bf16.mxu0 0
  %11841 = vmatpush1.bf16.msra.mxu0 %v11824
  %11842 = vmatprep.subr.bf16.mxu0 0
  %11843 = vmatpush1.bf16.msra.mxu0 %v11825
  %11844 = vmatprep.subr.bf16.mxu0 0
  %11845 = vmatpush1.bf16.msra.mxu0 %v11826
  %11846 = vmatprep.subr.bf16.mxu0 0
  %11847 = vmatpush1.bf16.msra.mxu0 %v11827
  %11848 = vmatprep.subr.bf16.mxu0 0
  %11849 = vmatpush1.bf16.msra.mxu0 %v11828
  %11850 = vmatprep.subr.bf16.mxu0 0
  %11851 = vmatpush1.bf16.msra.mxu0 %v11829
  %11852 = vmatprep.subr.bf16.mxu0 0
  %11853 = vmatpush1.bf16.msra.mxu0 %v11830
  %11854 = vmatprep.subr.bf16.mxu0 0
  %11855 = vmatpush1.bf16.msra.mxu0 %v11831
  %11856 = vmatprep.subr.bf16.mxu0 0
  %11857 = vmatpush1.bf16.msra.mxu0 0
  %11858 = vmatprep.subr.bf16.mxu0 0
  %11859 = vmatpush1.bf16.msra.mxu0 0
  %11860 = vmatprep.subr.bf16.mxu0 0
  %11861 = vmatpush1.bf16.msra.mxu0 0
  %11862 = vmatprep.subr.bf16.mxu0 0
  %11863 = vmatpush1.bf16.msra.mxu0 0
  %11864 = vmatprep.subr.bf16.mxu0 0
  %11865 = vmatpush1.bf16.msra.mxu0 0
  %11866 = vmatprep.subr.bf16.mxu0 0
  %11867 = vmatpush1.bf16.msra.mxu0 0
  %11868 = vmatprep.subr.bf16.mxu0 0
  %11869 = vmatpush1.bf16.msra.mxu0 0
  %11870 = vmatprep.subr.bf16.mxu0 0
  %11871 = vmatpush1.bf16.msra.mxu0 0
  %11872 = vmatprep.mubr.bf16.mxu0 0
  %11873 = vmatmul.mubr.bf16.gmra.mrb[0].mxu0 %v11735
  %v11874 = vpop.f32.mrb[0].mxu0
  %v11875 = vadd.f32 0.0, %v11874
  %v11876 = vpop.f32.mrb[0].mxu0
  %v11877 = vpop.f32.mrb[0].mxu0
  %v11878 = vadd.f32 0.0, %v11877
  %v11879 = vpop.f32.mrb[0].mxu0
  %11880 = vmatprep.mubr.bf16.mxu0 0
  %11881 = vmatmul.mubr.bf16.gmra.mrb[0].mxu0 %v11736
  %v11882 = vpop.f32.mrb[0].mxu0
  %v11883 = vadd.f32 0.0, %v11882
  %v11884 = vpop.f32.mrb[0].mxu0
  %v11885 = vpop.f32.mrb[0].mxu0
  %v11886 = vadd.f32 0.0, %v11885
  %v11887 = vpop.f32.mrb[0].mxu0
  %11888 = vmatprep.mubr.bf16.mxu0 0
  %11889 = vmatmul.mubr.bf16.gmra.mrb[0].mxu0 %v11737
  %v11890 = vpop.f32.mrb[0].mxu0
  %v11891 = vadd.f32 0.0, %v11890
  %v11892 = vpop.f32.mrb[0].mxu0
  %v11893 = vpop.f32.mrb[0].mxu0
  %v11894 = vadd.f32 0.0, %v11893
  %v11895 = vpop.f32.mrb[0].mxu0
  %11896 = vmatprep.mubr.bf16.mxu0 0
  %11897 = vmatmul.mubr.bf16.gmra.mrb[0].mxu0 %v11738
  %v11898 = vpop.f32.mrb[0].mxu0
  %v11899 = vadd.f32 0.0, %v11898
  %v11900 = vpop.f32.mrb[0].mxu0
  %v11901 = vpop.f32.mrb[0].mxu0
  %v11902 = vadd.f32 0.0, %v11901
  %v11903 = vpop.f32.mrb[0].mxu0
  %11904 = vmatprep.mubr.bf16.mxu0 0
  %11905 = vmatmul.mubr.bf16.gmra.mrb[0].mxu0 %v11739
  %v11906 = vpop.f32.mrb[0].mxu0
  %v11907 = vadd.f32 0.0, %v11906
  %v11908 = vpop.f32.mrb[0].mxu0
  %v11909 = vpop.f32.mrb[0].mxu0
  %v11910 = vadd.f32 0.0, %v11909
  %v11911 = vpop.f32.mrb[0].mxu0
  %11912 = vmatprep.mubr.bf16.mxu0 0
  %11913 = vmatmul.mubr.bf16.gmra.mrb[0].mxu0 %v11740
  %v11914 = vpop.f32.mrb[0].mxu0
  %v11915 = vadd.f32 0.0, %v11914
  %v11916 = vpop.f32.mrb[0].mxu0
  %v11917 = vpop.f32.mrb[0].mxu0
  %v11918 = vadd.f32 0.0, %v11917
  %v11919 = vpop.f32.mrb[0].mxu0
  %11920 = vmatprep.mubr.bf16.mxu0 0
  %11921 = vmatmul.mubr.bf16.gmra.mrb[0].mxu0 %v11741
  %v11922 = vpop.f32.mrb[0].mxu0
  %v11923 = vadd.f32 0.0, %v11922
  %v11924 = vpop.f32.mrb[0].mxu0
  %v11925 = vpop.f32.mrb[0].mxu0
  %v11926 = vadd.f32 0.0, %v11925
  %v11927 = vpop.f32.mrb[0].mxu0
  %11928 = vmatprep.mubr.bf16.mxu0 0
  %11929 = vmatmul.mubr.bf16.gmra.mrb[0].mxu0 %v11742
  %v11930 = vpop.f32.mrb[0].mxu0
  %v11931 = vadd.f32 0.0, %v11930
  %v11932 = vpop.f32.mrb[0].mxu0
  %v11933 = vpop.f32.mrb[0].mxu0
  %v11934 = vadd.f32 0.0, %v11933
  %v11935 = vpop.f32.mrb[0].mxu0
  %11936 = vmatprep.mubr.bf16.mxu0 0
  %11937 = vmatmul.mubr.bf16.gmra.mrb[0].mxu0 %v11743
  %v11938 = vpop.f32.mrb[0].mxu0
  %v11939 = vadd.f32 0.0, %v11938
  %v11940 = vpop.f32.mrb[0].mxu0
  %v11941 = vpop.f32.mrb[0].mxu0
  %v11942 = vadd.f32 0.0, %v11941
  %v11943 = vpop.f32.mrb[0].mxu0
  %11944 = vmatprep.mubr.bf16.mxu0 0
  %11945 = vmatmul.mubr.bf16.gmra.mrb[0].mxu0 %v11744
  %v11946 = vpop.f32.mrb[0].mxu0
  %v11947 = vadd.f32 0.0, %v11946
  %v11948 = vpop.f32.mrb[0].mxu0
  %v11949 = vpop.f32.mrb[0].mxu0
  %v11950 = vadd.f32 0.0, %v11949
  %v11951 = vpop.f32.mrb[0].mxu0
  %11952 = vmatprep.mubr.bf16.mxu0 0
  %11953 = vmatmul.mubr.bf16.gmra.mrb[0].mxu0 %v11745
  %v11954 = vpop.f32.mrb[0].mxu0
  %v11955 = vadd.f32 0.0, %v11954
  %v11956 = vpop.f32.mrb[0].mxu0
  %v11957 = vpop.f32.mrb[0].mxu0
  %v11958 = vadd.f32 0.0, %v11957
  %v11959 = vpop.f32.mrb[0].mxu0
  %11960 = vmatprep.mubr.bf16.mxu0 0
  %11961 = vmatmul.mubr.bf16.gmra.mrb[0].mxu0 %v11746
  %v11962 = vpop.f32.mrb[0].mxu0
  %v11963 = vadd.f32 0.0, %v11962
  %v11964 = vpop.f32.mrb[0].mxu0
  %v11965 = vpop.f32.mrb[0].mxu0
  %v11966 = vadd.f32 0.0, %v11965
  %v11967 = vpop.f32.mrb[0].mxu0
  %11968 = vmatprep.mubr.bf16.mxu0 0
  %11969 = vmatmul.mubr.bf16.gmra.mrb[0].mxu0 %v11747
  %v11970 = vpop.f32.mrb[0].mxu0
  %v11971 = vadd.f32 0.0, %v11970
  %v11972 = vpop.f32.mrb[0].mxu0
  %v11973 = vpop.f32.mrb[0].mxu0
  %v11974 = vadd.f32 0.0, %v11973
  %v11975 = vpop.f32.mrb[0].mxu0
  %11976 = vmatprep.mubr.bf16.mxu0 0
  %11977 = vmatmul.mubr.bf16.gmra.mrb[0].mxu0 %v11748
  %v11978 = vpop.f32.mrb[0].mxu0
  %v11979 = vadd.f32 0.0, %v11978
  %v11980 = vpop.f32.mrb[0].mxu0
  %v11981 = vpop.f32.mrb[0].mxu0
  %v11982 = vadd.f32 0.0, %v11981
  %v11983 = vpop.f32.mrb[0].mxu0
  %11984 = vmatprep.mubr.bf16.mxu0 0
  %11985 = vmatmul.mubr.bf16.gmra.mrb[0].mxu0 %v11749
  %v11986 = vpop.f32.mrb[0].mxu0
  %v11987 = vadd.f32 0.0, %v11986
  %v11988 = vpop.f32.mrb[0].mxu0
  %v11989 = vpop.f32.mrb[0].mxu0
  %v11990 = vadd.f32 0.0, %v11989
  %v11991 = vpop.f32.mrb[0].mxu0
  %11992 = vmatprep.mubr.bf16.mxu0 0
  %11993 = vmatmul.mubr.bf16.gmra.mrb[0].mxu0 %v11750
  %v11994 = vpop.f32.mrb[0].mxu0
  %v11995 = vadd.f32 0.0, %v11994
  %v11996 = vpop.f32.mrb[0].mxu0
  %v11997 = vpop.f32.mrb[0].mxu0
  %v11998 = vadd.f32 0.0, %v11997
  %v11999 = vpop.f32.mrb[0].mxu0
  %12000 = vmatprep.mubr.bf16.mxu0 0
  %12001 = vmatmul.mubr.bf16.gmra.mrb[0].mxu0 %v11751
  %v12002 = vpop.f32.mrb[0].mxu0
  %v12003 = vadd.f32 0.0, %v12002
  %v12004 = vpop.f32.mrb[0].mxu0
  %v12005 = vpop.f32.mrb[0].mxu0
  %v12006 = vadd.f32 0.0, %v12005
  %v12007 = vpop.f32.mrb[0].mxu0
  %12008 = vmatprep.mubr.bf16.mxu0 0
  %12009 = vmatmul.mubr.bf16.gmra.mrb[0].mxu0 %v11752
  %v12010 = vpop.f32.mrb[0].mxu0
  %v12011 = vadd.f32 0.0, %v12010
  %v12012 = vpop.f32.mrb[0].mxu0
  %v12013 = vpop.f32.mrb[0].mxu0
  %v12014 = vadd.f32 0.0, %v12013
  %v12015 = vpop.f32.mrb[0].mxu0
  %12016 = vmatprep.mubr.bf16.mxu0 0
  %12017 = vmatmul.mubr.bf16.gmra.mrb[0].mxu0 %v11753
  %v12018 = vpop.f32.mrb[0].mxu0
  %v12019 = vadd.f32 0.0, %v12018
  %v12020 = vpop.f32.mrb[0].mxu0
  %v12021 = vpop.f32.mrb[0].mxu0
  %v12022 = vadd.f32 0.0, %v12021
  %v12023 = vpop.f32.mrb[0].mxu0
  %12024 = vmatprep.mubr.bf16.mxu0 0
  %12025 = vmatmul.mubr.bf16.gmra.mrb[0].mxu0 %v11754
  %v12026 = vpop.f32.mrb[0].mxu0
  %v12027 = vadd.f32 0.0, %v12026
  %v12028 = vpop.f32.mrb[0].mxu0
  %v12029 = vpop.f32.mrb[0].mxu0
  %v12030 = vadd.f32 0.0, %v12029
  %v12031 = vpop.f32.mrb[0].mxu0
  %12032 = vmatprep.mubr.bf16.mxu0 0
  %12033 = vmatmul.mubr.bf16.gmra.mrb[0].mxu0 %v11755
  %v12034 = vpop.f32.mrb[0].mxu0
  %v12035 = vadd.f32 0.0, %v12034
  %v12036 = vpop.f32.mrb[0].mxu0
  %v12037 = vpop.f32.mrb[0].mxu0
  %v12038 = vadd.f32 0.0, %v12037
  %v12039 = vpop.f32.mrb[0].mxu0
  %12040 = vmatprep.mubr.bf16.mxu0 0
  %12041 = vmatmul.mubr.bf16.gmra.mrb[0].mxu0 %v11756
  %v12042 = vpop.f32.mrb[0].mxu0
  %v12043 = vadd.f32 0.0, %v12042
  %v12044 = vpop.f32.mrb[0].mxu0
  %v12045 = vpop.f32.mrb[0].mxu0
  %v12046 = vadd.f32 0.0, %v12045
  %v12047 = vpop.f32.mrb[0].mxu0
  %12048 = vmatprep.mubr.bf16.mxu0 0
  %12049 = vmatmul.mubr.bf16.gmra.mrb[0].mxu0 %v11757
  %v12050 = vpop.f32.mrb[0].mxu0
  %v12051 = vadd.f32 0.0, %v12050
  %v12052 = vpop.f32.mrb[0].mxu0
  %v12053 = vpop.f32.mrb[0].mxu0
  %v12054 = vadd.f32 0.0, %v12053
  %v12055 = vpop.f32.mrb[0].mxu0
  %12056 = vmatprep.mubr.bf16.mxu0 0
  %12057 = vmatmul.mubr.bf16.gmra.mrb[0].mxu0 %v11758
  %v12058 = vpop.f32.mrb[0].mxu0
  %v12059 = vadd.f32 0.0, %v12058
  %v12060 = vpop.f32.mrb[0].mxu0
  %v12061 = vpop.f32.mrb[0].mxu0
  %v12062 = vadd.f32 0.0, %v12061
  %v12063 = vpop.f32.mrb[0].mxu0
  %12064 = vmatprep.mubr.bf16.mxu0 0
  %12065 = vmatmul.mubr.bf16.gmra.mrb[0].mxu0 %v11759
  %v12066 = vpop.f32.mrb[0].mxu0
  %v12067 = vadd.f32 0.0, %v12066
  %v12068 = vpop.f32.mrb[0].mxu0
  %v12069 = vpop.f32.mrb[0].mxu0
  %v12070 = vadd.f32 0.0, %v12069
  %v12071 = vpop.f32.mrb[0].mxu0
  %12072 = vmatprep.mubr.bf16.mxu0 0
  %12073 = vmatmul.mubr.bf16.gmra.mrb[0].mxu0 %v11760
  %v12074 = vpop.f32.mrb[0].mxu0
  %v12075 = vadd.f32 0.0, %v12074
  %v12076 = vpop.f32.mrb[0].mxu0
  %v12077 = vpop.f32.mrb[0].mxu0
  %v12078 = vadd.f32 0.0, %v12077
  %v12079 = vpop.f32.mrb[0].mxu0
  %12080 = vmatprep.mubr.bf16.mxu0 0
  %12081 = vmatmul.mubr.bf16.gmra.mrb[0].mxu0 %v11761
  %v12082 = vpop.f32.mrb[0].mxu0
  %v12083 = vadd.f32 0.0, %v12082
  %v12084 = vpop.f32.mrb[0].mxu0
  %v12085 = vpop.f32.mrb[0].mxu0
  %v12086 = vadd.f32 0.0, %v12085
  %v12087 = vpop.f32.mrb[0].mxu0
  %12088 = vmatprep.mubr.bf16.mxu0 0
  %12089 = vmatmul.mubr.bf16.gmra.mrb[0].mxu0 %v11762
  %v12090 = vpop.f32.mrb[0].mxu0
  %v12091 = vadd.f32 0.0, %v12090
  %v12092 = vpop.f32.mrb[0].mxu0
  %v12093 = vpop.f32.mrb[0].mxu0
  %v12094 = vadd.f32 0.0, %v12093
  %v12095 = vpop.f32.mrb[0].mxu0
  %12096 = vmatprep.mubr.bf16.mxu0 0
  %12097 = vmatmul.mubr.bf16.gmra.mrb[0].mxu0 %v11763
  %v12098 = vpop.f32.mrb[0].mxu0
  %v12099 = vadd.f32 0.0, %v12098
  %v12100 = vpop.f32.mrb[0].mxu0
  %v12101 = vpop.f32.mrb[0].mxu0
  %v12102 = vadd.f32 0.0, %v12101
  %v12103 = vpop.f32.mrb[0].mxu0
  %12104 = vmatprep.mubr.bf16.mxu0 0
  %12105 = vmatmul.mubr.bf16.gmra.mrb[0].mxu0 %v11764
  %v12106 = vpop.f32.mrb[0].mxu0
  %v12107 = vadd.f32 0.0, %v12106
  %v12108 = vpop.f32.mrb[0].mxu0
  %v12109 = vpop.f32.mrb[0].mxu0
  %v12110 = vadd.f32 0.0, %v12109
  %v12111 = vpop.f32.mrb[0].mxu0
  %12112 = vmatprep.mubr.bf16.mxu0 0
  %12113 = vmatmul.mubr.bf16.gmra.mrb[0].mxu0 %v11765
  %v12114 = vpop.f32.mrb[0].mxu0
  %v12115 = vadd.f32 0.0, %v12114
  %v12116 = vpop.f32.mrb[0].mxu0
  %v12117 = vpop.f32.mrb[0].mxu0
  %v12118 = vadd.f32 0.0, %v12117
  %v12119 = vpop.f32.mrb[0].mxu0
  %12120 = vmatprep.mubr.bf16.mxu0 0
  %12121 = vmatmul.mubr.bf16.gmra.mrb[0].mxu0 %v11766
  %v12122 = vpop.f32.mrb[0].mxu0
  %v12123 = vadd.f32 0.0, %v12122
  %v12124 = vpop.f32.mrb[0].mxu0
  %v12125 = vpop.f32.mrb[0].mxu0
  %v12126 = vadd.f32 0.0, %v12125
  %v12127 = vpop.f32.mrb[0].mxu0
  %12128 = vmatprep.mubr.bf16.mxu0 0
  %12129 = vmatmul.mubr.bf16.gmra.mrb[0].mxu0 %v11767
  %v12130 = vpop.f32.mrb[0].mxu0
  %v12131 = vadd.f32 0.0, %v12130
  %v12132 = vpop.f32.mrb[0].mxu0
  %v12133 = vpop.f32.mrb[0].mxu0
  %v12134 = vadd.f32 0.0, %v12133
  %v12135 = vpop.f32.mrb[0].mxu0
  %12136 = vmatprep.mubr.bf16.mxu0 0
  %12137 = vmatmul.mubr.bf16.gmra.mrb[0].mxu0 %v11768
  %v12138 = vpop.f32.mrb[0].mxu0
  %v12139 = vadd.f32 0.0, %v12138
  %v12140 = vpop.f32.mrb[0].mxu0
  %v12141 = vpop.f32.mrb[0].mxu0
  %v12142 = vadd.f32 0.0, %v12141
  %v12143 = vpop.f32.mrb[0].mxu0
  %12144 = vmatprep.mubr.bf16.mxu0 0
  %12145 = vmatmul.mubr.bf16.gmra.mrb[0].mxu0 %v11769
  %v12146 = vpop.f32.mrb[0].mxu0
  %v12147 = vadd.f32 0.0, %v12146
  %v12148 = vpop.f32.mrb[0].mxu0
  %v12149 = vpop.f32.mrb[0].mxu0
  %v12150 = vadd.f32 0.0, %v12149
  %v12151 = vpop.f32.mrb[0].mxu0
  %12152 = vmatprep.mubr.bf16.mxu0 0
  %12153 = vmatmul.mubr.bf16.gmra.mrb[0].mxu0 %v11770
  %v12154 = vpop.f32.mrb[0].mxu0
  %v12155 = vadd.f32 0.0, %v12154
  %v12156 = vpop.f32.mrb[0].mxu0
  %v12157 = vpop.f32.mrb[0].mxu0
  %v12158 = vadd.f32 0.0, %v12157
  %v12159 = vpop.f32.mrb[0].mxu0
  %12160 = vmatprep.mubr.bf16.mxu0 0
  %12161 = vmatmul.mubr.bf16.gmra.mrb[0].mxu0 %v11771
  %v12162 = vpop.f32.mrb[0].mxu0
  %v12163 = vadd.f32 0.0, %v12162
  %v12164 = vpop.f32.mrb[0].mxu0
  %v12165 = vpop.f32.mrb[0].mxu0
  %v12166 = vadd.f32 0.0, %v12165
  %v12167 = vpop.f32.mrb[0].mxu0
  %12168 = vmatprep.mubr.bf16.mxu0 0
  %12169 = vmatmul.mubr.bf16.gmra.mrb[0].mxu0 %v11772
  %v12170 = vpop.f32.mrb[0].mxu0
  %v12171 = vadd.f32 0.0, %v12170
  %v12172 = vpop.f32.mrb[0].mxu0
  %v12173 = vpop.f32.mrb[0].mxu0
  %v12174 = vadd.f32 0.0, %v12173
  %v12175 = vpop.f32.mrb[0].mxu0
  %12176 = vmatprep.mubr.bf16.mxu0 0
  %12177 = vmatmul.mubr.bf16.gmra.mrb[0].mxu0 %v11773
  %v12178 = vpop.f32.mrb[0].mxu0
  %v12179 = vadd.f32 0.0, %v12178
  %v12180 = vpop.f32.mrb[0].mxu0
  %v12181 = vpop.f32.mrb[0].mxu0
  %v12182 = vadd.f32 0.0, %v12181
  %v12183 = vpop.f32.mrb[0].mxu0
  %12184 = vmatprep.mubr.bf16.mxu0 0
  %12185 = vmatmul.mubr.bf16.gmra.mrb[0].mxu0 %v11774
  %v12186 = vpop.f32.mrb[0].mxu0
  %v12187 = vadd.f32 0.0, %v12186
  %v12188 = vpop.f32.mrb[0].mxu0
  %v12189 = vpop.f32.mrb[0].mxu0
  %v12190 = vadd.f32 0.0, %v12189
  %v12191 = vpop.f32.mrb[0].mxu0
  %12192 = vmatprep.mubr.bf16.mxu0 0
  %12193 = vmatmul.mubr.bf16.gmra.mrb[0].mxu0 %v11775
  %v12194 = vpop.f32.mrb[0].mxu0
  %v12195 = vadd.f32 0.0, %v12194
  %v12196 = vpop.f32.mrb[0].mxu0
  %v12197 = vpop.f32.mrb[0].mxu0
  %v12198 = vpop.f32.mrb[0].mxu0
  %12199 = vdwg.mxu0
  %v12200 = vld [vmem:[%s11] sm:$0x1]
  %v12201 = vld [vmem:[%s12] sm:$0x1]
  %v12202 = vmul.f32 %v11875, %v10575
  %v12203 = vmul.f32 %v11878, %v10580
  %v12204 = vmul.f32 %v11883, %v10585
  %v12205 = vmul.f32 %v11886, %v10590
  %v12206 = vmul.f32 %v11891, %v10595
  %v12207 = vmul.f32 %v11894, %v10600
  %v12208 = vmul.f32 %v11899, %v10605
  %v12209 = vmul.f32 %v11902, %v10610
  %v12210 = vmul.f32 %v11907, %v10615
  %v12211 = vmul.f32 %v11910, %v10620
  %v12212 = vmul.f32 %v11915, %v10625
  %v12213 = vmul.f32 %v11918, %v10630
  %v12214 = vmul.f32 %v11923, %v10635
  %v12215 = vmul.f32 %v11926, %v10640
  %v12216 = vmul.f32 %v11931, %v10645
  %v12217 = vmul.f32 %v11934, %v10650
  %v12218 = vmul.f32 %v11939, %v10655
  %v12219 = vmul.f32 %v11942, %v10660
  %v12220 = vmul.f32 %v11947, %v10665
  %v12221 = vmul.f32 %v11950, %v10670
  %v12222 = vmul.f32 %v11955, %v10675
  %v12223 = vmul.f32 %v11958, %v10680
  %v12224 = vmul.f32 %v11963, %v10685
  %v12225 = vmul.f32 %v11966, %v10690
  %v12226 = vmul.f32 %v11971, %v10695
  %v12227 = vmul.f32 %v11974, %v10700
  %v12228 = vmul.f32 %v11979, %v10705
  %v12229 = vmul.f32 %v11982, %v10710
  %v12230 = vmul.f32 %v11987, %v10715
  %v12231 = vmul.f32 %v11990, %v10720
  %v12232 = vmul.f32 %v11995, %v10725
  %v12233 = vmul.f32 %v11998, %v10730
  %v12234 = vmul.f32 %v12003, %v10735
  %v12235 = vmul.f32 %v12006, %v10740
  %v12236 = vmul.f32 %v12011, %v10745
  %v12237 = vmul.f32 %v12014, %v10750
  %v12238 = vmul.f32 %v12019, %v10755
  %v12239 = vmul.f32 %v12022, %v10760
  %v12240 = vmul.f32 %v12027, %v10765
  %v12241 = vmul.f32 %v12030, %v10770
  %v12242 = vmul.f32 %v12035, %v10775
  %v12243 = vmul.f32 %v12038, %v10780
  %v12244 = vmul.f32 %v12043, %v10785
  %v12245 = vmul.f32 %v12046, %v10790
  %v12246 = vmul.f32 %v12051, %v10795
  %v12247 = vmul.f32 %v12054, %v10800
  %v12248 = vmul.f32 %v12059, %v10805
  %v12249 = vmul.f32 %v12062, %v10810
  %v12250 = vmul.f32 %v12067, %v10815
  %v12251 = vmul.f32 %v12070, %v10820
  %v12252 = vmul.f32 %v12075, %v10825
  %v12253 = vmul.f32 %v12078, %v10830
  %v12254 = vmul.f32 %v12083, %v10835
  %v12255 = vmul.f32 %v12086, %v10840
  %v12256 = vmul.f32 %v12091, %v10845
  %v12257 = vmul.f32 %v12094, %v10850
  %v12258 = vmul.f32 %v12099, %v10855
  %v12259 = vmul.f32 %v12102, %v10860
  %v12260 = vmul.f32 %v12107, %v10865
  %v12261 = vmul.f32 %v12110, %v10870
  %v12262 = vmul.f32 %v12115, %v10875
  %v12263 = vmul.f32 %v12118, %v10880
  %v12264 = vmul.f32 %v12123, %v10885
  %v12265 = vmul.f32 %v12126, %v10890
  %v12266 = vmul.f32 %v12131, %v10895
  %v12267 = vmul.f32 %v12134, %v10900
  %v12268 = vmul.f32 %v12139, %v10905
  %v12269 = vmul.f32 %v12142, %v10910
  %v12270 = vmul.f32 %v12147, %v10915
  %v12271 = vmul.f32 %v12150, %v10920
  %v12272 = vmul.f32 %v12155, %v10925
  %v12273 = vmul.f32 %v12158, %v10930
  %v12274 = vmul.f32 %v12163, %v10935
  %v12275 = vmul.f32 %v12166, %v10940
  %v12276 = vmul.f32 %v12171, %v10945
  %v12277 = vmul.f32 %v12174, %v10950
  %v12278 = vmul.f32 %v12179, %v10955
  %v12279 = vmul.f32 %v12182, %v10960
  %v12280 = vmul.f32 %v12187, %v10965
  %v12281 = vmul.f32 %v12190, %v10970
  %v12282 = vmul.f32 %v12195, %v10975
  %v12283 = vadd.f32 %v12202, %v12203
  %v12284 = vadd.f32 %v12283, %v12204
  %v12285 = vadd.f32 %v12284, %v12205
  %v12286 = vadd.f32 %v12285, %v12206
  %v12287 = vadd.f32 %v12286, %v12207
  %v12288 = vadd.f32 %v12287, %v12208
  %v12289 = vadd.f32 %v12288, %v12209
  %v12290 = vadd.f32 %v12289, %v12210
  %v12291 = vadd.f32 %v12290, %v12211
  %v12292 = vadd.f32 %v12291, %v12212
  %v12293 = vadd.f32 %v12292, %v12213
  %v12294 = vadd.f32 %v12293, %v12214
  %v12295 = vadd.f32 %v12294, %v12215
  %v12296 = vadd.f32 %v12295, %v12216
  %v12297 = vadd.f32 %v12296, %v12217
  %v12298 = vadd.f32 %v12297, %v12218
  %v12299 = vadd.f32 %v12298, %v12219
  %v12300 = vadd.f32 %v12299, %v12220
  %v12301 = vadd.f32 %v12300, %v12221
  %v12302 = vadd.f32 %v12301, %v12222
  %v12303 = vadd.f32 %v12302, %v12223
  %v12304 = vadd.f32 %v12303, %v12224
  %v12305 = vadd.f32 %v12304, %v12225
  %v12306 = vadd.f32 %v12305, %v12226
  %v12307 = vadd.f32 %v12306, %v12227
  %v12308 = vadd.f32 %v12307, %v12228
  %v12309 = vadd.f32 %v12308, %v12229
  %v12310 = vadd.f32 %v12309, %v12230
  %v12311 = vadd.f32 %v12310, %v12231
  %v12312 = vadd.f32 %v12311, %v12232
  %v12313 = vadd.f32 %v12312, %v12233
  %v12314 = vadd.f32 %v12313, %v12234
  %v12315 = vadd.f32 %v12314, %v12235
  %v12316 = vadd.f32 %v12315, %v12236
  %v12317 = vadd.f32 %v12316, %v12237
  %v12318 = vadd.f32 %v12317, %v12238
  %v12319 = vadd.f32 %v12318, %v12239
  %v12320 = vadd.f32 %v12319, %v12240
  %v12321 = vadd.f32 %v12320, %v12241
  %v12322 = vadd.f32 %v12321, %v12242
  %v12323 = vadd.f32 %v12322, %v12243
  %v12324 = vadd.f32 %v12323, %v12244
  %v12325 = vadd.f32 %v12324, %v12245
  %v12326 = vadd.f32 %v12325, %v12246
  %v12327 = vadd.f32 %v12326, %v12247
  %v12328 = vadd.f32 %v12327, %v12248
  %v12329 = vadd.f32 %v12328, %v12249
  %v12330 = vadd.f32 %v12329, %v12250
  %v12331 = vadd.f32 %v12330, %v12251
  %v12332 = vadd.f32 %v12331, %v12252
  %v12333 = vadd.f32 %v12332, %v12253
  %v12334 = vadd.f32 %v12333, %v12254
  %v12335 = vadd.f32 %v12334, %v12255
  %v12336 = vadd.f32 %v12335, %v12256
  %v12337 = vadd.f32 %v12336, %v12257
  %v12338 = vadd.f32 %v12337, %v12258
  %v12339 = vadd.f32 %v12338, %v12259
  %v12340 = vadd.f32 %v12339, %v12260
  %v12341 = vadd.f32 %v12340, %v12261
  %v12342 = vadd.f32 %v12341, %v12262
  %v12343 = vadd.f32 %v12342, %v12263
  %v12344 = vadd.f32 %v12343, %v12264
  %v12345 = vadd.f32 %v12344, %v12265
  %v12346 = vadd.f32 %v12345, %v12266
  %v12347 = vadd.f32 %v12346, %v12267
  %v12348 = vadd.f32 %v12347, %v12268
  %v12349 = vadd.f32 %v12348, %v12269
  %v12350 = vadd.f32 %v12349, %v12270
  %v12351 = vadd.f32 %v12350, %v12271
  %v12352 = vadd.f32 %v12351, %v12272
  %v12353 = vadd.f32 %v12352, %v12273
  %v12354 = vadd.f32 %v12353, %v12274
  %v12355 = vadd.f32 %v12354, %v12275
  %v12356 = vadd.f32 %v12355, %v12276
  %v12357 = vadd.f32 %v12356, %v12277
  %v12358 = vadd.f32 %v12357, %v12278
  %v12359 = vadd.f32 %v12358, %v12279
  %v12360 = vadd.f32 %v12359, %v12280
  %v12361 = vadd.f32 %v12360, %v12281
  %v12362 = vadd.f32 %v12361, %v12282
  %v12363 = vrot.slane %v12362, 4
  %v12364 = vadd.f32 %v12362, %v12363
  %v12365 = vrot.slane %v12364, 2
  %v12366 = vadd.f32 %v12364, %v12365
  %v12367 = vrot.slane %v12366, 1
  %v12368 = vadd.f32 %v12366, %v12367
  %v12369 = vmul.f32 %v12202, %v11875
  %v12370 = vmul.f32 %v12203, %v11878
  %v12371 = vmul.f32 %v12204, %v11883
  %v12372 = vmul.f32 %v12205, %v11886
  %v12373 = vmul.f32 %v12206, %v11891
  %v12374 = vmul.f32 %v12207, %v11894
  %v12375 = vmul.f32 %v12208, %v11899
  %v12376 = vmul.f32 %v12209, %v11902
  %v12377 = vmul.f32 %v12210, %v11907
  %v12378 = vmul.f32 %v12211, %v11910
  %v12379 = vmul.f32 %v12212, %v11915
  %v12380 = vmul.f32 %v12213, %v11918
  %v12381 = vmul.f32 %v12214, %v11923
  %v12382 = vmul.f32 %v12215, %v11926
  %v12383 = vmul.f32 %v12216, %v11931
  %v12384 = vmul.f32 %v12217, %v11934
  %v12385 = vmul.f32 %v12218, %v11939
  %v12386 = vmul.f32 %v12219, %v11942
  %v12387 = vmul.f32 %v12220, %v11947
  %v12388 = vmul.f32 %v12221, %v11950
  %v12389 = vmul.f32 %v12222, %v11955
  %v12390 = vmul.f32 %v12223, %v11958
  %v12391 = vmul.f32 %v12224, %v11963
  %v12392 = vmul.f32 %v12225, %v11966
  %v12393 = vmul.f32 %v12226, %v11971
  %v12394 = vmul.f32 %v12227, %v11974
  %v12395 = vmul.f32 %v12228, %v11979
  %v12396 = vmul.f32 %v12229, %v11982
  %v12397 = vmul.f32 %v12230, %v11987
  %v12398 = vmul.f32 %v12231, %v11990
  %v12399 = vmul.f32 %v12232, %v11995
  %v12400 = vmul.f32 %v12233, %v11998
  %v12401 = vmul.f32 %v12234, %v12003
  %v12402 = vmul.f32 %v12235, %v12006
  %v12403 = vmul.f32 %v12236, %v12011
  %v12404 = vmul.f32 %v12237, %v12014
  %v12405 = vmul.f32 %v12238, %v12019
  %v12406 = vmul.f32 %v12239, %v12022
  %v12407 = vmul.f32 %v12240, %v12027
  %v12408 = vmul.f32 %v12241, %v12030
  %v12409 = vmul.f32 %v12242, %v12035
  %v12410 = vmul.f32 %v12243, %v12038
  %v12411 = vmul.f32 %v12244, %v12043
  %v12412 = vmul.f32 %v12245, %v12046
  %v12413 = vmul.f32 %v12246, %v12051
  %v12414 = vmul.f32 %v12247, %v12054
  %v12415 = vmul.f32 %v12248, %v12059
  %v12416 = vmul.f32 %v12249, %v12062
  %v12417 = vmul.f32 %v12250, %v12067
  %v12418 = vmul.f32 %v12251, %v12070
  %v12419 = vmul.f32 %v12252, %v12075
  %v12420 = vmul.f32 %v12253, %v12078
  %v12421 = vmul.f32 %v12254, %v12083
  %v12422 = vmul.f32 %v12255, %v12086
  %v12423 = vmul.f32 %v12256, %v12091
  %v12424 = vmul.f32 %v12257, %v12094
  %v12425 = vmul.f32 %v12258, %v12099
  %v12426 = vmul.f32 %v12259, %v12102
  %v12427 = vmul.f32 %v12260, %v12107
  %v12428 = vmul.f32 %v12261, %v12110
  %v12429 = vmul.f32 %v12262, %v12115
  %v12430 = vmul.f32 %v12263, %v12118
  %v12431 = vmul.f32 %v12264, %v12123
  %v12432 = vmul.f32 %v12265, %v12126
  %v12433 = vmul.f32 %v12266, %v12131
  %v12434 = vmul.f32 %v12267, %v12134
  %v12435 = vmul.f32 %v12268, %v12139
  %v12436 = vmul.f32 %v12269, %v12142
  %v12437 = vmul.f32 %v12270, %v12147
  %v12438 = vmul.f32 %v12271, %v12150
  %v12439 = vmul.f32 %v12272, %v12155
  %v12440 = vmul.f32 %v12273, %v12158
  %v12441 = vmul.f32 %v12274, %v12163
  %v12442 = vmul.f32 %v12275, %v12166
  %v12443 = vmul.f32 %v12276, %v12171
  %v12444 = vmul.f32 %v12277, %v12174
  %v12445 = vmul.f32 %v12278, %v12179
  %v12446 = vmul.f32 %v12279, %v12182
  %v12447 = vmul.f32 %v12280, %v12187
  %v12448 = vmul.f32 %v12281, %v12190
  %v12449 = vmul.f32 %v12282, %v12195
  %v12450 = vadd.f32 %v12369, %v12370
  %v12451 = vadd.f32 %v12450, %v12371
  %v12452 = vadd.f32 %v12451, %v12372
  %v12453 = vadd.f32 %v12452, %v12373
  %v12454 = vadd.f32 %v12453, %v12374
  %v12455 = vadd.f32 %v12454, %v12375
  %v12456 = vadd.f32 %v12455, %v12376
  %v12457 = vadd.f32 %v12456, %v12377
  %v12458 = vadd.f32 %v12457, %v12378
  %v12459 = vadd.f32 %v12458, %v12379
  %v12460 = vadd.f32 %v12459, %v12380
  %v12461 = vadd.f32 %v12460, %v12381
  %v12462 = vadd.f32 %v12461, %v12382
  %v12463 = vadd.f32 %v12462, %v12383
  %v12464 = vadd.f32 %v12463, %v12384
  %v12465 = vadd.f32 %v12464, %v12385
  %v12466 = vadd.f32 %v12465, %v12386
  %v12467 = vadd.f32 %v12466, %v12387
  %v12468 = vadd.f32 %v12467, %v12388
  %v12469 = vadd.f32 %v12468, %v12389
  %v12470 = vadd.f32 %v12469, %v12390
  %v12471 = vadd.f32 %v12470, %v12391
  %v12472 = vadd.f32 %v12471, %v12392
  %v12473 = vadd.f32 %v12472, %v12393
  %v12474 = vadd.f32 %v12473, %v12394
  %v12475 = vadd.f32 %v12474, %v12395
  %v12476 = vadd.f32 %v12475, %v12396
  %v12477 = vadd.f32 %v12476, %v12397
  %v12478 = vadd.f32 %v12477, %v12398
  %v12479 = vadd.f32 %v12478, %v12399
  %v12480 = vadd.f32 %v12479, %v12400
  %v12481 = vadd.f32 %v12480, %v12401
  %v12482 = vadd.f32 %v12481, %v12402
  %v12483 = vadd.f32 %v12482, %v12403
  %v12484 = vadd.f32 %v12483, %v12404
  %v12485 = vadd.f32 %v12484, %v12405
  %v12486 = vadd.f32 %v12485, %v12406
  %v12487 = vadd.f32 %v12486, %v12407
  %v12488 = vadd.f32 %v12487, %v12408
  %v12489 = vadd.f32 %v12488, %v12409
  %v12490 = vadd.f32 %v12489, %v12410
  %v12491 = vadd.f32 %v12490, %v12411
  %v12492 = vadd.f32 %v12491, %v12412
  %v12493 = vadd.f32 %v12492, %v12413
  %v12494 = vadd.f32 %v12493, %v12414
  %v12495 = vadd.f32 %v12494, %v12415
  %v12496 = vadd.f32 %v12495, %v12416
  %v12497 = vadd.f32 %v12496, %v12417
  %v12498 = vadd.f32 %v12497, %v12418
  %v12499 = vadd.f32 %v12498, %v12419
  %v12500 = vadd.f32 %v12499, %v12420
  %v12501 = vadd.f32 %v12500, %v12421
  %v12502 = vadd.f32 %v12501, %v12422
  %v12503 = vadd.f32 %v12502, %v12423
  %v12504 = vadd.f32 %v12503, %v12424
  %v12505 = vadd.f32 %v12504, %v12425
  %v12506 = vadd.f32 %v12505, %v12426
  %v12507 = vadd.f32 %v12506, %v12427
  %v12508 = vadd.f32 %v12507, %v12428
  %v12509 = vadd.f32 %v12508, %v12429
  %v12510 = vadd.f32 %v12509, %v12430
  %v12511 = vadd.f32 %v12510, %v12431
  %v12512 = vadd.f32 %v12511, %v12432
  %v12513 = vadd.f32 %v12512, %v12433
  %v12514 = vadd.f32 %v12513, %v12434
  %v12515 = vadd.f32 %v12514, %v12435
  %v12516 = vadd.f32 %v12515, %v12436
  %v12517 = vadd.f32 %v12516, %v12437
  %v12518 = vadd.f32 %v12517, %v12438
  %v12519 = vadd.f32 %v12518, %v12439
  %v12520 = vadd.f32 %v12519, %v12440
  %v12521 = vadd.f32 %v12520, %v12441
  %v12522 = vadd.f32 %v12521, %v12442
  %v12523 = vadd.f32 %v12522, %v12443
  %v12524 = vadd.f32 %v12523, %v12444
  %v12525 = vadd.f32 %v12524, %v12445
  %v12526 = vadd.f32 %v12525, %v12446
  %v12527 = vadd.f32 %v12526, %v12447
  %v12528 = vadd.f32 %v12527, %v12448
  %v12529 = vadd.f32 %v12528, %v12449
  %v12530 = vrot.slane %v12529, 4
  %v12531 = vadd.f32 %v12529, %v12530
  %v12532 = vrot.slane %v12531, 2
  %v12533 = vadd.f32 %v12531, %v12532
  %v12534 = vrot.slane %v12533, 1
  %v12535 = vadd.f32 %v12533, %v12534
  %v12536 = vmul.f32 %v12368, 0.001953125
  %v12537 = vmul.f32 %v12535, 0.001953125
  %v12538 = vmul.f32 %v12536, %v12536
  %v12539 = vsub.f32 %v12537, %v12538
  %v12540 = vmax.f32 %v12539, 0.0
  %v12541 = vsub.f32 %v11875, %v12536
  %v12542 = vsub.f32 %v11878, %v12536
  %v12543 = vsub.f32 %v11883, %v12536
  %v12544 = vsub.f32 %v11886, %v12536
  %v12545 = vsub.f32 %v11891, %v12536
  %v12546 = vsub.f32 %v11894, %v12536
  %v12547 = vsub.f32 %v11899, %v12536
  %v12548 = vsub.f32 %v11902, %v12536
  %v12549 = vsub.f32 %v11907, %v12536
  %v12550 = vsub.f32 %v11910, %v12536
  %v12551 = vsub.f32 %v11915, %v12536
  %v12552 = vsub.f32 %v11918, %v12536
  %v12553 = vsub.f32 %v11923, %v12536
  %v12554 = vsub.f32 %v11926, %v12536
  %v12555 = vsub.f32 %v11931, %v12536
  %v12556 = vsub.f32 %v11934, %v12536
  %v12557 = vsub.f32 %v11939, %v12536
  %v12558 = vsub.f32 %v11942, %v12536
  %v12559 = vsub.f32 %v11947, %v12536
  %v12560 = vsub.f32 %v11950, %v12536
  %v12561 = vsub.f32 %v11955, %v12536
  %v12562 = vsub.f32 %v11958, %v12536
  %v12563 = vsub.f32 %v11963, %v12536
  %v12564 = vsub.f32 %v11966, %v12536
  %v12565 = vsub.f32 %v11971, %v12536
  %v12566 = vsub.f32 %v11974, %v12536
  %v12567 = vsub.f32 %v11979, %v12536
  %v12568 = vsub.f32 %v11982, %v12536
  %v12569 = vsub.f32 %v11987, %v12536
  %v12570 = vsub.f32 %v11990, %v12536
  %v12571 = vsub.f32 %v11995, %v12536
  %v12572 = vsub.f32 %v11998, %v12536
  %v12573 = vsub.f32 %v12003, %v12536
  %v12574 = vsub.f32 %v12006, %v12536
  %v12575 = vsub.f32 %v12011, %v12536
  %v12576 = vsub.f32 %v12014, %v12536
  %v12577 = vsub.f32 %v12019, %v12536
  %v12578 = vsub.f32 %v12022, %v12536
  %v12579 = vsub.f32 %v12027, %v12536
  %v12580 = vsub.f32 %v12030, %v12536
  %v12581 = vsub.f32 %v12035, %v12536
  %v12582 = vsub.f32 %v12038, %v12536
  %v12583 = vsub.f32 %v12043, %v12536
  %v12584 = vsub.f32 %v12046, %v12536
  %v12585 = vsub.f32 %v12051, %v12536
  %v12586 = vsub.f32 %v12054, %v12536
  %v12587 = vsub.f32 %v12059, %v12536
  %v12588 = vsub.f32 %v12062, %v12536
  %v12589 = vsub.f32 %v12067, %v12536
  %v12590 = vsub.f32 %v12070, %v12536
  %v12591 = vsub.f32 %v12075, %v12536
  %v12592 = vsub.f32 %v12078, %v12536
  %v12593 = vsub.f32 %v12083, %v12536
  %v12594 = vsub.f32 %v12086, %v12536
  %v12595 = vsub.f32 %v12091, %v12536
  %v12596 = vsub.f32 %v12094, %v12536
  %v12597 = vsub.f32 %v12099, %v12536
  %v12598 = vsub.f32 %v12102, %v12536
  %v12599 = vsub.f32 %v12107, %v12536
  %v12600 = vsub.f32 %v12110, %v12536
  %v12601 = vsub.f32 %v12115, %v12536
  %v12602 = vsub.f32 %v12118, %v12536
  %v12603 = vsub.f32 %v12123, %v12536
  %v12604 = vsub.f32 %v12126, %v12536
  %v12605 = vsub.f32 %v12131, %v12536
  %v12606 = vsub.f32 %v12134, %v12536
  %v12607 = vsub.f32 %v12139, %v12536
  %v12608 = vsub.f32 %v12142, %v12536
  %v12609 = vsub.f32 %v12147, %v12536
  %v12610 = vsub.f32 %v12150, %v12536
  %v12611 = vsub.f32 %v12155, %v12536
  %v12612 = vsub.f32 %v12158, %v12536
  %v12613 = vsub.f32 %v12163, %v12536
  %v12614 = vsub.f32 %v12166, %v12536
  %v12615 = vsub.f32 %v12171, %v12536
  %v12616 = vsub.f32 %v12174, %v12536
  %v12617 = vsub.f32 %v12179, %v12536
  %v12618 = vsub.f32 %v12182, %v12536
  %v12619 = vsub.f32 %v12187, %v12536
  %v12620 = vsub.f32 %v12190, %v12536
  %v12621 = vsub.f32 %v12195, %v12536
  %v12622 = vadd.f32 %v12540, 1e-05
  %v12623 = vrsqrt.pop %v12622
  %v12624 = vmul.f32 %v12541, %v12623
  %v12625 = vmul.f32 %v12542, %v12623
  %v12626 = vmul.f32 %v12543, %v12623
  %v12627 = vmul.f32 %v12544, %v12623
  %v12628 = vmul.f32 %v12545, %v12623
  %v12629 = vmul.f32 %v12546, %v12623
  %v12630 = vmul.f32 %v12547, %v12623
  %v12631 = vmul.f32 %v12548, %v12623
  %v12632 = vmul.f32 %v12549, %v12623
  %v12633 = vmul.f32 %v12550, %v12623
  %v12634 = vmul.f32 %v12551, %v12623
  %v12635 = vmul.f32 %v12552, %v12623
  %v12636 = vmul.f32 %v12553, %v12623
  %v12637 = vmul.f32 %v12554, %v12623
  %v12638 = vmul.f32 %v12555, %v12623
  %v12639 = vmul.f32 %v12556, %v12623
  %v12640 = vmul.f32 %v12557, %v12623
  %v12641 = vmul.f32 %v12558, %v12623
  %v12642 = vmul.f32 %v12559, %v12623
  %v12643 = vmul.f32 %v12560, %v12623
  %v12644 = vmul.f32 %v12561, %v12623
  %v12645 = vmul.f32 %v12562, %v12623
  %v12646 = vmul.f32 %v12563, %v12623
  %v12647 = vmul.f32 %v12564, %v12623
  %v12648 = vmul.f32 %v12565, %v12623
  %v12649 = vmul.f32 %v12566, %v12623
  %v12650 = vmul.f32 %v12567, %v12623
  %v12651 = vmul.f32 %v12568, %v12623
  %v12652 = vmul.f32 %v12569, %v12623
  %v12653 = vmul.f32 %v12570, %v12623
  %v12654 = vmul.f32 %v12571, %v12623
  %v12655 = vmul.f32 %v12572, %v12623
  %v12656 = vmul.f32 %v12573, %v12623
  %v12657 = vmul.f32 %v12574, %v12623
  %v12658 = vmul.f32 %v12575, %v12623
  %v12659 = vmul.f32 %v12576, %v12623
  %v12660 = vmul.f32 %v12577, %v12623
  %v12661 = vmul.f32 %v12578, %v12623
  %v12662 = vmul.f32 %v12579, %v12623
  %v12663 = vmul.f32 %v12580, %v12623
  %v12664 = vmul.f32 %v12581, %v12623
  %v12665 = vmul.f32 %v12582, %v12623
  %v12666 = vmul.f32 %v12583, %v12623
  %v12667 = vmul.f32 %v12584, %v12623
  %v12668 = vmul.f32 %v12585, %v12623
  %v12669 = vmul.f32 %v12586, %v12623
  %v12670 = vmul.f32 %v12587, %v12623
  %v12671 = vmul.f32 %v12588, %v12623
  %v12672 = vmul.f32 %v12589, %v12623
  %v12673 = vmul.f32 %v12590, %v12623
  %v12674 = vmul.f32 %v12591, %v12623
  %v12675 = vmul.f32 %v12592, %v12623
  %v12676 = vmul.f32 %v12593, %v12623
  %v12677 = vmul.f32 %v12594, %v12623
  %v12678 = vmul.f32 %v12595, %v12623
  %v12679 = vmul.f32 %v12596, %v12623
  %v12680 = vmul.f32 %v12597, %v12623
  %v12681 = vmul.f32 %v12598, %v12623
  %v12682 = vmul.f32 %v12599, %v12623
  %v12683 = vmul.f32 %v12600, %v12623
  %v12684 = vmul.f32 %v12601, %v12623
  %v12685 = vmul.f32 %v12602, %v12623
  %v12686 = vmul.f32 %v12603, %v12623
  %v12687 = vmul.f32 %v12604, %v12623
  %v12688 = vmul.f32 %v12605, %v12623
  %v12689 = vmul.f32 %v12606, %v12623
  %v12690 = vmul.f32 %v12607, %v12623
  %v12691 = vmul.f32 %v12608, %v12623
  %v12692 = vmul.f32 %v12609, %v12623
  %v12693 = vmul.f32 %v12610, %v12623
  %v12694 = vmul.f32 %v12611, %v12623
  %v12695 = vmul.f32 %v12612, %v12623
  %v12696 = vmul.f32 %v12613, %v12623
  %v12697 = vmul.f32 %v12614, %v12623
  %v12698 = vmul.f32 %v12615, %v12623
  %v12699 = vmul.f32 %v12616, %v12623
  %v12700 = vmul.f32 %v12617, %v12623
  %v12701 = vmul.f32 %v12618, %v12623
  %v12702 = vmul.f32 %v12619, %v12623
  %v12703 = vmul.f32 %v12620, %v12623
  %v12704 = vmul.f32 %v12621, %v12623
  %v12706 = vlaneseq
  %v12707 = vshrl.u32 %v12706, 7
  %v12708 = vsub.s32 0, %v12707
  %v12709 = vrot.slane %v12200, %v12708
  %v12711 = vmul.f32 %v12624, %v12709
  %v12712 = vmul.f32 %v12625, %v12709
  %v12713 = vmul.f32 %v12626, %v12709
  %v12714 = vmul.f32 %v12627, %v12709
  %v12715 = vmul.f32 %v12628, %v12709
  %v12716 = vmul.f32 %v12629, %v12709
  %v12717 = vmul.f32 %v12630, %v12709
  %v12718 = vmul.f32 %v12631, %v12709
  %v12719 = vmul.f32 %v12632, %v12709
  %v12720 = vmul.f32 %v12633, %v12709
  %v12721 = vmul.f32 %v12634, %v12709
  %v12722 = vmul.f32 %v12635, %v12709
  %v12723 = vmul.f32 %v12636, %v12709
  %v12724 = vmul.f32 %v12637, %v12709
  %v12725 = vmul.f32 %v12638, %v12709
  %v12726 = vmul.f32 %v12639, %v12709
  %v12727 = vmul.f32 %v12640, %v12709
  %v12728 = vmul.f32 %v12641, %v12709
  %v12729 = vmul.f32 %v12642, %v12709
  %v12730 = vmul.f32 %v12643, %v12709
  %v12731 = vmul.f32 %v12644, %v12709
  %v12732 = vmul.f32 %v12645, %v12709
  %v12733 = vmul.f32 %v12646, %v12709
  %v12734 = vmul.f32 %v12647, %v12709
  %v12735 = vmul.f32 %v12648, %v12709
  %v12736 = vmul.f32 %v12649, %v12709
  %v12737 = vmul.f32 %v12650, %v12709
  %v12738 = vmul.f32 %v12651, %v12709
  %v12739 = vmul.f32 %v12652, %v12709
  %v12740 = vmul.f32 %v12653, %v12709
  %v12741 = vmul.f32 %v12654, %v12709
  %v12742 = vmul.f32 %v12655, %v12709
  %v12743 = vmul.f32 %v12656, %v12709
  %v12744 = vmul.f32 %v12657, %v12709
  %v12745 = vmul.f32 %v12658, %v12709
  %v12746 = vmul.f32 %v12659, %v12709
  %v12747 = vmul.f32 %v12660, %v12709
  %v12748 = vmul.f32 %v12661, %v12709
  %v12749 = vmul.f32 %v12662, %v12709
  %v12750 = vmul.f32 %v12663, %v12709
  %v12751 = vmul.f32 %v12664, %v12709
  %v12752 = vmul.f32 %v12665, %v12709
  %v12753 = vmul.f32 %v12666, %v12709
  %v12754 = vmul.f32 %v12667, %v12709
  %v12755 = vmul.f32 %v12668, %v12709
  %v12756 = vmul.f32 %v12669, %v12709
  %v12757 = vmul.f32 %v12670, %v12709
  %v12758 = vmul.f32 %v12671, %v12709
  %v12759 = vmul.f32 %v12672, %v12709
  %v12760 = vmul.f32 %v12673, %v12709
  %v12761 = vmul.f32 %v12674, %v12709
  %v12762 = vmul.f32 %v12675, %v12709
  %v12763 = vmul.f32 %v12676, %v12709
  %v12764 = vmul.f32 %v12677, %v12709
  %v12765 = vmul.f32 %v12678, %v12709
  %v12766 = vmul.f32 %v12679, %v12709
  %v12767 = vmul.f32 %v12680, %v12709
  %v12768 = vmul.f32 %v12681, %v12709
  %v12769 = vmul.f32 %v12682, %v12709
  %v12770 = vmul.f32 %v12683, %v12709
  %v12771 = vmul.f32 %v12684, %v12709
  %v12772 = vmul.f32 %v12685, %v12709
  %v12773 = vmul.f32 %v12686, %v12709
  %v12774 = vmul.f32 %v12687, %v12709
  %v12775 = vmul.f32 %v12688, %v12709
  %v12776 = vmul.f32 %v12689, %v12709
  %v12777 = vmul.f32 %v12690, %v12709
  %v12778 = vmul.f32 %v12691, %v12709
  %v12779 = vmul.f32 %v12692, %v12709
  %v12780 = vmul.f32 %v12693, %v12709
  %v12781 = vmul.f32 %v12694, %v12709
  %v12782 = vmul.f32 %v12695, %v12709
  %v12783 = vmul.f32 %v12696, %v12709
  %v12784 = vmul.f32 %v12697, %v12709
  %v12785 = vmul.f32 %v12698, %v12709
  %v12786 = vmul.f32 %v12699, %v12709
  %v12787 = vmul.f32 %v12700, %v12709
  %v12788 = vmul.f32 %v12701, %v12709
  %v12789 = vmul.f32 %v12702, %v12709
  %v12790 = vmul.f32 %v12703, %v12709
  %v12791 = vmul.f32 %v12704, %v12709
  %v12793 = vlaneseq
  %v12794 = vshrl.u32 %v12793, 7
  %v12795 = vsub.s32 0, %v12794
  %v12796 = vrot.slane %v12201, %v12795
  %v12798 = vadd.f32 %v12711, %v12796
  %v12799 = vadd.f32 %v12712, %v12796
  %v12800 = vadd.f32 %v12713, %v12796
  %v12801 = vadd.f32 %v12714, %v12796
  %v12802 = vadd.f32 %v12715, %v12796
  %v12803 = vadd.f32 %v12716, %v12796
  %v12804 = vadd.f32 %v12717, %v12796
  %v12805 = vadd.f32 %v12718, %v12796
  %v12806 = vadd.f32 %v12719, %v12796
  %v12807 = vadd.f32 %v12720, %v12796
  %v12808 = vadd.f32 %v12721, %v12796
  %v12809 = vadd.f32 %v12722, %v12796
  %v12810 = vadd.f32 %v12723, %v12796
  %v12811 = vadd.f32 %v12724, %v12796
  %v12812 = vadd.f32 %v12725, %v12796
  %v12813 = vadd.f32 %v12726, %v12796
  %v12814 = vadd.f32 %v12727, %v12796
  %v12815 = vadd.f32 %v12728, %v12796
  %v12816 = vadd.f32 %v12729, %v12796
  %v12817 = vadd.f32 %v12730, %v12796
  %v12818 = vadd.f32 %v12731, %v12796
  %v12819 = vadd.f32 %v12732, %v12796
  %v12820 = vadd.f32 %v12733, %v12796
  %v12821 = vadd.f32 %v12734, %v12796
  %v12822 = vadd.f32 %v12735, %v12796
  %v12823 = vadd.f32 %v12736, %v12796
  %v12824 = vadd.f32 %v12737, %v12796
  %v12825 = vadd.f32 %v12738, %v12796
  %v12826 = vadd.f32 %v12739, %v12796
  %v12827 = vadd.f32 %v12740, %v12796
  %v12828 = vadd.f32 %v12741, %v12796
  %v12829 = vadd.f32 %v12742, %v12796
  %v12830 = vadd.f32 %v12743, %v12796
  %v12831 = vadd.f32 %v12744, %v12796
  %v12832 = vadd.f32 %v12745, %v12796
  %v12833 = vadd.f32 %v12746, %v12796
  %v12834 = vadd.f32 %v12747, %v12796
  %v12835 = vadd.f32 %v12748, %v12796
  %v12836 = vadd.f32 %v12749, %v12796
  %v12837 = vadd.f32 %v12750, %v12796
  %v12838 = vadd.f32 %v12751, %v12796
  %v12839 = vadd.f32 %v12752, %v12796
  %v12840 = vadd.f32 %v12753, %v12796
  %v12841 = vadd.f32 %v12754, %v12796
  %v12842 = vadd.f32 %v12755, %v12796
  %v12843 = vadd.f32 %v12756, %v12796
  %v12844 = vadd.f32 %v12757, %v12796
  %v12845 = vadd.f32 %v12758, %v12796
  %v12846 = vadd.f32 %v12759, %v12796
  %v12847 = vadd.f32 %v12760, %v12796
  %v12848 = vadd.f32 %v12761, %v12796
  %v12849 = vadd.f32 %v12762, %v12796
  %v12850 = vadd.f32 %v12763, %v12796
  %v12851 = vadd.f32 %v12764, %v12796
  %v12852 = vadd.f32 %v12765, %v12796
  %v12853 = vadd.f32 %v12766, %v12796
  %v12854 = vadd.f32 %v12767, %v12796
  %v12855 = vadd.f32 %v12768, %v12796
  %v12856 = vadd.f32 %v12769, %v12796
  %v12857 = vadd.f32 %v12770, %v12796
  %v12858 = vadd.f32 %v12771, %v12796
  %v12859 = vadd.f32 %v12772, %v12796
  %v12860 = vadd.f32 %v12773, %v12796
  %v12861 = vadd.f32 %v12774, %v12796
  %v12862 = vadd.f32 %v12775, %v12796
  %v12863 = vadd.f32 %v12776, %v12796
  %v12864 = vadd.f32 %v12777, %v12796
  %v12865 = vadd.f32 %v12778, %v12796
  %v12866 = vadd.f32 %v12779, %v12796
  %v12867 = vadd.f32 %v12780, %v12796
  %v12868 = vadd.f32 %v12781, %v12796
  %v12869 = vadd.f32 %v12782, %v12796
  %v12870 = vadd.f32 %v12783, %v12796
  %v12871 = vadd.f32 %v12784, %v12796
  %v12872 = vadd.f32 %v12785, %v12796
  %v12873 = vadd.f32 %v12786, %v12796
  %v12874 = vadd.f32 %v12787, %v12796
  %v12875 = vadd.f32 %v12788, %v12796
  %v12876 = vadd.f32 %v12789, %v12796
  %v12877 = vadd.f32 %v12790, %v12796
  %v12878 = vadd.f32 %v12791, %v12796
  %v12879 = vld [vmem:[%s0 + $0xc] sm:$0xf]
  %v12880 = vld [vmem:[%s0 + $0x10] sm:$0xf]
  %v12881 = vld [vmem:[%s0 + $0x14] sm:$0xf]
  %v12882 = vld [vmem:[%s0 + $0x18] sm:$0xf]
  %v12883 = vld [vmem:[%s0 + $0x1c] sm:$0xf]
  %v12884 = vld [vmem:[%s0 + $0x20] sm:$0xf]
  %v12885 = vld [vmem:[%s0 + $0x24] sm:$0xf]
  %v12886 = vld [vmem:[%s0 + $0x28] sm:$0xf]
  %v12887 = vld [vmem:[%s0 + $0x2c] sm:$0xf]
  %v12888 = vld [vmem:[%s0 + $0x30] sm:$0xf]
  %v12889 = vld [vmem:[%s0 + $0x34] sm:$0xf]
  %v12890 = vld [vmem:[%s0 + $0x38] sm:$0xf]
  %v12891 = vld [vmem:[%s0 + $0x3c] sm:$0xf]
  %v12892 = vld [vmem:[%s0 + $0x40] sm:$0xf]
  %v12893 = vld [vmem:[%s0 + $0x44] sm:$0xf]
  %v12894 = vld [vmem:[%s0 + $0x48] sm:$0xf]
  %v12895 = vld [vmem:[%s0 + $0x4c] sm:$0xf]
  %v12896 = vld [vmem:[%s0 + $0x50] sm:$0xf]
  %v12897 = vld [vmem:[%s0 + $0x54] sm:$0xf]
  %v12898 = vld [vmem:[%s0 + $0x58] sm:$0xf]
  %v12899 = vld [vmem:[%s0 + $0x5c] sm:$0xf]
  %v12900 = vld [vmem:[%s0 + $0x60] sm:$0xf]
  %v12901 = vld [vmem:[%s0 + $0x64] sm:$0xf]
  %v12902 = vld [vmem:[%s0 + $0x68] sm:$0xf]
  %v12903 = vld [vmem:[%s0 + $0x6c] sm:$0xf]
  %v12904 = vld [vmem:[%s0 + $0x70] sm:$0xf]
  %v12905 = vld [vmem:[%s0 + $0x74] sm:$0xf]
  %v12906 = vld [vmem:[%s0 + $0x78] sm:$0xf]
  %v12907 = vld [vmem:[%s0 + $0x7c] sm:$0xf]
  %v12908 = vld [vmem:[%s0 + $0x80] sm:$0xf]
  %v12909 = vld [vmem:[%s0 + $0x84] sm:$0xf]
  %v12910 = vld [vmem:[%s0 + $0x88] sm:$0xf]
  %v12911 = vld [vmem:[%s0 + $0x8c] sm:$0xf]
  %v12912 = vld [vmem:[%s0 + $0x90] sm:$0xf]
  %v12913 = vld [vmem:[%s0 + $0x94] sm:$0xf]
  %v12914 = vld [vmem:[%s0 + $0x98] sm:$0xf]
  %v12915 = vld [vmem:[%s0 + $0x9c] sm:$0xf]
  %v12916 = vld [vmem:[%s0 + $0xa0] sm:$0xf]
  %v12917 = vld [vmem:[%s0 + $0xa4] sm:$0xf]
  %v12918 = vld [vmem:[%s0 + $0xa8] sm:$0xf]
  %v12919 = vld [vmem:[%s0 + $0xac] sm:$0xf]
  %v12920 = vld [vmem:[%s0 + $0xb0] sm:$0xf]
  %v12921 = vld [vmem:[%s0 + $0xb4] sm:$0xf]
  %v12922 = vld [vmem:[%s0 + $0xb8] sm:$0xf]
  %v12923 = vld [vmem:[%s0 + $0xbc] sm:$0xf]
  %v12924 = vld [vmem:[%s0 + $0xc0] sm:$0xf]
  %v12925 = vld [vmem:[%s0 + $0xc4] sm:$0xf]
  %v12926 = vld [vmem:[%s0 + $0xc8] sm:$0xf]
  %v12927 = vld [vmem:[%s0 + $0xcc] sm:$0xf]
  %v12928 = vld [vmem:[%s0 + $0xd0] sm:$0xf]
  %v12929 = vld [vmem:[%s0 + $0xd4] sm:$0xf]
  %v12930 = vld [vmem:[%s0 + $0xd8] sm:$0xf]
  %v12931 = vld [vmem:[%s0 + $0xdc] sm:$0xf]
  %v12932 = vld [vmem:[%s0 + $0xe0] sm:$0xf]
  %v12933 = vld [vmem:[%s0 + $0xe4] sm:$0xf]
  %v12934 = vld [vmem:[%s0 + $0xe8] sm:$0xf]
  %v12935 = vld [vmem:[%s0 + $0xec] sm:$0xf]
  %v12936 = vld [vmem:[%s0 + $0xf0] sm:$0xf]
  %v12937 = vld [vmem:[%s0 + $0xf4] sm:$0xf]
  %v12938 = vld [vmem:[%s0 + $0xf8] sm:$0xf]
  %v12939 = vld [vmem:[%s0 + $0xfc] sm:$0xf]
  %v12940 = vld [vmem:[%s0 + $0x100] sm:$0xf]
  %v12941 = vld [vmem:[%s0 + $0x104] sm:$0xf]
  %v12942 = vld [vmem:[%s0 + $0x108] sm:$0xf]
  %v12943 = vld [vmem:[%s0 + $0x10c] sm:$0xf]
  %v12944 = vld [vmem:[%s0 + $0x110] sm:$0xf]
  %v12945 = vld [vmem:[%s0 + $0x114] sm:$0xf]
  %v12946 = vld [vmem:[%s0 + $0x118] sm:$0xf]
  %v12947 = vld [vmem:[%s0 + $0x11c] sm:$0xf]
  %v12948 = vld [vmem:[%s0 + $0x120] sm:$0xf]
  %v12949 = vld [vmem:[%s0 + $0x124] sm:$0xf]
  %v12950 = vld [vmem:[%s0 + $0x128] sm:$0xf]
  %v12951 = vld [vmem:[%s0 + $0x12c] sm:$0xf]
  %v12952 = vld [vmem:[%s0 + $0x130] sm:$0xf]
  %v12953 = vld [vmem:[%s0 + $0x134] sm:$0xf]
  %v12954 = vld [vmem:[%s0 + $0x138] sm:$0xf]
  %v12955 = vld [vmem:[%s0 + $0x13c] sm:$0xf]
  %v12956 = vld [vmem:[%s0 + $0x140] sm:$0xf]
  %v12957 = vld [vmem:[%s0 + $0x144] sm:$0xf]
  %v12958 = vld [vmem:[%s0 + $0x148] sm:$0xf]
  %v12959 = vld [vmem:[%s0 + $0x14c] sm:$0xf]
  %v12960 = vld [vmem:[%s6] sm:$0xf]
  %v12961 = vld [vmem:[%s6 + $0x4] sm:$0xf]
  %v12962 = vld [vmem:[%s6 + $0x8] sm:$0xf]
  %v12963 = vld [vmem:[%s6 + $0xc] sm:$0xf]
  %v12964 = vld [vmem:[%s6 + $0x10] sm:$0xf]
  %v12965 = vld [vmem:[%s6 + $0x14] sm:$0xf]
  %v12966 = vld [vmem:[%s6 + $0x18] sm:$0xf]
  %v12967 = vld [vmem:[%s6 + $0x1c] sm:$0xf]
  %v12968 = vld [vmem:[%s6 + $0x20] sm:$0xf]
  %v12969 = vld [vmem:[%s6 + $0x24] sm:$0xf]
  %v12970 = vld [vmem:[%s6 + $0x28] sm:$0xf]
  %v12971 = vld [vmem:[%s6 + $0x2c] sm:$0xf]
  %v12972 = vld [vmem:[%s6 + $0x30] sm:$0xf]
  %v12973 = vld [vmem:[%s6 + $0x34] sm:$0xf]
  %v12974 = vld [vmem:[%s6 + $0x38] sm:$0xf]
  %v12975 = vld [vmem:[%s6 + $0x3c] sm:$0xf]
  %v13057 = vunpack.c.l.b16 %v12879
  %v13058 = vunpack.c.l.b16 %v12880
  %v13059 = vunpack.c.l.b16 %v12881
  %v13060 = vunpack.c.l.b16 %v12882
  %v13061 = vunpack.c.l.b16 %v12883
  %v13062 = vunpack.c.l.b16 %v12884
  %v13063 = vunpack.c.l.b16 %v12885
  %v13064 = vunpack.c.l.b16 %v12886
  %v13065 = vunpack.c.l.b16 %v12887
  %v13066 = vunpack.c.l.b16 %v12888
  %v13067 = vunpack.c.l.b16 %v12889
  %v13068 = vunpack.c.l.b16 %v12890
  %v13069 = vunpack.c.l.b16 %v12891
  %v13070 = vunpack.c.l.b16 %v12892
  %v13071 = vunpack.c.l.b16 %v12893
  %v13072 = vunpack.c.l.b16 %v12894
  %v13073 = vunpack.c.l.b16 %v12895
  %v13074 = vunpack.c.l.b16 %v12896
  %v13075 = vunpack.c.l.b16 %v12897
  %v13076 = vunpack.c.l.b16 %v12898
  %v13077 = vunpack.c.l.b16 %v12899
  %v13078 = vunpack.c.l.b16 %v12900
  %v13079 = vunpack.c.l.b16 %v12901
  %v13080 = vunpack.c.l.b16 %v12902
  %v13081 = vunpack.c.l.b16 %v12903
  %v13082 = vunpack.c.l.b16 %v12904
  %v13083 = vunpack.c.l.b16 %v12905
  %v13084 = vunpack.c.l.b16 %v12906
  %v13085 = vunpack.c.l.b16 %v12907
  %v13086 = vunpack.c.l.b16 %v12908
  %v13087 = vunpack.c.l.b16 %v12909
  %v13088 = vunpack.c.l.b16 %v12910
  %v13089 = vunpack.c.l.b16 %v12911
  %v13090 = vunpack.c.l.b16 %v12912
  %v13091 = vunpack.c.l.b16 %v12913
  %v13092 = vunpack.c.l.b16 %v12914
  %v13093 = vunpack.c.l.b16 %v12915
  %v13094 = vunpack.c.l.b16 %v12916
  %v13095 = vunpack.c.l.b16 %v12917
  %v13096 = vunpack.c.l.b16 %v12918
  %v13097 = vunpack.c.l.b16 %v12919
  %v13098 = vunpack.c.l.b16 %v12920
  %v13099 = vunpack.c.l.b16 %v12921
  %v13100 = vunpack.c.l.b16 %v12922
  %v13101 = vunpack.c.l.b16 %v12923
  %v13102 = vunpack.c.l.b16 %v12924
  %v13103 = vunpack.c.l.b16 %v12925
  %v13104 = vunpack.c.l.b16 %v12926
  %v13105 = vunpack.c.l.b16 %v12927
  %v13106 = vunpack.c.l.b16 %v12928
  %v13107 = vunpack.c.l.b16 %v12929
  %v13108 = vunpack.c.l.b16 %v12930
  %v13109 = vunpack.c.l.b16 %v12931
  %v13110 = vunpack.c.l.b16 %v12932
  %v13111 = vunpack.c.l.b16 %v12933
  %v13112 = vunpack.c.l.b16 %v12934
  %v13113 = vunpack.c.l.b16 %v12935
  %v13114 = vunpack.c.l.b16 %v12936
  %v13115 = vunpack.c.l.b16 %v12937
  %v13116 = vunpack.c.l.b16 %v12938
  %v13117 = vunpack.c.l.b16 %v12939
  %v13118 = vunpack.c.l.b16 %v12940
  %v13119 = vunpack.c.l.b16 %v12941
  %v13120 = vunpack.c.l.b16 %v12942
  %v13121 = vunpack.c.l.b16 %v12943
  %v13122 = vunpack.c.l.b16 %v12944
  %v13123 = vunpack.c.l.b16 %v12945
  %v13124 = vunpack.c.l.b16 %v12946
  %v13125 = vunpack.c.l.b16 %v12947
  %v13126 = vunpack.c.l.b16 %v12948
  %v13127 = vunpack.c.l.b16 %v12949
  %v13128 = vunpack.c.l.b16 %v12950
  %v13129 = vunpack.c.l.b16 %v12951
  %v13130 = vunpack.c.l.b16 %v12952
  %v13131 = vunpack.c.l.b16 %v12953
  %v13132 = vunpack.c.l.b16 %v12954
  %v13133 = vunpack.c.l.b16 %v12955
  %v13134 = vunpack.c.l.b16 %v12956
  %v13135 = vunpack.c.l.b16 %v12957
  %v13136 = vunpack.c.l.b16 %v12958
  %v13137 = vunpack.c.l.b16 %v12959
  %v13138 = vpack.c.b16 %v13058, %v13057
  %v13139 = vpack.c.b16 %v13060, %v13059
  %v13140 = vpack.c.b16 %v13062, %v13061
  %v13141 = vpack.c.b16 %v13064, %v13063
  %v13142 = vpack.c.b16 %v13066, %v13065
  %v13143 = vpack.c.b16 %v13068, %v13067
  %v13144 = vpack.c.b16 %v13070, %v13069
  %v13145 = vpack.c.b16 %v13072, %v13071
  %v13146 = vpack.c.b16 %v13074, %v13073
  %v13147 = vpack.c.b16 %v13076, %v13075
  %v13148 = vpack.c.b16 %v13078, %v13077
  %v13149 = vpack.c.b16 %v13080, %v13079
  %v13150 = vpack.c.b16 %v13082, %v13081
  %v13151 = vpack.c.b16 %v13084, %v13083
  %v13152 = vpack.c.b16 %v13086, %v13085
  %v13153 = vpack.c.b16 %v13088, %v13087
  %v13154 = vpack.c.b16 %v13090, %v13089
  %v13155 = vpack.c.b16 %v13092, %v13091
  %v13156 = vpack.c.b16 %v13094, %v13093
  %v13157 = vpack.c.b16 %v13096, %v13095
  %v13158 = vpack.c.b16 %v13098, %v13097
  %v13159 = vpack.c.b16 %v13100, %v13099
  %v13160 = vpack.c.b16 %v13102, %v13101
  %v13161 = vpack.c.b16 %v13104, %v13103
  %v13162 = vpack.c.b16 %v13106, %v13105
  %v13163 = vpack.c.b16 %v13108, %v13107
  %v13164 = vpack.c.b16 %v13110, %v13109
  %v13165 = vpack.c.b16 %v13112, %v13111
  %v13166 = vpack.c.b16 %v13114, %v13113
  %v13167 = vpack.c.b16 %v13116, %v13115
  %v13168 = vpack.c.b16 %v13118, %v13117
  %v13169 = vpack.c.b16 %v13120, %v13119
  %v13170 = vpack.c.b16 %v13122, %v13121
  %v13171 = vpack.c.b16 %v13124, %v13123
  %v13172 = vpack.c.b16 %v13126, %v13125
  %v13173 = vpack.c.b16 %v13128, %v13127
  %v13174 = vpack.c.b16 %v13130, %v13129
  %v13175 = vpack.c.b16 %v13132, %v13131
  %v13176 = vpack.c.b16 %v13134, %v13133
  %v13177 = vpack.c.b16 %v13136, %v13135
  %v13178 = vpack.c.b16 %v13137, %v13137
  %v13236 = vunpack.c.l.b16 %v12960
  %v13237 = vunpack.c.l.b16 %v12961
  %v13238 = vunpack.c.l.b16 %v12962
  %v13239 = vunpack.c.l.b16 %v12963
  %v13240 = vunpack.c.l.b16 %v12964
  %v13241 = vunpack.c.l.b16 %v12965
  %v13242 = vunpack.c.l.b16 %v12966
  %v13243 = vunpack.c.l.b16 %v12967
  %v13244 = vunpack.c.l.b16 %v12968
  %v13245 = vunpack.c.l.b16 %v12969
  %v13246 = vunpack.c.l.b16 %v12970
  %v13247 = vunpack.c.l.b16 %v12971
  %v13248 = vunpack.c.l.b16 %v12972
  %v13249 = vunpack.c.l.b16 %v12973
  %v13250 = vunpack.c.l.b16 %v12974
  %v13251 = vunpack.c.l.b16 %v12975
  %v13252 = vpack.c.b16 %v13237, %v13236
  %v13253 = vpack.c.b16 %v13239, %v13238
  %v13254 = vpack.c.b16 %v13241, %v13240
  %v13255 = vpack.c.b16 %v13243, %v13242
  %v13256 = vpack.c.b16 %v13245, %v13244
  %v13257 = vpack.c.b16 %v13247, %v13246
  %v13258 = vpack.c.b16 %v13249, %v13248
  %v13259 = vpack.c.b16 %v13251, %v13250
  %13268 = vmatprep.subr.bf16.mxu0 0
  %13269 = vmatpush1.bf16.msra.mxu0 %v13252
  %13270 = vmatprep.subr.bf16.mxu0 0
  %13271 = vmatpush1.bf16.msra.mxu0 %v13253
  %13272 = vmatprep.subr.bf16.mxu0 0
  %13273 = vmatpush1.bf16.msra.mxu0 %v13254
  %13274 = vmatprep.subr.bf16.mxu0 0
  %13275 = vmatpush1.bf16.msra.mxu0 %v13255
  %13276 = vmatprep.subr.bf16.mxu0 0
  %13277 = vmatpush1.bf16.msra.mxu0 %v13256
  %13278 = vmatprep.subr.bf16.mxu0 0
  %13279 = vmatpush1.bf16.msra.mxu0 %v13257
  %13280 = vmatprep.subr.bf16.mxu0 0
  %13281 = vmatpush1.bf16.msra.mxu0 %v13258
  %13282 = vmatprep.subr.bf16.mxu0 0
  %13283 = vmatpush1.bf16.msra.mxu0 %v13259
  %13284 = vmatprep.subr.bf16.mxu0 0
  %13285 = vmatpush1.bf16.msra.mxu0 0
  %13286 = vmatprep.subr.bf16.mxu0 0
  %13287 = vmatpush1.bf16.msra.mxu0 0
  %13288 = vmatprep.subr.bf16.mxu0 0
  %13289 = vmatpush1.bf16.msra.mxu0 0
  %13290 = vmatprep.subr.bf16.mxu0 0
  %13291 = vmatpush1.bf16.msra.mxu0 0
  %13292 = vmatprep.subr.bf16.mxu0 0
  %13293 = vmatpush1.bf16.msra.mxu0 0
  %13294 = vmatprep.subr.bf16.mxu0 0
  %13295 = vmatpush1.bf16.msra.mxu0 0
  %13296 = vmatprep.subr.bf16.mxu0 0
  %13297 = vmatpush1.bf16.msra.mxu0 0
  %13298 = vmatprep.subr.bf16.mxu0 0
  %13299 = vmatpush1.bf16.msra.mxu0 0
  %13300 = vmatprep.mubr.bf16.mxu0 0
  %13301 = vmatmul.mubr.bf16.gmra.mrb[0].mxu0 %v13138
  %v13302 = vpop.f32.mrb[0].mxu0
  %v13303 = vadd.f32 0.0, %v13302
  %v13304 = vpop.f32.mrb[0].mxu0
  %v13305 = vpop.f32.mrb[0].mxu0
  %v13306 = vadd.f32 0.0, %v13305
  %v13307 = vpop.f32.mrb[0].mxu0
  %13308 = vmatprep.mubr.bf16.mxu0 0
  %13309 = vmatmul.mubr.bf16.gmra.mrb[0].mxu0 %v13139
  %v13310 = vpop.f32.mrb[0].mxu0
  %v13311 = vadd.f32 0.0, %v13310
  %v13312 = vpop.f32.mrb[0].mxu0
  %v13313 = vpop.f32.mrb[0].mxu0
  %v13314 = vadd.f32 0.0, %v13313
  %v13315 = vpop.f32.mrb[0].mxu0
  %13316 = vmatprep.mubr.bf16.mxu0 0
  %13317 = vmatmul.mubr.bf16.gmra.mrb[0].mxu0 %v13140
  %v13318 = vpop.f32.mrb[0].mxu0
  %v13319 = vadd.f32 0.0, %v13318
  %v13320 = vpop.f32.mrb[0].mxu0
  %v13321 = vpop.f32.mrb[0].mxu0
  %v13322 = vadd.f32 0.0, %v13321
  %v13323 = vpop.f32.mrb[0].mxu0
  %13324 = vmatprep.mubr.bf16.mxu0 0
  %13325 = vmatmul.mubr.bf16.gmra.mrb[0].mxu0 %v13141
  %v13326 = vpop.f32.mrb[0].mxu0
  %v13327 = vadd.f32 0.0, %v13326
  %v13328 = vpop.f32.mrb[0].mxu0
  %v13329 = vpop.f32.mrb[0].mxu0
  %v13330 = vadd.f32 0.0, %v13329
  %v13331 = vpop.f32.mrb[0].mxu0
  %13332 = vmatprep.mubr.bf16.mxu0 0
  %13333 = vmatmul.mubr.bf16.gmra.mrb[0].mxu0 %v13142
  %v13334 = vpop.f32.mrb[0].mxu0
  %v13335 = vadd.f32 0.0, %v13334
  %v13336 = vpop.f32.mrb[0].mxu0
  %v13337 = vpop.f32.mrb[0].mxu0
  %v13338 = vadd.f32 0.0, %v13337
  %v13339 = vpop.f32.mrb[0].mxu0
  %13340 = vmatprep.mubr.bf16.mxu0 0
  %13341 = vmatmul.mubr.bf16.gmra.mrb[0].mxu0 %v13143
  %v13342 = vpop.f32.mrb[0].mxu0
  %v13343 = vadd.f32 0.0, %v13342
  %v13344 = vpop.f32.mrb[0].mxu0
  %v13345 = vpop.f32.mrb[0].mxu0
  %v13346 = vadd.f32 0.0, %v13345
  %v13347 = vpop.f32.mrb[0].mxu0
  %13348 = vmatprep.mubr.bf16.mxu0 0
  %13349 = vmatmul.mubr.bf16.gmra.mrb[0].mxu0 %v13144
  %v13350 = vpop.f32.mrb[0].mxu0
  %v13351 = vadd.f32 0.0, %v13350
  %v13352 = vpop.f32.mrb[0].mxu0
  %v13353 = vpop.f32.mrb[0].mxu0
  %v13354 = vadd.f32 0.0, %v13353
  %v13355 = vpop.f32.mrb[0].mxu0
  %13356 = vmatprep.mubr.bf16.mxu0 0
  %13357 = vmatmul.mubr.bf16.gmra.mrb[0].mxu0 %v13145
  %v13358 = vpop.f32.mrb[0].mxu0
  %v13359 = vadd.f32 0.0, %v13358
  %v13360 = vpop.f32.mrb[0].mxu0
  %v13361 = vpop.f32.mrb[0].mxu0
  %v13362 = vadd.f32 0.0, %v13361
  %v13363 = vpop.f32.mrb[0].mxu0
  %13364 = vmatprep.mubr.bf16.mxu0 0
  %13365 = vmatmul.mubr.bf16.gmra.mrb[0].mxu0 %v13146
  %v13366 = vpop.f32.mrb[0].mxu0
  %v13367 = vadd.f32 0.0, %v13366
  %v13368 = vpop.f32.mrb[0].mxu0
  %v13369 = vpop.f32.mrb[0].mxu0
  %v13370 = vadd.f32 0.0, %v13369
  %v13371 = vpop.f32.mrb[0].mxu0
  %13372 = vmatprep.mubr.bf16.mxu0 0
  %13373 = vmatmul.mubr.bf16.gmra.mrb[0].mxu0 %v13147
  %v13374 = vpop.f32.mrb[0].mxu0
  %v13375 = vadd.f32 0.0, %v13374
  %v13376 = vpop.f32.mrb[0].mxu0
  %v13377 = vpop.f32.mrb[0].mxu0
  %v13378 = vadd.f32 0.0, %v13377
  %v13379 = vpop.f32.mrb[0].mxu0
  %13380 = vmatprep.mubr.bf16.mxu0 0
  %13381 = vmatmul.mubr.bf16.gmra.mrb[0].mxu0 %v13148
  %v13382 = vpop.f32.mrb[0].mxu0
  %v13383 = vadd.f32 0.0, %v13382
  %v13384 = vpop.f32.mrb[0].mxu0
  %v13385 = vpop.f32.mrb[0].mxu0
  %v13386 = vadd.f32 0.0, %v13385
  %v13387 = vpop.f32.mrb[0].mxu0
  %13388 = vmatprep.mubr.bf16.mxu0 0
  %13389 = vmatmul.mubr.bf16.gmra.mrb[0].mxu0 %v13149
  %v13390 = vpop.f32.mrb[0].mxu0
  %v13391 = vadd.f32 0.0, %v13390
  %v13392 = vpop.f32.mrb[0].mxu0
  %v13393 = vpop.f32.mrb[0].mxu0
  %v13394 = vadd.f32 0.0, %v13393
  %v13395 = vpop.f32.mrb[0].mxu0
  %13396 = vmatprep.mubr.bf16.mxu0 0
  %13397 = vmatmul.mubr.bf16.gmra.mrb[0].mxu0 %v13150
  %v13398 = vpop.f32.mrb[0].mxu0
  %v13399 = vadd.f32 0.0, %v13398
  %v13400 = vpop.f32.mrb[0].mxu0
  %v13401 = vpop.f32.mrb[0].mxu0
  %v13402 = vadd.f32 0.0, %v13401
  %v13403 = vpop.f32.mrb[0].mxu0
  %13404 = vmatprep.mubr.bf16.mxu0 0
  %13405 = vmatmul.mubr.bf16.gmra.mrb[0].mxu0 %v13151
  %v13406 = vpop.f32.mrb[0].mxu0
  %v13407 = vadd.f32 0.0, %v13406
  %v13408 = vpop.f32.mrb[0].mxu0
  %v13409 = vpop.f32.mrb[0].mxu0
  %v13410 = vadd.f32 0.0, %v13409
  %v13411 = vpop.f32.mrb[0].mxu0
  %13412 = vmatprep.mubr.bf16.mxu0 0
  %13413 = vmatmul.mubr.bf16.gmra.mrb[0].mxu0 %v13152
  %v13414 = vpop.f32.mrb[0].mxu0
  %v13415 = vadd.f32 0.0, %v13414
  %v13416 = vpop.f32.mrb[0].mxu0
  %v13417 = vpop.f32.mrb[0].mxu0
  %v13418 = vadd.f32 0.0, %v13417
  %v13419 = vpop.f32.mrb[0].mxu0
  %13420 = vmatprep.mubr.bf16.mxu0 0
  %13421 = vmatmul.mubr.bf16.gmra.mrb[0].mxu0 %v13153
  %v13422 = vpop.f32.mrb[0].mxu0
  %v13423 = vadd.f32 0.0, %v13422
  %v13424 = vpop.f32.mrb[0].mxu0
  %v13425 = vpop.f32.mrb[0].mxu0
  %v13426 = vadd.f32 0.0, %v13425
  %v13427 = vpop.f32.mrb[0].mxu0
  %13428 = vmatprep.mubr.bf16.mxu0 0
  %13429 = vmatmul.mubr.bf16.gmra.mrb[0].mxu0 %v13154
  %v13430 = vpop.f32.mrb[0].mxu0
  %v13431 = vadd.f32 0.0, %v13430
  %v13432 = vpop.f32.mrb[0].mxu0
  %v13433 = vpop.f32.mrb[0].mxu0
  %v13434 = vadd.f32 0.0, %v13433
  %v13435 = vpop.f32.mrb[0].mxu0
  %13436 = vmatprep.mubr.bf16.mxu0 0
  %13437 = vmatmul.mubr.bf16.gmra.mrb[0].mxu0 %v13155
  %v13438 = vpop.f32.mrb[0].mxu0
  %v13439 = vadd.f32 0.0, %v13438
  %v13440 = vpop.f32.mrb[0].mxu0
  %v13441 = vpop.f32.mrb[0].mxu0
  %v13442 = vadd.f32 0.0, %v13441
  %v13443 = vpop.f32.mrb[0].mxu0
  %13444 = vmatprep.mubr.bf16.mxu0 0
  %13445 = vmatmul.mubr.bf16.gmra.mrb[0].mxu0 %v13156
  %v13446 = vpop.f32.mrb[0].mxu0
  %v13447 = vadd.f32 0.0, %v13446
  %v13448 = vpop.f32.mrb[0].mxu0
  %v13449 = vpop.f32.mrb[0].mxu0
  %v13450 = vadd.f32 0.0, %v13449
  %v13451 = vpop.f32.mrb[0].mxu0
  %13452 = vmatprep.mubr.bf16.mxu0 0
  %13453 = vmatmul.mubr.bf16.gmra.mrb[0].mxu0 %v13157
  %v13454 = vpop.f32.mrb[0].mxu0
  %v13455 = vadd.f32 0.0, %v13454
  %v13456 = vpop.f32.mrb[0].mxu0
  %v13457 = vpop.f32.mrb[0].mxu0
  %v13458 = vadd.f32 0.0, %v13457
  %v13459 = vpop.f32.mrb[0].mxu0
  %13460 = vmatprep.mubr.bf16.mxu0 0
  %13461 = vmatmul.mubr.bf16.gmra.mrb[0].mxu0 %v13158
  %v13462 = vpop.f32.mrb[0].mxu0
  %v13463 = vadd.f32 0.0, %v13462
  %v13464 = vpop.f32.mrb[0].mxu0
  %v13465 = vpop.f32.mrb[0].mxu0
  %v13466 = vadd.f32 0.0, %v13465
  %v13467 = vpop.f32.mrb[0].mxu0
  %13468 = vmatprep.mubr.bf16.mxu0 0
  %13469 = vmatmul.mubr.bf16.gmra.mrb[0].mxu0 %v13159
  %v13470 = vpop.f32.mrb[0].mxu0
  %v13471 = vadd.f32 0.0, %v13470
  %v13472 = vpop.f32.mrb[0].mxu0
  %v13473 = vpop.f32.mrb[0].mxu0
  %v13474 = vadd.f32 0.0, %v13473
  %v13475 = vpop.f32.mrb[0].mxu0
  %13476 = vmatprep.mubr.bf16.mxu0 0
  %13477 = vmatmul.mubr.bf16.gmra.mrb[0].mxu0 %v13160
  %v13478 = vpop.f32.mrb[0].mxu0
  %v13479 = vadd.f32 0.0, %v13478
  %v13480 = vpop.f32.mrb[0].mxu0
  %v13481 = vpop.f32.mrb[0].mxu0
  %v13482 = vadd.f32 0.0, %v13481
  %v13483 = vpop.f32.mrb[0].mxu0
  %13484 = vmatprep.mubr.bf16.mxu0 0
  %13485 = vmatmul.mubr.bf16.gmra.mrb[0].mxu0 %v13161
  %v13486 = vpop.f32.mrb[0].mxu0
  %v13487 = vadd.f32 0.0, %v13486
  %v13488 = vpop.f32.mrb[0].mxu0
  %v13489 = vpop.f32.mrb[0].mxu0
  %v13490 = vadd.f32 0.0, %v13489
  %v13491 = vpop.f32.mrb[0].mxu0
  %13492 = vmatprep.mubr.bf16.mxu0 0
  %13493 = vmatmul.mubr.bf16.gmra.mrb[0].mxu0 %v13162
  %v13494 = vpop.f32.mrb[0].mxu0
  %v13495 = vadd.f32 0.0, %v13494
  %v13496 = vpop.f32.mrb[0].mxu0
  %v13497 = vpop.f32.mrb[0].mxu0
  %v13498 = vadd.f32 0.0, %v13497
  %v13499 = vpop.f32.mrb[0].mxu0
  %13500 = vmatprep.mubr.bf16.mxu0 0
  %13501 = vmatmul.mubr.bf16.gmra.mrb[0].mxu0 %v13163
  %v13502 = vpop.f32.mrb[0].mxu0
  %v13503 = vadd.f32 0.0, %v13502
  %v13504 = vpop.f32.mrb[0].mxu0
  %v13505 = vpop.f32.mrb[0].mxu0
  %v13506 = vadd.f32 0.0, %v13505
  %v13507 = vpop.f32.mrb[0].mxu0
  %13508 = vmatprep.mubr.bf16.mxu0 0
  %13509 = vmatmul.mubr.bf16.gmra.mrb[0].mxu0 %v13164
  %v13510 = vpop.f32.mrb[0].mxu0
  %v13511 = vadd.f32 0.0, %v13510
  %v13512 = vpop.f32.mrb[0].mxu0
  %v13513 = vpop.f32.mrb[0].mxu0
  %v13514 = vadd.f32 0.0, %v13513
  %v13515 = vpop.f32.mrb[0].mxu0
  %13516 = vmatprep.mubr.bf16.mxu0 0
  %13517 = vmatmul.mubr.bf16.gmra.mrb[0].mxu0 %v13165
  %v13518 = vpop.f32.mrb[0].mxu0
  %v13519 = vadd.f32 0.0, %v13518
  %v13520 = vpop.f32.mrb[0].mxu0
  %v13521 = vpop.f32.mrb[0].mxu0
  %v13522 = vadd.f32 0.0, %v13521
  %v13523 = vpop.f32.mrb[0].mxu0
  %13524 = vmatprep.mubr.bf16.mxu0 0
  %13525 = vmatmul.mubr.bf16.gmra.mrb[0].mxu0 %v13166
  %v13526 = vpop.f32.mrb[0].mxu0
  %v13527 = vadd.f32 0.0, %v13526
  %v13528 = vpop.f32.mrb[0].mxu0
  %v13529 = vpop.f32.mrb[0].mxu0
  %v13530 = vadd.f32 0.0, %v13529
  %v13531 = vpop.f32.mrb[0].mxu0
  %13532 = vmatprep.mubr.bf16.mxu0 0
  %13533 = vmatmul.mubr.bf16.gmra.mrb[0].mxu0 %v13167
  %v13534 = vpop.f32.mrb[0].mxu0
  %v13535 = vadd.f32 0.0, %v13534
  %v13536 = vpop.f32.mrb[0].mxu0
  %v13537 = vpop.f32.mrb[0].mxu0
  %v13538 = vadd.f32 0.0, %v13537
  %v13539 = vpop.f32.mrb[0].mxu0
  %13540 = vmatprep.mubr.bf16.mxu0 0
  %13541 = vmatmul.mubr.bf16.gmra.mrb[0].mxu0 %v13168
  %v13542 = vpop.f32.mrb[0].mxu0
  %v13543 = vadd.f32 0.0, %v13542
  %v13544 = vpop.f32.mrb[0].mxu0
  %v13545 = vpop.f32.mrb[0].mxu0
  %v13546 = vadd.f32 0.0, %v13545
  %v13547 = vpop.f32.mrb[0].mxu0
  %13548 = vmatprep.mubr.bf16.mxu0 0
  %13549 = vmatmul.mubr.bf16.gmra.mrb[0].mxu0 %v13169
  %v13550 = vpop.f32.mrb[0].mxu0
  %v13551 = vadd.f32 0.0, %v13550
  %v13552 = vpop.f32.mrb[0].mxu0
  %v13553 = vpop.f32.mrb[0].mxu0
  %v13554 = vadd.f32 0.0, %v13553
  %v13555 = vpop.f32.mrb[0].mxu0
  %13556 = vmatprep.mubr.bf16.mxu0 0
  %13557 = vmatmul.mubr.bf16.gmra.mrb[0].mxu0 %v13170
  %v13558 = vpop.f32.mrb[0].mxu0
  %v13559 = vadd.f32 0.0, %v13558
  %v13560 = vpop.f32.mrb[0].mxu0
  %v13561 = vpop.f32.mrb[0].mxu0
  %v13562 = vadd.f32 0.0, %v13561
  %v13563 = vpop.f32.mrb[0].mxu0
  %13564 = vmatprep.mubr.bf16.mxu0 0
  %13565 = vmatmul.mubr.bf16.gmra.mrb[0].mxu0 %v13171
  %v13566 = vpop.f32.mrb[0].mxu0
  %v13567 = vadd.f32 0.0, %v13566
  %v13568 = vpop.f32.mrb[0].mxu0
  %v13569 = vpop.f32.mrb[0].mxu0
  %v13570 = vadd.f32 0.0, %v13569
  %v13571 = vpop.f32.mrb[0].mxu0
  %13572 = vmatprep.mubr.bf16.mxu0 0
  %13573 = vmatmul.mubr.bf16.gmra.mrb[0].mxu0 %v13172
  %v13574 = vpop.f32.mrb[0].mxu0
  %v13575 = vadd.f32 0.0, %v13574
  %v13576 = vpop.f32.mrb[0].mxu0
  %v13577 = vpop.f32.mrb[0].mxu0
  %v13578 = vadd.f32 0.0, %v13577
  %v13579 = vpop.f32.mrb[0].mxu0
  %13580 = vmatprep.mubr.bf16.mxu0 0
  %13581 = vmatmul.mubr.bf16.gmra.mrb[0].mxu0 %v13173
  %v13582 = vpop.f32.mrb[0].mxu0
  %v13583 = vadd.f32 0.0, %v13582
  %v13584 = vpop.f32.mrb[0].mxu0
  %v13585 = vpop.f32.mrb[0].mxu0
  %v13586 = vadd.f32 0.0, %v13585
  %v13587 = vpop.f32.mrb[0].mxu0
  %13588 = vmatprep.mubr.bf16.mxu0 0
  %13589 = vmatmul.mubr.bf16.gmra.mrb[0].mxu0 %v13174
  %v13590 = vpop.f32.mrb[0].mxu0
  %v13591 = vadd.f32 0.0, %v13590
  %v13592 = vpop.f32.mrb[0].mxu0
  %v13593 = vpop.f32.mrb[0].mxu0
  %v13594 = vadd.f32 0.0, %v13593
  %v13595 = vpop.f32.mrb[0].mxu0
  %13596 = vmatprep.mubr.bf16.mxu0 0
  %13597 = vmatmul.mubr.bf16.gmra.mrb[0].mxu0 %v13175
  %v13598 = vpop.f32.mrb[0].mxu0
  %v13599 = vadd.f32 0.0, %v13598
  %v13600 = vpop.f32.mrb[0].mxu0
  %v13601 = vpop.f32.mrb[0].mxu0
  %v13602 = vadd.f32 0.0, %v13601
  %v13603 = vpop.f32.mrb[0].mxu0
  %13604 = vmatprep.mubr.bf16.mxu0 0
  %13605 = vmatmul.mubr.bf16.gmra.mrb[0].mxu0 %v13176
  %v13606 = vpop.f32.mrb[0].mxu0
  %v13607 = vadd.f32 0.0, %v13606
  %v13608 = vpop.f32.mrb[0].mxu0
  %v13609 = vpop.f32.mrb[0].mxu0
  %v13610 = vadd.f32 0.0, %v13609
  %v13611 = vpop.f32.mrb[0].mxu0
  %13612 = vmatprep.mubr.bf16.mxu0 0
  %13613 = vmatmul.mubr.bf16.gmra.mrb[0].mxu0 %v13177
  %v13614 = vpop.f32.mrb[0].mxu0
  %v13615 = vadd.f32 0.0, %v13614
  %v13616 = vpop.f32.mrb[0].mxu0
  %v13617 = vpop.f32.mrb[0].mxu0
  %v13618 = vadd.f32 0.0, %v13617
  %v13619 = vpop.f32.mrb[0].mxu0
  %13620 = vmatprep.mubr.bf16.mxu0 0
  %13621 = vmatmul.mubr.bf16.gmra.mrb[0].mxu0 %v13178
  %v13622 = vpop.f32.mrb[0].mxu0
  %v13623 = vadd.f32 0.0, %v13622
  %v13624 = vpop.f32.mrb[0].mxu0
  %v13625 = vpop.f32.mrb[0].mxu0
  %v13626 = vpop.f32.mrb[0].mxu0
  %13627 = vdwg.mxu0
  %v13628 = vld [vmem:[%s13] sm:$0x1]
  %v13629 = vld [vmem:[%s14] sm:$0x1]
  %v13630 = vmul.f32 %v13303, %v10575
  %v13631 = vmul.f32 %v13306, %v10580
  %v13632 = vmul.f32 %v13311, %v10585
  %v13633 = vmul.f32 %v13314, %v10590
  %v13634 = vmul.f32 %v13319, %v10595
  %v13635 = vmul.f32 %v13322, %v10600
  %v13636 = vmul.f32 %v13327, %v10605
  %v13637 = vmul.f32 %v13330, %v10610
  %v13638 = vmul.f32 %v13335, %v10615
  %v13639 = vmul.f32 %v13338, %v10620
  %v13640 = vmul.f32 %v13343, %v10625
  %v13641 = vmul.f32 %v13346, %v10630
  %v13642 = vmul.f32 %v13351, %v10635
  %v13643 = vmul.f32 %v13354, %v10640
  %v13644 = vmul.f32 %v13359, %v10645
  %v13645 = vmul.f32 %v13362, %v10650
  %v13646 = vmul.f32 %v13367, %v10655
  %v13647 = vmul.f32 %v13370, %v10660
  %v13648 = vmul.f32 %v13375, %v10665
  %v13649 = vmul.f32 %v13378, %v10670
  %v13650 = vmul.f32 %v13383, %v10675
  %v13651 = vmul.f32 %v13386, %v10680
  %v13652 = vmul.f32 %v13391, %v10685
  %v13653 = vmul.f32 %v13394, %v10690
  %v13654 = vmul.f32 %v13399, %v10695
  %v13655 = vmul.f32 %v13402, %v10700
  %v13656 = vmul.f32 %v13407, %v10705
  %v13657 = vmul.f32 %v13410, %v10710
  %v13658 = vmul.f32 %v13415, %v10715
  %v13659 = vmul.f32 %v13418, %v10720
  %v13660 = vmul.f32 %v13423, %v10725
  %v13661 = vmul.f32 %v13426, %v10730
  %v13662 = vmul.f32 %v13431, %v10735
  %v13663 = vmul.f32 %v13434, %v10740
  %v13664 = vmul.f32 %v13439, %v10745
  %v13665 = vmul.f32 %v13442, %v10750
  %v13666 = vmul.f32 %v13447, %v10755
  %v13667 = vmul.f32 %v13450, %v10760
  %v13668 = vmul.f32 %v13455, %v10765
  %v13669 = vmul.f32 %v13458, %v10770
  %v13670 = vmul.f32 %v13463, %v10775
  %v13671 = vmul.f32 %v13466, %v10780
  %v13672 = vmul.f32 %v13471, %v10785
  %v13673 = vmul.f32 %v13474, %v10790
  %v13674 = vmul.f32 %v13479, %v10795
  %v13675 = vmul.f32 %v13482, %v10800
  %v13676 = vmul.f32 %v13487, %v10805
  %v13677 = vmul.f32 %v13490, %v10810
  %v13678 = vmul.f32 %v13495, %v10815
  %v13679 = vmul.f32 %v13498, %v10820
  %v13680 = vmul.f32 %v13503, %v10825
  %v13681 = vmul.f32 %v13506, %v10830
  %v13682 = vmul.f32 %v13511, %v10835
  %v13683 = vmul.f32 %v13514, %v10840
  %v13684 = vmul.f32 %v13519, %v10845
  %v13685 = vmul.f32 %v13522, %v10850
  %v13686 = vmul.f32 %v13527, %v10855
  %v13687 = vmul.f32 %v13530, %v10860
  %v13688 = vmul.f32 %v13535, %v10865
  %v13689 = vmul.f32 %v13538, %v10870
  %v13690 = vmul.f32 %v13543, %v10875
  %v13691 = vmul.f32 %v13546, %v10880
  %v13692 = vmul.f32 %v13551, %v10885
  %v13693 = vmul.f32 %v13554, %v10890
  %v13694 = vmul.f32 %v13559, %v10895
  %v13695 = vmul.f32 %v13562, %v10900
  %v13696 = vmul.f32 %v13567, %v10905
  %v13697 = vmul.f32 %v13570, %v10910
  %v13698 = vmul.f32 %v13575, %v10915
  %v13699 = vmul.f32 %v13578, %v10920
  %v13700 = vmul.f32 %v13583, %v10925
  %v13701 = vmul.f32 %v13586, %v10930
  %v13702 = vmul.f32 %v13591, %v10935
  %v13703 = vmul.f32 %v13594, %v10940
  %v13704 = vmul.f32 %v13599, %v10945
  %v13705 = vmul.f32 %v13602, %v10950
  %v13706 = vmul.f32 %v13607, %v10955
  %v13707 = vmul.f32 %v13610, %v10960
  %v13708 = vmul.f32 %v13615, %v10965
  %v13709 = vmul.f32 %v13618, %v10970
  %v13710 = vmul.f32 %v13623, %v10975
  %v13711 = vadd.f32 %v13630, %v13631
  %v13712 = vadd.f32 %v13711, %v13632
  %v13713 = vadd.f32 %v13712, %v13633
  %v13714 = vadd.f32 %v13713, %v13634
  %v13715 = vadd.f32 %v13714, %v13635
  %v13716 = vadd.f32 %v13715, %v13636
  %v13717 = vadd.f32 %v13716, %v13637
  %v13718 = vadd.f32 %v13717, %v13638
  %v13719 = vadd.f32 %v13718, %v13639
  %v13720 = vadd.f32 %v13719, %v13640
  %v13721 = vadd.f32 %v13720, %v13641
  %v13722 = vadd.f32 %v13721, %v13642
  %v13723 = vadd.f32 %v13722, %v13643
  %v13724 = vadd.f32 %v13723, %v13644
  %v13725 = vadd.f32 %v13724, %v13645
  %v13726 = vadd.f32 %v13725, %v13646
  %v13727 = vadd.f32 %v13726, %v13647
  %v13728 = vadd.f32 %v13727, %v13648
  %v13729 = vadd.f32 %v13728, %v13649
  %v13730 = vadd.f32 %v13729, %v13650
  %v13731 = vadd.f32 %v13730, %v13651
  %v13732 = vadd.f32 %v13731, %v13652
  %v13733 = vadd.f32 %v13732, %v13653
  %v13734 = vadd.f32 %v13733, %v13654
  %v13735 = vadd.f32 %v13734, %v13655
  %v13736 = vadd.f32 %v13735, %v13656
  %v13737 = vadd.f32 %v13736, %v13657
  %v13738 = vadd.f32 %v13737, %v13658
  %v13739 = vadd.f32 %v13738, %v13659
  %v13740 = vadd.f32 %v13739, %v13660
  %v13741 = vadd.f32 %v13740, %v13661
  %v13742 = vadd.f32 %v13741, %v13662
  %v13743 = vadd.f32 %v13742, %v13663
  %v13744 = vadd.f32 %v13743, %v13664
  %v13745 = vadd.f32 %v13744, %v13665
  %v13746 = vadd.f32 %v13745, %v13666
  %v13747 = vadd.f32 %v13746, %v13667
  %v13748 = vadd.f32 %v13747, %v13668
  %v13749 = vadd.f32 %v13748, %v13669
  %v13750 = vadd.f32 %v13749, %v13670
  %v13751 = vadd.f32 %v13750, %v13671
  %v13752 = vadd.f32 %v13751, %v13672
  %v13753 = vadd.f32 %v13752, %v13673
  %v13754 = vadd.f32 %v13753, %v13674
  %v13755 = vadd.f32 %v13754, %v13675
  %v13756 = vadd.f32 %v13755, %v13676
  %v13757 = vadd.f32 %v13756, %v13677
  %v13758 = vadd.f32 %v13757, %v13678
  %v13759 = vadd.f32 %v13758, %v13679
  %v13760 = vadd.f32 %v13759, %v13680
  %v13761 = vadd.f32 %v13760, %v13681
  %v13762 = vadd.f32 %v13761, %v13682
  %v13763 = vadd.f32 %v13762, %v13683
  %v13764 = vadd.f32 %v13763, %v13684
  %v13765 = vadd.f32 %v13764, %v13685
  %v13766 = vadd.f32 %v13765, %v13686
  %v13767 = vadd.f32 %v13766, %v13687
  %v13768 = vadd.f32 %v13767, %v13688
  %v13769 = vadd.f32 %v13768, %v13689
  %v13770 = vadd.f32 %v13769, %v13690
  %v13771 = vadd.f32 %v13770, %v13691
  %v13772 = vadd.f32 %v13771, %v13692
  %v13773 = vadd.f32 %v13772, %v13693
  %v13774 = vadd.f32 %v13773, %v13694
  %v13775 = vadd.f32 %v13774, %v13695
  %v13776 = vadd.f32 %v13775, %v13696
  %v13777 = vadd.f32 %v13776, %v13697
  %v13778 = vadd.f32 %v13777, %v13698
  %v13779 = vadd.f32 %v13778, %v13699
  %v13780 = vadd.f32 %v13779, %v13700
  %v13781 = vadd.f32 %v13780, %v13701
  %v13782 = vadd.f32 %v13781, %v13702
  %v13783 = vadd.f32 %v13782, %v13703
  %v13784 = vadd.f32 %v13783, %v13704
  %v13785 = vadd.f32 %v13784, %v13705
  %v13786 = vadd.f32 %v13785, %v13706
  %v13787 = vadd.f32 %v13786, %v13707
  %v13788 = vadd.f32 %v13787, %v13708
  %v13789 = vadd.f32 %v13788, %v13709
  %v13790 = vadd.f32 %v13789, %v13710
  %v13791 = vrot.slane %v13790, 4
  %v13792 = vadd.f32 %v13790, %v13791
  %v13793 = vrot.slane %v13792, 2
  %v13794 = vadd.f32 %v13792, %v13793
  %v13795 = vrot.slane %v13794, 1
  %v13796 = vadd.f32 %v13794, %v13795
  %v13797 = vmul.f32 %v13630, %v13303
  %v13798 = vmul.f32 %v13631, %v13306
  %v13799 = vmul.f32 %v13632, %v13311
  %v13800 = vmul.f32 %v13633, %v13314
  %v13801 = vmul.f32 %v13634, %v13319
  %v13802 = vmul.f32 %v13635, %v13322
  %v13803 = vmul.f32 %v13636, %v13327
  %v13804 = vmul.f32 %v13637, %v13330
  %v13805 = vmul.f32 %v13638, %v13335
  %v13806 = vmul.f32 %v13639, %v13338
  %v13807 = vmul.f32 %v13640, %v13343
  %v13808 = vmul.f32 %v13641, %v13346
  %v13809 = vmul.f32 %v13642, %v13351
  %v13810 = vmul.f32 %v13643, %v13354
  %v13811 = vmul.f32 %v13644, %v13359
  %v13812 = vmul.f32 %v13645, %v13362
  %v13813 = vmul.f32 %v13646, %v13367
  %v13814 = vmul.f32 %v13647, %v13370
  %v13815 = vmul.f32 %v13648, %v13375
  %v13816 = vmul.f32 %v13649, %v13378
  %v13817 = vmul.f32 %v13650, %v13383
  %v13818 = vmul.f32 %v13651, %v13386
  %v13819 = vmul.f32 %v13652, %v13391
  %v13820 = vmul.f32 %v13653, %v13394
  %v13821 = vmul.f32 %v13654, %v13399
  %v13822 = vmul.f32 %v13655, %v13402
  %v13823 = vmul.f32 %v13656, %v13407
  %v13824 = vmul.f32 %v13657, %v13410
  %v13825 = vmul.f32 %v13658, %v13415
  %v13826 = vmul.f32 %v13659, %v13418
  %v13827 = vmul.f32 %v13660, %v13423
  %v13828 = vmul.f32 %v13661, %v13426
  %v13829 = vmul.f32 %v13662, %v13431
  %v13830 = vmul.f32 %v13663, %v13434
  %v13831 = vmul.f32 %v13664, %v13439
  %v13832 = vmul.f32 %v13665, %v13442
  %v13833 = vmul.f32 %v13666, %v13447
  %v13834 = vmul.f32 %v13667, %v13450
  %v13835 = vmul.f32 %v13668, %v13455
  %v13836 = vmul.f32 %v13669, %v13458
  %v13837 = vmul.f32 %v13670, %v13463
  %v13838 = vmul.f32 %v13671, %v13466
  %v13839 = vmul.f32 %v13672, %v13471
  %v13840 = vmul.f32 %v13673, %v13474
  %v13841 = vmul.f32 %v13674, %v13479
  %v13842 = vmul.f32 %v13675, %v13482
  %v13843 = vmul.f32 %v13676, %v13487
  %v13844 = vmul.f32 %v13677, %v13490
  %v13845 = vmul.f32 %v13678, %v13495
  %v13846 = vmul.f32 %v13679, %v13498
  %v13847 = vmul.f32 %v13680, %v13503
  %v13848 = vmul.f32 %v13681, %v13506
  %v13849 = vmul.f32 %v13682, %v13511
  %v13850 = vmul.f32 %v13683, %v13514
  %v13851 = vmul.f32 %v13684, %v13519
  %v13852 = vmul.f32 %v13685, %v13522
  %v13853 = vmul.f32 %v13686, %v13527
  %v13854 = vmul.f32 %v13687, %v13530
  %v13855 = vmul.f32 %v13688, %v13535
  %v13856 = vmul.f32 %v13689, %v13538
  %v13857 = vmul.f32 %v13690, %v13543
  %v13858 = vmul.f32 %v13691, %v13546
  %v13859 = vmul.f32 %v13692, %v13551
  %v13860 = vmul.f32 %v13693, %v13554
  %v13861 = vmul.f32 %v13694, %v13559
  %v13862 = vmul.f32 %v13695, %v13562
  %v13863 = vmul.f32 %v13696, %v13567
  %v13864 = vmul.f32 %v13697, %v13570
  %v13865 = vmul.f32 %v13698, %v13575
  %v13866 = vmul.f32 %v13699, %v13578
  %v13867 = vmul.f32 %v13700, %v13583
  %v13868 = vmul.f32 %v13701, %v13586
  %v13869 = vmul.f32 %v13702, %v13591
  %v13870 = vmul.f32 %v13703, %v13594
  %v13871 = vmul.f32 %v13704, %v13599
  %v13872 = vmul.f32 %v13705, %v13602
  %v13873 = vmul.f32 %v13706, %v13607
  %v13874 = vmul.f32 %v13707, %v13610
  %v13875 = vmul.f32 %v13708, %v13615
  %v13876 = vmul.f32 %v13709, %v13618
  %v13877 = vmul.f32 %v13710, %v13623
  %v13878 = vadd.f32 %v13797, %v13798
  %v13879 = vadd.f32 %v13878, %v13799
  %v13880 = vadd.f32 %v13879, %v13800
  %v13881 = vadd.f32 %v13880, %v13801
  %v13882 = vadd.f32 %v13881, %v13802
  %v13883 = vadd.f32 %v13882, %v13803
  %v13884 = vadd.f32 %v13883, %v13804
  %v13885 = vadd.f32 %v13884, %v13805
  %v13886 = vadd.f32 %v13885, %v13806
  %v13887 = vadd.f32 %v13886, %v13807
  %v13888 = vadd.f32 %v13887, %v13808
  %v13889 = vadd.f32 %v13888, %v13809
  %v13890 = vadd.f32 %v13889, %v13810
  %v13891 = vadd.f32 %v13890, %v13811
  %v13892 = vadd.f32 %v13891, %v13812
  %v13893 = vadd.f32 %v13892, %v13813
  %v13894 = vadd.f32 %v13893, %v13814
  %v13895 = vadd.f32 %v13894, %v13815
  %v13896 = vadd.f32 %v13895, %v13816
  %v13897 = vadd.f32 %v13896, %v13817
  %v13898 = vadd.f32 %v13897, %v13818
  %v13899 = vadd.f32 %v13898, %v13819
  %v13900 = vadd.f32 %v13899, %v13820
  %v13901 = vadd.f32 %v13900, %v13821
  %v13902 = vadd.f32 %v13901, %v13822
  %v13903 = vadd.f32 %v13902, %v13823
  %v13904 = vadd.f32 %v13903, %v13824
  %v13905 = vadd.f32 %v13904, %v13825
  %v13906 = vadd.f32 %v13905, %v13826
  %v13907 = vadd.f32 %v13906, %v13827
  %v13908 = vadd.f32 %v13907, %v13828
  %v13909 = vadd.f32 %v13908, %v13829
  %v13910 = vadd.f32 %v13909, %v13830
  %v13911 = vadd.f32 %v13910, %v13831
  %v13912 = vadd.f32 %v13911, %v13832
  %v13913 = vadd.f32 %v13912, %v13833
  %v13914 = vadd.f32 %v13913, %v13834
  %v13915 = vadd.f32 %v13914, %v13835
  %v13916 = vadd.f32 %v13915, %v13836
  %v13917 = vadd.f32 %v13916, %v13837
  %v13918 = vadd.f32 %v13917, %v13838
  %v13919 = vadd.f32 %v13918, %v13839
  %v13920 = vadd.f32 %v13919, %v13840
  %v13921 = vadd.f32 %v13920, %v13841
  %v13922 = vadd.f32 %v13921, %v13842
  %v13923 = vadd.f32 %v13922, %v13843
  %v13924 = vadd.f32 %v13923, %v13844
  %v13925 = vadd.f32 %v13924, %v13845
  %v13926 = vadd.f32 %v13925, %v13846
  %v13927 = vadd.f32 %v13926, %v13847
  %v13928 = vadd.f32 %v13927, %v13848
  %v13929 = vadd.f32 %v13928, %v13849
  %v13930 = vadd.f32 %v13929, %v13850
  %v13931 = vadd.f32 %v13930, %v13851
  %v13932 = vadd.f32 %v13931, %v13852
  %v13933 = vadd.f32 %v13932, %v13853
  %v13934 = vadd.f32 %v13933, %v13854
  %v13935 = vadd.f32 %v13934, %v13855
  %v13936 = vadd.f32 %v13935, %v13856
  %v13937 = vadd.f32 %v13936, %v13857
  %v13938 = vadd.f32 %v13937, %v13858
  %v13939 = vadd.f32 %v13938, %v13859
  %v13940 = vadd.f32 %v13939, %v13860
  %v13941 = vadd.f32 %v13940, %v13861
  %v13942 = vadd.f32 %v13941, %v13862
  %v13943 = vadd.f32 %v13942, %v13863
  %v13944 = vadd.f32 %v13943, %v13864
  %v13945 = vadd.f32 %v13944, %v13865
  %v13946 = vadd.f32 %v13945, %v13866
  %v13947 = vadd.f32 %v13946, %v13867
  %v13948 = vadd.f32 %v13947, %v13868
  %v13949 = vadd.f32 %v13948, %v13869
  %v13950 = vadd.f32 %v13949, %v13870
  %v13951 = vadd.f32 %v13950, %v13871
  %v13952 = vadd.f32 %v13951, %v13872
  %v13953 = vadd.f32 %v13952, %v13873
  %v13954 = vadd.f32 %v13953, %v13874
  %v13955 = vadd.f32 %v13954, %v13875
  %v13956 = vadd.f32 %v13955, %v13876
  %v13957 = vadd.f32 %v13956, %v13877
  %v13958 = vrot.slane %v13957, 4
  %v13959 = vadd.f32 %v13957, %v13958
  %v13960 = vrot.slane %v13959, 2
  %v13961 = vadd.f32 %v13959, %v13960
  %v13962 = vrot.slane %v13961, 1
  %v13963 = vadd.f32 %v13961, %v13962
  %v13964 = vmul.f32 %v13796, 0.001953125
  %v13965 = vmul.f32 %v13963, 0.001953125
  %v13966 = vmul.f32 %v13964, %v13964
  %v13967 = vsub.f32 %v13965, %v13966
  %v13968 = vmax.f32 %v13967, 0.0
  %v13969 = vsub.f32 %v13303, %v13964
  %v13970 = vsub.f32 %v13306, %v13964
  %v13971 = vsub.f32 %v13311, %v13964
  %v13972 = vsub.f32 %v13314, %v13964
  %v13973 = vsub.f32 %v13319, %v13964
  %v13974 = vsub.f32 %v13322, %v13964
  %v13975 = vsub.f32 %v13327, %v13964
  %v13976 = vsub.f32 %v13330, %v13964
  %v13977 = vsub.f32 %v13335, %v13964
  %v13978 = vsub.f32 %v13338, %v13964
  %v13979 = vsub.f32 %v13343, %v13964
  %v13980 = vsub.f32 %v13346, %v13964
  %v13981 = vsub.f32 %v13351, %v13964
  %v13982 = vsub.f32 %v13354, %v13964
  %v13983 = vsub.f32 %v13359, %v13964
  %v13984 = vsub.f32 %v13362, %v13964
  %v13985 = vsub.f32 %v13367, %v13964
  %v13986 = vsub.f32 %v13370, %v13964
  %v13987 = vsub.f32 %v13375, %v13964
  %v13988 = vsub.f32 %v13378, %v13964
  %v13989 = vsub.f32 %v13383, %v13964
  %v13990 = vsub.f32 %v13386, %v13964
  %v13991 = vsub.f32 %v13391, %v13964
  %v13992 = vsub.f32 %v13394, %v13964
  %v13993 = vsub.f32 %v13399, %v13964
  %v13994 = vsub.f32 %v13402, %v13964
  %v13995 = vsub.f32 %v13407, %v13964
  %v13996 = vsub.f32 %v13410, %v13964
  %v13997 = vsub.f32 %v13415, %v13964
  %v13998 = vsub.f32 %v13418, %v13964
  %v13999 = vsub.f32 %v13423, %v13964
  %v14000 = vsub.f32 %v13426, %v13964
  %v14001 = vsub.f32 %v13431, %v13964
  %v14002 = vsub.f32 %v13434, %v13964
  %v14003 = vsub.f32 %v13439, %v13964
  %v14004 = vsub.f32 %v13442, %v13964
  %v14005 = vsub.f32 %v13447, %v13964
  %v14006 = vsub.f32 %v13450, %v13964
  %v14007 = vsub.f32 %v13455, %v13964
  %v14008 = vsub.f32 %v13458, %v13964
  %v14009 = vsub.f32 %v13463, %v13964
  %v14010 = vsub.f32 %v13466, %v13964
  %v14011 = vsub.f32 %v13471, %v13964
  %v14012 = vsub.f32 %v13474, %v13964
  %v14013 = vsub.f32 %v13479, %v13964
  %v14014 = vsub.f32 %v13482, %v13964
  %v14015 = vsub.f32 %v13487, %v13964
  %v14016 = vsub.f32 %v13490, %v13964
  %v14017 = vsub.f32 %v13495, %v13964
  %v14018 = vsub.f32 %v13498, %v13964
  %v14019 = vsub.f32 %v13503, %v13964
  %v14020 = vsub.f32 %v13506, %v13964
  %v14021 = vsub.f32 %v13511, %v13964
  %v14022 = vsub.f32 %v13514, %v13964
  %v14023 = vsub.f32 %v13519, %v13964
  %v14024 = vsub.f32 %v13522, %v13964
  %v14025 = vsub.f32 %v13527, %v13964
  %v14026 = vsub.f32 %v13530, %v13964
  %v14027 = vsub.f32 %v13535, %v13964
  %v14028 = vsub.f32 %v13538, %v13964
  %v14029 = vsub.f32 %v13543, %v13964
  %v14030 = vsub.f32 %v13546, %v13964
  %v14031 = vsub.f32 %v13551, %v13964
  %v14032 = vsub.f32 %v13554, %v13964
  %v14033 = vsub.f32 %v13559, %v13964
  %v14034 = vsub.f32 %v13562, %v13964
  %v14035 = vsub.f32 %v13567, %v13964
  %v14036 = vsub.f32 %v13570, %v13964
  %v14037 = vsub.f32 %v13575, %v13964
  %v14038 = vsub.f32 %v13578, %v13964
  %v14039 = vsub.f32 %v13583, %v13964
  %v14040 = vsub.f32 %v13586, %v13964
  %v14041 = vsub.f32 %v13591, %v13964
  %v14042 = vsub.f32 %v13594, %v13964
  %v14043 = vsub.f32 %v13599, %v13964
  %v14044 = vsub.f32 %v13602, %v13964
  %v14045 = vsub.f32 %v13607, %v13964
  %v14046 = vsub.f32 %v13610, %v13964
  %v14047 = vsub.f32 %v13615, %v13964
  %v14048 = vsub.f32 %v13618, %v13964
  %v14049 = vsub.f32 %v13623, %v13964
  %v14050 = vadd.f32 %v13968, 1e-05
  %v14051 = vrsqrt.pop %v14050
  %v14052 = vmul.f32 %v13969, %v14051
  %v14053 = vmul.f32 %v13970, %v14051
  %v14054 = vmul.f32 %v13971, %v14051
  %v14055 = vmul.f32 %v13972, %v14051
  %v14056 = vmul.f32 %v13973, %v14051
  %v14057 = vmul.f32 %v13974, %v14051
  %v14058 = vmul.f32 %v13975, %v14051
  %v14059 = vmul.f32 %v13976, %v14051
  %v14060 = vmul.f32 %v13977, %v14051
  %v14061 = vmul.f32 %v13978, %v14051
  %v14062 = vmul.f32 %v13979, %v14051
  %v14063 = vmul.f32 %v13980, %v14051
  %v14064 = vmul.f32 %v13981, %v14051
  %v14065 = vmul.f32 %v13982, %v14051
  %v14066 = vmul.f32 %v13983, %v14051
  %v14067 = vmul.f32 %v13984, %v14051
  %v14068 = vmul.f32 %v13985, %v14051
  %v14069 = vmul.f32 %v13986, %v14051
  %v14070 = vmul.f32 %v13987, %v14051
  %v14071 = vmul.f32 %v13988, %v14051
  %v14072 = vmul.f32 %v13989, %v14051
  %v14073 = vmul.f32 %v13990, %v14051
  %v14074 = vmul.f32 %v13991, %v14051
  %v14075 = vmul.f32 %v13992, %v14051
  %v14076 = vmul.f32 %v13993, %v14051
  %v14077 = vmul.f32 %v13994, %v14051
  %v14078 = vmul.f32 %v13995, %v14051
  %v14079 = vmul.f32 %v13996, %v14051
  %v14080 = vmul.f32 %v13997, %v14051
  %v14081 = vmul.f32 %v13998, %v14051
  %v14082 = vmul.f32 %v13999, %v14051
  %v14083 = vmul.f32 %v14000, %v14051
  %v14084 = vmul.f32 %v14001, %v14051
  %v14085 = vmul.f32 %v14002, %v14051
  %v14086 = vmul.f32 %v14003, %v14051
  %v14087 = vmul.f32 %v14004, %v14051
  %v14088 = vmul.f32 %v14005, %v14051
  %v14089 = vmul.f32 %v14006, %v14051
  %v14090 = vmul.f32 %v14007, %v14051
  %v14091 = vmul.f32 %v14008, %v14051
  %v14092 = vmul.f32 %v14009, %v14051
  %v14093 = vmul.f32 %v14010, %v14051
  %v14094 = vmul.f32 %v14011, %v14051
  %v14095 = vmul.f32 %v14012, %v14051
  %v14096 = vmul.f32 %v14013, %v14051
  %v14097 = vmul.f32 %v14014, %v14051
  %v14098 = vmul.f32 %v14015, %v14051
  %v14099 = vmul.f32 %v14016, %v14051
  %v14100 = vmul.f32 %v14017, %v14051
  %v14101 = vmul.f32 %v14018, %v14051
  %v14102 = vmul.f32 %v14019, %v14051
  %v14103 = vmul.f32 %v14020, %v14051
  %v14104 = vmul.f32 %v14021, %v14051
  %v14105 = vmul.f32 %v14022, %v14051
  %v14106 = vmul.f32 %v14023, %v14051
  %v14107 = vmul.f32 %v14024, %v14051
  %v14108 = vmul.f32 %v14025, %v14051
  %v14109 = vmul.f32 %v14026, %v14051
  %v14110 = vmul.f32 %v14027, %v14051
  %v14111 = vmul.f32 %v14028, %v14051
  %v14112 = vmul.f32 %v14029, %v14051
  %v14113 = vmul.f32 %v14030, %v14051
  %v14114 = vmul.f32 %v14031, %v14051
  %v14115 = vmul.f32 %v14032, %v14051
  %v14116 = vmul.f32 %v14033, %v14051
  %v14117 = vmul.f32 %v14034, %v14051
  %v14118 = vmul.f32 %v14035, %v14051
  %v14119 = vmul.f32 %v14036, %v14051
  %v14120 = vmul.f32 %v14037, %v14051
  %v14121 = vmul.f32 %v14038, %v14051
  %v14122 = vmul.f32 %v14039, %v14051
  %v14123 = vmul.f32 %v14040, %v14051
  %v14124 = vmul.f32 %v14041, %v14051
  %v14125 = vmul.f32 %v14042, %v14051
  %v14126 = vmul.f32 %v14043, %v14051
  %v14127 = vmul.f32 %v14044, %v14051
  %v14128 = vmul.f32 %v14045, %v14051
  %v14129 = vmul.f32 %v14046, %v14051
  %v14130 = vmul.f32 %v14047, %v14051
  %v14131 = vmul.f32 %v14048, %v14051
  %v14132 = vmul.f32 %v14049, %v14051
  %v14134 = vlaneseq
  %v14135 = vshrl.u32 %v14134, 7
  %v14136 = vsub.s32 0, %v14135
  %v14137 = vrot.slane %v13628, %v14136
  %v14139 = vmul.f32 %v14052, %v14137
  %v14140 = vmul.f32 %v14053, %v14137
  %v14141 = vmul.f32 %v14054, %v14137
  %v14142 = vmul.f32 %v14055, %v14137
  %v14143 = vmul.f32 %v14056, %v14137
  %v14144 = vmul.f32 %v14057, %v14137
  %v14145 = vmul.f32 %v14058, %v14137
  %v14146 = vmul.f32 %v14059, %v14137
  %v14147 = vmul.f32 %v14060, %v14137
  %v14148 = vmul.f32 %v14061, %v14137
  %v14149 = vmul.f32 %v14062, %v14137
  %v14150 = vmul.f32 %v14063, %v14137
  %v14151 = vmul.f32 %v14064, %v14137
  %v14152 = vmul.f32 %v14065, %v14137
  %v14153 = vmul.f32 %v14066, %v14137
  %v14154 = vmul.f32 %v14067, %v14137
  %v14155 = vmul.f32 %v14068, %v14137
  %v14156 = vmul.f32 %v14069, %v14137
  %v14157 = vmul.f32 %v14070, %v14137
  %v14158 = vmul.f32 %v14071, %v14137
  %v14159 = vmul.f32 %v14072, %v14137
  %v14160 = vmul.f32 %v14073, %v14137
  %v14161 = vmul.f32 %v14074, %v14137
  %v14162 = vmul.f32 %v14075, %v14137
  %v14163 = vmul.f32 %v14076, %v14137
  %v14164 = vmul.f32 %v14077, %v14137
  %v14165 = vmul.f32 %v14078, %v14137
  %v14166 = vmul.f32 %v14079, %v14137
  %v14167 = vmul.f32 %v14080, %v14137
  %v14168 = vmul.f32 %v14081, %v14137
  %v14169 = vmul.f32 %v14082, %v14137
  %v14170 = vmul.f32 %v14083, %v14137
  %v14171 = vmul.f32 %v14084, %v14137
  %v14172 = vmul.f32 %v14085, %v14137
  %v14173 = vmul.f32 %v14086, %v14137
  %v14174 = vmul.f32 %v14087, %v14137
  %v14175 = vmul.f32 %v14088, %v14137
  %v14176 = vmul.f32 %v14089, %v14137
  %v14177 = vmul.f32 %v14090, %v14137
  %v14178 = vmul.f32 %v14091, %v14137
  %v14179 = vmul.f32 %v14092, %v14137
  %v14180 = vmul.f32 %v14093, %v14137
  %v14181 = vmul.f32 %v14094, %v14137
  %v14182 = vmul.f32 %v14095, %v14137
  %v14183 = vmul.f32 %v14096, %v14137
  %v14184 = vmul.f32 %v14097, %v14137
  %v14185 = vmul.f32 %v14098, %v14137
  %v14186 = vmul.f32 %v14099, %v14137
  %v14187 = vmul.f32 %v14100, %v14137
  %v14188 = vmul.f32 %v14101, %v14137
  %v14189 = vmul.f32 %v14102, %v14137
  %v14190 = vmul.f32 %v14103, %v14137
  %v14191 = vmul.f32 %v14104, %v14137
  %v14192 = vmul.f32 %v14105, %v14137
  %v14193 = vmul.f32 %v14106, %v14137
  %v14194 = vmul.f32 %v14107, %v14137
  %v14195 = vmul.f32 %v14108, %v14137
  %v14196 = vmul.f32 %v14109, %v14137
  %v14197 = vmul.f32 %v14110, %v14137
  %v14198 = vmul.f32 %v14111, %v14137
  %v14199 = vmul.f32 %v14112, %v14137
  %v14200 = vmul.f32 %v14113, %v14137
  %v14201 = vmul.f32 %v14114, %v14137
  %v14202 = vmul.f32 %v14115, %v14137
  %v14203 = vmul.f32 %v14116, %v14137
  %v14204 = vmul.f32 %v14117, %v14137
  %v14205 = vmul.f32 %v14118, %v14137
  %v14206 = vmul.f32 %v14119, %v14137
  %v14207 = vmul.f32 %v14120, %v14137
  %v14208 = vmul.f32 %v14121, %v14137
  %v14209 = vmul.f32 %v14122, %v14137
  %v14210 = vmul.f32 %v14123, %v14137
  %v14211 = vmul.f32 %v14124, %v14137
  %v14212 = vmul.f32 %v14125, %v14137
  %v14213 = vmul.f32 %v14126, %v14137
  %v14214 = vmul.f32 %v14127, %v14137
  %v14215 = vmul.f32 %v14128, %v14137
  %v14216 = vmul.f32 %v14129, %v14137
  %v14217 = vmul.f32 %v14130, %v14137
  %v14218 = vmul.f32 %v14131, %v14137
  %v14219 = vmul.f32 %v14132, %v14137
  %v14221 = vlaneseq
  %v14222 = vshrl.u32 %v14221, 7
  %v14223 = vsub.s32 0, %v14222
  %v14224 = vrot.slane %v13629, %v14223
  %v14226 = vadd.f32 %v14139, %v14224
  %v14227 = vadd.f32 %v14140, %v14224
  %v14228 = vadd.f32 %v14141, %v14224
  %v14229 = vadd.f32 %v14142, %v14224
  %v14230 = vadd.f32 %v14143, %v14224
  %v14231 = vadd.f32 %v14144, %v14224
  %v14232 = vadd.f32 %v14145, %v14224
  %v14233 = vadd.f32 %v14146, %v14224
  %v14234 = vadd.f32 %v14147, %v14224
  %v14235 = vadd.f32 %v14148, %v14224
  %v14236 = vadd.f32 %v14149, %v14224
  %v14237 = vadd.f32 %v14150, %v14224
  %v14238 = vadd.f32 %v14151, %v14224
  %v14239 = vadd.f32 %v14152, %v14224
  %v14240 = vadd.f32 %v14153, %v14224
  %v14241 = vadd.f32 %v14154, %v14224
  %v14242 = vadd.f32 %v14155, %v14224
  %v14243 = vadd.f32 %v14156, %v14224
  %v14244 = vadd.f32 %v14157, %v14224
  %v14245 = vadd.f32 %v14158, %v14224
  %v14246 = vadd.f32 %v14159, %v14224
  %v14247 = vadd.f32 %v14160, %v14224
  %v14248 = vadd.f32 %v14161, %v14224
  %v14249 = vadd.f32 %v14162, %v14224
  %v14250 = vadd.f32 %v14163, %v14224
  %v14251 = vadd.f32 %v14164, %v14224
  %v14252 = vadd.f32 %v14165, %v14224
  %v14253 = vadd.f32 %v14166, %v14224
  %v14254 = vadd.f32 %v14167, %v14224
  %v14255 = vadd.f32 %v14168, %v14224
  %v14256 = vadd.f32 %v14169, %v14224
  %v14257 = vadd.f32 %v14170, %v14224
  %v14258 = vadd.f32 %v14171, %v14224
  %v14259 = vadd.f32 %v14172, %v14224
  %v14260 = vadd.f32 %v14173, %v14224
  %v14261 = vadd.f32 %v14174, %v14224
  %v14262 = vadd.f32 %v14175, %v14224
  %v14263 = vadd.f32 %v14176, %v14224
  %v14264 = vadd.f32 %v14177, %v14224
  %v14265 = vadd.f32 %v14178, %v14224
  %v14266 = vadd.f32 %v14179, %v14224
  %v14267 = vadd.f32 %v14180, %v14224
  %v14268 = vadd.f32 %v14181, %v14224
  %v14269 = vadd.f32 %v14182, %v14224
  %v14270 = vadd.f32 %v14183, %v14224
  %v14271 = vadd.f32 %v14184, %v14224
  %v14272 = vadd.f32 %v14185, %v14224
  %v14273 = vadd.f32 %v14186, %v14224
  %v14274 = vadd.f32 %v14187, %v14224
  %v14275 = vadd.f32 %v14188, %v14224
  %v14276 = vadd.f32 %v14189, %v14224
  %v14277 = vadd.f32 %v14190, %v14224
  %v14278 = vadd.f32 %v14191, %v14224
  %v14279 = vadd.f32 %v14192, %v14224
  %v14280 = vadd.f32 %v14193, %v14224
  %v14281 = vadd.f32 %v14194, %v14224
  %v14282 = vadd.f32 %v14195, %v14224
  %v14283 = vadd.f32 %v14196, %v14224
  %v14284 = vadd.f32 %v14197, %v14224
  %v14285 = vadd.f32 %v14198, %v14224
  %v14286 = vadd.f32 %v14199, %v14224
  %v14287 = vadd.f32 %v14200, %v14224
  %v14288 = vadd.f32 %v14201, %v14224
  %v14289 = vadd.f32 %v14202, %v14224
  %v14290 = vadd.f32 %v14203, %v14224
  %v14291 = vadd.f32 %v14204, %v14224
  %v14292 = vadd.f32 %v14205, %v14224
  %v14293 = vadd.f32 %v14206, %v14224
  %v14294 = vadd.f32 %v14207, %v14224
  %v14295 = vadd.f32 %v14208, %v14224
  %v14296 = vadd.f32 %v14209, %v14224
  %v14297 = vadd.f32 %v14210, %v14224
  %v14298 = vadd.f32 %v14211, %v14224
  %v14299 = vadd.f32 %v14212, %v14224
  %v14300 = vadd.f32 %v14213, %v14224
  %v14301 = vadd.f32 %v14214, %v14224
  %v14302 = vadd.f32 %v14215, %v14224
  %v14303 = vadd.f32 %v14216, %v14224
  %v14304 = vadd.f32 %v14217, %v14224
  %v14305 = vadd.f32 %v14218, %v14224
  %v14306 = vadd.f32 %v14219, %v14224
  %v14307 = vadd.f32 %v12798, %v14226
  %v14308 = vadd.f32 %v12799, %v14227
  %v14309 = vadd.f32 %v12800, %v14228
  %v14310 = vadd.f32 %v12801, %v14229
  %v14311 = vadd.f32 %v12802, %v14230
  %v14312 = vadd.f32 %v12803, %v14231
  %v14313 = vadd.f32 %v12804, %v14232
  %v14314 = vadd.f32 %v12805, %v14233
  %v14315 = vadd.f32 %v12806, %v14234
  %v14316 = vadd.f32 %v12807, %v14235
  %v14317 = vadd.f32 %v12808, %v14236
  %v14318 = vadd.f32 %v12809, %v14237
  %v14319 = vadd.f32 %v12810, %v14238
  %v14320 = vadd.f32 %v12811, %v14239
  %v14321 = vadd.f32 %v12812, %v14240
  %v14322 = vadd.f32 %v12813, %v14241
  %v14323 = vadd.f32 %v12814, %v14242
  %v14324 = vadd.f32 %v12815, %v14243
  %v14325 = vadd.f32 %v12816, %v14244
  %v14326 = vadd.f32 %v12817, %v14245
  %v14327 = vadd.f32 %v12818, %v14246
  %v14328 = vadd.f32 %v12819, %v14247
  %v14329 = vadd.f32 %v12820, %v14248
  %v14330 = vadd.f32 %v12821, %v14249
  %v14331 = vadd.f32 %v12822, %v14250
  %v14332 = vadd.f32 %v12823, %v14251
  %v14333 = vadd.f32 %v12824, %v14252
  %v14334 = vadd.f32 %v12825, %v14253
  %v14335 = vadd.f32 %v12826, %v14254
  %v14336 = vadd.f32 %v12827, %v14255
  %v14337 = vadd.f32 %v12828, %v14256
  %v14338 = vadd.f32 %v12829, %v14257
  %v14339 = vadd.f32 %v12830, %v14258
  %v14340 = vadd.f32 %v12831, %v14259
  %v14341 = vadd.f32 %v12832, %v14260
  %v14342 = vadd.f32 %v12833, %v14261
  %v14343 = vadd.f32 %v12834, %v14262
  %v14344 = vadd.f32 %v12835, %v14263
  %v14345 = vadd.f32 %v12836, %v14264
  %v14346 = vadd.f32 %v12837, %v14265
  %v14347 = vadd.f32 %v12838, %v14266
  %v14348 = vadd.f32 %v12839, %v14267
  %v14349 = vadd.f32 %v12840, %v14268
  %v14350 = vadd.f32 %v12841, %v14269
  %v14351 = vadd.f32 %v12842, %v14270
  %v14352 = vadd.f32 %v12843, %v14271
  %v14353 = vadd.f32 %v12844, %v14272
  %v14354 = vadd.f32 %v12845, %v14273
  %v14355 = vadd.f32 %v12846, %v14274
  %v14356 = vadd.f32 %v12847, %v14275
  %v14357 = vadd.f32 %v12848, %v14276
  %v14358 = vadd.f32 %v12849, %v14277
  %v14359 = vadd.f32 %v12850, %v14278
  %v14360 = vadd.f32 %v12851, %v14279
  %v14361 = vadd.f32 %v12852, %v14280
  %v14362 = vadd.f32 %v12853, %v14281
  %v14363 = vadd.f32 %v12854, %v14282
  %v14364 = vadd.f32 %v12855, %v14283
  %v14365 = vadd.f32 %v12856, %v14284
  %v14366 = vadd.f32 %v12857, %v14285
  %v14367 = vadd.f32 %v12858, %v14286
  %v14368 = vadd.f32 %v12859, %v14287
  %v14369 = vadd.f32 %v12860, %v14288
  %v14370 = vadd.f32 %v12861, %v14289
  %v14371 = vadd.f32 %v12862, %v14290
  %v14372 = vadd.f32 %v12863, %v14291
  %v14373 = vadd.f32 %v12864, %v14292
  %v14374 = vadd.f32 %v12865, %v14293
  %v14375 = vadd.f32 %v12866, %v14294
  %v14376 = vadd.f32 %v12867, %v14295
  %v14377 = vadd.f32 %v12868, %v14296
  %v14378 = vadd.f32 %v12869, %v14297
  %v14379 = vadd.f32 %v12870, %v14298
  %v14380 = vadd.f32 %v12871, %v14299
  %v14381 = vadd.f32 %v12872, %v14300
  %v14382 = vadd.f32 %v12873, %v14301
  %v14383 = vadd.f32 %v12874, %v14302
  %v14384 = vadd.f32 %v12875, %v14303
  %v14385 = vadd.f32 %v12876, %v14304
  %v14386 = vadd.f32 %v12877, %v14305
  %v14387 = vadd.f32 %v12878, %v14306
  %v14388 = vmax.f32 %v14307, 0.0
  %v14389 = vmax.f32 %v14308, 0.0
  %v14390 = vmax.f32 %v14309, 0.0
  %v14391 = vmax.f32 %v14310, 0.0
  %v14392 = vmax.f32 %v14311, 0.0
  %v14393 = vmax.f32 %v14312, 0.0
  %v14394 = vmax.f32 %v14313, 0.0
  %v14395 = vmax.f32 %v14314, 0.0
  %v14396 = vmax.f32 %v14315, 0.0
  %v14397 = vmax.f32 %v14316, 0.0
  %v14398 = vmax.f32 %v14317, 0.0
  %v14399 = vmax.f32 %v14318, 0.0
  %v14400 = vmax.f32 %v14319, 0.0
  %v14401 = vmax.f32 %v14320, 0.0
  %v14402 = vmax.f32 %v14321, 0.0
  %v14403 = vmax.f32 %v14322, 0.0
  %v14404 = vmax.f32 %v14323, 0.0
  %v14405 = vmax.f32 %v14324, 0.0
  %v14406 = vmax.f32 %v14325, 0.0
  %v14407 = vmax.f32 %v14326, 0.0
  %v14408 = vmax.f32 %v14327, 0.0
  %v14409 = vmax.f32 %v14328, 0.0
  %v14410 = vmax.f32 %v14329, 0.0
  %v14411 = vmax.f32 %v14330, 0.0
  %v14412 = vmax.f32 %v14331, 0.0
  %v14413 = vmax.f32 %v14332, 0.0
  %v14414 = vmax.f32 %v14333, 0.0
  %v14415 = vmax.f32 %v14334, 0.0
  %v14416 = vmax.f32 %v14335, 0.0
  %v14417 = vmax.f32 %v14336, 0.0
  %v14418 = vmax.f32 %v14337, 0.0
  %v14419 = vmax.f32 %v14338, 0.0
  %v14420 = vmax.f32 %v14339, 0.0
  %v14421 = vmax.f32 %v14340, 0.0
  %v14422 = vmax.f32 %v14341, 0.0
  %v14423 = vmax.f32 %v14342, 0.0
  %v14424 = vmax.f32 %v14343, 0.0
  %v14425 = vmax.f32 %v14344, 0.0
  %v14426 = vmax.f32 %v14345, 0.0
  %v14427 = vmax.f32 %v14346, 0.0
  %v14428 = vmax.f32 %v14347, 0.0
  %v14429 = vmax.f32 %v14348, 0.0
  %v14430 = vmax.f32 %v14349, 0.0
  %v14431 = vmax.f32 %v14350, 0.0
  %v14432 = vmax.f32 %v14351, 0.0
  %v14433 = vmax.f32 %v14352, 0.0
  %v14434 = vmax.f32 %v14353, 0.0
  %v14435 = vmax.f32 %v14354, 0.0
  %v14436 = vmax.f32 %v14355, 0.0
  %v14437 = vmax.f32 %v14356, 0.0
  %v14438 = vmax.f32 %v14357, 0.0
  %v14439 = vmax.f32 %v14358, 0.0
  %v14440 = vmax.f32 %v14359, 0.0
  %v14441 = vmax.f32 %v14360, 0.0
  %v14442 = vmax.f32 %v14361, 0.0
  %v14443 = vmax.f32 %v14362, 0.0
  %v14444 = vmax.f32 %v14363, 0.0
  %v14445 = vmax.f32 %v14364, 0.0
  %v14446 = vmax.f32 %v14365, 0.0
  %v14447 = vmax.f32 %v14366, 0.0
  %v14448 = vmax.f32 %v14367, 0.0
  %v14449 = vmax.f32 %v14368, 0.0
  %v14450 = vmax.f32 %v14369, 0.0
  %v14451 = vmax.f32 %v14370, 0.0
  %v14452 = vmax.f32 %v14371, 0.0
  %v14453 = vmax.f32 %v14372, 0.0
  %v14454 = vmax.f32 %v14373, 0.0
  %v14455 = vmax.f32 %v14374, 0.0
  %v14456 = vmax.f32 %v14375, 0.0
  %v14457 = vmax.f32 %v14376, 0.0
  %v14458 = vmax.f32 %v14377, 0.0
  %v14459 = vmax.f32 %v14378, 0.0
  %v14460 = vmax.f32 %v14379, 0.0
  %v14461 = vmax.f32 %v14380, 0.0
  %v14462 = vmax.f32 %v14381, 0.0
  %v14463 = vmax.f32 %v14382, 0.0
  %v14464 = vmax.f32 %v14383, 0.0
  %v14465 = vmax.f32 %v14384, 0.0
  %v14466 = vmax.f32 %v14385, 0.0
  %v14467 = vmax.f32 %v14386, 0.0
  %v14468 = vmax.f32 %v14387, 0.0
  %14469 = vst [vmem:[%s15] sm:$0xff] %v14388
  %14470 = vst [vmem:[%s15 + $0x8] sm:$0xff] %v14389
  %14471 = vst [vmem:[%s15 + $0x10] sm:$0xff] %v14390
  %14472 = vst [vmem:[%s15 + $0x18] sm:$0xff] %v14391
  %14473 = vst [vmem:[%s15 + $0x20] sm:$0xff] %v14392
  %14474 = vst [vmem:[%s15 + $0x28] sm:$0xff] %v14393
  %14475 = vst [vmem:[%s15 + $0x30] sm:$0xff] %v14394
  %14476 = vst [vmem:[%s15 + $0x38] sm:$0xff] %v14395
  %14477 = vst [vmem:[%s15 + $0x40] sm:$0xff] %v14396
  %14478 = vst [vmem:[%s15 + $0x48] sm:$0xff] %v14397
  %14479 = vst [vmem:[%s15 + $0x50] sm:$0xff] %v14398
  %14480 = vst [vmem:[%s15 + $0x58] sm:$0xff] %v14399
  %14481 = vst [vmem:[%s15 + $0x60] sm:$0xff] %v14400
  %14482 = vst [vmem:[%s15 + $0x68] sm:$0xff] %v14401
  %14483 = vst [vmem:[%s15 + $0x70] sm:$0xff] %v14402
  %14484 = vst [vmem:[%s15 + $0x78] sm:$0xff] %v14403
  %14485 = vst [vmem:[%s15 + $0x80] sm:$0xff] %v14404
  %14486 = vst [vmem:[%s15 + $0x88] sm:$0xff] %v14405
  %14487 = vst [vmem:[%s15 + $0x90] sm:$0xff] %v14406
  %14488 = vst [vmem:[%s15 + $0x98] sm:$0xff] %v14407
  %14489 = vst [vmem:[%s15 + $0xa0] sm:$0xff] %v14408
  %14490 = vst [vmem:[%s15 + $0xa8] sm:$0xff] %v14409
  %14491 = vst [vmem:[%s15 + $0xb0] sm:$0xff] %v14410
  %14492 = vst [vmem:[%s15 + $0xb8] sm:$0xff] %v14411
  %14493 = vst [vmem:[%s15 + $0xc0] sm:$0xff] %v14412
  %14494 = vst [vmem:[%s15 + $0xc8] sm:$0xff] %v14413
  %14495 = vst [vmem:[%s15 + $0xd0] sm:$0xff] %v14414
  %14496 = vst [vmem:[%s15 + $0xd8] sm:$0xff] %v14415
  %14497 = vst [vmem:[%s15 + $0xe0] sm:$0xff] %v14416
  %14498 = vst [vmem:[%s15 + $0xe8] sm:$0xff] %v14417
  %14499 = vst [vmem:[%s15 + $0xf0] sm:$0xff] %v14418
  %14500 = vst [vmem:[%s15 + $0xf8] sm:$0xff] %v14419
  %14501 = vst [vmem:[%s15 + $0x100] sm:$0xff] %v14420
  %14502 = vst [vmem:[%s15 + $0x108] sm:$0xff] %v14421
  %14503 = vst [vmem:[%s15 + $0x110] sm:$0xff] %v14422
  %14504 = vst [vmem:[%s15 + $0x118] sm:$0xff] %v14423
  %14505 = vst [vmem:[%s15 + $0x120] sm:$0xff] %v14424
  %14506 = vst [vmem:[%s15 + $0x128] sm:$0xff] %v14425
  %14507 = vst [vmem:[%s15 + $0x130] sm:$0xff] %v14426
  %14508 = vst [vmem:[%s15 + $0x138] sm:$0xff] %v14427
  %14509 = vst [vmem:[%s15 + $0x140] sm:$0xff] %v14428
  %14510 = vst [vmem:[%s15 + $0x148] sm:$0xff] %v14429
  %14511 = vst [vmem:[%s15 + $0x150] sm:$0xff] %v14430
  %14512 = vst [vmem:[%s15 + $0x158] sm:$0xff] %v14431
  %14513 = vst [vmem:[%s15 + $0x160] sm:$0xff] %v14432
  %14514 = vst [vmem:[%s15 + $0x168] sm:$0xff] %v14433
  %14515 = vst [vmem:[%s15 + $0x170] sm:$0xff] %v14434
  %14516 = vst [vmem:[%s15 + $0x178] sm:$0xff] %v14435
  %14517 = vst [vmem:[%s15 + $0x180] sm:$0xff] %v14436
  %14518 = vst [vmem:[%s15 + $0x188] sm:$0xff] %v14437
  %14519 = vst [vmem:[%s15 + $0x190] sm:$0xff] %v14438
  %14520 = vst [vmem:[%s15 + $0x198] sm:$0xff] %v14439
  %14521 = vst [vmem:[%s15 + $0x1a0] sm:$0xff] %v14440
  %14522 = vst [vmem:[%s15 + $0x1a8] sm:$0xff] %v14441
  %14523 = vst [vmem:[%s15 + $0x1b0] sm:$0xff] %v14442
  %14524 = vst [vmem:[%s15 + $0x1b8] sm:$0xff] %v14443
  %14525 = vst [vmem:[%s15 + $0x1c0] sm:$0xff] %v14444
  %14526 = vst [vmem:[%s15 + $0x1c8] sm:$0xff] %v14445
  %14527 = vst [vmem:[%s15 + $0x1d0] sm:$0xff] %v14446
  %14528 = vst [vmem:[%s15 + $0x1d8] sm:$0xff] %v14447
  %14529 = vst [vmem:[%s15 + $0x1e0] sm:$0xff] %v14448
  %14530 = vst [vmem:[%s15 + $0x1e8] sm:$0xff] %v14449
  %14531 = vst [vmem:[%s15 + $0x1f0] sm:$0xff] %v14450
  %14532 = vst [vmem:[%s15 + $0x1f8] sm:$0xff] %v14451
  %14533 = vst [vmem:[%s15 + $0x200] sm:$0xff] %v14452
  %14534 = vst [vmem:[%s15 + $0x208] sm:$0xff] %v14453
  %14535 = vst [vmem:[%s15 + $0x210] sm:$0xff] %v14454
  %14536 = vst [vmem:[%s15 + $0x218] sm:$0xff] %v14455
  %14537 = vst [vmem:[%s15 + $0x220] sm:$0xff] %v14456
  %14538 = vst [vmem:[%s15 + $0x228] sm:$0xff] %v14457
  %14539 = vst [vmem:[%s15 + $0x230] sm:$0xff] %v14458
  %14540 = vst [vmem:[%s15 + $0x238] sm:$0xff] %v14459
  %14541 = vst [vmem:[%s15 + $0x240] sm:$0xff] %v14460
  %14542 = vst [vmem:[%s15 + $0x248] sm:$0xff] %v14461
  %14543 = vst [vmem:[%s15 + $0x250] sm:$0xff] %v14462
  %14544 = vst [vmem:[%s15 + $0x258] sm:$0xff] %v14463
  %14545 = vst [vmem:[%s15 + $0x260] sm:$0xff] %v14464
  %14546 = vst [vmem:[%s15 + $0x268] sm:$0xff] %v14465
  %14547 = vst [vmem:[%s15 + $0x270] sm:$0xff] %v14466
  %14548 = vst [vmem:[%s15 + $0x278] sm:$0xff] %v14467
  %14549 = vst [vmem:[%s15 + $0x280] sm:$0xff] %v14468
  // Predicated region
  $region62: #{bottleneck_forward.1} parent=0 // pred_check
    _
  $region63: #{bottleneck_forward.1} parent=0 // pred_check_branch
    %14551 = sbr.rel (0) target = $region65
  $region64: #{bottleneck_forward.1} parent=0 // pred_region
    _
  $region65: #{bottleneck_forward.1} parent=0 // pred_fallthru
    _
  // Predicated region
  $region66: #{bottleneck_forward.1} parent=0 // pred_check
    _
  $region67: #{bottleneck_forward.1} parent=0 // pred_check_branch
    %14553 = sbr.rel (0) target = $region69
  $region68: #{bottleneck_forward.1} parent=0 // pred_region
    _
  $region69: #{bottleneck_forward.1} parent=0 // pred_fallthru
    _

</llo_original>
